<compile_context>
chip_gen: v5e
topology: v5e:2x2
jax: 0.10.0
libtpu: 0.0.40
codegen_flags: <defaults>
</compile_context>

<pallas_src>
import functools
import math

import jax
import jax.numpy as jnp
from jax.experimental import pallas as pl
from jax.experimental.pallas import tpu as pltpu

# ----------------------------- model config ---------------------------------
C = 3
H = W = 16
PATCH = 8
HP, WP = H // PATCH, W // PATCH
NUM_PATCHES = HP * WP                 # 4
SEQ = NUM_PATCHES + 1                 # 5  (class token + patches)
PATCH_DIM = C * PATCH * PATCH         # 192
PATCH_DIM_PAD = 256                   # padded to 2 full 128-lane tiles
HIDDEN = 128
HEADS = 2
HEAD_DIM = HIDDEN // HEADS            # 64
MLP_DIM = 256
LAYERS = 2
EPS = 1e-5

# text tower (plain-JAX stand-in for clip_model.text_model)
VOCAB = 64
TEXT_MAX_LEN = 16
TEXT_LAYERS = 2

IMG_BLK = 64                          # images per grid step (64*SEQ = 320 MXU rows)


# ------------------------------ shared helpers -------------------------------
def _ln(x, g, b):
    mu = jnp.mean(x, axis=-1, keepdims=True)
    var = jnp.mean((x - mu) ** 2, axis=-1, keepdims=True)
    return (x - mu) * jax.lax.rsqrt(var + EPS) * g + b


def _round_up(x, m):
    return ((x + m - 1) // m) * m


# ------------------------------ Pallas kernel --------------------------------
def _vit_kernel(patches_ref, w_patch_ref, pos_cls_ref,
                ln_pre_g_ref, ln_pre_b_ref,
                ln1_g_ref, ln1_b_ref,
                wq_ref, bq_ref, wk_ref, bk_ref, wv_ref, bv_ref, wo_ref, bo_ref,
                ln2_g_ref, ln2_b_ref,
                w1_ref, b1_ref, w2_ref, b2_ref,
                out_ref):
    bs = patches_ref.shape[0]          # IMG_BLK * SEQ flattened rows
    nimg = bs // SEQ

    # Patch embedding: one big (bs, 256) bf16 @ (256, 128) bf16 matmul, f32 acc.
    # Row 0 of every image is an all-zero "class token" row, so the matmul
    # directly yields SEQ rows per image; pos_cls already folds cls into pos[0].
    x = jnp.dot(patches_ref[...], w_patch_ref[...],
                preferred_element_type=jnp.float32)
    x = x + pos_cls_ref[...]
    x = _ln(x, ln_pre_g_ref[...], ln_pre_b_ref[...])

    for l in range(LAYERS):                                   # static unroll
        # ---------------- multi-head self-attention ----------------
        h = _ln(x, ln1_g_ref[l], ln1_b_ref[l])
        hb = h.astype(jnp.bfloat16)
        attn = None
        for hd in range(HEADS):                               # static unroll
            i = l * HEADS + hd
            # Per-head projections against pre-split weights (no lane slicing).
            qh = jnp.dot(hb, wq_ref[i], preferred_element_type=jnp.float32) + bq_ref[i]
            kh = jnp.dot(hb, wk_ref[i], preferred_element_type=jnp.float32) + bk_ref[i]
            vh = jnp.dot(hb, wv_ref[i], preferred_element_type=jnp.float32) + bv_ref[i]
            q3 = qh.reshape(nimg, SEQ, HEAD_DIM).astype(jnp.bfloat16)
            k3 = kh.reshape(nimg, SEQ, HEAD_DIM).astype(jnp.bfloat16)
            v3 = vh.reshape(nimg, SEQ, HEAD_DIM).astype(jnp.bfloat16)
            # Scores / softmax batched over the images of this block.
            # (1/sqrt(head_dim) is folded into wq/bq in the wrapper.)
            s = jnp.einsum('bqd,bkd->bqk', q3, k3,
                           preferred_element_type=jnp.float32)
            s = s - jnp.max(s, axis=-1, keepdims=True)
            p = jnp.exp(s)
            p = p * pl.reciprocal(jnp.sum(p, axis=-1, keepdims=True), approx=True)
            o3 = jnp.einsum('bqk,bkd->bqd', p.astype(jnp.bfloat16), v3,
                            preferred_element_type=jnp.float32)
            o = o3.reshape(bs, HEAD_DIM).astype(jnp.bfloat16)
            proj = jnp.dot(o, wo_ref[i], preferred_element_type=jnp.float32)
            attn = proj if attn is None else attn + proj
        x = x + attn + bo_ref[l]
        # --------------------------- MLP ----------------------------
        h = _ln(x, ln2_g_ref[l], ln2_b_ref[l])
        h1 = jnp.dot(h.astype(jnp.bfloat16), w1_ref[l],
                     preferred_element_type=jnp.float32) + b1_ref[l]
        h1 = h1 * jax.nn.sigmoid(1.702 * h1)                  # CLIP quick_gelu (f32)
        h2 = jnp.dot(h1.astype(jnp.bfloat16), w2_ref[l],
                     preferred_element_type=jnp.float32) + b2_ref[l]
        x = x + h2

    out_ref[...] = x.astype(out_ref.dtype)


def _full_spec(shape):
    nd = len(shape)
    return pl.BlockSpec(shape, lambda n: (0,) * nd)   # replicated weight block


def _prepare_vision_kernel_params(params, img_blk):
    """One-time layout plumbing: head split, scale fold, 192->256 pad, bf16 cast."""
    bf16 = jnp.bfloat16
    scale = 1.0 / math.sqrt(HEAD_DIM)

    def split_in(w):    # (L,H,H) columns -> (L*HEADS, H, HEAD_DIM)
        return (w.reshape(LAYERS, HIDDEN, HEADS, HEAD_DIM)
                 .transpose(0, 2, 1, 3)
                 .reshape(LAYERS * HEADS, HIDDEN, HEAD_DIM))

    def split_b(b):     # (L,1,H) -> (L*HEADS, 1, HEAD_DIM)
        return (b.reshape(LAYERS, 1, HEADS, HEAD_DIM)
                 .transpose(0, 2, 1, 3)
                 .reshape(LAYERS * HEADS, 1, HEAD_DIM))

    def split_out(w):   # (L,H,H) rows -> (L*HEADS, HEAD_DIM, H)
        return w.reshape(LAYERS * HEADS, HEAD_DIM, HIDDEN)

    w_patch = jnp.pad(params["w_patch"], ((0, PATCH_DIM_PAD - PATCH_DIM), (0, 0)))
    pos_cls = params["pos"].at[0, :].add(params["cls"][0, :])
    pos_cls_tiled = jnp.tile(pos_cls, (img_blk, 1)).astype(jnp.float32)

    return [
        w_patch.astype(bf16),
        pos_cls_tiled,
        params["ln_pre_g"], params["ln_pre_b"],
        params["ln1_g"], params["ln1_b"],
        split_in(params["wq"] * scale).astype(bf16), split_b(params["bq"] * scale),
        split_in(params["wk"]).astype(bf16), split_b(params["bk"]),
        split_in(params["wv"]).astype(bf16), split_b(params["bv"]),
        split_out(params["wo"]).astype(bf16), params["bo"],
        params["ln2_g"], params["ln2_b"],
        params["w1"].astype(bf16), params["b1"],
        params["w2"].astype(bf16), params["b2"],
    ]


def clip_vision_last_hidden_state(pixel_values_flat, params, img_blk=IMG_BLK):
    """(N, C, H, W) f32 -> last_hidden_state (N, SEQ, HIDDEN) f32 via one Pallas kernel."""
    n = pixel_values_flat.shape[0]
    img_blk = min(img_blk, _round_up(n, 16))        # don't over-pad tiny batches
    grid_n = (n + img_blk - 1) // img_blk
    n_pad = grid_n * img_blk

    # im2col patchify NCHW -> (N, NUM_PATCHES, C*ph*pw); prepend a zero
    # class-token row per image and zero-pad the contraction dim 192 -> 256.
    x = pixel_values_flat.astype(jnp.float32).reshape(n, C, HP, PATCH, WP, PATCH)
    patches = x.transpose(0, 2, 4, 1, 3, 5).reshape(n, NUM_PATCHES, PATCH_DIM)
    patches = jnp.pad(patches, ((0, n_pad - n), (1, 0), (0, PATCH_DIM_PAD - PATCH_DIM)))
    patches_flat = patches.reshape(n_pad * SEQ, PATCH_DIM_PAD).astype(jnp.bfloat16)

    ordered = _prepare_vision_kernel_params(params, img_blk)
    in_specs = [pl.BlockSpec((img_blk * SEQ, PATCH_DIM_PAD), lambda i: (i, 0))]
    in_specs += [_full_spec(p.shape) for p in ordered]

    out_flat = pl.pallas_call(
        _vit_kernel,
        out_shape=jax.ShapeDtypeStruct((n_pad * SEQ, HIDDEN), jnp.float32),
        grid_spec=pltpu.PrefetchScalarGridSpec(
            num_scalar_prefetch=0,
            grid=(grid_n,),
            in_specs=in_specs,
            out_specs=pl.BlockSpec((img_blk * SEQ, HIDDEN), lambda i: (i, 0)),
        ),
        compiler_params=pltpu.CompilerParams(dimension_semantics=("parallel",)),
    )(patches_flat, *ordered)

    return out_flat.reshape(n_pad, SEQ, HIDDEN)[:n]


# -------------------- pure-JAX f32 reference (validation) --------------------
def clip_vision_reference(pixel_values_flat, params):
    n = pixel_values_flat.shape[0]
    x = pixel_values_flat.astype(jnp.float32).reshape(n, C, HP, PATCH, WP, PATCH)
    patches = x.transpose(0, 2, 4, 1, 3, 5).reshape(n, NUM_PATCHES, PATCH_DIM)
    emb = jnp.einsum('npd,dh->nph', patches, params["w_patch"])
    cls = jnp.broadcast_to(params["cls"][None], (n, 1, HIDDEN))
    x = jnp.concatenate([cls, emb], axis=1) + params["pos"][None]
    x = _ln(x, params["ln_pre_g"], params["ln_pre_b"])
    scale = 1.0 / math.sqrt(HEAD_DIM)
    for l in range(LAYERS):
        h = _ln(x, params["ln1_g"][l], params["ln1_b"][l])
        q = (h @ params["wq"][l] + params["bq"][l]).reshape(n, SEQ, HEADS, HEAD_DIM)
        k = (h @ params["wk"][l] + params["bk"][l]).reshape(n, SEQ, HEADS, HEAD_DIM)
        v = (h @ params["wv"][l] + params["bv"][l]).reshape(n, SEQ, HEADS, HEAD_DIM)
        s = jnp.einsum('nqhd,nkhd->nhqk', q, k) * scale
        p = jax.nn.softmax(s, axis=-1)
        o = jnp.einsum('nhqk,nkhd->nqhd', p, v).reshape(n, SEQ, HIDDEN)
        x = x + o @ params["wo"][l] + params["bo"][l]
        h = _ln(x, params["ln2_g"][l], params["ln2_b"][l])
        h1 = h @ params["w1"][l] + params["b1"][l]
        h1 = h1 * jax.nn.sigmoid(1.702 * h1)
        x = x + h1 @ params["w2"][l] + params["b2"][l]
    return x


# -------------------------- CLIP text tower (plain JAX) -----------------------
def clip_text_last_hidden_state(input_ids_flat, attention_mask_flat, tp):
    # TODO(synk): text tower kept in plain JAX (causal CLIP-style transformer);
    # the vision tower is the Pallas hot path per the perf review.
    m, seq_len = input_ids_flat.shape
    x = tp["tok"][input_ids_flat] + tp["pos"][None, :seq_len, :]
    causal = jnp.where(jnp.arange(seq_len)[:, None] >= jnp.arange(seq_len)[None, :],
                       0.0, -1e9)
    pad = (1.0 - attention_mask_flat.astype(jnp.float32)) * -1e9
    bias = causal[None, None, :, :] + pad[:, None, None, :]
    scale = 1.0 / math.sqrt(HEAD_DIM)
    for l in range(TEXT_LAYERS):
        h = _ln(x, tp["ln1_g"][l], tp["ln1_b"][l])
        q = (h @ tp["wq"][l] + tp["bq"][l]).reshape(m, seq_len, HEADS, HEAD_DIM)
        k = (h @ tp["wk"][l] + tp["bk"][l]).reshape(m, seq_len, HEADS, HEAD_DIM)
        v = (h @ tp["wv"][l] + tp["bv"][l]).reshape(m, seq_len, HEADS, HEAD_DIM)
        s = jnp.einsum('mqhd,mkhd->mhqk', q, k) * scale + bias
        p = jax.nn.softmax(s, axis=-1)
        o = jnp.einsum('mhqk,mkhd->mqhd', p, v).reshape(m, seq_len, HIDDEN)
        x = x + o @ tp["wo"][l] + tp["bo"][l]
        h = _ln(x, tp["ln2_g"][l], tp["ln2_b"][l])
        h1 = h @ tp["w1"][l] + tp["b1"][l]
        h1 = h1 * jax.nn.sigmoid(1.702 * h1)
        x = x + h1 @ tp["w2"][l] + tp["b2"][l]
    return _ln(x, tp["lnf_g"], tp["lnf_b"])


# ------------------------- parameter initialization --------------------------
def init_params(key):
    ks = jax.random.split(key, 9)
    s = 0.02
    return {
        "w_patch": s * jax.random.normal(ks[0], (PATCH_DIM, HIDDEN), jnp.float32),
        "cls":     s * jax.random.normal(ks[1], (1, HIDDEN), jnp.float32),
        "pos":     s * jax.random.normal(ks[2], (SEQ, HIDDEN), jnp.float32),
        "ln_pre_g": jnp.ones((1, HIDDEN), jnp.float32),
        "ln_pre_b": jnp.zeros((1, HIDDEN), jnp.float32),
        "ln1_g": jnp.ones((LAYERS, 1, HIDDEN), jnp.float32),
        "ln1_b": jnp.zeros((LAYERS, 1, HIDDEN), jnp.float32),
        "wq": s * jax.random.normal(ks[3], (LAYERS, HIDDEN, HIDDEN), jnp.float32),
        "bq": jnp.zeros((LAYERS, 1, HIDDEN), jnp.float32),
        "wk": s * jax.random.normal(ks[4], (LAYERS, HIDDEN, HIDDEN), jnp.float32),
        "bk": jnp.zeros((LAYERS, 1, HIDDEN), jnp.float32),
        "wv": s * jax.random.normal(ks[5], (LAYERS, HIDDEN, HIDDEN), jnp.float32),
        "bv": jnp.zeros((LAYERS, 1, HIDDEN), jnp.float32),
        "wo": s * jax.random.normal(ks[6], (LAYERS, HIDDEN, HIDDEN), jnp.float32),
        "bo": jnp.zeros((LAYERS, 1, HIDDEN), jnp.float32),
        "ln2_g": jnp.ones((LAYERS, 1, HIDDEN), jnp.float32),
        "ln2_b": jnp.zeros((LAYERS, 1, HIDDEN), jnp.float32),
        "w1": s * jax.random.normal(ks[7], (LAYERS, HIDDEN, MLP_DIM), jnp.float32),
        "b1": jnp.zeros((LAYERS, 1, MLP_DIM), jnp.float32),
        "w2": s * jax.random.normal(ks[8], (LAYERS, MLP_DIM, HIDDEN), jnp.float32),
        "b2": jnp.zeros((LAYERS, 1, HIDDEN), jnp.float32),
    }


def init_text_params(key):
    ks = jax.random.split(key, 8)
    s = 0.02
    return {
        "tok": s * jax.random.normal(ks[0], (VOCAB, HIDDEN), jnp.float32),
        "pos": s * jax.random.normal(ks[1], (TEXT_MAX_LEN, HIDDEN), jnp.float32),
        "ln1_g": jnp.ones((TEXT_LAYERS, 1, HIDDEN), jnp.float32),
        "ln1_b": jnp.zeros((TEXT_LAYERS, 1, HIDDEN), jnp.float32),
        "wq": s * jax.random.normal(ks[2], (TEXT_LAYERS, HIDDEN, HIDDEN), jnp.float32),
        "bq": jnp.zeros((TEXT_LAYERS, 1, HIDDEN), jnp.float32),
        "wk": s * jax.random.normal(ks[3], (TEXT_LAYERS, HIDDEN, HIDDEN), jnp.float32),
        "bk": jnp.zeros((TEXT_LAYERS, 1, HIDDEN), jnp.float32),
        "wv": s * jax.random.normal(ks[4], (TEXT_LAYERS, HIDDEN, HIDDEN), jnp.float32),
        "bv": jnp.zeros((TEXT_LAYERS, 1, HIDDEN), jnp.float32),
        "wo": s * jax.random.normal(ks[5], (TEXT_LAYERS, HIDDEN, HIDDEN), jnp.float32),
        "bo": jnp.zeros((TEXT_LAYERS, 1, HIDDEN), jnp.float32),
        "ln2_g": jnp.ones((TEXT_LAYERS, 1, HIDDEN), jnp.float32),
        "ln2_b": jnp.zeros((TEXT_LAYERS, 1, HIDDEN), jnp.float32),
        "w1": s * jax.random.normal(ks[6], (TEXT_LAYERS, HIDDEN, MLP_DIM), jnp.float32),
        "b1": jnp.zeros((TEXT_LAYERS, 1, MLP_DIM), jnp.float32),
        "w2": s * jax.random.normal(ks[7], (TEXT_LAYERS, MLP_DIM, HIDDEN), jnp.float32),
        "b2": jnp.zeros((TEXT_LAYERS, 1, HIDDEN), jnp.float32),
        "lnf_g": jnp.ones((1, HIDDEN), jnp.float32),
        "lnf_b": jnp.zeros((1, HIDDEN), jnp.float32),
    }


# --------------------------- Encoder2.forward ---------------------------------
def encoder2_forward(pixel_values, input_ids, attention_mask, mention_entity_image_mask,
                     vparams, tparams, *, max_mention_image_num, max_entity_image_num):
    """Mirrors Encoder2.forward with use_attributes=False."""
    batch_size, textual_sequence_num, sequence_len = input_ids.shape
    _, entity_image_num, c, h, w = pixel_values.shape

    reshaped_input_ids = input_ids.reshape(batch_size * textual_sequence_num, -1)
    reshaped_attention_mask = attention_mask.reshape(batch_size * textual_sequence_num, -1)
    reshaped_pixel_values = pixel_values.reshape(batch_size * entity_image_num, c, h, w)

    # clip text_model_output.last_hidden_state  (plain JAX)
    mention_entity_text_attribute_embeds = clip_text_last_hidden_state(
        reshaped_input_ids, reshaped_attention_mask, tparams)
    # clip vision_model_output.last_hidden_state  (Pallas kernel hot path)
    mention_entity_img_embed = clip_vision_last_hidden_state(reshaped_pixel_values, vparams)

    patch_num = mention_entity_img_embed.shape[-2]
    emb = mention_entity_img_embed.reshape(batch_size, entity_image_num, patch_num, -1)

    # split_mention_entity_image_embed (drops the class-token row)
    mm, me = max_mention_image_num, max_entity_image_num
    remaining = patch_num - 1
    real_seq = (entity_image_num - mm) // me
    mention_image_embed = emb[:, 0:mm, 1:, :].reshape(batch_size, 1, mm * remaining, -1)
    entity_image_embeds = emb[:, mm:, 1:, :].reshape(batch_size, real_seq, me * remaining, -1)

    # split_mention_entity_image_mask (keeps ALL patch_num columns, per Encoder2)
    mask = jnp.broadcast_to(mention_entity_image_mask[:, :, None],
                            (batch_size, entity_image_num, patch_num))
    mention_image_mask = mask[:, 0:mm, :].reshape(batch_size, 1, mm * patch_num)
    entity_image_mask = mask[:, mm:, :].reshape(batch_size, real_seq, me * patch_num)

    # use_attributes=False branch: text split + attention split
    text = mention_entity_text_attribute_embeds.reshape(
        batch_size, textual_sequence_num, sequence_len, -1)
    mention_text_embed = text[:, 0:1]
    entity_text_embeds = text[:, 1:]
    mention_text_attention_mask = attention_mask[:, 0:1, :]
    entity_text_attention_mask = attention_mask[:, 1:, :]

    return (mention_text_embed, entity_text_embeds, mention_image_embed, entity_image_embeds,
            mention_text_attention_mask, entity_text_attention_mask, batch_size,
            mention_image_mask, entity_image_mask)


# ---------------------------------- main --------------------------------------
if __name__ == "__main__":
    key = jax.random.PRNGKey(0)
    k_v, k_t, k_pix, k_ids, k_am, k_imask = jax.random.split(key, 6)

    vparams = init_params(k_v)
    tparams = init_text_params(k_t)

    batch_size = 2
    max_mention_image_num = 1
    max_entity_image_num = 2
    real_sequence_num = 2
    image_num = max_mention_image_num + real_sequence_num * max_entity_image_num  # 5
    textual_sequence_num = 1 + real_sequence_num                                   # 3
    sequence_len = 8

    pixel_values = jax.random.normal(k_pix, (batch_size, image_num, C, H, W), jnp.float32)
    input_ids = jax.random.randint(k_ids, (batch_size, textual_sequence_num, sequence_len), 0, VOCAB)
    attention_mask = (jax.random.uniform(k_am, (batch_size, textual_sequence_num, sequence_len)) > 0.2
                      ).astype(jnp.float32).at[..., 0].set(1.0)
    mention_entity_image_mask = (jax.random.uniform(k_imask, (batch_size, image_num)) > 0.3
                                 ).astype(jnp.float32)

    # correctness: Pallas vision tower vs pure-JAX f32 reference (bf16 MXU tolerance)
    flat_pix = pixel_values.reshape(batch_size * image_num, C, H, W)
    vis_ref = clip_vision_reference(flat_pix, vparams)
    vis_ker = clip_vision_last_hidden_state(flat_pix, vparams)
    jax.block_until_ready(vis_ker)
    max_err = float(jnp.max(jnp.abs(vis_ker - vis_ref)))
    assert max_err < 3e-2, f"vision kernel mismatch vs reference: max abs err {max_err}"

    # full Encoder2.forward
    fwd = jax.jit(functools.partial(
        encoder2_forward,
        max_mention_image_num=max_mention_image_num,
        max_entity_image_num=max_entity_image_num))

    (mention_text_embed, entity_text_embeds, mention_image_embed, entity_image_embeds,
     mention_text_attention_mask, entity_text_attention_mask, bsz,
     mention_image_mask, entity_image_mask) = fwd(
        pixel_values, input_ids, attention_mask, mention_entity_image_mask, vparams, tparams)

    for t in (mention_text_embed, entity_text_embeds, mention_image_embed, entity_image_embeds,
              mention_text_attention_mask, entity_text_attention_mask,
              mention_image_mask, entity_image_mask):
        jax.block_until_ready(t)

    remaining = SEQ - 1
    assert mention_text_embed.shape == (batch_size, 1, sequence_len, HIDDEN)
    assert entity_text_embeds.shape == (batch_size, textual_sequence_num - 1, sequence_len, HIDDEN)
    assert mention_image_embed.shape == (batch_size, 1, max_mention_image_num * remaining, HIDDEN)
    assert entity_image_embeds.shape == (batch_size, real_sequence_num,
                                         max_entity_image_num * remaining, HIDDEN)
    assert mention_text_attention_mask.shape == (batch_size, 1, sequence_len)
    assert entity_text_attention_mask.shape == (batch_size, textual_sequence_num - 1, sequence_len)
    assert mention_image_mask.shape == (batch_size, 1, max_mention_image_num * SEQ)
    assert entity_image_mask.shape == (batch_size, real_sequence_num, max_entity_image_num * SEQ)
    assert bsz == batch_size

    print("KERNEL_OK")
</pallas_src>

<mosaic_0001>
module attributes {stable_mosaic.version = 11 : i64} {
  func.func @_vit_kernel(%arg0: i32, %arg1: memref<80x256xbf16, #tpu.memory_space<vmem>>, %arg2: memref<256x128xbf16, #tpu.memory_space<vmem>>, %arg3: memref<80x128xf32, #tpu.memory_space<vmem>>, %arg4: memref<1x128xf32, #tpu.memory_space<vmem>>, %arg5: memref<1x128xf32, #tpu.memory_space<vmem>>, %arg6: memref<2x1x128xf32, #tpu.memory_space<vmem>>, %arg7: memref<2x1x128xf32, #tpu.memory_space<vmem>>, %arg8: memref<4x128x64xbf16, #tpu.memory_space<vmem>>, %arg9: memref<4x1x64xf32, #tpu.memory_space<vmem>>, %arg10: memref<4x128x64xbf16, #tpu.memory_space<vmem>>, %arg11: memref<4x1x64xf32, #tpu.memory_space<vmem>>, %arg12: memref<4x128x64xbf16, #tpu.memory_space<vmem>>, %arg13: memref<4x1x64xf32, #tpu.memory_space<vmem>>, %arg14: memref<4x64x128xbf16, #tpu.memory_space<vmem>>, %arg15: memref<2x1x128xf32, #tpu.memory_space<vmem>>, %arg16: memref<2x1x128xf32, #tpu.memory_space<vmem>>, %arg17: memref<2x1x128xf32, #tpu.memory_space<vmem>>, %arg18: memref<2x128x256xbf16, #tpu.memory_space<vmem>>, %arg19: memref<2x1x256xf32, #tpu.memory_space<vmem>>, %arg20: memref<2x256x128xbf16, #tpu.memory_space<vmem>>, %arg21: memref<2x1x128xf32, #tpu.memory_space<vmem>>, %arg22: memref<80x128xf32, #tpu.memory_space<vmem>>) attributes {dimension_semantics = [#tpu.dimension_semantics<parallel>], iteration_bounds = array<i64: 1>, scalar_prefetch = 0 : i64, scratch_operands = 0 : i64, tpu.core_type = #tpu.core_type<tc>, window_params = [{transform_indices = @transform_0, window_bounds = array<i64: 80, 256>}, {pipeline_mode = #tpu.pipeline_mode<synchronous>, transform_indices = @transform_1, window_bounds = array<i64: 256, 128>}, {pipeline_mode = #tpu.pipeline_mode<synchronous>, transform_indices = @transform_2, window_bounds = array<i64: 80, 128>}, {pipeline_mode = #tpu.pipeline_mode<synchronous>, transform_indices = @transform_3, window_bounds = array<i64: 1, 128>}, {pipeline_mode = #tpu.pipeline_mode<synchronous>, transform_indices = @transform_4, window_bounds = array<i64: 1, 128>}, {pipeline_mode = #tpu.pipeline_mode<synchronous>, transform_indices = @transform_5, window_bounds = array<i64: 2, 1, 128>}, {pipeline_mode = #tpu.pipeline_mode<synchronous>, transform_indices = @transform_6, window_bounds = array<i64: 2, 1, 128>}, {pipeline_mode = #tpu.pipeline_mode<synchronous>, transform_indices = @transform_7, window_bounds = array<i64: 4, 128, 64>}, {pipeline_mode = #tpu.pipeline_mode<synchronous>, transform_indices = @transform_8, window_bounds = array<i64: 4, 1, 64>}, {pipeline_mode = #tpu.pipeline_mode<synchronous>, transform_indices = @transform_9, window_bounds = array<i64: 4, 128, 64>}, {pipeline_mode = #tpu.pipeline_mode<synchronous>, transform_indices = @transform_10, window_bounds = array<i64: 4, 1, 64>}, {pipeline_mode = #tpu.pipeline_mode<synchronous>, transform_indices = @transform_11, window_bounds = array<i64: 4, 128, 64>}, {pipeline_mode = #tpu.pipeline_mode<synchronous>, transform_indices = @transform_12, window_bounds = array<i64: 4, 1, 64>}, {pipeline_mode = #tpu.pipeline_mode<synchronous>, transform_indices = @transform_13, window_bounds = array<i64: 4, 64, 128>}, {pipeline_mode = #tpu.pipeline_mode<synchronous>, transform_indices = @transform_14, window_bounds = array<i64: 2, 1, 128>}, {pipeline_mode = #tpu.pipeline_mode<synchronous>, transform_indices = @transform_15, window_bounds = array<i64: 2, 1, 128>}, {pipeline_mode = #tpu.pipeline_mode<synchronous>, transform_indices = @transform_16, window_bounds = array<i64: 2, 1, 128>}, {pipeline_mode = #tpu.pipeline_mode<synchronous>, transform_indices = @transform_17, window_bounds = array<i64: 2, 128, 256>}, {pipeline_mode = #tpu.pipeline_mode<synchronous>, transform_indices = @transform_18, window_bounds = array<i64: 2, 1, 256>}, {pipeline_mode = #tpu.pipeline_mode<synchronous>, transform_indices = @transform_19, window_bounds = array<i64: 2, 256, 128>}, {pipeline_mode = #tpu.pipeline_mode<synchronous>, transform_indices = @transform_20, window_bounds = array<i64: 2, 1, 128>}, {transform_indices = @transform_21, window_bounds = array<i64: 80, 128>}]} {
    %c0 = arith.constant 0 : index
    %c0_0 = arith.constant 0 : index
    %0 = vector.load %arg1[%c0, %c0_0] : memref<80x256xbf16, #tpu.memory_space<vmem>>, vector<80x256xbf16>
    %c0_1 = arith.constant 0 : index
    %c0_2 = arith.constant 0 : index
    %1 = vector.load %arg2[%c0_1, %c0_2] : memref<256x128xbf16, #tpu.memory_space<vmem>>, vector<256x128xbf16>
    %cst = arith.constant dense<0.000000e+00> : vector<80x128xf32>
    %2 = tpu.matmul %0, %1, %cst {dimension_numbers = #tpu.dot_dimension_numbers<[1], [0], [0], [1], [0, 0, 1, 1], [], []>} : vector<80x256xbf16>, vector<256x128xbf16>, vector<80x128xf32> -> vector<80x128xf32>
    %c0_3 = arith.constant 0 : index
    %c0_4 = arith.constant 0 : index
    %3 = vector.load %arg3[%c0_3, %c0_4] : memref<80x128xf32, #tpu.memory_space<vmem>>, vector<80x128xf32>
    %4 = arith.addf %2, %3 : vector<80x128xf32>
    %c0_5 = arith.constant 0 : index
    %c0_6 = arith.constant 0 : index
    %5 = vector.load %arg4[%c0_5, %c0_6] : memref<1x128xf32, #tpu.memory_space<vmem>>, vector<1x128xf32>
    %c0_7 = arith.constant 0 : index
    %c0_8 = arith.constant 0 : index
    %6 = vector.load %arg5[%c0_7, %c0_8] : memref<1x128xf32, #tpu.memory_space<vmem>>, vector<1x128xf32>
    %cst_9 = arith.constant dense<0.000000e+00> : vector<80xf32>
    %7 = vector.multi_reduction <add>, %4, %cst_9 [1] : vector<80x128xf32> to vector<80xf32>
    %8 = vector.shape_cast %7 : vector<80xf32> to vector<80x1xf32>
    %cst_10 = arith.constant 1.280000e+02 : f32
    %9 = vector.broadcast %cst_10 : f32 to vector<80x1xf32>
    %10 = arith.divf %8, %9 : vector<80x1xf32>
    %11 = vector.broadcast %10 : vector<80x1xf32> to vector<80x128xf32>
    %12 = arith.subf %4, %11 : vector<80x128xf32>
    %13 = arith.mulf %12, %12 : vector<80x128xf32>
    %cst_11 = arith.constant dense<0.000000e+00> : vector<80xf32>
    %14 = vector.multi_reduction <add>, %13, %cst_11 [1] : vector<80x128xf32> to vector<80xf32>
    %15 = vector.shape_cast %14 : vector<80xf32> to vector<80x1xf32>
    %cst_12 = arith.constant 1.280000e+02 : f32
    %16 = vector.broadcast %cst_12 : f32 to vector<80x1xf32>
    %17 = arith.divf %15, %16 : vector<80x1xf32>
    %18 = vector.broadcast %10 : vector<80x1xf32> to vector<80x128xf32>
    %19 = arith.subf %4, %18 : vector<80x128xf32>
    %cst_13 = arith.constant 9.99999974E-6 : f32
    %20 = vector.broadcast %cst_13 : f32 to vector<80x1xf32>
    %21 = arith.addf %17, %20 : vector<80x1xf32>
    %22 = math.rsqrt %21 : vector<80x1xf32>
    %23 = vector.broadcast %22 : vector<80x1xf32> to vector<80x128xf32>
    %24 = arith.mulf %19, %23 : vector<80x128xf32>
    %25 = vector.broadcast %5 : vector<1x128xf32> to vector<80x128xf32>
    %26 = arith.mulf %24, %25 : vector<80x128xf32>
    %27 = vector.broadcast %6 : vector<1x128xf32> to vector<80x128xf32>
    %28 = arith.addf %26, %27 : vector<80x128xf32>
    %c0_14 = arith.constant 0 : index
    %c0_15 = arith.constant 0 : index
    %c0_16 = arith.constant 0 : index
    %29 = vector.load %arg6[%c0_14, %c0_15, %c0_16] : memref<2x1x128xf32, #tpu.memory_space<vmem>>, vector<1x1x128xf32>
    %30 = vector.shape_cast %29 : vector<1x1x128xf32> to vector<1x128xf32>
    %c0_17 = arith.constant 0 : index
    %c0_18 = arith.constant 0 : index
    %c0_19 = arith.constant 0 : index
    %31 = vector.load %arg7[%c0_17, %c0_18, %c0_19] : memref<2x1x128xf32, #tpu.memory_space<vmem>>, vector<1x1x128xf32>
    %32 = vector.shape_cast %31 : vector<1x1x128xf32> to vector<1x128xf32>
    %cst_20 = arith.constant dense<0.000000e+00> : vector<80xf32>
    %33 = vector.multi_reduction <add>, %28, %cst_20 [1] : vector<80x128xf32> to vector<80xf32>
    %34 = vector.shape_cast %33 : vector<80xf32> to vector<80x1xf32>
    %cst_21 = arith.constant 1.280000e+02 : f32
    %35 = vector.broadcast %cst_21 : f32 to vector<80x1xf32>
    %36 = arith.divf %34, %35 : vector<80x1xf32>
    %37 = vector.broadcast %36 : vector<80x1xf32> to vector<80x128xf32>
    %38 = arith.subf %28, %37 : vector<80x128xf32>
    %39 = arith.mulf %38, %38 : vector<80x128xf32>
    %cst_22 = arith.constant dense<0.000000e+00> : vector<80xf32>
    %40 = vector.multi_reduction <add>, %39, %cst_22 [1] : vector<80x128xf32> to vector<80xf32>
    %41 = vector.shape_cast %40 : vector<80xf32> to vector<80x1xf32>
    %cst_23 = arith.constant 1.280000e+02 : f32
    %42 = vector.broadcast %cst_23 : f32 to vector<80x1xf32>
    %43 = arith.divf %41, %42 : vector<80x1xf32>
    %44 = vector.broadcast %36 : vector<80x1xf32> to vector<80x128xf32>
    %45 = arith.subf %28, %44 : vector<80x128xf32>
    %cst_24 = arith.constant 9.99999974E-6 : f32
    %46 = vector.broadcast %cst_24 : f32 to vector<80x1xf32>
    %47 = arith.addf %43, %46 : vector<80x1xf32>
    %48 = math.rsqrt %47 : vector<80x1xf32>
    %49 = vector.broadcast %48 : vector<80x1xf32> to vector<80x128xf32>
    %50 = arith.mulf %45, %49 : vector<80x128xf32>
    %51 = vector.broadcast %30 : vector<1x128xf32> to vector<80x128xf32>
    %52 = arith.mulf %50, %51 : vector<80x128xf32>
    %53 = vector.broadcast %32 : vector<1x128xf32> to vector<80x128xf32>
    %54 = arith.addf %52, %53 : vector<80x128xf32>
    %55 = arith.truncf %54 : vector<80x128xf32> to vector<80x128xbf16>
    %c0_25 = arith.constant 0 : index
    %c0_26 = arith.constant 0 : index
    %c0_27 = arith.constant 0 : index
    %56 = vector.load %arg8[%c0_25, %c0_26, %c0_27] : memref<4x128x64xbf16, #tpu.memory_space<vmem>>, vector<1x128x64xbf16>
    %57 = vector.shape_cast %56 : vector<1x128x64xbf16> to vector<128x64xbf16>
    %cst_28 = arith.constant dense<0.000000e+00> : vector<80x64xf32>
    %58 = tpu.matmul %55, %57, %cst_28 {dimension_numbers = #tpu.dot_dimension_numbers<[1], [0], [0], [1], [0, 0, 1, 1], [], []>} : vector<80x128xbf16>, vector<128x64xbf16>, vector<80x64xf32> -> vector<80x64xf32>
    %c0_29 = arith.constant 0 : index
    %c0_30 = arith.constant 0 : index
    %c0_31 = arith.constant 0 : index
    %59 = vector.load %arg9[%c0_29, %c0_30, %c0_31] : memref<4x1x64xf32, #tpu.memory_space<vmem>>, vector<1x1x64xf32>
    %60 = vector.shape_cast %59 : vector<1x1x64xf32> to vector<1x64xf32>
    %61 = vector.broadcast %60 : vector<1x64xf32> to vector<80x64xf32>
    %62 = arith.addf %58, %61 : vector<80x64xf32>
    %c0_32 = arith.constant 0 : index
    %c0_33 = arith.constant 0 : index
    %c0_34 = arith.constant 0 : index
    %63 = vector.load %arg10[%c0_32, %c0_33, %c0_34] : memref<4x128x64xbf16, #tpu.memory_space<vmem>>, vector<1x128x64xbf16>
    %64 = vector.shape_cast %63 : vector<1x128x64xbf16> to vector<128x64xbf16>
    %cst_35 = arith.constant dense<0.000000e+00> : vector<80x64xf32>
    %65 = tpu.matmul %55, %64, %cst_35 {dimension_numbers = #tpu.dot_dimension_numbers<[1], [0], [0], [1], [0, 0, 1, 1], [], []>} : vector<80x128xbf16>, vector<128x64xbf16>, vector<80x64xf32> -> vector<80x64xf32>
    %c0_36 = arith.constant 0 : index
    %c0_37 = arith.constant 0 : index
    %c0_38 = arith.constant 0 : index
    %66 = vector.load %arg11[%c0_36, %c0_37, %c0_38] : memref<4x1x64xf32, #tpu.memory_space<vmem>>, vector<1x1x64xf32>
    %67 = vector.shape_cast %66 : vector<1x1x64xf32> to vector<1x64xf32>
    %68 = vector.broadcast %67 : vector<1x64xf32> to vector<80x64xf32>
    %69 = arith.addf %65, %68 : vector<80x64xf32>
    %c0_39 = arith.constant 0 : index
    %c0_40 = arith.constant 0 : index
    %c0_41 = arith.constant 0 : index
    %70 = vector.load %arg12[%c0_39, %c0_40, %c0_41] : memref<4x128x64xbf16, #tpu.memory_space<vmem>>, vector<1x128x64xbf16>
    %71 = vector.shape_cast %70 : vector<1x128x64xbf16> to vector<128x64xbf16>
    %cst_42 = arith.constant dense<0.000000e+00> : vector<80x64xf32>
    %72 = tpu.matmul %55, %71, %cst_42 {dimension_numbers = #tpu.dot_dimension_numbers<[1], [0], [0], [1], [0, 0, 1, 1], [], []>} : vector<80x128xbf16>, vector<128x64xbf16>, vector<80x64xf32> -> vector<80x64xf32>
    %c0_43 = arith.constant 0 : index
    %c0_44 = arith.constant 0 : index
    %c0_45 = arith.constant 0 : index
    %73 = vector.load %arg13[%c0_43, %c0_44, %c0_45] : memref<4x1x64xf32, #tpu.memory_space<vmem>>, vector<1x1x64xf32>
    %74 = vector.shape_cast %73 : vector<1x1x64xf32> to vector<1x64xf32>
    %75 = vector.broadcast %74 : vector<1x64xf32> to vector<80x64xf32>
    %76 = arith.addf %72, %75 : vector<80x64xf32>
    %77 = vector.shape_cast %62 : vector<80x64xf32> to vector<16x5x64xf32>
    %78 = arith.truncf %77 : vector<16x5x64xf32> to vector<16x5x64xbf16>
    %79 = vector.shape_cast %69 : vector<80x64xf32> to vector<16x5x64xf32>
    %80 = arith.truncf %79 : vector<16x5x64xf32> to vector<16x5x64xbf16>
    %81 = vector.shape_cast %76 : vector<80x64xf32> to vector<16x5x64xf32>
    %82 = arith.truncf %81 : vector<16x5x64xf32> to vector<16x5x64xbf16>
    "tpu.trace_start"() <{level = 10 : i32, message = "bqd,bkd->bqk"}> : () -> ()
    %cst_46 = arith.constant dense<0.000000e+00> : vector<16x5x5xf32>
    %83 = tpu.matmul %78, %80, %cst_46 {dimension_numbers = #tpu.dot_dimension_numbers<[2], [2], [1], [1], [0, 0, 0, 1, 1, 1], [0], [0]>} : vector<16x5x64xbf16>, vector<16x5x64xbf16>, vector<16x5x5xf32> -> vector<16x5x5xf32>
    "tpu.trace_stop"() : () -> ()
    %cst_47 = arith.constant dense<0xFF800000> : vector<16x5xf32>
    %84 = vector.multi_reduction <maximumf>, %83, %cst_47 [2] : vector<16x5x5xf32> to vector<16x5xf32>
    %85 = vector.shape_cast %84 : vector<16x5xf32> to vector<16x5x1xf32>
    %86 = vector.broadcast %85 : vector<16x5x1xf32> to vector<16x5x5xf32>
    %87 = arith.subf %83, %86 : vector<16x5x5xf32>
    %88 = math.exp %87 : vector<16x5x5xf32>
    %cst_48 = arith.constant dense<0.000000e+00> : vector<16x5xf32>
    %89 = vector.multi_reduction <add>, %88, %cst_48 [2] : vector<16x5x5xf32> to vector<16x5xf32>
    %90 = vector.shape_cast %89 : vector<16x5xf32> to vector<16x5x1xf32>
    %91 = tpu.reciprocal %90 {approx = true} : vector<16x5x1xf32> -> vector<16x5x1xf32>
    %92 = vector.broadcast %91 : vector<16x5x1xf32> to vector<16x5x5xf32>
    %93 = arith.mulf %88, %92 : vector<16x5x5xf32>
    %94 = arith.truncf %93 : vector<16x5x5xf32> to vector<16x5x5xbf16>
    "tpu.trace_start"() <{level = 10 : i32, message = "bqk,bkd->bqd"}> : () -> ()
    %cst_49 = arith.constant dense<0.000000e+00> : vector<16x5x64xf32>
    %95 = tpu.matmul %94, %82, %cst_49 {dimension_numbers = #tpu.dot_dimension_numbers<[2], [1], [1], [2], [0, 0, 0, 1, 1, 2], [0], [0]>} : vector<16x5x5xbf16>, vector<16x5x64xbf16>, vector<16x5x64xf32> -> vector<16x5x64xf32>
    "tpu.trace_stop"() : () -> ()
    %96 = vector.shape_cast %95 : vector<16x5x64xf32> to vector<80x64xf32>
    %97 = arith.truncf %96 : vector<80x64xf32> to vector<80x64xbf16>
    %c0_50 = arith.constant 0 : index
    %c0_51 = arith.constant 0 : index
    %c0_52 = arith.constant 0 : index
    %98 = vector.load %arg14[%c0_50, %c0_51, %c0_52] : memref<4x64x128xbf16, #tpu.memory_space<vmem>>, vector<1x64x128xbf16>
    %99 = vector.shape_cast %98 : vector<1x64x128xbf16> to vector<64x128xbf16>
    %cst_53 = arith.constant dense<0.000000e+00> : vector<80x128xf32>
    %100 = tpu.matmul %97, %99, %cst_53 {dimension_numbers = #tpu.dot_dimension_numbers<[1], [0], [0], [1], [0, 0, 1, 1], [], []>} : vector<80x64xbf16>, vector<64x128xbf16>, vector<80x128xf32> -> vector<80x128xf32>
    %c1 = arith.constant 1 : index
    %c0_54 = arith.constant 0 : index
    %c0_55 = arith.constant 0 : index
    %101 = vector.load %arg8[%c1, %c0_54, %c0_55] : memref<4x128x64xbf16, #tpu.memory_space<vmem>>, vector<1x128x64xbf16>
    %102 = vector.shape_cast %101 : vector<1x128x64xbf16> to vector<128x64xbf16>
    %cst_56 = arith.constant dense<0.000000e+00> : vector<80x64xf32>
    %103 = tpu.matmul %55, %102, %cst_56 {dimension_numbers = #tpu.dot_dimension_numbers<[1], [0], [0], [1], [0, 0, 1, 1], [], []>} : vector<80x128xbf16>, vector<128x64xbf16>, vector<80x64xf32> -> vector<80x64xf32>
    %c1_57 = arith.constant 1 : index
    %c0_58 = arith.constant 0 : index
    %c0_59 = arith.constant 0 : index
    %104 = vector.load %arg9[%c1_57, %c0_58, %c0_59] : memref<4x1x64xf32, #tpu.memory_space<vmem>>, vector<1x1x64xf32>
    %105 = vector.shape_cast %104 : vector<1x1x64xf32> to vector<1x64xf32>
    %106 = vector.broadcast %105 : vector<1x64xf32> to vector<80x64xf32>
    %107 = arith.addf %103, %106 : vector<80x64xf32>
    %c1_60 = arith.constant 1 : index
    %c0_61 = arith.constant 0 : index
    %c0_62 = arith.constant 0 : index
    %108 = vector.load %arg10[%c1_60, %c0_61, %c0_62] : memref<4x128x64xbf16, #tpu.memory_space<vmem>>, vector<1x128x64xbf16>
    %109 = vector.shape_cast %108 : vector<1x128x64xbf16> to vector<128x64xbf16>
    %cst_63 = arith.constant dense<0.000000e+00> : vector<80x64xf32>
    %110 = tpu.matmul %55, %109, %cst_63 {dimension_numbers = #tpu.dot_dimension_numbers<[1], [0], [0], [1], [0, 0, 1, 1], [], []>} : vector<80x128xbf16>, vector<128x64xbf16>, vector<80x64xf32> -> vector<80x64xf32>
    %c1_64 = arith.constant 1 : index
    %c0_65 = arith.constant 0 : index
    %c0_66 = arith.constant 0 : index
    %111 = vector.load %arg11[%c1_64, %c0_65, %c0_66] : memref<4x1x64xf32, #tpu.memory_space<vmem>>, vector<1x1x64xf32>
    %112 = vector.shape_cast %111 : vector<1x1x64xf32> to vector<1x64xf32>
    %113 = vector.broadcast %112 : vector<1x64xf32> to vector<80x64xf32>
    %114 = arith.addf %110, %113 : vector<80x64xf32>
    %c1_67 = arith.constant 1 : index
    %c0_68 = arith.constant 0 : index
    %c0_69 = arith.constant 0 : index
    %115 = vector.load %arg12[%c1_67, %c0_68, %c0_69] : memref<4x128x64xbf16, #tpu.memory_space<vmem>>, vector<1x128x64xbf16>
    %116 = vector.shape_cast %115 : vector<1x128x64xbf16> to vector<128x64xbf16>
    %cst_70 = arith.constant dense<0.000000e+00> : vector<80x64xf32>
    %117 = tpu.matmul %55, %116, %cst_70 {dimension_numbers = #tpu.dot_dimension_numbers<[1], [0], [0], [1], [0, 0, 1, 1], [], []>} : vector<80x128xbf16>, vector<128x64xbf16>, vector<80x64xf32> -> vector<80x64xf32>
    %c1_71 = arith.constant 1 : index
    %c0_72 = arith.constant 0 : index
    %c0_73 = arith.constant 0 : index
    %118 = vector.load %arg13[%c1_71, %c0_72, %c0_73] : memref<4x1x64xf32, #tpu.memory_space<vmem>>, vector<1x1x64xf32>
    %119 = vector.shape_cast %118 : vector<1x1x64xf32> to vector<1x64xf32>
    %120 = vector.broadcast %119 : vector<1x64xf32> to vector<80x64xf32>
    %121 = arith.addf %117, %120 : vector<80x64xf32>
    %122 = vector.shape_cast %107 : vector<80x64xf32> to vector<16x5x64xf32>
    %123 = arith.truncf %122 : vector<16x5x64xf32> to vector<16x5x64xbf16>
    %124 = vector.shape_cast %114 : vector<80x64xf32> to vector<16x5x64xf32>
    %125 = arith.truncf %124 : vector<16x5x64xf32> to vector<16x5x64xbf16>
    %126 = vector.shape_cast %121 : vector<80x64xf32> to vector<16x5x64xf32>
    %127 = arith.truncf %126 : vector<16x5x64xf32> to vector<16x5x64xbf16>
    "tpu.trace_start"() <{level = 10 : i32, message = "bqd,bkd->bqk"}> : () -> ()
    %cst_74 = arith.constant dense<0.000000e+00> : vector<16x5x5xf32>
    %128 = tpu.matmul %123, %125, %cst_74 {dimension_numbers = #tpu.dot_dimension_numbers<[2], [2], [1], [1], [0, 0, 0, 1, 1, 1], [0], [0]>} : vector<16x5x64xbf16>, vector<16x5x64xbf16>, vector<16x5x5xf32> -> vector<16x5x5xf32>
    "tpu.trace_stop"() : () -> ()
    %cst_75 = arith.constant dense<0xFF800000> : vector<16x5xf32>
    %129 = vector.multi_reduction <maximumf>, %128, %cst_75 [2] : vector<16x5x5xf32> to vector<16x5xf32>
    %130 = vector.shape_cast %129 : vector<16x5xf32> to vector<16x5x1xf32>
    %131 = vector.broadcast %130 : vector<16x5x1xf32> to vector<16x5x5xf32>
    %132 = arith.subf %128, %131 : vector<16x5x5xf32>
    %133 = math.exp %132 : vector<16x5x5xf32>
    %cst_76 = arith.constant dense<0.000000e+00> : vector<16x5xf32>
    %134 = vector.multi_reduction <add>, %133, %cst_76 [2] : vector<16x5x5xf32> to vector<16x5xf32>
    %135 = vector.shape_cast %134 : vector<16x5xf32> to vector<16x5x1xf32>
    %136 = tpu.reciprocal %135 {approx = true} : vector<16x5x1xf32> -> vector<16x5x1xf32>
    %137 = vector.broadcast %136 : vector<16x5x1xf32> to vector<16x5x5xf32>
    %138 = arith.mulf %133, %137 : vector<16x5x5xf32>
    %139 = arith.truncf %138 : vector<16x5x5xf32> to vector<16x5x5xbf16>
    "tpu.trace_start"() <{level = 10 : i32, message = "bqk,bkd->bqd"}> : () -> ()
    %cst_77 = arith.constant dense<0.000000e+00> : vector<16x5x64xf32>
    %140 = tpu.matmul %139, %127, %cst_77 {dimension_numbers = #tpu.dot_dimension_numbers<[2], [1], [1], [2], [0, 0, 0, 1, 1, 2], [0], [0]>} : vector<16x5x5xbf16>, vector<16x5x64xbf16>, vector<16x5x64xf32> -> vector<16x5x64xf32>
    "tpu.trace_stop"() : () -> ()
    %141 = vector.shape_cast %140 : vector<16x5x64xf32> to vector<80x64xf32>
    %142 = arith.truncf %141 : vector<80x64xf32> to vector<80x64xbf16>
    %c1_78 = arith.constant 1 : index
    %c0_79 = arith.constant 0 : index
    %c0_80 = arith.constant 0 : index
    %143 = vector.load %arg14[%c1_78, %c0_79, %c0_80] : memref<4x64x128xbf16, #tpu.memory_space<vmem>>, vector<1x64x128xbf16>
    %144 = vector.shape_cast %143 : vector<1x64x128xbf16> to vector<64x128xbf16>
    %cst_81 = arith.constant dense<0.000000e+00> : vector<80x128xf32>
    %145 = tpu.matmul %142, %144, %cst_81 {dimension_numbers = #tpu.dot_dimension_numbers<[1], [0], [0], [1], [0, 0, 1, 1], [], []>} : vector<80x64xbf16>, vector<64x128xbf16>, vector<80x128xf32> -> vector<80x128xf32>
    %146 = arith.addf %100, %145 : vector<80x128xf32>
    %147 = arith.addf %28, %146 : vector<80x128xf32>
    %c0_82 = arith.constant 0 : index
    %c0_83 = arith.constant 0 : index
    %c0_84 = arith.constant 0 : index
    %148 = vector.load %arg15[%c0_82, %c0_83, %c0_84] : memref<2x1x128xf32, #tpu.memory_space<vmem>>, vector<1x1x128xf32>
    %149 = vector.shape_cast %148 : vector<1x1x128xf32> to vector<1x128xf32>
    %150 = vector.broadcast %149 : vector<1x128xf32> to vector<80x128xf32>
    %151 = arith.addf %147, %150 : vector<80x128xf32>
    %c0_85 = arith.constant 0 : index
    %c0_86 = arith.constant 0 : index
    %c0_87 = arith.constant 0 : index
    %152 = vector.load %arg16[%c0_85, %c0_86, %c0_87] : memref<2x1x128xf32, #tpu.memory_space<vmem>>, vector<1x1x128xf32>
    %153 = vector.shape_cast %152 : vector<1x1x128xf32> to vector<1x128xf32>
    %c0_88 = arith.constant 0 : index
    %c0_89 = arith.constant 0 : index
    %c0_90 = arith.constant 0 : index
    %154 = vector.load %arg17[%c0_88, %c0_89, %c0_90] : memref<2x1x128xf32, #tpu.memory_space<vmem>>, vector<1x1x128xf32>
    %155 = vector.shape_cast %154 : vector<1x1x128xf32> to vector<1x128xf32>
    %cst_91 = arith.constant dense<0.000000e+00> : vector<80xf32>
    %156 = vector.multi_reduction <add>, %151, %cst_91 [1] : vector<80x128xf32> to vector<80xf32>
    %157 = vector.shape_cast %156 : vector<80xf32> to vector<80x1xf32>
    %cst_92 = arith.constant 1.280000e+02 : f32
    %158 = vector.broadcast %cst_92 : f32 to vector<80x1xf32>
    %159 = arith.divf %157, %158 : vector<80x1xf32>
    %160 = vector.broadcast %159 : vector<80x1xf32> to vector<80x128xf32>
    %161 = arith.subf %151, %160 : vector<80x128xf32>
    %162 = arith.mulf %161, %161 : vector<80x128xf32>
    %cst_93 = arith.constant dense<0.000000e+00> : vector<80xf32>
    %163 = vector.multi_reduction <add>, %162, %cst_93 [1] : vector<80x128xf32> to vector<80xf32>
    %164 = vector.shape_cast %163 : vector<80xf32> to vector<80x1xf32>
    %cst_94 = arith.constant 1.280000e+02 : f32
    %165 = vector.broadcast %cst_94 : f32 to vector<80x1xf32>
    %166 = arith.divf %164, %165 : vector<80x1xf32>
    %167 = vector.broadcast %159 : vector<80x1xf32> to vector<80x128xf32>
    %168 = arith.subf %151, %167 : vector<80x128xf32>
    %cst_95 = arith.constant 9.99999974E-6 : f32
    %169 = vector.broadcast %cst_95 : f32 to vector<80x1xf32>
    %170 = arith.addf %166, %169 : vector<80x1xf32>
    %171 = math.rsqrt %170 : vector<80x1xf32>
    %172 = vector.broadcast %171 : vector<80x1xf32> to vector<80x128xf32>
    %173 = arith.mulf %168, %172 : vector<80x128xf32>
    %174 = vector.broadcast %153 : vector<1x128xf32> to vector<80x128xf32>
    %175 = arith.mulf %173, %174 : vector<80x128xf32>
    %176 = vector.broadcast %155 : vector<1x128xf32> to vector<80x128xf32>
    %177 = arith.addf %175, %176 : vector<80x128xf32>
    %178 = arith.truncf %177 : vector<80x128xf32> to vector<80x128xbf16>
    %c0_96 = arith.constant 0 : index
    %c0_97 = arith.constant 0 : index
    %c0_98 = arith.constant 0 : index
    %179 = vector.load %arg18[%c0_96, %c0_97, %c0_98] : memref<2x128x256xbf16, #tpu.memory_space<vmem>>, vector<1x128x256xbf16>
    %180 = vector.shape_cast %179 : vector<1x128x256xbf16> to vector<128x256xbf16>
    %cst_99 = arith.constant dense<0.000000e+00> : vector<80x256xf32>
    %181 = tpu.matmul %178, %180, %cst_99 {dimension_numbers = #tpu.dot_dimension_numbers<[1], [0], [0], [1], [0, 0, 1, 1], [], []>} : vector<80x128xbf16>, vector<128x256xbf16>, vector<80x256xf32> -> vector<80x256xf32>
    %c0_100 = arith.constant 0 : index
    %c0_101 = arith.constant 0 : index
    %c0_102 = arith.constant 0 : index
    %182 = vector.load %arg19[%c0_100, %c0_101, %c0_102] : memref<2x1x256xf32, #tpu.memory_space<vmem>>, vector<1x1x256xf32>
    %183 = vector.shape_cast %182 : vector<1x1x256xf32> to vector<1x256xf32>
    %184 = vector.broadcast %183 : vector<1x256xf32> to vector<80x256xf32>
    %185 = arith.addf %181, %184 : vector<80x256xf32>
    %cst_103 = arith.constant 1.702000e+00 : f32
    %186 = vector.broadcast %cst_103 : f32 to vector<80x256xf32>
    %187 = arith.mulf %186, %185 : vector<80x256xf32>
    %188 = arith.negf %187 : vector<80x256xf32>
    %189 = math.exp %188 : vector<80x256xf32>
    %cst_104 = arith.constant 1.000000e+00 : f32
    %190 = vector.broadcast %cst_104 : f32 to vector<80x256xf32>
    %191 = arith.addf %190, %189 : vector<80x256xf32>
    %192 = arith.divf %190, %191 : vector<80x256xf32>
    %193 = arith.mulf %185, %192 : vector<80x256xf32>
    %194 = arith.truncf %193 : vector<80x256xf32> to vector<80x256xbf16>
    %c0_105 = arith.constant 0 : index
    %c0_106 = arith.constant 0 : index
    %c0_107 = arith.constant 0 : index
    %195 = vector.load %arg20[%c0_105, %c0_106, %c0_107] : memref<2x256x128xbf16, #tpu.memory_space<vmem>>, vector<1x256x128xbf16>
    %196 = vector.shape_cast %195 : vector<1x256x128xbf16> to vector<256x128xbf16>
    %cst_108 = arith.constant dense<0.000000e+00> : vector<80x128xf32>
    %197 = tpu.matmul %194, %196, %cst_108 {dimension_numbers = #tpu.dot_dimension_numbers<[1], [0], [0], [1], [0, 0, 1, 1], [], []>} : vector<80x256xbf16>, vector<256x128xbf16>, vector<80x128xf32> -> vector<80x128xf32>
    %c0_109 = arith.constant 0 : index
    %c0_110 = arith.constant 0 : index
    %c0_111 = arith.constant 0 : index
    %198 = vector.load %arg21[%c0_109, %c0_110, %c0_111] : memref<2x1x128xf32, #tpu.memory_space<vmem>>, vector<1x1x128xf32>
    %199 = vector.shape_cast %198 : vector<1x1x128xf32> to vector<1x128xf32>
    %200 = vector.broadcast %199 : vector<1x128xf32> to vector<80x128xf32>
    %201 = arith.addf %197, %200 : vector<80x128xf32>
    %202 = arith.addf %151, %201 : vector<80x128xf32>
    %c1_112 = arith.constant 1 : index
    %c0_113 = arith.constant 0 : index
    %c0_114 = arith.constant 0 : index
    %203 = vector.load %arg6[%c1_112, %c0_113, %c0_114] : memref<2x1x128xf32, #tpu.memory_space<vmem>>, vector<1x1x128xf32>
    %204 = vector.shape_cast %203 : vector<1x1x128xf32> to vector<1x128xf32>
    %c1_115 = arith.constant 1 : index
    %c0_116 = arith.constant 0 : index
    %c0_117 = arith.constant 0 : index
    %205 = vector.load %arg7[%c1_115, %c0_116, %c0_117] : memref<2x1x128xf32, #tpu.memory_space<vmem>>, vector<1x1x128xf32>
    %206 = vector.shape_cast %205 : vector<1x1x128xf32> to vector<1x128xf32>
    %cst_118 = arith.constant dense<0.000000e+00> : vector<80xf32>
    %207 = vector.multi_reduction <add>, %202, %cst_118 [1] : vector<80x128xf32> to vector<80xf32>
    %208 = vector.shape_cast %207 : vector<80xf32> to vector<80x1xf32>
    %cst_119 = arith.constant 1.280000e+02 : f32
    %209 = vector.broadcast %cst_119 : f32 to vector<80x1xf32>
    %210 = arith.divf %208, %209 : vector<80x1xf32>
    %211 = vector.broadcast %210 : vector<80x1xf32> to vector<80x128xf32>
    %212 = arith.subf %202, %211 : vector<80x128xf32>
    %213 = arith.mulf %212, %212 : vector<80x128xf32>
    %cst_120 = arith.constant dense<0.000000e+00> : vector<80xf32>
    %214 = vector.multi_reduction <add>, %213, %cst_120 [1] : vector<80x128xf32> to vector<80xf32>
    %215 = vector.shape_cast %214 : vector<80xf32> to vector<80x1xf32>
    %cst_121 = arith.constant 1.280000e+02 : f32
    %216 = vector.broadcast %cst_121 : f32 to vector<80x1xf32>
    %217 = arith.divf %215, %216 : vector<80x1xf32>
    %218 = vector.broadcast %210 : vector<80x1xf32> to vector<80x128xf32>
    %219 = arith.subf %202, %218 : vector<80x128xf32>
    %cst_122 = arith.constant 9.99999974E-6 : f32
    %220 = vector.broadcast %cst_122 : f32 to vector<80x1xf32>
    %221 = arith.addf %217, %220 : vector<80x1xf32>
    %222 = math.rsqrt %221 : vector<80x1xf32>
    %223 = vector.broadcast %222 : vector<80x1xf32> to vector<80x128xf32>
    %224 = arith.mulf %219, %223 : vector<80x128xf32>
    %225 = vector.broadcast %204 : vector<1x128xf32> to vector<80x128xf32>
    %226 = arith.mulf %224, %225 : vector<80x128xf32>
    %227 = vector.broadcast %206 : vector<1x128xf32> to vector<80x128xf32>
    %228 = arith.addf %226, %227 : vector<80x128xf32>
    %229 = arith.truncf %228 : vector<80x128xf32> to vector<80x128xbf16>
    %c2 = arith.constant 2 : index
    %c0_123 = arith.constant 0 : index
    %c0_124 = arith.constant 0 : index
    %230 = vector.load %arg8[%c2, %c0_123, %c0_124] : memref<4x128x64xbf16, #tpu.memory_space<vmem>>, vector<1x128x64xbf16>
    %231 = vector.shape_cast %230 : vector<1x128x64xbf16> to vector<128x64xbf16>
    %cst_125 = arith.constant dense<0.000000e+00> : vector<80x64xf32>
    %232 = tpu.matmul %229, %231, %cst_125 {dimension_numbers = #tpu.dot_dimension_numbers<[1], [0], [0], [1], [0, 0, 1, 1], [], []>} : vector<80x128xbf16>, vector<128x64xbf16>, vector<80x64xf32> -> vector<80x64xf32>
    %c2_126 = arith.constant 2 : index
    %c0_127 = arith.constant 0 : index
    %c0_128 = arith.constant 0 : index
    %233 = vector.load %arg9[%c2_126, %c0_127, %c0_128] : memref<4x1x64xf32, #tpu.memory_space<vmem>>, vector<1x1x64xf32>
    %234 = vector.shape_cast %233 : vector<1x1x64xf32> to vector<1x64xf32>
    %235 = vector.broadcast %234 : vector<1x64xf32> to vector<80x64xf32>
    %236 = arith.addf %232, %235 : vector<80x64xf32>
    %c2_129 = arith.constant 2 : index
    %c0_130 = arith.constant 0 : index
    %c0_131 = arith.constant 0 : index
    %237 = vector.load %arg10[%c2_129, %c0_130, %c0_131] : memref<4x128x64xbf16, #tpu.memory_space<vmem>>, vector<1x128x64xbf16>
    %238 = vector.shape_cast %237 : vector<1x128x64xbf16> to vector<128x64xbf16>
    %cst_132 = arith.constant dense<0.000000e+00> : vector<80x64xf32>
    %239 = tpu.matmul %229, %238, %cst_132 {dimension_numbers = #tpu.dot_dimension_numbers<[1], [0], [0], [1], [0, 0, 1, 1], [], []>} : vector<80x128xbf16>, vector<128x64xbf16>, vector<80x64xf32> -> vector<80x64xf32>
    %c2_133 = arith.constant 2 : index
    %c0_134 = arith.constant 0 : index
    %c0_135 = arith.constant 0 : index
    %240 = vector.load %arg11[%c2_133, %c0_134, %c0_135] : memref<4x1x64xf32, #tpu.memory_space<vmem>>, vector<1x1x64xf32>
    %241 = vector.shape_cast %240 : vector<1x1x64xf32> to vector<1x64xf32>
    %242 = vector.broadcast %241 : vector<1x64xf32> to vector<80x64xf32>
    %243 = arith.addf %239, %242 : vector<80x64xf32>
    %c2_136 = arith.constant 2 : index
    %c0_137 = arith.constant 0 : index
    %c0_138 = arith.constant 0 : index
    %244 = vector.load %arg12[%c2_136, %c0_137, %c0_138] : memref<4x128x64xbf16, #tpu.memory_space<vmem>>, vector<1x128x64xbf16>
    %245 = vector.shape_cast %244 : vector<1x128x64xbf16> to vector<128x64xbf16>
    %cst_139 = arith.constant dense<0.000000e+00> : vector<80x64xf32>
    %246 = tpu.matmul %229, %245, %cst_139 {dimension_numbers = #tpu.dot_dimension_numbers<[1], [0], [0], [1], [0, 0, 1, 1], [], []>} : vector<80x128xbf16>, vector<128x64xbf16>, vector<80x64xf32> -> vector<80x64xf32>
    %c2_140 = arith.constant 2 : index
    %c0_141 = arith.constant 0 : index
    %c0_142 = arith.constant 0 : index
    %247 = vector.load %arg13[%c2_140, %c0_141, %c0_142] : memref<4x1x64xf32, #tpu.memory_space<vmem>>, vector<1x1x64xf32>
    %248 = vector.shape_cast %247 : vector<1x1x64xf32> to vector<1x64xf32>
    %249 = vector.broadcast %248 : vector<1x64xf32> to vector<80x64xf32>
    %250 = arith.addf %246, %249 : vector<80x64xf32>
    %251 = vector.shape_cast %236 : vector<80x64xf32> to vector<16x5x64xf32>
    %252 = arith.truncf %251 : vector<16x5x64xf32> to vector<16x5x64xbf16>
    %253 = vector.shape_cast %243 : vector<80x64xf32> to vector<16x5x64xf32>
    %254 = arith.truncf %253 : vector<16x5x64xf32> to vector<16x5x64xbf16>
    %255 = vector.shape_cast %250 : vector<80x64xf32> to vector<16x5x64xf32>
    %256 = arith.truncf %255 : vector<16x5x64xf32> to vector<16x5x64xbf16>
    "tpu.trace_start"() <{level = 10 : i32, message = "bqd,bkd->bqk"}> : () -> ()
    %cst_143 = arith.constant dense<0.000000e+00> : vector<16x5x5xf32>
    %257 = tpu.matmul %252, %254, %cst_143 {dimension_numbers = #tpu.dot_dimension_numbers<[2], [2], [1], [1], [0, 0, 0, 1, 1, 1], [0], [0]>} : vector<16x5x64xbf16>, vector<16x5x64xbf16>, vector<16x5x5xf32> -> vector<16x5x5xf32>
    "tpu.trace_stop"() : () -> ()
    %cst_144 = arith.constant dense<0xFF800000> : vector<16x5xf32>
    %258 = vector.multi_reduction <maximumf>, %257, %cst_144 [2] : vector<16x5x5xf32> to vector<16x5xf32>
    %259 = vector.shape_cast %258 : vector<16x5xf32> to vector<16x5x1xf32>
    %260 = vector.broadcast %259 : vector<16x5x1xf32> to vector<16x5x5xf32>
    %261 = arith.subf %257, %260 : vector<16x5x5xf32>
    %262 = math.exp %261 : vector<16x5x5xf32>
    %cst_145 = arith.constant dense<0.000000e+00> : vector<16x5xf32>
    %263 = vector.multi_reduction <add>, %262, %cst_145 [2] : vector<16x5x5xf32> to vector<16x5xf32>
    %264 = vector.shape_cast %263 : vector<16x5xf32> to vector<16x5x1xf32>
    %265 = tpu.reciprocal %264 {approx = true} : vector<16x5x1xf32> -> vector<16x5x1xf32>
    %266 = vector.broadcast %265 : vector<16x5x1xf32> to vector<16x5x5xf32>
    %267 = arith.mulf %262, %266 : vector<16x5x5xf32>
    %268 = arith.truncf %267 : vector<16x5x5xf32> to vector<16x5x5xbf16>
    "tpu.trace_start"() <{level = 10 : i32, message = "bqk,bkd->bqd"}> : () -> ()
    %cst_146 = arith.constant dense<0.000000e+00> : vector<16x5x64xf32>
    %269 = tpu.matmul %268, %256, %cst_146 {dimension_numbers = #tpu.dot_dimension_numbers<[2], [1], [1], [2], [0, 0, 0, 1, 1, 2], [0], [0]>} : vector<16x5x5xbf16>, vector<16x5x64xbf16>, vector<16x5x64xf32> -> vector<16x5x64xf32>
    "tpu.trace_stop"() : () -> ()
    %270 = vector.shape_cast %269 : vector<16x5x64xf32> to vector<80x64xf32>
    %271 = arith.truncf %270 : vector<80x64xf32> to vector<80x64xbf16>
    %c2_147 = arith.constant 2 : index
    %c0_148 = arith.constant 0 : index
    %c0_149 = arith.constant 0 : index
    %272 = vector.load %arg14[%c2_147, %c0_148, %c0_149] : memref<4x64x128xbf16, #tpu.memory_space<vmem>>, vector<1x64x128xbf16>
    %273 = vector.shape_cast %272 : vector<1x64x128xbf16> to vector<64x128xbf16>
    %cst_150 = arith.constant dense<0.000000e+00> : vector<80x128xf32>
    %274 = tpu.matmul %271, %273, %cst_150 {dimension_numbers = #tpu.dot_dimension_numbers<[1], [0], [0], [1], [0, 0, 1, 1], [], []>} : vector<80x64xbf16>, vector<64x128xbf16>, vector<80x128xf32> -> vector<80x128xf32>
    %c3 = arith.constant 3 : index
    %c0_151 = arith.constant 0 : index
    %c0_152 = arith.constant 0 : index
    %275 = vector.load %arg8[%c3, %c0_151, %c0_152] : memref<4x128x64xbf16, #tpu.memory_space<vmem>>, vector<1x128x64xbf16>
    %276 = vector.shape_cast %275 : vector<1x128x64xbf16> to vector<128x64xbf16>
    %cst_153 = arith.constant dense<0.000000e+00> : vector<80x64xf32>
    %277 = tpu.matmul %229, %276, %cst_153 {dimension_numbers = #tpu.dot_dimension_numbers<[1], [0], [0], [1], [0, 0, 1, 1], [], []>} : vector<80x128xbf16>, vector<128x64xbf16>, vector<80x64xf32> -> vector<80x64xf32>
    %c3_154 = arith.constant 3 : index
    %c0_155 = arith.constant 0 : index
    %c0_156 = arith.constant 0 : index
    %278 = vector.load %arg9[%c3_154, %c0_155, %c0_156] : memref<4x1x64xf32, #tpu.memory_space<vmem>>, vector<1x1x64xf32>
    %279 = vector.shape_cast %278 : vector<1x1x64xf32> to vector<1x64xf32>
    %280 = vector.broadcast %279 : vector<1x64xf32> to vector<80x64xf32>
    %281 = arith.addf %277, %280 : vector<80x64xf32>
    %c3_157 = arith.constant 3 : index
    %c0_158 = arith.constant 0 : index
    %c0_159 = arith.constant 0 : index
    %282 = vector.load %arg10[%c3_157, %c0_158, %c0_159] : memref<4x128x64xbf16, #tpu.memory_space<vmem>>, vector<1x128x64xbf16>
    %283 = vector.shape_cast %282 : vector<1x128x64xbf16> to vector<128x64xbf16>
    %cst_160 = arith.constant dense<0.000000e+00> : vector<80x64xf32>
    %284 = tpu.matmul %229, %283, %cst_160 {dimension_numbers = #tpu.dot_dimension_numbers<[1], [0], [0], [1], [0, 0, 1, 1], [], []>} : vector<80x128xbf16>, vector<128x64xbf16>, vector<80x64xf32> -> vector<80x64xf32>
    %c3_161 = arith.constant 3 : index
    %c0_162 = arith.constant 0 : index
    %c0_163 = arith.constant 0 : index
    %285 = vector.load %arg11[%c3_161, %c0_162, %c0_163] : memref<4x1x64xf32, #tpu.memory_space<vmem>>, vector<1x1x64xf32>
    %286 = vector.shape_cast %285 : vector<1x1x64xf32> to vector<1x64xf32>
    %287 = vector.broadcast %286 : vector<1x64xf32> to vector<80x64xf32>
    %288 = arith.addf %284, %287 : vector<80x64xf32>
    %c3_164 = arith.constant 3 : index
    %c0_165 = arith.constant 0 : index
    %c0_166 = arith.constant 0 : index
    %289 = vector.load %arg12[%c3_164, %c0_165, %c0_166] : memref<4x128x64xbf16, #tpu.memory_space<vmem>>, vector<1x128x64xbf16>
    %290 = vector.shape_cast %289 : vector<1x128x64xbf16> to vector<128x64xbf16>
    %cst_167 = arith.constant dense<0.000000e+00> : vector<80x64xf32>
    %291 = tpu.matmul %229, %290, %cst_167 {dimension_numbers = #tpu.dot_dimension_numbers<[1], [0], [0], [1], [0, 0, 1, 1], [], []>} : vector<80x128xbf16>, vector<128x64xbf16>, vector<80x64xf32> -> vector<80x64xf32>
    %c3_168 = arith.constant 3 : index
    %c0_169 = arith.constant 0 : index
    %c0_170 = arith.constant 0 : index
    %292 = vector.load %arg13[%c3_168, %c0_169, %c0_170] : memref<4x1x64xf32, #tpu.memory_space<vmem>>, vector<1x1x64xf32>
    %293 = vector.shape_cast %292 : vector<1x1x64xf32> to vector<1x64xf32>
    %294 = vector.broadcast %293 : vector<1x64xf32> to vector<80x64xf32>
    %295 = arith.addf %291, %294 : vector<80x64xf32>
    %296 = vector.shape_cast %281 : vector<80x64xf32> to vector<16x5x64xf32>
    %297 = arith.truncf %296 : vector<16x5x64xf32> to vector<16x5x64xbf16>
    %298 = vector.shape_cast %288 : vector<80x64xf32> to vector<16x5x64xf32>
    %299 = arith.truncf %298 : vector<16x5x64xf32> to vector<16x5x64xbf16>
    %300 = vector.shape_cast %295 : vector<80x64xf32> to vector<16x5x64xf32>
    %301 = arith.truncf %300 : vector<16x5x64xf32> to vector<16x5x64xbf16>
    "tpu.trace_start"() <{level = 10 : i32, message = "bqd,bkd->bqk"}> : () -> ()
    %cst_171 = arith.constant dense<0.000000e+00> : vector<16x5x5xf32>
    %302 = tpu.matmul %297, %299, %cst_171 {dimension_numbers = #tpu.dot_dimension_numbers<[2], [2], [1], [1], [0, 0, 0, 1, 1, 1], [0], [0]>} : vector<16x5x64xbf16>, vector<16x5x64xbf16>, vector<16x5x5xf32> -> vector<16x5x5xf32>
    "tpu.trace_stop"() : () -> ()
    %cst_172 = arith.constant dense<0xFF800000> : vector<16x5xf32>
    %303 = vector.multi_reduction <maximumf>, %302, %cst_172 [2] : vector<16x5x5xf32> to vector<16x5xf32>
    %304 = vector.shape_cast %303 : vector<16x5xf32> to vector<16x5x1xf32>
    %305 = vector.broadcast %304 : vector<16x5x1xf32> to vector<16x5x5xf32>
    %306 = arith.subf %302, %305 : vector<16x5x5xf32>
    %307 = math.exp %306 : vector<16x5x5xf32>
    %cst_173 = arith.constant dense<0.000000e+00> : vector<16x5xf32>
    %308 = vector.multi_reduction <add>, %307, %cst_173 [2] : vector<16x5x5xf32> to vector<16x5xf32>
    %309 = vector.shape_cast %308 : vector<16x5xf32> to vector<16x5x1xf32>
    %310 = tpu.reciprocal %309 {approx = true} : vector<16x5x1xf32> -> vector<16x5x1xf32>
    %311 = vector.broadcast %310 : vector<16x5x1xf32> to vector<16x5x5xf32>
    %312 = arith.mulf %307, %311 : vector<16x5x5xf32>
    %313 = arith.truncf %312 : vector<16x5x5xf32> to vector<16x5x5xbf16>
    "tpu.trace_start"() <{level = 10 : i32, message = "bqk,bkd->bqd"}> : () -> ()
    %cst_174 = arith.constant dense<0.000000e+00> : vector<16x5x64xf32>
    %314 = tpu.matmul %313, %301, %cst_174 {dimension_numbers = #tpu.dot_dimension_numbers<[2], [1], [1], [2], [0, 0, 0, 1, 1, 2], [0], [0]>} : vector<16x5x5xbf16>, vector<16x5x64xbf16>, vector<16x5x64xf32> -> vector<16x5x64xf32>
    "tpu.trace_stop"() : () -> ()
    %315 = vector.shape_cast %314 : vector<16x5x64xf32> to vector<80x64xf32>
    %316 = arith.truncf %315 : vector<80x64xf32> to vector<80x64xbf16>
    %c3_175 = arith.constant 3 : index
    %c0_176 = arith.constant 0 : index
    %c0_177 = arith.constant 0 : index
    %317 = vector.load %arg14[%c3_175, %c0_176, %c0_177] : memref<4x64x128xbf16, #tpu.memory_space<vmem>>, vector<1x64x128xbf16>
    %318 = vector.shape_cast %317 : vector<1x64x128xbf16> to vector<64x128xbf16>
    %cst_178 = arith.constant dense<0.000000e+00> : vector<80x128xf32>
    %319 = tpu.matmul %316, %318, %cst_178 {dimension_numbers = #tpu.dot_dimension_numbers<[1], [0], [0], [1], [0, 0, 1, 1], [], []>} : vector<80x64xbf16>, vector<64x128xbf16>, vector<80x128xf32> -> vector<80x128xf32>
    %320 = arith.addf %274, %319 : vector<80x128xf32>
    %321 = arith.addf %202, %320 : vector<80x128xf32>
    %c1_179 = arith.constant 1 : index
    %c0_180 = arith.constant 0 : index
    %c0_181 = arith.constant 0 : index
    %322 = vector.load %arg15[%c1_179, %c0_180, %c0_181] : memref<2x1x128xf32, #tpu.memory_space<vmem>>, vector<1x1x128xf32>
    %323 = vector.shape_cast %322 : vector<1x1x128xf32> to vector<1x128xf32>
    %324 = vector.broadcast %323 : vector<1x128xf32> to vector<80x128xf32>
    %325 = arith.addf %321, %324 : vector<80x128xf32>
    %c1_182 = arith.constant 1 : index
    %c0_183 = arith.constant 0 : index
    %c0_184 = arith.constant 0 : index
    %326 = vector.load %arg16[%c1_182, %c0_183, %c0_184] : memref<2x1x128xf32, #tpu.memory_space<vmem>>, vector<1x1x128xf32>
    %327 = vector.shape_cast %326 : vector<1x1x128xf32> to vector<1x128xf32>
    %c1_185 = arith.constant 1 : index
    %c0_186 = arith.constant 0 : index
    %c0_187 = arith.constant 0 : index
    %328 = vector.load %arg17[%c1_185, %c0_186, %c0_187] : memref<2x1x128xf32, #tpu.memory_space<vmem>>, vector<1x1x128xf32>
    %329 = vector.shape_cast %328 : vector<1x1x128xf32> to vector<1x128xf32>
    %cst_188 = arith.constant dense<0.000000e+00> : vector<80xf32>
    %330 = vector.multi_reduction <add>, %325, %cst_188 [1] : vector<80x128xf32> to vector<80xf32>
    %331 = vector.shape_cast %330 : vector<80xf32> to vector<80x1xf32>
    %cst_189 = arith.constant 1.280000e+02 : f32
    %332 = vector.broadcast %cst_189 : f32 to vector<80x1xf32>
    %333 = arith.divf %331, %332 : vector<80x1xf32>
    %334 = vector.broadcast %333 : vector<80x1xf32> to vector<80x128xf32>
    %335 = arith.subf %325, %334 : vector<80x128xf32>
    %336 = arith.mulf %335, %335 : vector<80x128xf32>
    %cst_190 = arith.constant dense<0.000000e+00> : vector<80xf32>
    %337 = vector.multi_reduction <add>, %336, %cst_190 [1] : vector<80x128xf32> to vector<80xf32>
    %338 = vector.shape_cast %337 : vector<80xf32> to vector<80x1xf32>
    %cst_191 = arith.constant 1.280000e+02 : f32
    %339 = vector.broadcast %cst_191 : f32 to vector<80x1xf32>
    %340 = arith.divf %338, %339 : vector<80x1xf32>
    %341 = vector.broadcast %333 : vector<80x1xf32> to vector<80x128xf32>
    %342 = arith.subf %325, %341 : vector<80x128xf32>
    %cst_192 = arith.constant 9.99999974E-6 : f32
    %343 = vector.broadcast %cst_192 : f32 to vector<80x1xf32>
    %344 = arith.addf %340, %343 : vector<80x1xf32>
    %345 = math.rsqrt %344 : vector<80x1xf32>
    %346 = vector.broadcast %345 : vector<80x1xf32> to vector<80x128xf32>
    %347 = arith.mulf %342, %346 : vector<80x128xf32>
    %348 = vector.broadcast %327 : vector<1x128xf32> to vector<80x128xf32>
    %349 = arith.mulf %347, %348 : vector<80x128xf32>
    %350 = vector.broadcast %329 : vector<1x128xf32> to vector<80x128xf32>
    %351 = arith.addf %349, %350 : vector<80x128xf32>
    %352 = arith.truncf %351 : vector<80x128xf32> to vector<80x128xbf16>
    %c1_193 = arith.constant 1 : index
    %c0_194 = arith.constant 0 : index
    %c0_195 = arith.constant 0 : index
    %353 = vector.load %arg18[%c1_193, %c0_194, %c0_195] : memref<2x128x256xbf16, #tpu.memory_space<vmem>>, vector<1x128x256xbf16>
    %354 = vector.shape_cast %353 : vector<1x128x256xbf16> to vector<128x256xbf16>
    %cst_196 = arith.constant dense<0.000000e+00> : vector<80x256xf32>
    %355 = tpu.matmul %352, %354, %cst_196 {dimension_numbers = #tpu.dot_dimension_numbers<[1], [0], [0], [1], [0, 0, 1, 1], [], []>} : vector<80x128xbf16>, vector<128x256xbf16>, vector<80x256xf32> -> vector<80x256xf32>
    %c1_197 = arith.constant 1 : index
    %c0_198 = arith.constant 0 : index
    %c0_199 = arith.constant 0 : index
    %356 = vector.load %arg19[%c1_197, %c0_198, %c0_199] : memref<2x1x256xf32, #tpu.memory_space<vmem>>, vector<1x1x256xf32>
    %357 = vector.shape_cast %356 : vector<1x1x256xf32> to vector<1x256xf32>
    %358 = vector.broadcast %357 : vector<1x256xf32> to vector<80x256xf32>
    %359 = arith.addf %355, %358 : vector<80x256xf32>
    %cst_200 = arith.constant 1.702000e+00 : f32
    %360 = vector.broadcast %cst_200 : f32 to vector<80x256xf32>
    %361 = arith.mulf %360, %359 : vector<80x256xf32>
    %362 = arith.negf %361 : vector<80x256xf32>
    %363 = math.exp %362 : vector<80x256xf32>
    %cst_201 = arith.constant 1.000000e+00 : f32
    %364 = vector.broadcast %cst_201 : f32 to vector<80x256xf32>
    %365 = arith.addf %364, %363 : vector<80x256xf32>
    %366 = arith.divf %364, %365 : vector<80x256xf32>
    %367 = arith.mulf %359, %366 : vector<80x256xf32>
    %368 = arith.truncf %367 : vector<80x256xf32> to vector<80x256xbf16>
    %c1_202 = arith.constant 1 : index
    %c0_203 = arith.constant 0 : index
    %c0_204 = arith.constant 0 : index
    %369 = vector.load %arg20[%c1_202, %c0_203, %c0_204] : memref<2x256x128xbf16, #tpu.memory_space<vmem>>, vector<1x256x128xbf16>
    %370 = vector.shape_cast %369 : vector<1x256x128xbf16> to vector<256x128xbf16>
    %cst_205 = arith.constant dense<0.000000e+00> : vector<80x128xf32>
    %371 = tpu.matmul %368, %370, %cst_205 {dimension_numbers = #tpu.dot_dimension_numbers<[1], [0], [0], [1], [0, 0, 1, 1], [], []>} : vector<80x256xbf16>, vector<256x128xbf16>, vector<80x128xf32> -> vector<80x128xf32>
    %c1_206 = arith.constant 1 : index
    %c0_207 = arith.constant 0 : index
    %c0_208 = arith.constant 0 : index
    %372 = vector.load %arg21[%c1_206, %c0_207, %c0_208] : memref<2x1x128xf32, #tpu.memory_space<vmem>>, vector<1x1x128xf32>
    %373 = vector.shape_cast %372 : vector<1x1x128xf32> to vector<1x128xf32>
    %374 = vector.broadcast %373 : vector<1x128xf32> to vector<80x128xf32>
    %375 = arith.addf %371, %374 : vector<80x128xf32>
    %376 = arith.addf %325, %375 : vector<80x128xf32>
    %c0_209 = arith.constant 0 : index
    %c0_210 = arith.constant 0 : index
    %377 = vector.load %arg22[%c0_209, %c0_210] : memref<80x128xf32, #tpu.memory_space<vmem>>, vector<80x128xf32>
    tpu.vector_store %arg22[%c0_209, %c0_210], %376 {strides = array<i32>} : memref<80x128xf32, #tpu.memory_space<vmem>>, vector<80x128xf32>,
    return
  }
  func.func @transform_0(%arg0: i32) -> (i32, i32) {
    %c0_i32 = arith.constant 0 : i32
    %c0_i32_0 = arith.constant 0 : i32
    return %arg0, %c0_i32 : i32, i32
  }
  func.func @transform_1(%arg0: i32) -> (i32, i32) {
    %c0_i32 = arith.constant 0 : i32
    %c0_i32_0 = arith.constant 0 : i32
    %c0_i32_1 = arith.constant 0 : i32
    return %c0_i32, %c0_i32_0 : i32, i32
  }
  func.func @transform_2(%arg0: i32) -> (i32, i32) {
    %c0_i32 = arith.constant 0 : i32
    %c0_i32_0 = arith.constant 0 : i32
    %c0_i32_1 = arith.constant 0 : i32
    return %c0_i32, %c0_i32_0 : i32, i32
  }
  func.func @transform_3(%arg0: i32) -> (i32, i32) {
    %c0_i32 = arith.constant 0 : i32
    %c0_i32_0 = arith.constant 0 : i32
    %c0_i32_1 = arith.constant 0 : i32
    return %c0_i32, %c0_i32_0 : i32, i32
  }
  func.func @transform_4(%arg0: i32) -> (i32, i32) {
    %c0_i32 = arith.constant 0 : i32
    %c0_i32_0 = arith.constant 0 : i32
    %c0_i32_1 = arith.constant 0 : i32
    return %c0_i32, %c0_i32_0 : i32, i32
  }
  func.func @transform_5(%arg0: i32) -> (i32, i32, i32) {
    %c0_i32 = arith.constant 0 : i32
    %c0_i32_0 = arith.constant 0 : i32
    %c0_i32_1 = arith.constant 0 : i32
    %c0_i32_2 = arith.constant 0 : i32
    return %c0_i32, %c0_i32_0, %c0_i32_1 : i32, i32, i32
  }
  func.func @transform_6(%arg0: i32) -> (i32, i32, i32) {
    %c0_i32 = arith.constant 0 : i32
    %c0_i32_0 = arith.constant 0 : i32
    %c0_i32_1 = arith.constant 0 : i32
    %c0_i32_2 = arith.constant 0 : i32
    return %c0_i32, %c0_i32_0, %c0_i32_1 : i32, i32, i32
  }
  func.func @transform_7(%arg0: i32) -> (i32, i32, i32) {
    %c0_i32 = arith.constant 0 : i32
    %c0_i32_0 = arith.constant 0 : i32
    %c0_i32_1 = arith.constant 0 : i32
    %c0_i32_2 = arith.constant 0 : i32
    return %c0_i32, %c0_i32_0, %c0_i32_1 : i32, i32, i32
  }
  func.func @transform_8(%arg0: i32) -> (i32, i32, i32) {
    %c0_i32 = arith.constant 0 : i32
    %c0_i32_0 = arith.constant 0 : i32
    %c0_i32_1 = arith.constant 0 : i32
    %c0_i32_2 = arith.constant 0 : i32
    return %c0_i32, %c0_i32_0, %c0_i32_1 : i32, i32, i32
  }
  func.func @transform_9(%arg0: i32) -> (i32, i32, i32) {
    %c0_i32 = arith.constant 0 : i32
    %c0_i32_0 = arith.constant 0 : i32
    %c0_i32_1 = arith.constant 0 : i32
    %c0_i32_2 = arith.constant 0 : i32
    return %c0_i32, %c0_i32_0, %c0_i32_1 : i32, i32, i32
  }
  func.func @transform_10(%arg0: i32) -> (i32, i32, i32) {
    %c0_i32 = arith.constant 0 : i32
    %c0_i32_0 = arith.constant 0 : i32
    %c0_i32_1 = arith.constant 0 : i32
    %c0_i32_2 = arith.constant 0 : i32
    return %c0_i32, %c0_i32_0, %c0_i32_1 : i32, i32, i32
  }
  func.func @transform_11(%arg0: i32) -> (i32, i32, i32) {
    %c0_i32 = arith.constant 0 : i32
    %c0_i32_0 = arith.constant 0 : i32
    %c0_i32_1 = arith.constant 0 : i32
    %c0_i32_2 = arith.constant 0 : i32
    return %c0_i32, %c0_i32_0, %c0_i32_1 : i32, i32, i32
  }
  func.func @transform_12(%arg0: i32) -> (i32, i32, i32) {
    %c0_i32 = arith.constant 0 : i32
    %c0_i32_0 = arith.constant 0 : i32
    %c0_i32_1 = arith.constant 0 : i32
    %c0_i32_2 = arith.constant 0 : i32
    return %c0_i32, %c0_i32_0, %c0_i32_1 : i32, i32, i32
  }
  func.func @transform_13(%arg0: i32) -> (i32, i32, i32) {
    %c0_i32 = arith.constant 0 : i32
    %c0_i32_0 = arith.constant 0 : i32
    %c0_i32_1 = arith.constant 0 : i32
    %c0_i32_2 = arith.constant 0 : i32
    return %c0_i32, %c0_i32_0, %c0_i32_1 : i32, i32, i32
  }
  func.func @transform_14(%arg0: i32) -> (i32, i32, i32) {
    %c0_i32 = arith.constant 0 : i32
    %c0_i32_0 = arith.constant 0 : i32
    %c0_i32_1 = arith.constant 0 : i32
    %c0_i32_2 = arith.constant 0 : i32
    return %c0_i32, %c0_i32_0, %c0_i32_1 : i32, i32, i32
  }
  func.func @transform_15(%arg0: i32) -> (i32, i32, i32) {
    %c0_i32 = arith.constant 0 : i32
    %c0_i32_0 = arith.constant 0 : i32
    %c0_i32_1 = arith.constant 0 : i32
    %c0_i32_2 = arith.constant 0 : i32
    return %c0_i32, %c0_i32_0, %c0_i32_1 : i32, i32, i32
  }
  func.func @transform_16(%arg0: i32) -> (i32, i32, i32) {
    %c0_i32 = arith.constant 0 : i32
    %c0_i32_0 = arith.constant 0 : i32
    %c0_i32_1 = arith.constant 0 : i32
    %c0_i32_2 = arith.constant 0 : i32
    return %c0_i32, %c0_i32_0, %c0_i32_1 : i32, i32, i32
  }
  func.func @transform_17(%arg0: i32) -> (i32, i32, i32) {
    %c0_i32 = arith.constant 0 : i32
    %c0_i32_0 = arith.constant 0 : i32
    %c0_i32_1 = arith.constant 0 : i32
    %c0_i32_2 = arith.constant 0 : i32
    return %c0_i32, %c0_i32_0, %c0_i32_1 : i32, i32, i32
  }
  func.func @transform_18(%arg0: i32) -> (i32, i32, i32) {
    %c0_i32 = arith.constant 0 : i32
    %c0_i32_0 = arith.constant 0 : i32
    %c0_i32_1 = arith.constant 0 : i32
    %c0_i32_2 = arith.constant 0 : i32
    return %c0_i32, %c0_i32_0, %c0_i32_1 : i32, i32, i32
  }
  func.func @transform_19(%arg0: i32) -> (i32, i32, i32) {
    %c0_i32 = arith.constant 0 : i32
    %c0_i32_0 = arith.constant 0 : i32
    %c0_i32_1 = arith.constant 0 : i32
    %c0_i32_2 = arith.constant 0 : i32
    return %c0_i32, %c0_i32_0, %c0_i32_1 : i32, i32, i32
  }
  func.func @transform_20(%arg0: i32) -> (i32, i32, i32) {
    %c0_i32 = arith.constant 0 : i32
    %c0_i32_0 = arith.constant 0 : i32
    %c0_i32_1 = arith.constant 0 : i32
    %c0_i32_2 = arith.constant 0 : i32
    return %c0_i32, %c0_i32_0, %c0_i32_1 : i32, i32, i32
  }
  func.func @transform_21(%arg0: i32) -> (i32, i32) {
    %c0_i32 = arith.constant 0 : i32
    %c0_i32_0 = arith.constant 0 : i32
    return %arg0, %c0_i32 : i32, i32
  }
}

</mosaic_0001>

<llo_original>
// kernel: tpu_custom_call.1
$region0: #{tpu_custom_call.1}
  #allocation0 [shape = 'u32[]', space=smem, size = 0x4, offset = 0x4, fixed_abs, tag = 'smem constant byte address 0x4 - core index']
  #allocation1 [shape = 'u32[72,128]{1,0:T(1,128)}', space=vmem, size = 0x9000, scoped, tag = 'internal scratch']
  %s0 = inlined_call_operand.vmem [shape: bf16[80,256], index: 0, kind: input, shape index: {}]
  %s1 = inlined_call_operand.vmem [shape: bf16[256,128], index: 1, kind: input, shape index: {}]
  %s2 = inlined_call_operand.hbm [shape: f32[80,128], index: 2, kind: input, shape index: {}]
  %s3 = inlined_call_operand.vmem [shape: f32[1,128], index: 3, kind: input, shape index: {}]
  %s4 = inlined_call_operand.vmem [shape: f32[1,128], index: 4, kind: input, shape index: {}]
  %s5 = inlined_call_operand.vmem [shape: f32[2,1,128], index: 5, kind: input, shape index: {}]
  %s6 = inlined_call_operand.vmem [shape: f32[2,1,128], index: 6, kind: input, shape index: {}]
  %s7 = inlined_call_operand.vmem [shape: bf16[4,128,64], index: 7, kind: input, shape index: {}]
  %s8 = inlined_call_operand.vmem [shape: f32[4,1,64], index: 8, kind: input, shape index: {}]
  %s9 = inlined_call_operand.vmem [shape: bf16[4,128,64], index: 9, kind: input, shape index: {}]
  %s10 = inlined_call_operand.vmem [shape: f32[4,1,64], index: 10, kind: input, shape index: {}]
  %s11 = inlined_call_operand.vmem [shape: bf16[4,128,64], index: 11, kind: input, shape index: {}]
  %s12 = inlined_call_operand.vmem [shape: f32[4,1,64], index: 12, kind: input, shape index: {}]
  %s13 = inlined_call_operand.vmem [shape: bf16[4,64,128], index: 13, kind: input, shape index: {}]
  %s14 = inlined_call_operand.vmem [shape: f32[2,1,128], index: 14, kind: input, shape index: {}]
  %s15 = inlined_call_operand.vmem [shape: f32[2,1,128], index: 15, kind: input, shape index: {}]
  %s16 = inlined_call_operand.vmem [shape: f32[2,1,128], index: 16, kind: input, shape index: {}]
  %s17 = inlined_call_operand.vmem [shape: bf16[2,128,256], index: 17, kind: input, shape index: {}]
  %s18 = inlined_call_operand.vmem [shape: f32[2,1,256], index: 18, kind: input, shape index: {}]
  %s19 = inlined_call_operand.vmem [shape: bf16[2,256,128], index: 19, kind: input, shape index: {}]
  %s20 = inlined_call_operand.vmem [shape: f32[2,1,128], index: 20, kind: input, shape index: {}]
  %s21 = inlined_call_operand.hbm [shape: f32[80,128], index: 21, kind: output, shape index: {}]
  %s22 = sld [smem:[#allocation0]]
  $region98: #{tpu_custom_call.1} parent=0
    _
  %s24 = ssub.s32 1, %s22
  %s25 = scalar_select 0, %s24, %s22
  $region1: #{tpu_custom_call.1} parent=0
    #allocation2 [shape = 'u8[40960]{0}', space=vmem, size = 0xa000, scoped, tag = 'input window, operand 2, single buffered']
    #allocation3 [shape = 's32[1]{0}', space=sflag, size = 0x4, scoped, tag = 'scoped memory for tpu_custom_call.1']
    #allocation4 [shape = 's32[1]{0}', space=sflag, size = 0x4, scoped, tag = 'scoped memory for tpu_custom_call.1']
    #allocation5 [shape = 'u8[40960]{0}', space=vmem, size = 0xa000, scoped, tag = 'output window, operand 0, single buffered']
    %26 = vsyncpa [#allocation3], 0
    %27 = vsyncpa [#allocation4], 0
    // Predicated region
    $region2: #{tpu_custom_call.1} parent=1 // pred_check
      _
    $region3: #{tpu_custom_call.1} parent=1 // pred_check_branch
      %29 = sbr.rel (0) target = $region5
    $region4: #{tpu_custom_call.1} parent=1 // pred_region
      _
    $region5: #{tpu_custom_call.1} parent=1 // pred_fallthru
      _
    // Predicated region
    $region6: #{tpu_custom_call.1} parent=1 // pred_check
      _
    $region7: #{tpu_custom_call.1} parent=1 // pred_check_branch
      %31 = sbr.rel (0) target = $region9
    $region8: #{tpu_custom_call.1} parent=1 // pred_region
      _
    $region9: #{tpu_custom_call.1} parent=1 // pred_fallthru
      _
    // Predicated region
    $region10: #{tpu_custom_call.1} parent=1 // pred_check
      _
    $region11: #{tpu_custom_call.1} parent=1 // pred_check_branch
      %33 = sbr.rel (0) target = $region13
    $region12: #{tpu_custom_call.1} parent=1 // pred_region
      %35 = vsyncadd [#allocation3], 0
      %s36 = sshll.u32 %s2, 4
      %s37 = int_to_ptr.hbm [resolvable:$true] %s36
      %s38 = sshll.u32 [#allocation2], 4
      %s39 = int_to_ptr.vmem [resolvable:$true] %s38
      %44 = dma.hbm_to_vmem [thread:$0]  %s37, 1280, %s39, [#allocation3], 128, 128, 8
    $region13: #{tpu_custom_call.1} parent=1 // pred_fallthru
      _
    // Predicated region
    $region14: #{tpu_custom_call.1} parent=1 // pred_check
      _
    $region15: #{tpu_custom_call.1} parent=1 // pred_check_branch
      %46 = sbr.rel (0) target = $region17
    $region16: #{tpu_custom_call.1} parent=1 // pred_region
      _
    $region17: #{tpu_custom_call.1} parent=1 // pred_fallthru
      _
    // Predicated region
    $region18: #{tpu_custom_call.1} parent=1 // pred_check
      _
    $region19: #{tpu_custom_call.1} parent=1 // pred_check_branch
      %48 = sbr.rel (0) target = $region21
    $region20: #{tpu_custom_call.1} parent=1 // pred_region
      _
    $region21: #{tpu_custom_call.1} parent=1 // pred_fallthru
      _
    // Predicated region
    $region22: #{tpu_custom_call.1} parent=1 // pred_check
      _
    $region23: #{tpu_custom_call.1} parent=1 // pred_check_branch
      %50 = sbr.rel (0) target = $region25
    $region24: #{tpu_custom_call.1} parent=1 // pred_region
      _
    $region25: #{tpu_custom_call.1} parent=1 // pred_fallthru
      _
    // Predicated region
    $region26: #{tpu_custom_call.1} parent=1 // pred_check
      _
    $region27: #{tpu_custom_call.1} parent=1 // pred_check_branch
      %52 = sbr.rel (0) target = $region29
    $region28: #{tpu_custom_call.1} parent=1 // pred_region
      _
    $region29: #{tpu_custom_call.1} parent=1 // pred_fallthru
      _
    // Predicated region
    $region30: #{tpu_custom_call.1} parent=1 // pred_check
      _
    $region31: #{tpu_custom_call.1} parent=1 // pred_check_branch
      %54 = sbr.rel (0) target = $region33
    $region32: #{tpu_custom_call.1} parent=1 // pred_region
      _
    $region33: #{tpu_custom_call.1} parent=1 // pred_fallthru
      _
    // Predicated region
    $region34: #{tpu_custom_call.1} parent=1 // pred_check
      _
    $region35: #{tpu_custom_call.1} parent=1 // pred_check_branch
      %56 = sbr.rel (0) target = $region37
    $region36: #{tpu_custom_call.1} parent=1 // pred_region
      _
    $region37: #{tpu_custom_call.1} parent=1 // pred_fallthru
      _
    // Predicated region
    $region38: #{tpu_custom_call.1} parent=1 // pred_check
      _
    $region39: #{tpu_custom_call.1} parent=1 // pred_check_branch
      %58 = sbr.rel (0) target = $region41
    $region40: #{tpu_custom_call.1} parent=1 // pred_region
      _
    $region41: #{tpu_custom_call.1} parent=1 // pred_fallthru
      _
    // Predicated region
    $region42: #{tpu_custom_call.1} parent=1 // pred_check
      _
    $region43: #{tpu_custom_call.1} parent=1 // pred_check_branch
      %60 = sbr.rel (0) target = $region45
    $region44: #{tpu_custom_call.1} parent=1 // pred_region
      _
    $region45: #{tpu_custom_call.1} parent=1 // pred_fallthru
      _
    // Predicated region
    $region46: #{tpu_custom_call.1} parent=1 // pred_check
      _
    $region47: #{tpu_custom_call.1} parent=1 // pred_check_branch
      %62 = sbr.rel (0) target = $region49
    $region48: #{tpu_custom_call.1} parent=1 // pred_region
      _
    $region49: #{tpu_custom_call.1} parent=1 // pred_fallthru
      _
    // Predicated region
    $region50: #{tpu_custom_call.1} parent=1 // pred_check
      _
    $region51: #{tpu_custom_call.1} parent=1 // pred_check_branch
      %64 = sbr.rel (0) target = $region53
    $region52: #{tpu_custom_call.1} parent=1 // pred_region
      _
    $region53: #{tpu_custom_call.1} parent=1 // pred_fallthru
      _
    // Predicated region
    $region54: #{tpu_custom_call.1} parent=1 // pred_check
      _
    $region55: #{tpu_custom_call.1} parent=1 // pred_check_branch
      %66 = sbr.rel (0) target = $region57
    $region56: #{tpu_custom_call.1} parent=1 // pred_region
      _
    $region57: #{tpu_custom_call.1} parent=1 // pred_fallthru
      _
    // Predicated region
    $region58: #{tpu_custom_call.1} parent=1 // pred_check
      _
    $region59: #{tpu_custom_call.1} parent=1 // pred_check_branch
      %68 = sbr.rel (0) target = $region61
    $region60: #{tpu_custom_call.1} parent=1 // pred_region
      _
    $region61: #{tpu_custom_call.1} parent=1 // pred_fallthru
      _
    // Predicated region
    $region62: #{tpu_custom_call.1} parent=1 // pred_check
      _
    $region63: #{tpu_custom_call.1} parent=1 // pred_check_branch
      %70 = sbr.rel (0) target = $region65
    $region64: #{tpu_custom_call.1} parent=1 // pred_region
      _
    $region65: #{tpu_custom_call.1} parent=1 // pred_fallthru
      _
    // Predicated region
    $region66: #{tpu_custom_call.1} parent=1 // pred_check
      _
    $region67: #{tpu_custom_call.1} parent=1 // pred_check_branch
      %72 = sbr.rel (0) target = $region69
    $region68: #{tpu_custom_call.1} parent=1 // pred_region
      _
    $region69: #{tpu_custom_call.1} parent=1 // pred_fallthru
      _
    // Predicated region
    $region70: #{tpu_custom_call.1} parent=1 // pred_check
      _
    $region71: #{tpu_custom_call.1} parent=1 // pred_check_branch
      %74 = sbr.rel (0) target = $region73
    $region72: #{tpu_custom_call.1} parent=1 // pred_region
      _
    $region73: #{tpu_custom_call.1} parent=1 // pred_fallthru
      _
    // Predicated region
    $region74: #{tpu_custom_call.1} parent=1 // pred_check
      _
    $region75: #{tpu_custom_call.1} parent=1 // pred_check_branch
      %76 = sbr.rel (0) target = $region77
    $region76: #{tpu_custom_call.1} parent=1 // pred_region
      _
    $region77: #{tpu_custom_call.1} parent=1 // pred_fallthru
      _
    // Predicated region
    $region78: #{tpu_custom_call.1} parent=1 // pred_check
      _
    $region79: #{tpu_custom_call.1} parent=1 // pred_check_branch
      %78 = sbr.rel (0) target = $region81
    $region80: #{tpu_custom_call.1} parent=1 // pred_region
      _
    $region81: #{tpu_custom_call.1} parent=1 // pred_fallthru
      _
    // Predicated region
    $region82: #{tpu_custom_call.1} parent=1 // pred_check
      _
    $region83: #{tpu_custom_call.1} parent=1 // pred_check_branch
      %80 = sbr.rel (0) target = $region85
    $region84: #{tpu_custom_call.1} parent=1 // pred_region
      _
    $region85: #{tpu_custom_call.1} parent=1 // pred_fallthru
      _
    // Predicated region
    $region86: #{tpu_custom_call.1} parent=1 // pred_check
      _
    $region87: #{tpu_custom_call.1} parent=1 // pred_check_branch
      %82 = sbr.rel (0) target = $region89
    $region88: #{tpu_custom_call.1} parent=1 // pred_region
      %84 = dma.done [#allocation3], 1280
    $region89: #{tpu_custom_call.1} parent=1 // pred_fallthru
      _
    %v86 = vld [vmem:[%s0] sm:$0xff]
    %v87 = vld [vmem:[%s0 + $0x8] sm:$0xff]
    %v88 = vld [vmem:[%s0 + $0x10] sm:$0xff]
    %v89 = vld [vmem:[%s0 + $0x18] sm:$0xff]
    %v90 = vld [vmem:[%s0 + $0x20] sm:$0xff]
    %v91 = vld [vmem:[%s0 + $0x28] sm:$0xff]
    %v92 = vld [vmem:[%s0 + $0x30] sm:$0xff]
    %v93 = vld [vmem:[%s0 + $0x38] sm:$0xff]
    %v94 = vld [vmem:[%s0 + $0x40] sm:$0xff]
    %v95 = vld [vmem:[%s0 + $0x48] sm:$0xff]
    %v96 = vld [vmem:[%s1] sm:$0xf]
    %v97 = vld [vmem:[%s1 + $0x4] sm:$0xf]
    %v98 = vld [vmem:[%s1 + $0x8] sm:$0xf]
    %v99 = vld [vmem:[%s1 + $0xc] sm:$0xf]
    %v100 = vld [vmem:[%s1 + $0x10] sm:$0xf]
    %v101 = vld [vmem:[%s1 + $0x14] sm:$0xf]
    %v102 = vld [vmem:[%s1 + $0x18] sm:$0xf]
    %v103 = vld [vmem:[%s1 + $0x1c] sm:$0xf]
    %v104 = vld [vmem:[%s1 + $0x20] sm:$0xf]
    %v105 = vld [vmem:[%s1 + $0x24] sm:$0xf]
    %v106 = vld [vmem:[%s1 + $0x28] sm:$0xf]
    %v107 = vld [vmem:[%s1 + $0x2c] sm:$0xf]
    %v108 = vld [vmem:[%s1 + $0x30] sm:$0xf]
    %v109 = vld [vmem:[%s1 + $0x34] sm:$0xf]
    %v110 = vld [vmem:[%s1 + $0x38] sm:$0xf]
    %v111 = vld [vmem:[%s1 + $0x3c] sm:$0xf]
    %v112 = vld [vmem:[%s1 + $0x40] sm:$0xf]
    %v113 = vld [vmem:[%s1 + $0x44] sm:$0xf]
    %v114 = vld [vmem:[%s1 + $0x48] sm:$0xf]
    %v115 = vld [vmem:[%s1 + $0x4c] sm:$0xf]
    %v116 = vld [vmem:[%s1 + $0x50] sm:$0xf]
    %v117 = vld [vmem:[%s1 + $0x54] sm:$0xf]
    %v118 = vld [vmem:[%s1 + $0x58] sm:$0xf]
    %v119 = vld [vmem:[%s1 + $0x5c] sm:$0xf]
    %v120 = vld [vmem:[%s1 + $0x60] sm:$0xf]
    %v121 = vld [vmem:[%s1 + $0x64] sm:$0xf]
    %v122 = vld [vmem:[%s1 + $0x68] sm:$0xf]
    %v123 = vld [vmem:[%s1 + $0x6c] sm:$0xf]
    %v124 = vld [vmem:[%s1 + $0x70] sm:$0xf]
    %v125 = vld [vmem:[%s1 + $0x74] sm:$0xf]
    %v126 = vld [vmem:[%s1 + $0x78] sm:$0xf]
    %v127 = vld [vmem:[%s1 + $0x7c] sm:$0xf]
    %v128 = vld [vmem:[#allocation2] sm:$0xff]
    %v129 = vld [vmem:[#allocation2 + $0x8] sm:$0xff]
    %v130 = vld [vmem:[#allocation2 + $0x10] sm:$0xff]
    %v131 = vld [vmem:[#allocation2 + $0x18] sm:$0xff]
    %v132 = vld [vmem:[#allocation2 + $0x20] sm:$0xff]
    %v133 = vld [vmem:[#allocation2 + $0x28] sm:$0xff]
    %v134 = vld [vmem:[#allocation2 + $0x30] sm:$0xff]
    %v135 = vld [vmem:[#allocation2 + $0x38] sm:$0xff]
    %v136 = vld [vmem:[#allocation2 + $0x40] sm:$0xff]
    %v137 = vld [vmem:[#allocation2 + $0x48] sm:$0xff]
    %v148 = vunpack.c.l.b16 %v86
    %v149 = vunpack.c.h.b16 %v86
    %v150 = vunpack.c.l.b16 %v87
    %v151 = vunpack.c.h.b16 %v87
    %v152 = vunpack.c.l.b16 %v88
    %v153 = vunpack.c.h.b16 %v88
    %v154 = vunpack.c.l.b16 %v89
    %v155 = vunpack.c.h.b16 %v89
    %v156 = vunpack.c.l.b16 %v90
    %v157 = vunpack.c.h.b16 %v90
    %v158 = vunpack.c.l.b16 %v91
    %v159 = vunpack.c.h.b16 %v91
    %v160 = vunpack.c.l.b16 %v92
    %v161 = vunpack.c.h.b16 %v92
    %v162 = vunpack.c.l.b16 %v93
    %v163 = vunpack.c.h.b16 %v93
    %v164 = vunpack.c.l.b16 %v94
    %v165 = vunpack.c.h.b16 %v94
    %v166 = vunpack.c.l.b16 %v95
    %v167 = vunpack.c.h.b16 %v95
    %v168 = vpack.c.b16 %v150, %v148
    %v169 = vpack.c.b16 %v151, %v149
    %v170 = vpack.c.b16 %v154, %v152
    %v171 = vpack.c.b16 %v155, %v153
    %v172 = vpack.c.b16 %v158, %v156
    %v173 = vpack.c.b16 %v159, %v157
    %v174 = vpack.c.b16 %v162, %v160
    %v175 = vpack.c.b16 %v163, %v161
    %v176 = vpack.c.b16 %v166, %v164
    %v177 = vpack.c.b16 %v167, %v165
    %v220 = vunpack.c.l.b16 %v96
    %v221 = vunpack.c.l.b16 %v97
    %v222 = vunpack.c.l.b16 %v98
    %v223 = vunpack.c.l.b16 %v99
    %v224 = vunpack.c.l.b16 %v100
    %v225 = vunpack.c.l.b16 %v101
    %v226 = vunpack.c.l.b16 %v102
    %v227 = vunpack.c.l.b16 %v103
    %v228 = vunpack.c.l.b16 %v104
    %v229 = vunpack.c.l.b16 %v105
    %v230 = vunpack.c.l.b16 %v106
    %v231 = vunpack.c.l.b16 %v107
    %v232 = vunpack.c.l.b16 %v108
    %v233 = vunpack.c.l.b16 %v109
    %v234 = vunpack.c.l.b16 %v110
    %v235 = vunpack.c.l.b16 %v111
    %v236 = vunpack.c.l.b16 %v112
    %v237 = vunpack.c.l.b16 %v113
    %v238 = vunpack.c.l.b16 %v114
    %v239 = vunpack.c.l.b16 %v115
    %v240 = vunpack.c.l.b16 %v116
    %v241 = vunpack.c.l.b16 %v117
    %v242 = vunpack.c.l.b16 %v118
    %v243 = vunpack.c.l.b16 %v119
    %v244 = vunpack.c.l.b16 %v120
    %v245 = vunpack.c.l.b16 %v121
    %v246 = vunpack.c.l.b16 %v122
    %v247 = vunpack.c.l.b16 %v123
    %v248 = vunpack.c.l.b16 %v124
    %v249 = vunpack.c.l.b16 %v125
    %v250 = vunpack.c.l.b16 %v126
    %v251 = vunpack.c.l.b16 %v127
    %v252 = vpack.c.b16 %v221, %v220
    %v253 = vpack.c.b16 %v223, %v222
    %v254 = vpack.c.b16 %v225, %v224
    %v255 = vpack.c.b16 %v227, %v226
    %v256 = vpack.c.b16 %v229, %v228
    %v257 = vpack.c.b16 %v231, %v230
    %v258 = vpack.c.b16 %v233, %v232
    %v259 = vpack.c.b16 %v235, %v234
    %v260 = vpack.c.b16 %v237, %v236
    %v261 = vpack.c.b16 %v239, %v238
    %v262 = vpack.c.b16 %v241, %v240
    %v263 = vpack.c.b16 %v243, %v242
    %v264 = vpack.c.b16 %v245, %v244
    %v265 = vpack.c.b16 %v247, %v246
    %v266 = vpack.c.b16 %v249, %v248
    %v267 = vpack.c.b16 %v251, %v250
    %284 = vmatpush.bf16.msra.mxu0 %v259
    %285 = vmatpush.bf16.msra.mxu0 %v258
    %286 = vmatpush.bf16.msra.mxu0 %v257
    %287 = vmatpush.bf16.msra.mxu0 %v256
    %288 = vmatpush.bf16.msra.mxu0 %v255
    %289 = vmatpush.bf16.msra.mxu0 %v254
    %290 = vmatpush.bf16.msra.mxu0 %v253
    %291 = vmatpush.bf16.msra.mxu0 %v252
    %292 = vmatmul.bf16.gmra.mxu0 %v168
    %v293 = vpop.f32.mrf.mxu0
    %v294 = vadd.f32 %v128, %v293
    %v295 = vpop.f32.mrf.mxu0
    %v296 = vadd.f32 %v129, %v295
    %297 = vmatmul.bf16.gmra.mxu0 %v170
    %v298 = vpop.f32.mrf.mxu0
    %v299 = vadd.f32 %v130, %v298
    %v300 = vpop.f32.mrf.mxu0
    %v301 = vadd.f32 %v131, %v300
    %302 = vmatmul.bf16.gmra.mxu0 %v172
    %v303 = vpop.f32.mrf.mxu0
    %v304 = vadd.f32 %v132, %v303
    %v305 = vpop.f32.mrf.mxu0
    %v306 = vadd.f32 %v133, %v305
    %307 = vmatmul.bf16.gmra.mxu0 %v174
    %v308 = vpop.f32.mrf.mxu0
    %v309 = vadd.f32 %v134, %v308
    %v310 = vpop.f32.mrf.mxu0
    %v311 = vadd.f32 %v135, %v310
    %312 = vmatmul.bf16.gmra.mxu0 %v176
    %v313 = vpop.f32.mrf.mxu0
    %v314 = vadd.f32 %v136, %v313
    %v315 = vpop.f32.mrf.mxu0
    %v316 = vadd.f32 %v137, %v315
    %317 = vdwg.mxu0
    %318 = vmatpush.bf16.msra.mxu0 %v267
    %319 = vmatpush.bf16.msra.mxu0 %v266
    %320 = vmatpush.bf16.msra.mxu0 %v265
    %321 = vmatpush.bf16.msra.mxu0 %v264
    %322 = vmatpush.bf16.msra.mxu0 %v263
    %323 = vmatpush.bf16.msra.mxu0 %v262
    %324 = vmatpush.bf16.msra.mxu0 %v261
    %325 = vmatpush.bf16.msra.mxu0 %v260
    %326 = vmatmul.bf16.gmra.mxu0 %v169
    %v327 = vpop.f32.mrf.mxu0
    %v328 = vadd.f32 %v294, %v327
    %v329 = vpop.f32.mrf.mxu0
    %v330 = vadd.f32 %v296, %v329
    %331 = vmatmul.bf16.gmra.mxu0 %v171
    %v332 = vpop.f32.mrf.mxu0
    %v333 = vadd.f32 %v299, %v332
    %v334 = vpop.f32.mrf.mxu0
    %v335 = vadd.f32 %v301, %v334
    %336 = vmatmul.bf16.gmra.mxu0 %v173
    %v337 = vpop.f32.mrf.mxu0
    %v338 = vadd.f32 %v304, %v337
    %v339 = vpop.f32.mrf.mxu0
    %v340 = vadd.f32 %v306, %v339
    %341 = vmatmul.bf16.gmra.mxu0 %v175
    %v342 = vpop.f32.mrf.mxu0
    %v343 = vadd.f32 %v309, %v342
    %v344 = vpop.f32.mrf.mxu0
    %v345 = vadd.f32 %v311, %v344
    %346 = vmatmul.bf16.gmra.mxu0 %v177
    %v347 = vpop.f32.mrf.mxu0
    %v348 = vadd.f32 %v314, %v347
    %v349 = vpop.f32.mrf.mxu0
    %v350 = vadd.f32 %v316, %v349
    %351 = vdwg.mxu0
    %v352 = vld [vmem:[%s3] sm:$0x1]
    %v353 = vld [vmem:[%s4] sm:$0x1]
    %354 = vadd.xlane.f32.xlu0 %v328
    %v355 = vpop.xlane.xlu0 %354
    %356 = vadd.xlane.f32.xlu0 %v330
    %v357 = vpop.xlane.xlu0 %356
    %358 = vadd.xlane.f32.xlu0 %v333
    %v359 = vpop.xlane.xlu0 %358
    %360 = vadd.xlane.f32.xlu0 %v335
    %v361 = vpop.xlane.xlu0 %360
    %362 = vadd.xlane.f32.xlu0 %v338
    %v363 = vpop.xlane.xlu0 %362
    %364 = vadd.xlane.f32.xlu0 %v340
    %v365 = vpop.xlane.xlu0 %364
    %366 = vadd.xlane.f32.xlu0 %v343
    %v367 = vpop.xlane.xlu0 %366
    %368 = vadd.xlane.f32.xlu0 %v345
    %v369 = vpop.xlane.xlu0 %368
    %370 = vadd.xlane.f32.xlu0 %v348
    %v371 = vpop.xlane.xlu0 %370
    %372 = vadd.xlane.f32.xlu0 %v350
    %v373 = vpop.xlane.xlu0 %372
    %v374 = vrcp.pop 128.0
    %v375 = vmul.f32 128.0, %v374
    %v376 = vsub.f32 1.0, %v375
    %v377 = vmul.f32 %v374, %v376
    %v378 = vadd.f32 %v374, %v377
    %vm379 = vweird.f32 %v374
    %v380 = vsel %vm379, %v374, %v378
    %v381 = vmul.f32 %v355, %v380
    %v382 = vmul.f32 %v357, %v380
    %v383 = vmul.f32 %v359, %v380
    %v384 = vmul.f32 %v361, %v380
    %v385 = vmul.f32 %v363, %v380
    %v386 = vmul.f32 %v365, %v380
    %v387 = vmul.f32 %v367, %v380
    %v388 = vmul.f32 %v369, %v380
    %v389 = vmul.f32 %v371, %v380
    %v390 = vmul.f32 %v373, %v380
    %v391 = vsub.f32 %v328, %v381
    %v392 = vsub.f32 %v330, %v382
    %v393 = vsub.f32 %v333, %v383
    %v394 = vsub.f32 %v335, %v384
    %v395 = vsub.f32 %v338, %v385
    %v396 = vsub.f32 %v340, %v386
    %v397 = vsub.f32 %v343, %v387
    %v398 = vsub.f32 %v345, %v388
    %v399 = vsub.f32 %v348, %v389
    %v400 = vsub.f32 %v350, %v390
    %v401 = vmul.f32 %v391, %v391
    %v402 = vmul.f32 %v392, %v392
    %v403 = vmul.f32 %v393, %v393
    %v404 = vmul.f32 %v394, %v394
    %v405 = vmul.f32 %v395, %v395
    %v406 = vmul.f32 %v396, %v396
    %v407 = vmul.f32 %v397, %v397
    %v408 = vmul.f32 %v398, %v398
    %v409 = vmul.f32 %v399, %v399
    %v410 = vmul.f32 %v400, %v400
    %411 = vadd.xlane.f32.xlu0 %v401
    %v412 = vpop.xlane.xlu0 %411
    %413 = vadd.xlane.f32.xlu0 %v402
    %v414 = vpop.xlane.xlu0 %413
    %415 = vadd.xlane.f32.xlu0 %v403
    %v416 = vpop.xlane.xlu0 %415
    %417 = vadd.xlane.f32.xlu0 %v404
    %v418 = vpop.xlane.xlu0 %417
    %419 = vadd.xlane.f32.xlu0 %v405
    %v420 = vpop.xlane.xlu0 %419
    %421 = vadd.xlane.f32.xlu0 %v406
    %v422 = vpop.xlane.xlu0 %421
    %423 = vadd.xlane.f32.xlu0 %v407
    %v424 = vpop.xlane.xlu0 %423
    %425 = vadd.xlane.f32.xlu0 %v408
    %v426 = vpop.xlane.xlu0 %425
    %427 = vadd.xlane.f32.xlu0 %v409
    %v428 = vpop.xlane.xlu0 %427
    %429 = vadd.xlane.f32.xlu0 %v410
    %v430 = vpop.xlane.xlu0 %429
    %v431 = vmul.f32 %v412, %v380
    %v432 = vmul.f32 %v414, %v380
    %v433 = vmul.f32 %v416, %v380
    %v434 = vmul.f32 %v418, %v380
    %v435 = vmul.f32 %v420, %v380
    %v436 = vmul.f32 %v422, %v380
    %v437 = vmul.f32 %v424, %v380
    %v438 = vmul.f32 %v426, %v380
    %v439 = vmul.f32 %v428, %v380
    %v440 = vmul.f32 %v430, %v380
    %v441 = vadd.f32 %v431, 1e-05
    %v442 = vadd.f32 %v432, 1e-05
    %v443 = vadd.f32 %v433, 1e-05
    %v444 = vadd.f32 %v434, 1e-05
    %v445 = vadd.f32 %v435, 1e-05
    %v446 = vadd.f32 %v436, 1e-05
    %v447 = vadd.f32 %v437, 1e-05
    %v448 = vadd.f32 %v438, 1e-05
    %v449 = vadd.f32 %v439, 1e-05
    %v450 = vadd.f32 %v440, 1e-05
    %v451 = vrsqrt.pop %v441
    %v452 = vmul.f32 %v451, %v441
    %v453 = vmul.f32 %v452, %v451
    %v454 = vmul.f32 0.5, %v453
    %v455 = vsub.f32 1.5, %v454
    %v456 = vmul.f32 %v451, %v455
    %vm457 = vweird.f32 %v441
    %vm458 = vweird.f32 %v451
    %vm459 = vmor %vm457, %vm458
    %v460 = vsel %vm459, %v451, %v456
    %v461 = vrsqrt.pop %v442
    %v462 = vmul.f32 %v461, %v442
    %v463 = vmul.f32 %v462, %v461
    %v464 = vmul.f32 0.5, %v463
    %v465 = vsub.f32 1.5, %v464
    %v466 = vmul.f32 %v461, %v465
    %vm467 = vweird.f32 %v442
    %vm468 = vweird.f32 %v461
    %vm469 = vmor %vm467, %vm468
    %v470 = vsel %vm469, %v461, %v466
    %v471 = vrsqrt.pop %v443
    %v472 = vmul.f32 %v471, %v443
    %v473 = vmul.f32 %v472, %v471
    %v474 = vmul.f32 0.5, %v473
    %v475 = vsub.f32 1.5, %v474
    %v476 = vmul.f32 %v471, %v475
    %vm477 = vweird.f32 %v443
    %vm478 = vweird.f32 %v471
    %vm479 = vmor %vm477, %vm478
    %v480 = vsel %vm479, %v471, %v476
    %v481 = vrsqrt.pop %v444
    %v482 = vmul.f32 %v481, %v444
    %v483 = vmul.f32 %v482, %v481
    %v484 = vmul.f32 0.5, %v483
    %v485 = vsub.f32 1.5, %v484
    %v486 = vmul.f32 %v481, %v485
    %vm487 = vweird.f32 %v444
    %vm488 = vweird.f32 %v481
    %vm489 = vmor %vm487, %vm488
    %v490 = vsel %vm489, %v481, %v486
    %v491 = vrsqrt.pop %v445
    %v492 = vmul.f32 %v491, %v445
    %v493 = vmul.f32 %v492, %v491
    %v494 = vmul.f32 0.5, %v493
    %v495 = vsub.f32 1.5, %v494
    %v496 = vmul.f32 %v491, %v495
    %vm497 = vweird.f32 %v445
    %vm498 = vweird.f32 %v491
    %vm499 = vmor %vm497, %vm498
    %v500 = vsel %vm499, %v491, %v496
    %v501 = vrsqrt.pop %v446
    %v502 = vmul.f32 %v501, %v446
    %v503 = vmul.f32 %v502, %v501
    %v504 = vmul.f32 0.5, %v503
    %v505 = vsub.f32 1.5, %v504
    %v506 = vmul.f32 %v501, %v505
    %vm507 = vweird.f32 %v446
    %vm508 = vweird.f32 %v501
    %vm509 = vmor %vm507, %vm508
    %v510 = vsel %vm509, %v501, %v506
    %v511 = vrsqrt.pop %v447
    %v512 = vmul.f32 %v511, %v447
    %v513 = vmul.f32 %v512, %v511
    %v514 = vmul.f32 0.5, %v513
    %v515 = vsub.f32 1.5, %v514
    %v516 = vmul.f32 %v511, %v515
    %vm517 = vweird.f32 %v447
    %vm518 = vweird.f32 %v511
    %vm519 = vmor %vm517, %vm518
    %v520 = vsel %vm519, %v511, %v516
    %v521 = vrsqrt.pop %v448
    %v522 = vmul.f32 %v521, %v448
    %v523 = vmul.f32 %v522, %v521
    %v524 = vmul.f32 0.5, %v523
    %v525 = vsub.f32 1.5, %v524
    %v526 = vmul.f32 %v521, %v525
    %vm527 = vweird.f32 %v448
    %vm528 = vweird.f32 %v521
    %vm529 = vmor %vm527, %vm528
    %v530 = vsel %vm529, %v521, %v526
    %v531 = vrsqrt.pop %v449
    %v532 = vmul.f32 %v531, %v449
    %v533 = vmul.f32 %v532, %v531
    %v534 = vmul.f32 0.5, %v533
    %v535 = vsub.f32 1.5, %v534
    %v536 = vmul.f32 %v531, %v535
    %vm537 = vweird.f32 %v449
    %vm538 = vweird.f32 %v531
    %vm539 = vmor %vm537, %vm538
    %v540 = vsel %vm539, %v531, %v536
    %v541 = vrsqrt.pop %v450
    %v542 = vmul.f32 %v541, %v450
    %v543 = vmul.f32 %v542, %v541
    %v544 = vmul.f32 0.5, %v543
    %v545 = vsub.f32 1.5, %v544
    %v546 = vmul.f32 %v541, %v545
    %vm547 = vweird.f32 %v450
    %vm548 = vweird.f32 %v541
    %vm549 = vmor %vm547, %vm548
    %v550 = vsel %vm549, %v541, %v546
    %v551 = vmul.f32 %v391, %v460
    %v552 = vmul.f32 %v392, %v470
    %v553 = vmul.f32 %v393, %v480
    %v554 = vmul.f32 %v394, %v490
    %v555 = vmul.f32 %v395, %v500
    %v556 = vmul.f32 %v396, %v510
    %v557 = vmul.f32 %v397, %v520
    %v558 = vmul.f32 %v398, %v530
    %v559 = vmul.f32 %v399, %v540
    %v560 = vmul.f32 %v400, %v550
    %v562 = vperm.slane %v352, 0
    %v564 = vmul.f32 %v551, %v562
    %v565 = vmul.f32 %v552, %v562
    %v566 = vmul.f32 %v553, %v562
    %v567 = vmul.f32 %v554, %v562
    %v568 = vmul.f32 %v555, %v562
    %v569 = vmul.f32 %v556, %v562
    %v570 = vmul.f32 %v557, %v562
    %v571 = vmul.f32 %v558, %v562
    %v572 = vmul.f32 %v559, %v562
    %v573 = vmul.f32 %v560, %v562
    %v575 = vperm.slane %v353, 0
    %v577 = vadd.f32 %v564, %v575
    %v578 = vadd.f32 %v565, %v575
    %v579 = vadd.f32 %v566, %v575
    %v580 = vadd.f32 %v567, %v575
    %v581 = vadd.f32 %v568, %v575
    %v582 = vadd.f32 %v569, %v575
    %v583 = vadd.f32 %v570, %v575
    %v584 = vadd.f32 %v571, %v575
    %v585 = vadd.f32 %v572, %v575
    %v586 = vadd.f32 %v573, %v575
    %v587 = vld [vmem:[%s5] sm:$0x1]
    %v588 = vld [vmem:[%s6] sm:$0x1]
    %589 = vadd.xlane.f32.xlu0 %v577
    %v590 = vpop.xlane.xlu0 %589
    %591 = vadd.xlane.f32.xlu0 %v578
    %v592 = vpop.xlane.xlu0 %591
    %593 = vadd.xlane.f32.xlu0 %v579
    %v594 = vpop.xlane.xlu0 %593
    %595 = vadd.xlane.f32.xlu0 %v580
    %v596 = vpop.xlane.xlu0 %595
    %597 = vadd.xlane.f32.xlu0 %v581
    %v598 = vpop.xlane.xlu0 %597
    %599 = vadd.xlane.f32.xlu0 %v582
    %v600 = vpop.xlane.xlu0 %599
    %601 = vadd.xlane.f32.xlu0 %v583
    %v602 = vpop.xlane.xlu0 %601
    %603 = vadd.xlane.f32.xlu0 %v584
    %v604 = vpop.xlane.xlu0 %603
    %605 = vadd.xlane.f32.xlu0 %v585
    %v606 = vpop.xlane.xlu0 %605
    %607 = vadd.xlane.f32.xlu0 %v586
    %v608 = vpop.xlane.xlu0 %607
    %v609 = vmul.f32 %v590, %v380
    %v610 = vmul.f32 %v592, %v380
    %v611 = vmul.f32 %v594, %v380
    %v612 = vmul.f32 %v596, %v380
    %v613 = vmul.f32 %v598, %v380
    %v614 = vmul.f32 %v600, %v380
    %v615 = vmul.f32 %v602, %v380
    %v616 = vmul.f32 %v604, %v380
    %v617 = vmul.f32 %v606, %v380
    %v618 = vmul.f32 %v608, %v380
    %v619 = vsub.f32 %v577, %v609
    %v620 = vsub.f32 %v578, %v610
    %v621 = vsub.f32 %v579, %v611
    %v622 = vsub.f32 %v580, %v612
    %v623 = vsub.f32 %v581, %v613
    %v624 = vsub.f32 %v582, %v614
    %v625 = vsub.f32 %v583, %v615
    %v626 = vsub.f32 %v584, %v616
    %v627 = vsub.f32 %v585, %v617
    %v628 = vsub.f32 %v586, %v618
    %v629 = vmul.f32 %v619, %v619
    %v630 = vmul.f32 %v620, %v620
    %v631 = vmul.f32 %v621, %v621
    %v632 = vmul.f32 %v622, %v622
    %v633 = vmul.f32 %v623, %v623
    %v634 = vmul.f32 %v624, %v624
    %v635 = vmul.f32 %v625, %v625
    %v636 = vmul.f32 %v626, %v626
    %v637 = vmul.f32 %v627, %v627
    %v638 = vmul.f32 %v628, %v628
    %639 = vadd.xlane.f32.xlu0 %v629
    %v640 = vpop.xlane.xlu0 %639
    %641 = vadd.xlane.f32.xlu0 %v630
    %v642 = vpop.xlane.xlu0 %641
    %643 = vadd.xlane.f32.xlu0 %v631
    %v644 = vpop.xlane.xlu0 %643
    %645 = vadd.xlane.f32.xlu0 %v632
    %v646 = vpop.xlane.xlu0 %645
    %647 = vadd.xlane.f32.xlu0 %v633
    %v648 = vpop.xlane.xlu0 %647
    %649 = vadd.xlane.f32.xlu0 %v634
    %v650 = vpop.xlane.xlu0 %649
    %651 = vadd.xlane.f32.xlu0 %v635
    %v652 = vpop.xlane.xlu0 %651
    %653 = vadd.xlane.f32.xlu0 %v636
    %v654 = vpop.xlane.xlu0 %653
    %655 = vadd.xlane.f32.xlu0 %v637
    %v656 = vpop.xlane.xlu0 %655
    %657 = vadd.xlane.f32.xlu0 %v638
    %v658 = vpop.xlane.xlu0 %657
    %v659 = vmul.f32 %v640, %v380
    %v660 = vmul.f32 %v642, %v380
    %v661 = vmul.f32 %v644, %v380
    %v662 = vmul.f32 %v646, %v380
    %v663 = vmul.f32 %v648, %v380
    %v664 = vmul.f32 %v650, %v380
    %v665 = vmul.f32 %v652, %v380
    %v666 = vmul.f32 %v654, %v380
    %v667 = vmul.f32 %v656, %v380
    %v668 = vmul.f32 %v658, %v380
    %v669 = vadd.f32 %v659, 1e-05
    %v670 = vadd.f32 %v660, 1e-05
    %v671 = vadd.f32 %v661, 1e-05
    %v672 = vadd.f32 %v662, 1e-05
    %v673 = vadd.f32 %v663, 1e-05
    %v674 = vadd.f32 %v664, 1e-05
    %v675 = vadd.f32 %v665, 1e-05
    %v676 = vadd.f32 %v666, 1e-05
    %v677 = vadd.f32 %v667, 1e-05
    %v678 = vadd.f32 %v668, 1e-05
    %v679 = vrsqrt.pop %v669
    %v680 = vmul.f32 %v679, %v669
    %v681 = vmul.f32 %v680, %v679
    %v682 = vmul.f32 0.5, %v681
    %v683 = vsub.f32 1.5, %v682
    %v684 = vmul.f32 %v679, %v683
    %vm685 = vweird.f32 %v669
    %vm686 = vweird.f32 %v679
    %vm687 = vmor %vm685, %vm686
    %v688 = vsel %vm687, %v679, %v684
    %v689 = vrsqrt.pop %v670
    %v690 = vmul.f32 %v689, %v670
    %v691 = vmul.f32 %v690, %v689
    %v692 = vmul.f32 0.5, %v691
    %v693 = vsub.f32 1.5, %v692
    %v694 = vmul.f32 %v689, %v693
    %vm695 = vweird.f32 %v670
    %vm696 = vweird.f32 %v689
    %vm697 = vmor %vm695, %vm696
    %v698 = vsel %vm697, %v689, %v694
    %v699 = vrsqrt.pop %v671
    %v700 = vmul.f32 %v699, %v671
    %v701 = vmul.f32 %v700, %v699
    %v702 = vmul.f32 0.5, %v701
    %v703 = vsub.f32 1.5, %v702
    %v704 = vmul.f32 %v699, %v703
    %vm705 = vweird.f32 %v671
    %vm706 = vweird.f32 %v699
    %vm707 = vmor %vm705, %vm706
    %v708 = vsel %vm707, %v699, %v704
    %v709 = vrsqrt.pop %v672
    %v710 = vmul.f32 %v709, %v672
    %v711 = vmul.f32 %v710, %v709
    %v712 = vmul.f32 0.5, %v711
    %v713 = vsub.f32 1.5, %v712
    %v714 = vmul.f32 %v709, %v713
    %vm715 = vweird.f32 %v672
    %vm716 = vweird.f32 %v709
    %vm717 = vmor %vm715, %vm716
    %v718 = vsel %vm717, %v709, %v714
    %v719 = vrsqrt.pop %v673
    %v720 = vmul.f32 %v719, %v673
    %v721 = vmul.f32 %v720, %v719
    %v722 = vmul.f32 0.5, %v721
    %v723 = vsub.f32 1.5, %v722
    %v724 = vmul.f32 %v719, %v723
    %vm725 = vweird.f32 %v673
    %vm726 = vweird.f32 %v719
    %vm727 = vmor %vm725, %vm726
    %v728 = vsel %vm727, %v719, %v724
    %v729 = vrsqrt.pop %v674
    %v730 = vmul.f32 %v729, %v674
    %v731 = vmul.f32 %v730, %v729
    %v732 = vmul.f32 0.5, %v731
    %v733 = vsub.f32 1.5, %v732
    %v734 = vmul.f32 %v729, %v733
    %vm735 = vweird.f32 %v674
    %vm736 = vweird.f32 %v729
    %vm737 = vmor %vm735, %vm736
    %v738 = vsel %vm737, %v729, %v734
    %v739 = vrsqrt.pop %v675
    %v740 = vmul.f32 %v739, %v675
    %v741 = vmul.f32 %v740, %v739
    %v742 = vmul.f32 0.5, %v741
    %v743 = vsub.f32 1.5, %v742
    %v744 = vmul.f32 %v739, %v743
    %vm745 = vweird.f32 %v675
    %vm746 = vweird.f32 %v739
    %vm747 = vmor %vm745, %vm746
    %v748 = vsel %vm747, %v739, %v744
    %v749 = vrsqrt.pop %v676
    %v750 = vmul.f32 %v749, %v676
    %v751 = vmul.f32 %v750, %v749
    %v752 = vmul.f32 0.5, %v751
    %v753 = vsub.f32 1.5, %v752
    %v754 = vmul.f32 %v749, %v753
    %vm755 = vweird.f32 %v676
    %vm756 = vweird.f32 %v749
    %vm757 = vmor %vm755, %vm756
    %v758 = vsel %vm757, %v749, %v754
    %v759 = vrsqrt.pop %v677
    %v760 = vmul.f32 %v759, %v677
    %v761 = vmul.f32 %v760, %v759
    %v762 = vmul.f32 0.5, %v761
    %v763 = vsub.f32 1.5, %v762
    %v764 = vmul.f32 %v759, %v763
    %vm765 = vweird.f32 %v677
    %vm766 = vweird.f32 %v759
    %vm767 = vmor %vm765, %vm766
    %v768 = vsel %vm767, %v759, %v764
    %v769 = vrsqrt.pop %v678
    %v770 = vmul.f32 %v769, %v678
    %v771 = vmul.f32 %v770, %v769
    %v772 = vmul.f32 0.5, %v771
    %v773 = vsub.f32 1.5, %v772
    %v774 = vmul.f32 %v769, %v773
    %vm775 = vweird.f32 %v678
    %vm776 = vweird.f32 %v769
    %vm777 = vmor %vm775, %vm776
    %v778 = vsel %vm777, %v769, %v774
    %v779 = vmul.f32 %v619, %v688
    %v780 = vmul.f32 %v620, %v698
    %v781 = vmul.f32 %v621, %v708
    %v782 = vmul.f32 %v622, %v718
    %v783 = vmul.f32 %v623, %v728
    %v784 = vmul.f32 %v624, %v738
    %v785 = vmul.f32 %v625, %v748
    %v786 = vmul.f32 %v626, %v758
    %v787 = vmul.f32 %v627, %v768
    %v788 = vmul.f32 %v628, %v778
    %v790 = vperm.slane %v587, 0
    %v792 = vmul.f32 %v779, %v790
    %v793 = vmul.f32 %v780, %v790
    %v794 = vmul.f32 %v781, %v790
    %v795 = vmul.f32 %v782, %v790
    %v796 = vmul.f32 %v783, %v790
    %v797 = vmul.f32 %v784, %v790
    %v798 = vmul.f32 %v785, %v790
    %v799 = vmul.f32 %v786, %v790
    %v800 = vmul.f32 %v787, %v790
    %v801 = vmul.f32 %v788, %v790
    %v803 = vperm.slane %v588, 0
    %v805 = vadd.f32 %v792, %v803
    %v806 = vadd.f32 %v793, %v803
    %v807 = vadd.f32 %v794, %v803
    %v808 = vadd.f32 %v795, %v803
    %v809 = vadd.f32 %v796, %v803
    %v810 = vadd.f32 %v797, %v803
    %v811 = vadd.f32 %v798, %v803
    %v812 = vadd.f32 %v799, %v803
    %v813 = vadd.f32 %v800, %v803
    %v814 = vadd.f32 %v801, %v803
    %v815 = vpack.c.bf16 %v806, %v805
    %v816 = vpack.c.bf16 %v808, %v807
    %v817 = vpack.c.bf16 %v810, %v809
    %v818 = vpack.c.bf16 %v812, %v811
    %v819 = vpack.c.bf16 %v814, %v813
    %v820 = vld [vmem:[%s7] sm:$0xf]
    %v821 = vld [vmem:[%s7 + $0x4] sm:$0xf]
    %v822 = vld [vmem:[%s7 + $0x8] sm:$0xf]
    %v823 = vld [vmem:[%s7 + $0xc] sm:$0xf]
    %v824 = vld [vmem:[%s7 + $0x10] sm:$0xf]
    %v825 = vld [vmem:[%s7 + $0x14] sm:$0xf]
    %v826 = vld [vmem:[%s7 + $0x18] sm:$0xf]
    %v827 = vld [vmem:[%s7 + $0x1c] sm:$0xf]
    %v828 = vld [vmem:[%s7 + $0x20] sm:$0xf]
    %v829 = vld [vmem:[%s7 + $0x24] sm:$0xf]
    %v830 = vld [vmem:[%s7 + $0x28] sm:$0xf]
    %v831 = vld [vmem:[%s7 + $0x2c] sm:$0xf]
    %v832 = vld [vmem:[%s7 + $0x30] sm:$0xf]
    %v833 = vld [vmem:[%s7 + $0x34] sm:$0xf]
    %v834 = vld [vmem:[%s7 + $0x38] sm:$0xf]
    %v835 = vld [vmem:[%s7 + $0x3c] sm:$0xf]
    %v836 = vld [vmem:[%s8] sm:$0x1]
    %v838 = vperm.slane %v836, 0
    %v856 = vunpack.c.l.b16 %v820
    %v857 = vunpack.c.l.b16 %v821
    %v858 = vunpack.c.l.b16 %v822
    %v859 = vunpack.c.l.b16 %v823
    %v860 = vunpack.c.l.b16 %v824
    %v861 = vunpack.c.l.b16 %v825
    %v862 = vunpack.c.l.b16 %v826
    %v863 = vunpack.c.l.b16 %v827
    %v864 = vunpack.c.l.b16 %v828
    %v865 = vunpack.c.l.b16 %v829
    %v866 = vunpack.c.l.b16 %v830
    %v867 = vunpack.c.l.b16 %v831
    %v868 = vunpack.c.l.b16 %v832
    %v869 = vunpack.c.l.b16 %v833
    %v870 = vunpack.c.l.b16 %v834
    %v871 = vunpack.c.l.b16 %v835
    %v872 = vpack.c.b16 %v857, %v856
    %v873 = vpack.c.b16 %v859, %v858
    %v874 = vpack.c.b16 %v861, %v860
    %v875 = vpack.c.b16 %v863, %v862
    %v876 = vpack.c.b16 %v865, %v864
    %v877 = vpack.c.b16 %v867, %v866
    %v878 = vpack.c.b16 %v869, %v868
    %v879 = vpack.c.b16 %v871, %v870
    %888 = vmatpush.bf16.msra.mxu0 %v879
    %889 = vmatpush.bf16.msra.mxu0 %v878
    %890 = vmatpush.bf16.msra.mxu0 %v877
    %891 = vmatpush.bf16.msra.mxu0 %v876
    %892 = vmatpush.bf16.msra.mxu0 %v875
    %893 = vmatpush.bf16.msra.mxu0 %v874
    %894 = vmatpush.bf16.msra.mxu0 %v873
    %895 = vmatpush.bf16.msra.mxu0 %v872
    %896 = vmatmul.bf16.gmra.mxu0 %v815
    %v897 = vpop.f32.mrf.mxu0
    %v898 = vadd.f32 %v838, %v897
    %v899 = vpop.f32.mrf.mxu0
    %v900 = vadd.f32 %v838, %v899
    %901 = vmatmul.bf16.gmra.mxu0 %v816
    %v902 = vpop.f32.mrf.mxu0
    %v903 = vadd.f32 %v838, %v902
    %v904 = vpop.f32.mrf.mxu0
    %v905 = vadd.f32 %v838, %v904
    %906 = vmatmul.bf16.gmra.mxu0 %v817
    %v907 = vpop.f32.mrf.mxu0
    %v908 = vadd.f32 %v838, %v907
    %v909 = vpop.f32.mrf.mxu0
    %v910 = vadd.f32 %v838, %v909
    %911 = vmatmul.bf16.gmra.mxu0 %v818
    %v912 = vpop.f32.mrf.mxu0
    %v913 = vadd.f32 %v838, %v912
    %v914 = vpop.f32.mrf.mxu0
    %v915 = vadd.f32 %v838, %v914
    %916 = vmatmul.bf16.gmra.mxu0 %v819
    %v917 = vpop.f32.mrf.mxu0
    %v918 = vadd.f32 %v838, %v917
    %v919 = vpop.f32.mrf.mxu0
    %v920 = vadd.f32 %v838, %v919
    %921 = vdwg.mxu0
    %v922 = vld [vmem:[%s9] sm:$0xf]
    %v923 = vld [vmem:[%s9 + $0x4] sm:$0xf]
    %v924 = vld [vmem:[%s9 + $0x8] sm:$0xf]
    %v925 = vld [vmem:[%s9 + $0xc] sm:$0xf]
    %v926 = vld [vmem:[%s9 + $0x10] sm:$0xf]
    %v927 = vld [vmem:[%s9 + $0x14] sm:$0xf]
    %v928 = vld [vmem:[%s9 + $0x18] sm:$0xf]
    %v929 = vld [vmem:[%s9 + $0x1c] sm:$0xf]
    %v930 = vld [vmem:[%s9 + $0x20] sm:$0xf]
    %v931 = vld [vmem:[%s9 + $0x24] sm:$0xf]
    %v932 = vld [vmem:[%s9 + $0x28] sm:$0xf]
    %v933 = vld [vmem:[%s9 + $0x2c] sm:$0xf]
    %v934 = vld [vmem:[%s9 + $0x30] sm:$0xf]
    %v935 = vld [vmem:[%s9 + $0x34] sm:$0xf]
    %v936 = vld [vmem:[%s9 + $0x38] sm:$0xf]
    %v937 = vld [vmem:[%s9 + $0x3c] sm:$0xf]
    %v938 = vld [vmem:[%s10] sm:$0x1]
    %v940 = vperm.slane %v938, 0
    %v958 = vunpack.c.l.b16 %v922
    %v959 = vunpack.c.l.b16 %v923
    %v960 = vunpack.c.l.b16 %v924
    %v961 = vunpack.c.l.b16 %v925
    %v962 = vunpack.c.l.b16 %v926
    %v963 = vunpack.c.l.b16 %v927
    %v964 = vunpack.c.l.b16 %v928
    %v965 = vunpack.c.l.b16 %v929
    %v966 = vunpack.c.l.b16 %v930
    %v967 = vunpack.c.l.b16 %v931
    %v968 = vunpack.c.l.b16 %v932
    %v969 = vunpack.c.l.b16 %v933
    %v970 = vunpack.c.l.b16 %v934
    %v971 = vunpack.c.l.b16 %v935
    %v972 = vunpack.c.l.b16 %v936
    %v973 = vunpack.c.l.b16 %v937
    %v974 = vpack.c.b16 %v959, %v958
    %v975 = vpack.c.b16 %v961, %v960
    %v976 = vpack.c.b16 %v963, %v962
    %v977 = vpack.c.b16 %v965, %v964
    %v978 = vpack.c.b16 %v967, %v966
    %v979 = vpack.c.b16 %v969, %v968
    %v980 = vpack.c.b16 %v971, %v970
    %v981 = vpack.c.b16 %v973, %v972
    %990 = vmatpush.bf16.msra.mxu0 %v981
    %991 = vmatpush.bf16.msra.mxu0 %v980
    %992 = vmatpush.bf16.msra.mxu0 %v979
    %993 = vmatpush.bf16.msra.mxu0 %v978
    %994 = vmatpush.bf16.msra.mxu0 %v977
    %995 = vmatpush.bf16.msra.mxu0 %v976
    %996 = vmatpush.bf16.msra.mxu0 %v975
    %997 = vmatpush.bf16.msra.mxu0 %v974
    %998 = vmatmul.bf16.gmra.mxu0 %v815
    %v999 = vpop.f32.mrf.mxu0
    %v1000 = vadd.f32 %v940, %v999
    %v1001 = vpop.f32.mrf.mxu0
    %v1002 = vadd.f32 %v940, %v1001
    %1003 = vmatmul.bf16.gmra.mxu0 %v816
    %v1004 = vpop.f32.mrf.mxu0
    %v1005 = vadd.f32 %v940, %v1004
    %v1006 = vpop.f32.mrf.mxu0
    %v1007 = vadd.f32 %v940, %v1006
    %1008 = vmatmul.bf16.gmra.mxu0 %v817
    %v1009 = vpop.f32.mrf.mxu0
    %v1010 = vadd.f32 %v940, %v1009
    %v1011 = vpop.f32.mrf.mxu0
    %v1012 = vadd.f32 %v940, %v1011
    %1013 = vmatmul.bf16.gmra.mxu0 %v818
    %v1014 = vpop.f32.mrf.mxu0
    %v1015 = vadd.f32 %v940, %v1014
    %v1016 = vpop.f32.mrf.mxu0
    %v1017 = vadd.f32 %v940, %v1016
    %1018 = vmatmul.bf16.gmra.mxu0 %v819
    %v1019 = vpop.f32.mrf.mxu0
    %v1020 = vadd.f32 %v940, %v1019
    %v1021 = vpop.f32.mrf.mxu0
    %v1022 = vadd.f32 %v940, %v1021
    %1023 = vdwg.mxu0
    %v1024 = vld [vmem:[%s11] sm:$0xf]
    %v1025 = vld [vmem:[%s11 + $0x4] sm:$0xf]
    %v1026 = vld [vmem:[%s11 + $0x8] sm:$0xf]
    %v1027 = vld [vmem:[%s11 + $0xc] sm:$0xf]
    %v1028 = vld [vmem:[%s11 + $0x10] sm:$0xf]
    %v1029 = vld [vmem:[%s11 + $0x14] sm:$0xf]
    %v1030 = vld [vmem:[%s11 + $0x18] sm:$0xf]
    %v1031 = vld [vmem:[%s11 + $0x1c] sm:$0xf]
    %v1032 = vld [vmem:[%s11 + $0x20] sm:$0xf]
    %v1033 = vld [vmem:[%s11 + $0x24] sm:$0xf]
    %v1034 = vld [vmem:[%s11 + $0x28] sm:$0xf]
    %v1035 = vld [vmem:[%s11 + $0x2c] sm:$0xf]
    %v1036 = vld [vmem:[%s11 + $0x30] sm:$0xf]
    %v1037 = vld [vmem:[%s11 + $0x34] sm:$0xf]
    %v1038 = vld [vmem:[%s11 + $0x38] sm:$0xf]
    %v1039 = vld [vmem:[%s11 + $0x3c] sm:$0xf]
    %v1040 = vld [vmem:[%s12] sm:$0x1]
    %v1042 = vperm.slane %v1040, 0
    %v1060 = vunpack.c.l.b16 %v1024
    %v1061 = vunpack.c.l.b16 %v1025
    %v1062 = vunpack.c.l.b16 %v1026
    %v1063 = vunpack.c.l.b16 %v1027
    %v1064 = vunpack.c.l.b16 %v1028
    %v1065 = vunpack.c.l.b16 %v1029
    %v1066 = vunpack.c.l.b16 %v1030
    %v1067 = vunpack.c.l.b16 %v1031
    %v1068 = vunpack.c.l.b16 %v1032
    %v1069 = vunpack.c.l.b16 %v1033
    %v1070 = vunpack.c.l.b16 %v1034
    %v1071 = vunpack.c.l.b16 %v1035
    %v1072 = vunpack.c.l.b16 %v1036
    %v1073 = vunpack.c.l.b16 %v1037
    %v1074 = vunpack.c.l.b16 %v1038
    %v1075 = vunpack.c.l.b16 %v1039
    %v1076 = vpack.c.b16 %v1061, %v1060
    %v1077 = vpack.c.b16 %v1063, %v1062
    %v1078 = vpack.c.b16 %v1065, %v1064
    %v1079 = vpack.c.b16 %v1067, %v1066
    %v1080 = vpack.c.b16 %v1069, %v1068
    %v1081 = vpack.c.b16 %v1071, %v1070
    %v1082 = vpack.c.b16 %v1073, %v1072
    %v1083 = vpack.c.b16 %v1075, %v1074
    %1092 = vmatpush.bf16.msra.mxu0 %v1083
    %1093 = vmatpush.bf16.msra.mxu0 %v1082
    %1094 = vmatpush.bf16.msra.mxu0 %v1081
    %1095 = vmatpush.bf16.msra.mxu0 %v1080
    %1096 = vmatpush.bf16.msra.mxu0 %v1079
    %1097 = vmatpush.bf16.msra.mxu0 %v1078
    %1098 = vmatpush.bf16.msra.mxu0 %v1077
    %1099 = vmatpush.bf16.msra.mxu0 %v1076
    %1100 = vmatmul.bf16.gmra.mxu0 %v815
    %v1101 = vpop.f32.mrf.mxu0
    %v1102 = vadd.f32 %v1042, %v1101
    %v1103 = vpop.f32.mrf.mxu0
    %v1104 = vadd.f32 %v1042, %v1103
    %1105 = vmatmul.bf16.gmra.mxu0 %v816
    %v1106 = vpop.f32.mrf.mxu0
    %v1107 = vadd.f32 %v1042, %v1106
    %v1108 = vpop.f32.mrf.mxu0
    %v1109 = vadd.f32 %v1042, %v1108
    %1110 = vmatmul.bf16.gmra.mxu0 %v817
    %v1111 = vpop.f32.mrf.mxu0
    %v1112 = vadd.f32 %v1042, %v1111
    %v1113 = vpop.f32.mrf.mxu0
    %v1114 = vadd.f32 %v1042, %v1113
    %1115 = vmatmul.bf16.gmra.mxu0 %v818
    %v1116 = vpop.f32.mrf.mxu0
    %v1117 = vadd.f32 %v1042, %v1116
    %v1118 = vpop.f32.mrf.mxu0
    %v1119 = vadd.f32 %v1042, %v1118
    %1120 = vmatmul.bf16.gmra.mxu0 %v819
    %v1121 = vpop.f32.mrf.mxu0
    %v1122 = vadd.f32 %v1042, %v1121
    %v1123 = vpop.f32.mrf.mxu0
    %v1124 = vadd.f32 %v1042, %v1123
    %1125 = vdwg.mxu0
    %v1136 = vrot.slane %v898, 1
    %v1137 = vrot.slane %v898, 2
    %v1138 = vrot.slane %v898, 3
    %v1139 = vrot.slane %v898, 4
    %v1140 = vrot.slane %v898, 5
    %v1141 = vrot.slane %v898, 6
    %v1142 = vrot.slane %v898, 7
    %v1143 = vrot.slane %v900, 1
    %v1144 = vrot.slane %v900, 2
    %v1145 = vrot.slane %v900, 3
    %v1146 = vrot.slane %v900, 4
    %v1147 = vrot.slane %v900, 5
    %v1148 = vrot.slane %v900, 6
    %v1149 = vrot.slane %v900, 7
    %v1150 = vrot.slane %v903, 1
    %v1151 = vrot.slane %v903, 2
    %v1152 = vrot.slane %v903, 3
    %v1153 = vrot.slane %v903, 4
    %v1154 = vrot.slane %v903, 5
    %v1155 = vrot.slane %v903, 6
    %v1156 = vrot.slane %v903, 7
    %v1157 = vrot.slane %v905, 1
    %v1158 = vrot.slane %v905, 2
    %v1159 = vrot.slane %v905, 3
    %v1160 = vrot.slane %v905, 4
    %v1161 = vrot.slane %v905, 5
    %v1162 = vrot.slane %v905, 6
    %v1163 = vrot.slane %v905, 7
    %v1164 = vrot.slane %v908, 1
    %v1165 = vrot.slane %v908, 2
    %v1166 = vrot.slane %v908, 3
    %v1167 = vrot.slane %v908, 4
    %v1168 = vrot.slane %v908, 5
    %v1169 = vrot.slane %v908, 6
    %v1170 = vrot.slane %v908, 7
    %v1171 = vrot.slane %v910, 1
    %v1172 = vrot.slane %v910, 2
    %v1173 = vrot.slane %v910, 3
    %v1174 = vrot.slane %v910, 4
    %v1175 = vrot.slane %v910, 5
    %v1176 = vrot.slane %v910, 6
    %v1177 = vrot.slane %v910, 7
    %v1178 = vrot.slane %v913, 1
    %v1179 = vrot.slane %v913, 2
    %v1180 = vrot.slane %v913, 3
    %v1181 = vrot.slane %v913, 4
    %v1182 = vrot.slane %v913, 5
    %v1183 = vrot.slane %v913, 6
    %v1184 = vrot.slane %v913, 7
    %v1185 = vrot.slane %v915, 1
    %v1186 = vrot.slane %v915, 2
    %v1187 = vrot.slane %v915, 3
    %v1188 = vrot.slane %v915, 4
    %v1189 = vrot.slane %v915, 5
    %v1190 = vrot.slane %v915, 6
    %v1191 = vrot.slane %v915, 7
    %v1192 = vrot.slane %v918, 1
    %v1193 = vrot.slane %v918, 2
    %v1194 = vrot.slane %v918, 3
    %v1195 = vrot.slane %v918, 4
    %v1196 = vrot.slane %v918, 5
    %v1197 = vrot.slane %v918, 6
    %v1198 = vrot.slane %v918, 7
    %v1199 = vrot.slane %v920, 1
    %v1200 = vrot.slane %v920, 2
    %v1201 = vrot.slane %v920, 3
    %v1202 = vrot.slane %v920, 4
    %v1203 = vrot.slane %v920, 5
    %v1204 = vrot.slane %v920, 6
    %v1205 = vrot.slane %v920, 7
    %1206 = vst [vmem:[#allocation1] ss:$9 sm:$0xff] %v898
    %s1207 = scalar_lea.vmem [#allocation1], 1
    %1208 = vst [vmem:[%s1207] ss:$9 sm:$0xff] %v1136
    %s1209 = scalar_lea.vmem [#allocation1], 2
    %1210 = vst [vmem:[%s1209] ss:$9 sm:$0xff] %v1137
    %s1211 = scalar_lea.vmem [#allocation1], 3
    %1212 = vst [vmem:[%s1211] ss:$9 sm:$0xff] %v1138
    %s1213 = scalar_lea.vmem [#allocation1], 4
    %1214 = vst [vmem:[%s1213] ss:$9 sm:$0xff] %v1139
    %v1215 = vld [vmem:[#allocation1] sm:$0xff]
    %1216 = vst [vmem:[#allocation1] ss:$9 sm:$0xff] %v1140
    %1217 = vst [vmem:[%s1207] ss:$9 sm:$0xff] %v1141
    %1218 = vst [vmem:[%s1209] ss:$9 sm:$0xff] %v1142
    %1219 = vst [vmem:[%s1211] ss:$9 sm:$0xff] %v900
    %1220 = vst [vmem:[%s1213] ss:$9 sm:$0xff] %v1143
    %v1221 = vld [vmem:[#allocation1] sm:$0xff]
    %1222 = vst [vmem:[#allocation1] ss:$9 sm:$0xff] %v1144
    %1223 = vst [vmem:[%s1207] ss:$9 sm:$0xff] %v1145
    %1224 = vst [vmem:[%s1209] ss:$9 sm:$0xff] %v1146
    %1225 = vst [vmem:[%s1211] ss:$9 sm:$0xff] %v1147
    %1226 = vst [vmem:[%s1213] ss:$9 sm:$0xff] %v1148
    %v1227 = vld [vmem:[#allocation1] sm:$0xff]
    %1228 = vst [vmem:[#allocation1] ss:$9 sm:$0xff] %v1149
    %1229 = vst [vmem:[%s1207] ss:$9 sm:$0xff] %v903
    %1230 = vst [vmem:[%s1209] ss:$9 sm:$0xff] %v1150
    %1231 = vst [vmem:[%s1211] ss:$9 sm:$0xff] %v1151
    %1232 = vst [vmem:[%s1213] ss:$9 sm:$0xff] %v1152
    %v1233 = vld [vmem:[#allocation1] sm:$0xff]
    %1234 = vst [vmem:[#allocation1] ss:$9 sm:$0xff] %v1153
    %1235 = vst [vmem:[%s1207] ss:$9 sm:$0xff] %v1154
    %1236 = vst [vmem:[%s1209] ss:$9 sm:$0xff] %v1155
    %1237 = vst [vmem:[%s1211] ss:$9 sm:$0xff] %v1156
    %1238 = vst [vmem:[%s1213] ss:$9 sm:$0xff] %v905
    %v1239 = vld [vmem:[#allocation1] sm:$0xff]
    %1240 = vst [vmem:[#allocation1] ss:$9 sm:$0xff] %v1157
    %1241 = vst [vmem:[%s1207] ss:$9 sm:$0xff] %v1158
    %1242 = vst [vmem:[%s1209] ss:$9 sm:$0xff] %v1159
    %1243 = vst [vmem:[%s1211] ss:$9 sm:$0xff] %v1160
    %1244 = vst [vmem:[%s1213] ss:$9 sm:$0xff] %v1161
    %v1245 = vld [vmem:[#allocation1] sm:$0xff]
    %1246 = vst [vmem:[#allocation1] ss:$9 sm:$0xff] %v1162
    %1247 = vst [vmem:[%s1207] ss:$9 sm:$0xff] %v1163
    %1248 = vst [vmem:[%s1209] ss:$9 sm:$0xff] %v908
    %1249 = vst [vmem:[%s1211] ss:$9 sm:$0xff] %v1164
    %1250 = vst [vmem:[%s1213] ss:$9 sm:$0xff] %v1165
    %v1251 = vld [vmem:[#allocation1] sm:$0xff]
    %1252 = vst [vmem:[#allocation1] ss:$9 sm:$0xff] %v1166
    %1253 = vst [vmem:[%s1207] ss:$9 sm:$0xff] %v1167
    %1254 = vst [vmem:[%s1209] ss:$9 sm:$0xff] %v1168
    %1255 = vst [vmem:[%s1211] ss:$9 sm:$0xff] %v1169
    %1256 = vst [vmem:[%s1213] ss:$9 sm:$0xff] %v1170
    %v1257 = vld [vmem:[#allocation1] sm:$0xff]
    %1258 = vst [vmem:[#allocation1] ss:$9 sm:$0xff] %v910
    %1259 = vst [vmem:[%s1207] ss:$9 sm:$0xff] %v1171
    %1260 = vst [vmem:[%s1209] ss:$9 sm:$0xff] %v1172
    %1261 = vst [vmem:[%s1211] ss:$9 sm:$0xff] %v1173
    %1262 = vst [vmem:[%s1213] ss:$9 sm:$0xff] %v1174
    %v1263 = vld [vmem:[#allocation1] sm:$0xff]
    %1264 = vst [vmem:[#allocation1] ss:$9 sm:$0xff] %v1175
    %1265 = vst [vmem:[%s1207] ss:$9 sm:$0xff] %v1176
    %1266 = vst [vmem:[%s1209] ss:$9 sm:$0xff] %v1177
    %1267 = vst [vmem:[%s1211] ss:$9 sm:$0xff] %v913
    %1268 = vst [vmem:[%s1213] ss:$9 sm:$0xff] %v1178
    %v1269 = vld [vmem:[#allocation1] sm:$0xff]
    %1270 = vst [vmem:[#allocation1] ss:$9 sm:$0xff] %v1179
    %1271 = vst [vmem:[%s1207] ss:$9 sm:$0xff] %v1180
    %1272 = vst [vmem:[%s1209] ss:$9 sm:$0xff] %v1181
    %1273 = vst [vmem:[%s1211] ss:$9 sm:$0xff] %v1182
    %1274 = vst [vmem:[%s1213] ss:$9 sm:$0xff] %v1183
    %v1275 = vld [vmem:[#allocation1] sm:$0xff]
    %1276 = vst [vmem:[#allocation1] ss:$9 sm:$0xff] %v1184
    %1277 = vst [vmem:[%s1207] ss:$9 sm:$0xff] %v915
    %1278 = vst [vmem:[%s1209] ss:$9 sm:$0xff] %v1185
    %1279 = vst [vmem:[%s1211] ss:$9 sm:$0xff] %v1186
    %1280 = vst [vmem:[%s1213] ss:$9 sm:$0xff] %v1187
    %v1281 = vld [vmem:[#allocation1] sm:$0xff]
    %1282 = vst [vmem:[#allocation1] ss:$9 sm:$0xff] %v1188
    %1283 = vst [vmem:[%s1207] ss:$9 sm:$0xff] %v1189
    %1284 = vst [vmem:[%s1209] ss:$9 sm:$0xff] %v1190
    %1285 = vst [vmem:[%s1211] ss:$9 sm:$0xff] %v1191
    %1286 = vst [vmem:[%s1213] ss:$9 sm:$0xff] %v918
    %v1287 = vld [vmem:[#allocation1] sm:$0xff]
    %1288 = vst [vmem:[#allocation1] ss:$9 sm:$0xff] %v1192
    %1289 = vst [vmem:[%s1207] ss:$9 sm:$0xff] %v1193
    %1290 = vst [vmem:[%s1209] ss:$9 sm:$0xff] %v1194
    %1291 = vst [vmem:[%s1211] ss:$9 sm:$0xff] %v1195
    %1292 = vst [vmem:[%s1213] ss:$9 sm:$0xff] %v1196
    %v1293 = vld [vmem:[#allocation1] sm:$0xff]
    %1294 = vst [vmem:[#allocation1] ss:$9 sm:$0xff] %v1197
    %1295 = vst [vmem:[%s1207] ss:$9 sm:$0xff] %v1198
    %1296 = vst [vmem:[%s1209] ss:$9 sm:$0xff] %v920
    %1297 = vst [vmem:[%s1211] ss:$9 sm:$0xff] %v1199
    %1298 = vst [vmem:[%s1213] ss:$9 sm:$0xff] %v1200
    %v1299 = vld [vmem:[#allocation1] sm:$0xff]
    %1300 = vst [vmem:[#allocation1] ss:$9 sm:$0xff] %v1201
    %1301 = vst [vmem:[%s1207] ss:$9 sm:$0xff] %v1202
    %1302 = vst [vmem:[%s1209] ss:$9 sm:$0xff] %v1203
    %1303 = vst [vmem:[%s1211] ss:$9 sm:$0xff] %v1204
    %1304 = vst [vmem:[%s1213] ss:$9 sm:$0xff] %v1205
    %v1305 = vld [vmem:[#allocation1] sm:$0xff]
    %v1322 = vpack.c.bf16 %v1215, %v1215
    %v1323 = vpack.c.bf16 %v1221, %v1221
    %v1324 = vpack.c.bf16 %v1227, %v1227
    %v1325 = vpack.c.bf16 %v1233, %v1233
    %v1326 = vpack.c.bf16 %v1239, %v1239
    %v1327 = vpack.c.bf16 %v1245, %v1245
    %v1328 = vpack.c.bf16 %v1251, %v1251
    %v1329 = vpack.c.bf16 %v1257, %v1257
    %v1330 = vpack.c.bf16 %v1263, %v1263
    %v1331 = vpack.c.bf16 %v1269, %v1269
    %v1332 = vpack.c.bf16 %v1275, %v1275
    %v1333 = vpack.c.bf16 %v1281, %v1281
    %v1334 = vpack.c.bf16 %v1287, %v1287
    %v1335 = vpack.c.bf16 %v1293, %v1293
    %v1336 = vpack.c.bf16 %v1299, %v1299
    %v1337 = vpack.c.bf16 %v1305, %v1305
    %v1348 = vrot.slane %v1000, 1
    %v1349 = vrot.slane %v1000, 2
    %v1350 = vrot.slane %v1000, 3
    %v1351 = vrot.slane %v1000, 4
    %v1352 = vrot.slane %v1000, 5
    %v1353 = vrot.slane %v1000, 6
    %v1354 = vrot.slane %v1000, 7
    %v1355 = vrot.slane %v1002, 1
    %v1356 = vrot.slane %v1002, 2
    %v1357 = vrot.slane %v1002, 3
    %v1358 = vrot.slane %v1002, 4
    %v1359 = vrot.slane %v1002, 5
    %v1360 = vrot.slane %v1002, 6
    %v1361 = vrot.slane %v1002, 7
    %v1362 = vrot.slane %v1005, 1
    %v1363 = vrot.slane %v1005, 2
    %v1364 = vrot.slane %v1005, 3
    %v1365 = vrot.slane %v1005, 4
    %v1366 = vrot.slane %v1005, 5
    %v1367 = vrot.slane %v1005, 6
    %v1368 = vrot.slane %v1005, 7
    %v1369 = vrot.slane %v1007, 1
    %v1370 = vrot.slane %v1007, 2
    %v1371 = vrot.slane %v1007, 3
    %v1372 = vrot.slane %v1007, 4
    %v1373 = vrot.slane %v1007, 5
    %v1374 = vrot.slane %v1007, 6
    %v1375 = vrot.slane %v1007, 7
    %v1376 = vrot.slane %v1010, 1
    %v1377 = vrot.slane %v1010, 2
    %v1378 = vrot.slane %v1010, 3
    %v1379 = vrot.slane %v1010, 4
    %v1380 = vrot.slane %v1010, 5
    %v1381 = vrot.slane %v1010, 6
    %v1382 = vrot.slane %v1010, 7
    %v1383 = vrot.slane %v1012, 1
    %v1384 = vrot.slane %v1012, 2
    %v1385 = vrot.slane %v1012, 3
    %v1386 = vrot.slane %v1012, 4
    %v1387 = vrot.slane %v1012, 5
    %v1388 = vrot.slane %v1012, 6
    %v1389 = vrot.slane %v1012, 7
    %v1390 = vrot.slane %v1015, 1
    %v1391 = vrot.slane %v1015, 2
    %v1392 = vrot.slane %v1015, 3
    %v1393 = vrot.slane %v1015, 4
    %v1394 = vrot.slane %v1015, 5
    %v1395 = vrot.slane %v1015, 6
    %v1396 = vrot.slane %v1015, 7
    %v1397 = vrot.slane %v1017, 1
    %v1398 = vrot.slane %v1017, 2
    %v1399 = vrot.slane %v1017, 3
    %v1400 = vrot.slane %v1017, 4
    %v1401 = vrot.slane %v1017, 5
    %v1402 = vrot.slane %v1017, 6
    %v1403 = vrot.slane %v1017, 7
    %v1404 = vrot.slane %v1020, 1
    %v1405 = vrot.slane %v1020, 2
    %v1406 = vrot.slane %v1020, 3
    %v1407 = vrot.slane %v1020, 4
    %v1408 = vrot.slane %v1020, 5
    %v1409 = vrot.slane %v1020, 6
    %v1410 = vrot.slane %v1020, 7
    %v1411 = vrot.slane %v1022, 1
    %v1412 = vrot.slane %v1022, 2
    %v1413 = vrot.slane %v1022, 3
    %v1414 = vrot.slane %v1022, 4
    %v1415 = vrot.slane %v1022, 5
    %v1416 = vrot.slane %v1022, 6
    %v1417 = vrot.slane %v1022, 7
    %1418 = vst [vmem:[#allocation1] ss:$9 sm:$0xff] %v1000
    %s1419 = scalar_lea.vmem [#allocation1], 1
    %1420 = vst [vmem:[%s1419] ss:$9 sm:$0xff] %v1348
    %s1421 = scalar_lea.vmem [#allocation1], 2
    %1422 = vst [vmem:[%s1421] ss:$9 sm:$0xff] %v1349
    %s1423 = scalar_lea.vmem [#allocation1], 3
    %1424 = vst [vmem:[%s1423] ss:$9 sm:$0xff] %v1350
    %s1425 = scalar_lea.vmem [#allocation1], 4
    %1426 = vst [vmem:[%s1425] ss:$9 sm:$0xff] %v1351
    %v1427 = vld [vmem:[#allocation1] sm:$0xff]
    %1428 = vst [vmem:[#allocation1] ss:$9 sm:$0xff] %v1352
    %1429 = vst [vmem:[%s1419] ss:$9 sm:$0xff] %v1353
    %1430 = vst [vmem:[%s1421] ss:$9 sm:$0xff] %v1354
    %1431 = vst [vmem:[%s1423] ss:$9 sm:$0xff] %v1002
    %1432 = vst [vmem:[%s1425] ss:$9 sm:$0xff] %v1355
    %v1433 = vld [vmem:[#allocation1] sm:$0xff]
    %1434 = vst [vmem:[#allocation1] ss:$9 sm:$0xff] %v1356
    %1435 = vst [vmem:[%s1419] ss:$9 sm:$0xff] %v1357
    %1436 = vst [vmem:[%s1421] ss:$9 sm:$0xff] %v1358
    %1437 = vst [vmem:[%s1423] ss:$9 sm:$0xff] %v1359
    %1438 = vst [vmem:[%s1425] ss:$9 sm:$0xff] %v1360
    %v1439 = vld [vmem:[#allocation1] sm:$0xff]
    %1440 = vst [vmem:[#allocation1] ss:$9 sm:$0xff] %v1361
    %1441 = vst [vmem:[%s1419] ss:$9 sm:$0xff] %v1005
    %1442 = vst [vmem:[%s1421] ss:$9 sm:$0xff] %v1362
    %1443 = vst [vmem:[%s1423] ss:$9 sm:$0xff] %v1363
    %1444 = vst [vmem:[%s1425] ss:$9 sm:$0xff] %v1364
    %v1445 = vld [vmem:[#allocation1] sm:$0xff]
    %1446 = vst [vmem:[#allocation1] ss:$9 sm:$0xff] %v1365
    %1447 = vst [vmem:[%s1419] ss:$9 sm:$0xff] %v1366
    %1448 = vst [vmem:[%s1421] ss:$9 sm:$0xff] %v1367
    %1449 = vst [vmem:[%s1423] ss:$9 sm:$0xff] %v1368
    %1450 = vst [vmem:[%s1425] ss:$9 sm:$0xff] %v1007
    %v1451 = vld [vmem:[#allocation1] sm:$0xff]
    %1452 = vst [vmem:[#allocation1] ss:$9 sm:$0xff] %v1369
    %1453 = vst [vmem:[%s1419] ss:$9 sm:$0xff] %v1370
    %1454 = vst [vmem:[%s1421] ss:$9 sm:$0xff] %v1371
    %1455 = vst [vmem:[%s1423] ss:$9 sm:$0xff] %v1372
    %1456 = vst [vmem:[%s1425] ss:$9 sm:$0xff] %v1373
    %v1457 = vld [vmem:[#allocation1] sm:$0xff]
    %1458 = vst [vmem:[#allocation1] ss:$9 sm:$0xff] %v1374
    %1459 = vst [vmem:[%s1419] ss:$9 sm:$0xff] %v1375
    %1460 = vst [vmem:[%s1421] ss:$9 sm:$0xff] %v1010
    %1461 = vst [vmem:[%s1423] ss:$9 sm:$0xff] %v1376
    %1462 = vst [vmem:[%s1425] ss:$9 sm:$0xff] %v1377
    %v1463 = vld [vmem:[#allocation1] sm:$0xff]
    %1464 = vst [vmem:[#allocation1] ss:$9 sm:$0xff] %v1378
    %1465 = vst [vmem:[%s1419] ss:$9 sm:$0xff] %v1379
    %1466 = vst [vmem:[%s1421] ss:$9 sm:$0xff] %v1380
    %1467 = vst [vmem:[%s1423] ss:$9 sm:$0xff] %v1381
    %1468 = vst [vmem:[%s1425] ss:$9 sm:$0xff] %v1382
    %v1469 = vld [vmem:[#allocation1] sm:$0xff]
    %1470 = vst [vmem:[#allocation1] ss:$9 sm:$0xff] %v1012
    %1471 = vst [vmem:[%s1419] ss:$9 sm:$0xff] %v1383
    %1472 = vst [vmem:[%s1421] ss:$9 sm:$0xff] %v1384
    %1473 = vst [vmem:[%s1423] ss:$9 sm:$0xff] %v1385
    %1474 = vst [vmem:[%s1425] ss:$9 sm:$0xff] %v1386
    %v1475 = vld [vmem:[#allocation1] sm:$0xff]
    %1476 = vst [vmem:[#allocation1] ss:$9 sm:$0xff] %v1387
    %1477 = vst [vmem:[%s1419] ss:$9 sm:$0xff] %v1388
    %1478 = vst [vmem:[%s1421] ss:$9 sm:$0xff] %v1389
    %1479 = vst [vmem:[%s1423] ss:$9 sm:$0xff] %v1015
    %1480 = vst [vmem:[%s1425] ss:$9 sm:$0xff] %v1390
    %v1481 = vld [vmem:[#allocation1] sm:$0xff]
    %1482 = vst [vmem:[#allocation1] ss:$9 sm:$0xff] %v1391
    %1483 = vst [vmem:[%s1419] ss:$9 sm:$0xff] %v1392
    %1484 = vst [vmem:[%s1421] ss:$9 sm:$0xff] %v1393
    %1485 = vst [vmem:[%s1423] ss:$9 sm:$0xff] %v1394
    %1486 = vst [vmem:[%s1425] ss:$9 sm:$0xff] %v1395
    %v1487 = vld [vmem:[#allocation1] sm:$0xff]
    %1488 = vst [vmem:[#allocation1] ss:$9 sm:$0xff] %v1396
    %1489 = vst [vmem:[%s1419] ss:$9 sm:$0xff] %v1017
    %1490 = vst [vmem:[%s1421] ss:$9 sm:$0xff] %v1397
    %1491 = vst [vmem:[%s1423] ss:$9 sm:$0xff] %v1398
    %1492 = vst [vmem:[%s1425] ss:$9 sm:$0xff] %v1399
    %v1493 = vld [vmem:[#allocation1] sm:$0xff]
    %1494 = vst [vmem:[#allocation1] ss:$9 sm:$0xff] %v1400
    %1495 = vst [vmem:[%s1419] ss:$9 sm:$0xff] %v1401
    %1496 = vst [vmem:[%s1421] ss:$9 sm:$0xff] %v1402
    %1497 = vst [vmem:[%s1423] ss:$9 sm:$0xff] %v1403
    %1498 = vst [vmem:[%s1425] ss:$9 sm:$0xff] %v1020
    %v1499 = vld [vmem:[#allocation1] sm:$0xff]
    %1500 = vst [vmem:[#allocation1] ss:$9 sm:$0xff] %v1404
    %1501 = vst [vmem:[%s1419] ss:$9 sm:$0xff] %v1405
    %1502 = vst [vmem:[%s1421] ss:$9 sm:$0xff] %v1406
    %1503 = vst [vmem:[%s1423] ss:$9 sm:$0xff] %v1407
    %1504 = vst [vmem:[%s1425] ss:$9 sm:$0xff] %v1408
    %v1505 = vld [vmem:[#allocation1] sm:$0xff]
    %1506 = vst [vmem:[#allocation1] ss:$9 sm:$0xff] %v1409
    %1507 = vst [vmem:[%s1419] ss:$9 sm:$0xff] %v1410
    %1508 = vst [vmem:[%s1421] ss:$9 sm:$0xff] %v1022
    %1509 = vst [vmem:[%s1423] ss:$9 sm:$0xff] %v1411
    %1510 = vst [vmem:[%s1425] ss:$9 sm:$0xff] %v1412
    %v1511 = vld [vmem:[#allocation1] sm:$0xff]
    %1512 = vst [vmem:[#allocation1] ss:$9 sm:$0xff] %v1413
    %1513 = vst [vmem:[%s1419] ss:$9 sm:$0xff] %v1414
    %1514 = vst [vmem:[%s1421] ss:$9 sm:$0xff] %v1415
    %1515 = vst [vmem:[%s1423] ss:$9 sm:$0xff] %v1416
    %1516 = vst [vmem:[%s1425] ss:$9 sm:$0xff] %v1417
    %v1517 = vld [vmem:[#allocation1] sm:$0xff]
    %v1534 = vpack.c.bf16 %v1427, %v1427
    %v1535 = vpack.c.bf16 %v1433, %v1433
    %v1536 = vpack.c.bf16 %v1439, %v1439
    %v1537 = vpack.c.bf16 %v1445, %v1445
    %v1538 = vpack.c.bf16 %v1451, %v1451
    %v1539 = vpack.c.bf16 %v1457, %v1457
    %v1540 = vpack.c.bf16 %v1463, %v1463
    %v1541 = vpack.c.bf16 %v1469, %v1469
    %v1542 = vpack.c.bf16 %v1475, %v1475
    %v1543 = vpack.c.bf16 %v1481, %v1481
    %v1544 = vpack.c.bf16 %v1487, %v1487
    %v1545 = vpack.c.bf16 %v1493, %v1493
    %v1546 = vpack.c.bf16 %v1499, %v1499
    %v1547 = vpack.c.bf16 %v1505, %v1505
    %v1548 = vpack.c.bf16 %v1511, %v1511
    %v1549 = vpack.c.bf16 %v1517, %v1517
    %v1560 = vrot.slane %v1102, 1
    %v1561 = vrot.slane %v1102, 2
    %v1562 = vrot.slane %v1102, 3
    %v1563 = vrot.slane %v1102, 4
    %v1564 = vrot.slane %v1102, 5
    %v1565 = vrot.slane %v1102, 6
    %v1566 = vrot.slane %v1102, 7
    %v1567 = vrot.slane %v1104, 1
    %v1568 = vrot.slane %v1104, 2
    %v1569 = vrot.slane %v1104, 3
    %v1570 = vrot.slane %v1104, 4
    %v1571 = vrot.slane %v1104, 5
    %v1572 = vrot.slane %v1104, 6
    %v1573 = vrot.slane %v1104, 7
    %v1574 = vrot.slane %v1107, 1
    %v1575 = vrot.slane %v1107, 2
    %v1576 = vrot.slane %v1107, 3
    %v1577 = vrot.slane %v1107, 4
    %v1578 = vrot.slane %v1107, 5
    %v1579 = vrot.slane %v1107, 6
    %v1580 = vrot.slane %v1107, 7
    %v1581 = vrot.slane %v1109, 1
    %v1582 = vrot.slane %v1109, 2
    %v1583 = vrot.slane %v1109, 3
    %v1584 = vrot.slane %v1109, 4
    %v1585 = vrot.slane %v1109, 5
    %v1586 = vrot.slane %v1109, 6
    %v1587 = vrot.slane %v1109, 7
    %v1588 = vrot.slane %v1112, 1
    %v1589 = vrot.slane %v1112, 2
    %v1590 = vrot.slane %v1112, 3
    %v1591 = vrot.slane %v1112, 4
    %v1592 = vrot.slane %v1112, 5
    %v1593 = vrot.slane %v1112, 6
    %v1594 = vrot.slane %v1112, 7
    %v1595 = vrot.slane %v1114, 1
    %v1596 = vrot.slane %v1114, 2
    %v1597 = vrot.slane %v1114, 3
    %v1598 = vrot.slane %v1114, 4
    %v1599 = vrot.slane %v1114, 5
    %v1600 = vrot.slane %v1114, 6
    %v1601 = vrot.slane %v1114, 7
    %v1602 = vrot.slane %v1117, 1
    %v1603 = vrot.slane %v1117, 2
    %v1604 = vrot.slane %v1117, 3
    %v1605 = vrot.slane %v1117, 4
    %v1606 = vrot.slane %v1117, 5
    %v1607 = vrot.slane %v1117, 6
    %v1608 = vrot.slane %v1117, 7
    %v1609 = vrot.slane %v1119, 1
    %v1610 = vrot.slane %v1119, 2
    %v1611 = vrot.slane %v1119, 3
    %v1612 = vrot.slane %v1119, 4
    %v1613 = vrot.slane %v1119, 5
    %v1614 = vrot.slane %v1119, 6
    %v1615 = vrot.slane %v1119, 7
    %v1616 = vrot.slane %v1122, 1
    %v1617 = vrot.slane %v1122, 2
    %v1618 = vrot.slane %v1122, 3
    %v1619 = vrot.slane %v1122, 4
    %v1620 = vrot.slane %v1122, 5
    %v1621 = vrot.slane %v1122, 6
    %v1622 = vrot.slane %v1122, 7
    %v1623 = vrot.slane %v1124, 1
    %v1624 = vrot.slane %v1124, 2
    %v1625 = vrot.slane %v1124, 3
    %v1626 = vrot.slane %v1124, 4
    %v1627 = vrot.slane %v1124, 5
    %v1628 = vrot.slane %v1124, 6
    %v1629 = vrot.slane %v1124, 7
    %1630 = vst [vmem:[#allocation1] ss:$9 sm:$0xff] %v1102
    %s1631 = scalar_lea.vmem [#allocation1], 1
    %1632 = vst [vmem:[%s1631] ss:$9 sm:$0xff] %v1560
    %s1633 = scalar_lea.vmem [#allocation1], 2
    %1634 = vst [vmem:[%s1633] ss:$9 sm:$0xff] %v1561
    %s1635 = scalar_lea.vmem [#allocation1], 3
    %1636 = vst [vmem:[%s1635] ss:$9 sm:$0xff] %v1562
    %s1637 = scalar_lea.vmem [#allocation1], 4
    %1638 = vst [vmem:[%s1637] ss:$9 sm:$0xff] %v1563
    %v1639 = vld [vmem:[#allocation1] sm:$0xff]
    %1640 = vst [vmem:[#allocation1] ss:$9 sm:$0xff] %v1564
    %1641 = vst [vmem:[%s1631] ss:$9 sm:$0xff] %v1565
    %1642 = vst [vmem:[%s1633] ss:$9 sm:$0xff] %v1566
    %1643 = vst [vmem:[%s1635] ss:$9 sm:$0xff] %v1104
    %1644 = vst [vmem:[%s1637] ss:$9 sm:$0xff] %v1567
    %v1645 = vld [vmem:[#allocation1] sm:$0xff]
    %1646 = vst [vmem:[#allocation1] ss:$9 sm:$0xff] %v1568
    %1647 = vst [vmem:[%s1631] ss:$9 sm:$0xff] %v1569
    %1648 = vst [vmem:[%s1633] ss:$9 sm:$0xff] %v1570
    %1649 = vst [vmem:[%s1635] ss:$9 sm:$0xff] %v1571
    %1650 = vst [vmem:[%s1637] ss:$9 sm:$0xff] %v1572
    %v1651 = vld [vmem:[#allocation1] sm:$0xff]
    %1652 = vst [vmem:[#allocation1] ss:$9 sm:$0xff] %v1573
    %1653 = vst [vmem:[%s1631] ss:$9 sm:$0xff] %v1107
    %1654 = vst [vmem:[%s1633] ss:$9 sm:$0xff] %v1574
    %1655 = vst [vmem:[%s1635] ss:$9 sm:$0xff] %v1575
    %1656 = vst [vmem:[%s1637] ss:$9 sm:$0xff] %v1576
    %v1657 = vld [vmem:[#allocation1] sm:$0xff]
    %1658 = vst [vmem:[#allocation1] ss:$9 sm:$0xff] %v1577
    %1659 = vst [vmem:[%s1631] ss:$9 sm:$0xff] %v1578
    %1660 = vst [vmem:[%s1633] ss:$9 sm:$0xff] %v1579
    %1661 = vst [vmem:[%s1635] ss:$9 sm:$0xff] %v1580
    %1662 = vst [vmem:[%s1637] ss:$9 sm:$0xff] %v1109
    %v1663 = vld [vmem:[#allocation1] sm:$0xff]
    %1664 = vst [vmem:[#allocation1] ss:$9 sm:$0xff] %v1581
    %1665 = vst [vmem:[%s1631] ss:$9 sm:$0xff] %v1582
    %1666 = vst [vmem:[%s1633] ss:$9 sm:$0xff] %v1583
    %1667 = vst [vmem:[%s1635] ss:$9 sm:$0xff] %v1584
    %1668 = vst [vmem:[%s1637] ss:$9 sm:$0xff] %v1585
    %v1669 = vld [vmem:[#allocation1] sm:$0xff]
    %1670 = vst [vmem:[#allocation1] ss:$9 sm:$0xff] %v1586
    %1671 = vst [vmem:[%s1631] ss:$9 sm:$0xff] %v1587
    %1672 = vst [vmem:[%s1633] ss:$9 sm:$0xff] %v1112
    %1673 = vst [vmem:[%s1635] ss:$9 sm:$0xff] %v1588
    %1674 = vst [vmem:[%s1637] ss:$9 sm:$0xff] %v1589
    %v1675 = vld [vmem:[#allocation1] sm:$0xff]
    %1676 = vst [vmem:[#allocation1] ss:$9 sm:$0xff] %v1590
    %1677 = vst [vmem:[%s1631] ss:$9 sm:$0xff] %v1591
    %1678 = vst [vmem:[%s1633] ss:$9 sm:$0xff] %v1592
    %1679 = vst [vmem:[%s1635] ss:$9 sm:$0xff] %v1593
    %1680 = vst [vmem:[%s1637] ss:$9 sm:$0xff] %v1594
    %v1681 = vld [vmem:[#allocation1] sm:$0xff]
    %1682 = vst [vmem:[#allocation1] ss:$9 sm:$0xff] %v1114
    %1683 = vst [vmem:[%s1631] ss:$9 sm:$0xff] %v1595
    %1684 = vst [vmem:[%s1633] ss:$9 sm:$0xff] %v1596
    %1685 = vst [vmem:[%s1635] ss:$9 sm:$0xff] %v1597
    %1686 = vst [vmem:[%s1637] ss:$9 sm:$0xff] %v1598
    %v1687 = vld [vmem:[#allocation1] sm:$0xff]
    %1688 = vst [vmem:[#allocation1] ss:$9 sm:$0xff] %v1599
    %1689 = vst [vmem:[%s1631] ss:$9 sm:$0xff] %v1600
    %1690 = vst [vmem:[%s1633] ss:$9 sm:$0xff] %v1601
    %1691 = vst [vmem:[%s1635] ss:$9 sm:$0xff] %v1117
    %1692 = vst [vmem:[%s1637] ss:$9 sm:$0xff] %v1602
    %v1693 = vld [vmem:[#allocation1] sm:$0xff]
    %1694 = vst [vmem:[#allocation1] ss:$9 sm:$0xff] %v1603
    %1695 = vst [vmem:[%s1631] ss:$9 sm:$0xff] %v1604
    %1696 = vst [vmem:[%s1633] ss:$9 sm:$0xff] %v1605
    %1697 = vst [vmem:[%s1635] ss:$9 sm:$0xff] %v1606
    %1698 = vst [vmem:[%s1637] ss:$9 sm:$0xff] %v1607
    %v1699 = vld [vmem:[#allocation1] sm:$0xff]
    %1700 = vst [vmem:[#allocation1] ss:$9 sm:$0xff] %v1608
    %1701 = vst [vmem:[%s1631] ss:$9 sm:$0xff] %v1119
    %1702 = vst [vmem:[%s1633] ss:$9 sm:$0xff] %v1609
    %1703 = vst [vmem:[%s1635] ss:$9 sm:$0xff] %v1610
    %1704 = vst [vmem:[%s1637] ss:$9 sm:$0xff] %v1611
    %v1705 = vld [vmem:[#allocation1] sm:$0xff]
    %1706 = vst [vmem:[#allocation1] ss:$9 sm:$0xff] %v1612
    %1707 = vst [vmem:[%s1631] ss:$9 sm:$0xff] %v1613
    %1708 = vst [vmem:[%s1633] ss:$9 sm:$0xff] %v1614
    %1709 = vst [vmem:[%s1635] ss:$9 sm:$0xff] %v1615
    %1710 = vst [vmem:[%s1637] ss:$9 sm:$0xff] %v1122
    %v1711 = vld [vmem:[#allocation1] sm:$0xff]
    %1712 = vst [vmem:[#allocation1] ss:$9 sm:$0xff] %v1616
    %1713 = vst [vmem:[%s1631] ss:$9 sm:$0xff] %v1617
    %1714 = vst [vmem:[%s1633] ss:$9 sm:$0xff] %v1618
    %1715 = vst [vmem:[%s1635] ss:$9 sm:$0xff] %v1619
    %1716 = vst [vmem:[%s1637] ss:$9 sm:$0xff] %v1620
    %v1717 = vld [vmem:[#allocation1] sm:$0xff]
    %1718 = vst [vmem:[#allocation1] ss:$9 sm:$0xff] %v1621
    %1719 = vst [vmem:[%s1631] ss:$9 sm:$0xff] %v1622
    %1720 = vst [vmem:[%s1633] ss:$9 sm:$0xff] %v1124
    %1721 = vst [vmem:[%s1635] ss:$9 sm:$0xff] %v1623
    %1722 = vst [vmem:[%s1637] ss:$9 sm:$0xff] %v1624
    %v1723 = vld [vmem:[#allocation1] sm:$0xff]
    %1724 = vst [vmem:[#allocation1] ss:$9 sm:$0xff] %v1625
    %1725 = vst [vmem:[%s1631] ss:$9 sm:$0xff] %v1626
    %1726 = vst [vmem:[%s1633] ss:$9 sm:$0xff] %v1627
    %1727 = vst [vmem:[%s1635] ss:$9 sm:$0xff] %v1628
    %1728 = vst [vmem:[%s1637] ss:$9 sm:$0xff] %v1629
    %v1729 = vld [vmem:[#allocation1] sm:$0xff]
    %v1746 = vpack.c.bf16 %v1639, %v1639
    %v1747 = vpack.c.bf16 %v1645, %v1645
    %v1748 = vpack.c.bf16 %v1651, %v1651
    %v1749 = vpack.c.bf16 %v1657, %v1657
    %v1750 = vpack.c.bf16 %v1663, %v1663
    %v1751 = vpack.c.bf16 %v1669, %v1669
    %v1752 = vpack.c.bf16 %v1675, %v1675
    %v1753 = vpack.c.bf16 %v1681, %v1681
    %v1754 = vpack.c.bf16 %v1687, %v1687
    %v1755 = vpack.c.bf16 %v1693, %v1693
    %v1756 = vpack.c.bf16 %v1699, %v1699
    %v1757 = vpack.c.bf16 %v1705, %v1705
    %v1758 = vpack.c.bf16 %v1711, %v1711
    %v1759 = vpack.c.bf16 %v1717, %v1717
    %v1760 = vpack.c.bf16 %v1723, %v1723
    %v1761 = vpack.c.bf16 %v1729, %v1729
    %vm1762 = vcmask 523264
    %v1764 = vsel %vm1762, %v1322, 0
    %v1767 = vsel %vm1762, %v1534, 0
    %1769 = vmatpush.bf16.xpose.msra.mxu0 0
    %1770 = vmatpush.bf16.xpose.msra.mxu0 0
    %1771 = vmatpush.bf16.xpose.msra.mxu0 0
    %1772 = vmatpush.bf16.xpose.msra.mxu0 0
    %1773 = vmatpush.bf16.xpose.msra.mxu0 0
    %1774 = vmatpush.bf16.xpose.msra.mxu0 0
    %1775 = vmatpush.bf16.xpose.msra.mxu0 0
    %1776 = vmatpush.bf16.xpose.msra.mxu0 %v1767
    %1777 = vmatmul.bf16.gmra.mxu0 %v1764
    %v1778 = vpop.f32.mrf.mxu0
    %v1779 = vadd.f32 0.0, %v1778
    %v1780 = vpop.f32.mrf.mxu0
    %1781 = vdwg.mxu0
    %v1783 = vsel %vm1762, %v1323, 0
    %v1786 = vsel %vm1762, %v1535, 0
    %1788 = vmatpush.bf16.xpose.msra.mxu0 0
    %1789 = vmatpush.bf16.xpose.msra.mxu0 0
    %1790 = vmatpush.bf16.xpose.msra.mxu0 0
    %1791 = vmatpush.bf16.xpose.msra.mxu0 0
    %1792 = vmatpush.bf16.xpose.msra.mxu0 0
    %1793 = vmatpush.bf16.xpose.msra.mxu0 0
    %1794 = vmatpush.bf16.xpose.msra.mxu0 0
    %1795 = vmatpush.bf16.xpose.msra.mxu0 %v1786
    %1796 = vmatmul.bf16.gmra.mxu0 %v1783
    %v1797 = vpop.f32.mrf.mxu0
    %v1798 = vadd.f32 0.0, %v1797
    %v1799 = vpop.f32.mrf.mxu0
    %1800 = vdwg.mxu0
    %v1802 = vsel %vm1762, %v1324, 0
    %v1805 = vsel %vm1762, %v1536, 0
    %1807 = vmatpush.bf16.xpose.msra.mxu0 0
    %1808 = vmatpush.bf16.xpose.msra.mxu0 0
    %1809 = vmatpush.bf16.xpose.msra.mxu0 0
    %1810 = vmatpush.bf16.xpose.msra.mxu0 0
    %1811 = vmatpush.bf16.xpose.msra.mxu0 0
    %1812 = vmatpush.bf16.xpose.msra.mxu0 0
    %1813 = vmatpush.bf16.xpose.msra.mxu0 0
    %1814 = vmatpush.bf16.xpose.msra.mxu0 %v1805
    %1815 = vmatmul.bf16.gmra.mxu0 %v1802
    %v1816 = vpop.f32.mrf.mxu0
    %v1817 = vadd.f32 0.0, %v1816
    %v1818 = vpop.f32.mrf.mxu0
    %1819 = vdwg.mxu0
    %v1821 = vsel %vm1762, %v1325, 0
    %v1824 = vsel %vm1762, %v1537, 0
    %1826 = vmatpush.bf16.xpose.msra.mxu0 0
    %1827 = vmatpush.bf16.xpose.msra.mxu0 0
    %1828 = vmatpush.bf16.xpose.msra.mxu0 0
    %1829 = vmatpush.bf16.xpose.msra.mxu0 0
    %1830 = vmatpush.bf16.xpose.msra.mxu0 0
    %1831 = vmatpush.bf16.xpose.msra.mxu0 0
    %1832 = vmatpush.bf16.xpose.msra.mxu0 0
    %1833 = vmatpush.bf16.xpose.msra.mxu0 %v1824
    %1834 = vmatmul.bf16.gmra.mxu0 %v1821
    %v1835 = vpop.f32.mrf.mxu0
    %v1836 = vadd.f32 0.0, %v1835
    %v1837 = vpop.f32.mrf.mxu0
    %1838 = vdwg.mxu0
    %v1840 = vsel %vm1762, %v1326, 0
    %v1843 = vsel %vm1762, %v1538, 0
    %1845 = vmatpush.bf16.xpose.msra.mxu0 0
    %1846 = vmatpush.bf16.xpose.msra.mxu0 0
    %1847 = vmatpush.bf16.xpose.msra.mxu0 0
    %1848 = vmatpush.bf16.xpose.msra.mxu0 0
    %1849 = vmatpush.bf16.xpose.msra.mxu0 0
    %1850 = vmatpush.bf16.xpose.msra.mxu0 0
    %1851 = vmatpush.bf16.xpose.msra.mxu0 0
    %1852 = vmatpush.bf16.xpose.msra.mxu0 %v1843
    %1853 = vmatmul.bf16.gmra.mxu0 %v1840
    %v1854 = vpop.f32.mrf.mxu0
    %v1855 = vadd.f32 0.0, %v1854
    %v1856 = vpop.f32.mrf.mxu0
    %1857 = vdwg.mxu0
    %v1859 = vsel %vm1762, %v1327, 0
    %v1862 = vsel %vm1762, %v1539, 0
    %1864 = vmatpush.bf16.xpose.msra.mxu0 0
    %1865 = vmatpush.bf16.xpose.msra.mxu0 0
    %1866 = vmatpush.bf16.xpose.msra.mxu0 0
    %1867 = vmatpush.bf16.xpose.msra.mxu0 0
    %1868 = vmatpush.bf16.xpose.msra.mxu0 0
    %1869 = vmatpush.bf16.xpose.msra.mxu0 0
    %1870 = vmatpush.bf16.xpose.msra.mxu0 0
    %1871 = vmatpush.bf16.xpose.msra.mxu0 %v1862
    %1872 = vmatmul.bf16.gmra.mxu0 %v1859
    %v1873 = vpop.f32.mrf.mxu0
    %v1874 = vadd.f32 0.0, %v1873
    %v1875 = vpop.f32.mrf.mxu0
    %1876 = vdwg.mxu0
    %v1878 = vsel %vm1762, %v1328, 0
    %v1881 = vsel %vm1762, %v1540, 0
    %1883 = vmatpush.bf16.xpose.msra.mxu0 0
    %1884 = vmatpush.bf16.xpose.msra.mxu0 0
    %1885 = vmatpush.bf16.xpose.msra.mxu0 0
    %1886 = vmatpush.bf16.xpose.msra.mxu0 0
    %1887 = vmatpush.bf16.xpose.msra.mxu0 0
    %1888 = vmatpush.bf16.xpose.msra.mxu0 0
    %1889 = vmatpush.bf16.xpose.msra.mxu0 0
    %1890 = vmatpush.bf16.xpose.msra.mxu0 %v1881
    %1891 = vmatmul.bf16.gmra.mxu0 %v1878
    %v1892 = vpop.f32.mrf.mxu0
    %v1893 = vadd.f32 0.0, %v1892
    %v1894 = vpop.f32.mrf.mxu0
    %1895 = vdwg.mxu0
    %v1897 = vsel %vm1762, %v1329, 0
    %v1900 = vsel %vm1762, %v1541, 0
    %1902 = vmatpush.bf16.xpose.msra.mxu0 0
    %1903 = vmatpush.bf16.xpose.msra.mxu0 0
    %1904 = vmatpush.bf16.xpose.msra.mxu0 0
    %1905 = vmatpush.bf16.xpose.msra.mxu0 0
    %1906 = vmatpush.bf16.xpose.msra.mxu0 0
    %1907 = vmatpush.bf16.xpose.msra.mxu0 0
    %1908 = vmatpush.bf16.xpose.msra.mxu0 0
    %1909 = vmatpush.bf16.xpose.msra.mxu0 %v1900
    %1910 = vmatmul.bf16.gmra.mxu0 %v1897
    %v1911 = vpop.f32.mrf.mxu0
    %v1912 = vadd.f32 0.0, %v1911
    %v1913 = vpop.f32.mrf.mxu0
    %1914 = vdwg.mxu0
    %v1916 = vsel %vm1762, %v1330, 0
    %v1919 = vsel %vm1762, %v1542, 0
    %1921 = vmatpush.bf16.xpose.msra.mxu0 0
    %1922 = vmatpush.bf16.xpose.msra.mxu0 0
    %1923 = vmatpush.bf16.xpose.msra.mxu0 0
    %1924 = vmatpush.bf16.xpose.msra.mxu0 0
    %1925 = vmatpush.bf16.xpose.msra.mxu0 0
    %1926 = vmatpush.bf16.xpose.msra.mxu0 0
    %1927 = vmatpush.bf16.xpose.msra.mxu0 0
    %1928 = vmatpush.bf16.xpose.msra.mxu0 %v1919
    %1929 = vmatmul.bf16.gmra.mxu0 %v1916
    %v1930 = vpop.f32.mrf.mxu0
    %v1931 = vadd.f32 0.0, %v1930
    %v1932 = vpop.f32.mrf.mxu0
    %1933 = vdwg.mxu0
    %v1935 = vsel %vm1762, %v1331, 0
    %v1938 = vsel %vm1762, %v1543, 0
    %1940 = vmatpush.bf16.xpose.msra.mxu0 0
    %1941 = vmatpush.bf16.xpose.msra.mxu0 0
    %1942 = vmatpush.bf16.xpose.msra.mxu0 0
    %1943 = vmatpush.bf16.xpose.msra.mxu0 0
    %1944 = vmatpush.bf16.xpose.msra.mxu0 0
    %1945 = vmatpush.bf16.xpose.msra.mxu0 0
    %1946 = vmatpush.bf16.xpose.msra.mxu0 0
    %1947 = vmatpush.bf16.xpose.msra.mxu0 %v1938
    %1948 = vmatmul.bf16.gmra.mxu0 %v1935
    %v1949 = vpop.f32.mrf.mxu0
    %v1950 = vadd.f32 0.0, %v1949
    %v1951 = vpop.f32.mrf.mxu0
    %1952 = vdwg.mxu0
    %v1954 = vsel %vm1762, %v1332, 0
    %v1957 = vsel %vm1762, %v1544, 0
    %1959 = vmatpush.bf16.xpose.msra.mxu0 0
    %1960 = vmatpush.bf16.xpose.msra.mxu0 0
    %1961 = vmatpush.bf16.xpose.msra.mxu0 0
    %1962 = vmatpush.bf16.xpose.msra.mxu0 0
    %1963 = vmatpush.bf16.xpose.msra.mxu0 0
    %1964 = vmatpush.bf16.xpose.msra.mxu0 0
    %1965 = vmatpush.bf16.xpose.msra.mxu0 0
    %1966 = vmatpush.bf16.xpose.msra.mxu0 %v1957
    %1967 = vmatmul.bf16.gmra.mxu0 %v1954
    %v1968 = vpop.f32.mrf.mxu0
    %v1969 = vadd.f32 0.0, %v1968
    %v1970 = vpop.f32.mrf.mxu0
    %1971 = vdwg.mxu0
    %v1973 = vsel %vm1762, %v1333, 0
    %v1976 = vsel %vm1762, %v1545, 0
    %1978 = vmatpush.bf16.xpose.msra.mxu0 0
    %1979 = vmatpush.bf16.xpose.msra.mxu0 0
    %1980 = vmatpush.bf16.xpose.msra.mxu0 0
    %1981 = vmatpush.bf16.xpose.msra.mxu0 0
    %1982 = vmatpush.bf16.xpose.msra.mxu0 0
    %1983 = vmatpush.bf16.xpose.msra.mxu0 0
    %1984 = vmatpush.bf16.xpose.msra.mxu0 0
    %1985 = vmatpush.bf16.xpose.msra.mxu0 %v1976
    %1986 = vmatmul.bf16.gmra.mxu0 %v1973
    %v1987 = vpop.f32.mrf.mxu0
    %v1988 = vadd.f32 0.0, %v1987
    %v1989 = vpop.f32.mrf.mxu0
    %1990 = vdwg.mxu0
    %v1992 = vsel %vm1762, %v1334, 0
    %v1995 = vsel %vm1762, %v1546, 0
    %1997 = vmatpush.bf16.xpose.msra.mxu0 0
    %1998 = vmatpush.bf16.xpose.msra.mxu0 0
    %1999 = vmatpush.bf16.xpose.msra.mxu0 0
    %2000 = vmatpush.bf16.xpose.msra.mxu0 0
    %2001 = vmatpush.bf16.xpose.msra.mxu0 0
    %2002 = vmatpush.bf16.xpose.msra.mxu0 0
    %2003 = vmatpush.bf16.xpose.msra.mxu0 0
    %2004 = vmatpush.bf16.xpose.msra.mxu0 %v1995
    %2005 = vmatmul.bf16.gmra.mxu0 %v1992
    %v2006 = vpop.f32.mrf.mxu0
    %v2007 = vadd.f32 0.0, %v2006
    %v2008 = vpop.f32.mrf.mxu0
    %2009 = vdwg.mxu0
    %v2011 = vsel %vm1762, %v1335, 0
    %v2014 = vsel %vm1762, %v1547, 0
    %2016 = vmatpush.bf16.xpose.msra.mxu0 0
    %2017 = vmatpush.bf16.xpose.msra.mxu0 0
    %2018 = vmatpush.bf16.xpose.msra.mxu0 0
    %2019 = vmatpush.bf16.xpose.msra.mxu0 0
    %2020 = vmatpush.bf16.xpose.msra.mxu0 0
    %2021 = vmatpush.bf16.xpose.msra.mxu0 0
    %2022 = vmatpush.bf16.xpose.msra.mxu0 0
    %2023 = vmatpush.bf16.xpose.msra.mxu0 %v2014
    %2024 = vmatmul.bf16.gmra.mxu0 %v2011
    %v2025 = vpop.f32.mrf.mxu0
    %v2026 = vadd.f32 0.0, %v2025
    %v2027 = vpop.f32.mrf.mxu0
    %2028 = vdwg.mxu0
    %v2030 = vsel %vm1762, %v1336, 0
    %v2033 = vsel %vm1762, %v1548, 0
    %2035 = vmatpush.bf16.xpose.msra.mxu0 0
    %2036 = vmatpush.bf16.xpose.msra.mxu0 0
    %2037 = vmatpush.bf16.xpose.msra.mxu0 0
    %2038 = vmatpush.bf16.xpose.msra.mxu0 0
    %2039 = vmatpush.bf16.xpose.msra.mxu0 0
    %2040 = vmatpush.bf16.xpose.msra.mxu0 0
    %2041 = vmatpush.bf16.xpose.msra.mxu0 0
    %2042 = vmatpush.bf16.xpose.msra.mxu0 %v2033
    %2043 = vmatmul.bf16.gmra.mxu0 %v2030
    %v2044 = vpop.f32.mrf.mxu0
    %v2045 = vadd.f32 0.0, %v2044
    %v2046 = vpop.f32.mrf.mxu0
    %2047 = vdwg.mxu0
    %v2049 = vsel %vm1762, %v1337, 0
    %v2052 = vsel %vm1762, %v1549, 0
    %2054 = vmatpush.bf16.xpose.msra.mxu0 0
    %2055 = vmatpush.bf16.xpose.msra.mxu0 0
    %2056 = vmatpush.bf16.xpose.msra.mxu0 0
    %2057 = vmatpush.bf16.xpose.msra.mxu0 0
    %2058 = vmatpush.bf16.xpose.msra.mxu0 0
    %2059 = vmatpush.bf16.xpose.msra.mxu0 0
    %2060 = vmatpush.bf16.xpose.msra.mxu0 0
    %2061 = vmatpush.bf16.xpose.msra.mxu0 %v2052
    %2062 = vmatmul.bf16.gmra.mxu0 %v2049
    %v2063 = vpop.f32.mrf.mxu0
    %v2064 = vadd.f32 0.0, %v2063
    %v2065 = vpop.f32.mrf.mxu0
    %2066 = vdwg.mxu0
    %vm2067 = vcmask 36864
    %v2068 = vsel %vm2067, %v1779, -inf
    %2069 = vmax.xlane.f32.xlu0 %v2068
    %v2070 = vpop.xlane.xlu0 %2069
    %v2071 = vsel %vm2067, %v1798, -inf
    %2072 = vmax.xlane.f32.xlu0 %v2071
    %v2073 = vpop.xlane.xlu0 %2072
    %v2074 = vsel %vm2067, %v1817, -inf
    %2075 = vmax.xlane.f32.xlu0 %v2074
    %v2076 = vpop.xlane.xlu0 %2075
    %v2077 = vsel %vm2067, %v1836, -inf
    %2078 = vmax.xlane.f32.xlu0 %v2077
    %v2079 = vpop.xlane.xlu0 %2078
    %v2080 = vsel %vm2067, %v1855, -inf
    %2081 = vmax.xlane.f32.xlu0 %v2080
    %v2082 = vpop.xlane.xlu0 %2081
    %v2083 = vsel %vm2067, %v1874, -inf
    %2084 = vmax.xlane.f32.xlu0 %v2083
    %v2085 = vpop.xlane.xlu0 %2084
    %v2086 = vsel %vm2067, %v1893, -inf
    %2087 = vmax.xlane.f32.xlu0 %v2086
    %v2088 = vpop.xlane.xlu0 %2087
    %v2089 = vsel %vm2067, %v1912, -inf
    %2090 = vmax.xlane.f32.xlu0 %v2089
    %v2091 = vpop.xlane.xlu0 %2090
    %v2092 = vsel %vm2067, %v1931, -inf
    %2093 = vmax.xlane.f32.xlu0 %v2092
    %v2094 = vpop.xlane.xlu0 %2093
    %v2095 = vsel %vm2067, %v1950, -inf
    %2096 = vmax.xlane.f32.xlu0 %v2095
    %v2097 = vpop.xlane.xlu0 %2096
    %v2098 = vsel %vm2067, %v1969, -inf
    %2099 = vmax.xlane.f32.xlu0 %v2098
    %v2100 = vpop.xlane.xlu0 %2099
    %v2101 = vsel %vm2067, %v1988, -inf
    %2102 = vmax.xlane.f32.xlu0 %v2101
    %v2103 = vpop.xlane.xlu0 %2102
    %v2104 = vsel %vm2067, %v2007, -inf
    %2105 = vmax.xlane.f32.xlu0 %v2104
    %v2106 = vpop.xlane.xlu0 %2105
    %v2107 = vsel %vm2067, %v2026, -inf
    %2108 = vmax.xlane.f32.xlu0 %v2107
    %v2109 = vpop.xlane.xlu0 %2108
    %v2110 = vsel %vm2067, %v2045, -inf
    %2111 = vmax.xlane.f32.xlu0 %v2110
    %v2112 = vpop.xlane.xlu0 %2111
    %v2113 = vsel %vm2067, %v2064, -inf
    %2114 = vmax.xlane.f32.xlu0 %v2113
    %v2115 = vpop.xlane.xlu0 %2114
    %v2116 = vsub.f32 %v1779, %v2070
    %v2117 = vsub.f32 %v1798, %v2073
    %v2118 = vsub.f32 %v1817, %v2076
    %v2119 = vsub.f32 %v1836, %v2079
    %v2120 = vsub.f32 %v1855, %v2082
    %v2121 = vsub.f32 %v1874, %v2085
    %v2122 = vsub.f32 %v1893, %v2088
    %v2123 = vsub.f32 %v1912, %v2091
    %v2124 = vsub.f32 %v1931, %v2094
    %v2125 = vsub.f32 %v1950, %v2097
    %v2126 = vsub.f32 %v1969, %v2100
    %v2127 = vsub.f32 %v1988, %v2103
    %v2128 = vsub.f32 %v2007, %v2106
    %v2129 = vsub.f32 %v2026, %v2109
    %v2130 = vsub.f32 %v2045, %v2112
    %v2131 = vsub.f32 %v2064, %v2115
    %v2132 = vmul.f32 %v2116, 1.442695
    %v2133 = vpow.pop %v2132
    %v2134 = vmul.f32 %v2117, 1.442695
    %v2135 = vpow.pop %v2134
    %v2136 = vmul.f32 %v2118, 1.442695
    %v2137 = vpow.pop %v2136
    %v2138 = vmul.f32 %v2119, 1.442695
    %v2139 = vpow.pop %v2138
    %v2140 = vmul.f32 %v2120, 1.442695
    %v2141 = vpow.pop %v2140
    %v2142 = vmul.f32 %v2121, 1.442695
    %v2143 = vpow.pop %v2142
    %v2144 = vmul.f32 %v2122, 1.442695
    %v2145 = vpow.pop %v2144
    %v2146 = vmul.f32 %v2123, 1.442695
    %v2147 = vpow.pop %v2146
    %v2148 = vmul.f32 %v2124, 1.442695
    %v2149 = vpow.pop %v2148
    %v2150 = vmul.f32 %v2125, 1.442695
    %v2151 = vpow.pop %v2150
    %v2152 = vmul.f32 %v2126, 1.442695
    %v2153 = vpow.pop %v2152
    %v2154 = vmul.f32 %v2127, 1.442695
    %v2155 = vpow.pop %v2154
    %v2156 = vmul.f32 %v2128, 1.442695
    %v2157 = vpow.pop %v2156
    %v2158 = vmul.f32 %v2129, 1.442695
    %v2159 = vpow.pop %v2158
    %v2160 = vmul.f32 %v2130, 1.442695
    %v2161 = vpow.pop %v2160
    %v2162 = vmul.f32 %v2131, 1.442695
    %v2163 = vpow.pop %v2162
    %v2164 = vsel %vm2067, %v2133, 0.0
    %2165 = vadd.xlane.f32.xlu0 %v2164
    %v2166 = vpop.xlane.xlu0 %2165
    %v2167 = vsel %vm2067, %v2135, 0.0
    %2168 = vadd.xlane.f32.xlu0 %v2167
    %v2169 = vpop.xlane.xlu0 %2168
    %v2170 = vsel %vm2067, %v2137, 0.0
    %2171 = vadd.xlane.f32.xlu0 %v2170
    %v2172 = vpop.xlane.xlu0 %2171
    %v2173 = vsel %vm2067, %v2139, 0.0
    %2174 = vadd.xlane.f32.xlu0 %v2173
    %v2175 = vpop.xlane.xlu0 %2174
    %v2176 = vsel %vm2067, %v2141, 0.0
    %2177 = vadd.xlane.f32.xlu0 %v2176
    %v2178 = vpop.xlane.xlu0 %2177
    %v2179 = vsel %vm2067, %v2143, 0.0
    %2180 = vadd.xlane.f32.xlu0 %v2179
    %v2181 = vpop.xlane.xlu0 %2180
    %v2182 = vsel %vm2067, %v2145, 0.0
    %2183 = vadd.xlane.f32.xlu0 %v2182
    %v2184 = vpop.xlane.xlu0 %2183
    %v2185 = vsel %vm2067, %v2147, 0.0
    %2186 = vadd.xlane.f32.xlu0 %v2185
    %v2187 = vpop.xlane.xlu0 %2186
    %v2188 = vsel %vm2067, %v2149, 0.0
    %2189 = vadd.xlane.f32.xlu0 %v2188
    %v2190 = vpop.xlane.xlu0 %2189
    %v2191 = vsel %vm2067, %v2151, 0.0
    %2192 = vadd.xlane.f32.xlu0 %v2191
    %v2193 = vpop.xlane.xlu0 %2192
    %v2194 = vsel %vm2067, %v2153, 0.0
    %2195 = vadd.xlane.f32.xlu0 %v2194
    %v2196 = vpop.xlane.xlu0 %2195
    %v2197 = vsel %vm2067, %v2155, 0.0
    %2198 = vadd.xlane.f32.xlu0 %v2197
    %v2199 = vpop.xlane.xlu0 %2198
    %v2200 = vsel %vm2067, %v2157, 0.0
    %2201 = vadd.xlane.f32.xlu0 %v2200
    %v2202 = vpop.xlane.xlu0 %2201
    %v2203 = vsel %vm2067, %v2159, 0.0
    %2204 = vadd.xlane.f32.xlu0 %v2203
    %v2205 = vpop.xlane.xlu0 %2204
    %v2206 = vsel %vm2067, %v2161, 0.0
    %2207 = vadd.xlane.f32.xlu0 %v2206
    %v2208 = vpop.xlane.xlu0 %2207
    %v2209 = vsel %vm2067, %v2163, 0.0
    %2210 = vadd.xlane.f32.xlu0 %v2209
    %v2211 = vpop.xlane.xlu0 %2210
    %v2212 = vrcp.pop %v2166
    %v2213 = vrcp.pop %v2169
    %v2214 = vrcp.pop %v2172
    %v2215 = vrcp.pop %v2175
    %v2216 = vrcp.pop %v2178
    %v2217 = vrcp.pop %v2181
    %v2218 = vrcp.pop %v2184
    %v2219 = vrcp.pop %v2187
    %v2220 = vrcp.pop %v2190
    %v2221 = vrcp.pop %v2193
    %v2222 = vrcp.pop %v2196
    %v2223 = vrcp.pop %v2199
    %v2224 = vrcp.pop %v2202
    %v2225 = vrcp.pop %v2205
    %v2226 = vrcp.pop %v2208
    %v2227 = vrcp.pop %v2211
    %v2228 = vmul.f32 %v2133, %v2212
    %v2229 = vmul.f32 %v2135, %v2213
    %v2230 = vmul.f32 %v2137, %v2214
    %v2231 = vmul.f32 %v2139, %v2215
    %v2232 = vmul.f32 %v2141, %v2216
    %v2233 = vmul.f32 %v2143, %v2217
    %v2234 = vmul.f32 %v2145, %v2218
    %v2235 = vmul.f32 %v2147, %v2219
    %v2236 = vmul.f32 %v2149, %v2220
    %v2237 = vmul.f32 %v2151, %v2221
    %v2238 = vmul.f32 %v2153, %v2222
    %v2239 = vmul.f32 %v2155, %v2223
    %v2240 = vmul.f32 %v2157, %v2224
    %v2241 = vmul.f32 %v2159, %v2225
    %v2242 = vmul.f32 %v2161, %v2226
    %v2243 = vmul.f32 %v2163, %v2227
    %v2244 = vpack.c.bf16 %v2228, %v2228
    %v2245 = vpack.c.bf16 %v2229, %v2229
    %v2246 = vpack.c.bf16 %v2230, %v2230
    %v2247 = vpack.c.bf16 %v2231, %v2231
    %v2248 = vpack.c.bf16 %v2232, %v2232
    %v2249 = vpack.c.bf16 %v2233, %v2233
    %v2250 = vpack.c.bf16 %v2234, %v2234
    %v2251 = vpack.c.bf16 %v2235, %v2235
    %v2252 = vpack.c.bf16 %v2236, %v2236
    %v2253 = vpack.c.bf16 %v2237, %v2237
    %v2254 = vpack.c.bf16 %v2238, %v2238
    %v2255 = vpack.c.bf16 %v2239, %v2239
    %v2256 = vpack.c.bf16 %v2240, %v2240
    %v2257 = vpack.c.bf16 %v2241, %v2241
    %v2258 = vpack.c.bf16 %v2242, %v2242
    %v2259 = vpack.c.bf16 %v2243, %v2243
    %vm2260 = vcmask 39936
    %v2262 = vsel %vm2260, %v2244, 0
    %vm2264 = vcmask 1041408
    %vm2265 = vcmask 1042432
    %v2266 = vsel %vm2264, 4294967295, 65535
    %v2267 = vsel %vm2265, %v2266, 0
    %v2269 = vand.u32 %v1746, %v2267
    %2271 = vmatpush.bf16.msra.mxu0 0
    %2272 = vmatpush.bf16.msra.mxu0 0
    %2273 = vmatpush.bf16.msra.mxu0 0
    %2274 = vmatpush.bf16.msra.mxu0 0
    %2275 = vmatpush.bf16.msra.mxu0 0
    %2276 = vmatpush.bf16.msra.mxu0 0
    %2277 = vmatpush.bf16.msra.mxu0 0
    %2278 = vmatpush.bf16.msra.mxu0 %v2269
    %2279 = vmatmul.bf16.gmra.mxu0 %v2262
    %v2280 = vpop.f32.mrf.mxu0
    %v2281 = vadd.f32 0.0, %v2280
    %v2282 = vpop.f32.mrf.mxu0
    %2283 = vdwg.mxu0
    %v2285 = vsel %vm2260, %v2245, 0
    %v2288 = vand.u32 %v1747, %v2267
    %2290 = vmatpush.bf16.msra.mxu0 0
    %2291 = vmatpush.bf16.msra.mxu0 0
    %2292 = vmatpush.bf16.msra.mxu0 0
    %2293 = vmatpush.bf16.msra.mxu0 0
    %2294 = vmatpush.bf16.msra.mxu0 0
    %2295 = vmatpush.bf16.msra.mxu0 0
    %2296 = vmatpush.bf16.msra.mxu0 0
    %2297 = vmatpush.bf16.msra.mxu0 %v2288
    %2298 = vmatmul.bf16.gmra.mxu0 %v2285
    %v2299 = vpop.f32.mrf.mxu0
    %v2300 = vadd.f32 0.0, %v2299
    %v2301 = vpop.f32.mrf.mxu0
    %2302 = vdwg.mxu0
    %v2304 = vsel %vm2260, %v2246, 0
    %v2307 = vand.u32 %v1748, %v2267
    %2309 = vmatpush.bf16.msra.mxu0 0
    %2310 = vmatpush.bf16.msra.mxu0 0
    %2311 = vmatpush.bf16.msra.mxu0 0
    %2312 = vmatpush.bf16.msra.mxu0 0
    %2313 = vmatpush.bf16.msra.mxu0 0
    %2314 = vmatpush.bf16.msra.mxu0 0
    %2315 = vmatpush.bf16.msra.mxu0 0
    %2316 = vmatpush.bf16.msra.mxu0 %v2307
    %2317 = vmatmul.bf16.gmra.mxu0 %v2304
    %v2318 = vpop.f32.mrf.mxu0
    %v2319 = vadd.f32 0.0, %v2318
    %v2320 = vpop.f32.mrf.mxu0
    %2321 = vdwg.mxu0
    %v2323 = vsel %vm2260, %v2247, 0
    %v2326 = vand.u32 %v1749, %v2267
    %2328 = vmatpush.bf16.msra.mxu0 0
    %2329 = vmatpush.bf16.msra.mxu0 0
    %2330 = vmatpush.bf16.msra.mxu0 0
    %2331 = vmatpush.bf16.msra.mxu0 0
    %2332 = vmatpush.bf16.msra.mxu0 0
    %2333 = vmatpush.bf16.msra.mxu0 0
    %2334 = vmatpush.bf16.msra.mxu0 0
    %2335 = vmatpush.bf16.msra.mxu0 %v2326
    %2336 = vmatmul.bf16.gmra.mxu0 %v2323
    %v2337 = vpop.f32.mrf.mxu0
    %v2338 = vadd.f32 0.0, %v2337
    %v2339 = vpop.f32.mrf.mxu0
    %2340 = vdwg.mxu0
    %v2342 = vsel %vm2260, %v2248, 0
    %v2345 = vand.u32 %v1750, %v2267
    %2347 = vmatpush.bf16.msra.mxu0 0
    %2348 = vmatpush.bf16.msra.mxu0 0
    %2349 = vmatpush.bf16.msra.mxu0 0
    %2350 = vmatpush.bf16.msra.mxu0 0
    %2351 = vmatpush.bf16.msra.mxu0 0
    %2352 = vmatpush.bf16.msra.mxu0 0
    %2353 = vmatpush.bf16.msra.mxu0 0
    %2354 = vmatpush.bf16.msra.mxu0 %v2345
    %2355 = vmatmul.bf16.gmra.mxu0 %v2342
    %v2356 = vpop.f32.mrf.mxu0
    %v2357 = vadd.f32 0.0, %v2356
    %v2358 = vpop.f32.mrf.mxu0
    %2359 = vdwg.mxu0
    %v2361 = vsel %vm2260, %v2249, 0
    %v2364 = vand.u32 %v1751, %v2267
    %2366 = vmatpush.bf16.msra.mxu0 0
    %2367 = vmatpush.bf16.msra.mxu0 0
    %2368 = vmatpush.bf16.msra.mxu0 0
    %2369 = vmatpush.bf16.msra.mxu0 0
    %2370 = vmatpush.bf16.msra.mxu0 0
    %2371 = vmatpush.bf16.msra.mxu0 0
    %2372 = vmatpush.bf16.msra.mxu0 0
    %2373 = vmatpush.bf16.msra.mxu0 %v2364
    %2374 = vmatmul.bf16.gmra.mxu0 %v2361
    %v2375 = vpop.f32.mrf.mxu0
    %v2376 = vadd.f32 0.0, %v2375
    %v2377 = vpop.f32.mrf.mxu0
    %2378 = vdwg.mxu0
    %v2380 = vsel %vm2260, %v2250, 0
    %v2383 = vand.u32 %v1752, %v2267
    %2385 = vmatpush.bf16.msra.mxu0 0
    %2386 = vmatpush.bf16.msra.mxu0 0
    %2387 = vmatpush.bf16.msra.mxu0 0
    %2388 = vmatpush.bf16.msra.mxu0 0
    %2389 = vmatpush.bf16.msra.mxu0 0
    %2390 = vmatpush.bf16.msra.mxu0 0
    %2391 = vmatpush.bf16.msra.mxu0 0
    %2392 = vmatpush.bf16.msra.mxu0 %v2383
    %2393 = vmatmul.bf16.gmra.mxu0 %v2380
    %v2394 = vpop.f32.mrf.mxu0
    %v2395 = vadd.f32 0.0, %v2394
    %v2396 = vpop.f32.mrf.mxu0
    %2397 = vdwg.mxu0
    %v2399 = vsel %vm2260, %v2251, 0
    %v2402 = vand.u32 %v1753, %v2267
    %2404 = vmatpush.bf16.msra.mxu0 0
    %2405 = vmatpush.bf16.msra.mxu0 0
    %2406 = vmatpush.bf16.msra.mxu0 0
    %2407 = vmatpush.bf16.msra.mxu0 0
    %2408 = vmatpush.bf16.msra.mxu0 0
    %2409 = vmatpush.bf16.msra.mxu0 0
    %2410 = vmatpush.bf16.msra.mxu0 0
    %2411 = vmatpush.bf16.msra.mxu0 %v2402
    %2412 = vmatmul.bf16.gmra.mxu0 %v2399
    %v2413 = vpop.f32.mrf.mxu0
    %v2414 = vadd.f32 0.0, %v2413
    %v2415 = vpop.f32.mrf.mxu0
    %2416 = vdwg.mxu0
    %v2418 = vsel %vm2260, %v2252, 0
    %v2421 = vand.u32 %v1754, %v2267
    %2423 = vmatpush.bf16.msra.mxu0 0
    %2424 = vmatpush.bf16.msra.mxu0 0
    %2425 = vmatpush.bf16.msra.mxu0 0
    %2426 = vmatpush.bf16.msra.mxu0 0
    %2427 = vmatpush.bf16.msra.mxu0 0
    %2428 = vmatpush.bf16.msra.mxu0 0
    %2429 = vmatpush.bf16.msra.mxu0 0
    %2430 = vmatpush.bf16.msra.mxu0 %v2421
    %2431 = vmatmul.bf16.gmra.mxu0 %v2418
    %v2432 = vpop.f32.mrf.mxu0
    %v2433 = vadd.f32 0.0, %v2432
    %v2434 = vpop.f32.mrf.mxu0
    %2435 = vdwg.mxu0
    %v2437 = vsel %vm2260, %v2253, 0
    %v2440 = vand.u32 %v1755, %v2267
    %2442 = vmatpush.bf16.msra.mxu0 0
    %2443 = vmatpush.bf16.msra.mxu0 0
    %2444 = vmatpush.bf16.msra.mxu0 0
    %2445 = vmatpush.bf16.msra.mxu0 0
    %2446 = vmatpush.bf16.msra.mxu0 0
    %2447 = vmatpush.bf16.msra.mxu0 0
    %2448 = vmatpush.bf16.msra.mxu0 0
    %2449 = vmatpush.bf16.msra.mxu0 %v2440
    %2450 = vmatmul.bf16.gmra.mxu0 %v2437
    %v2451 = vpop.f32.mrf.mxu0
    %v2452 = vadd.f32 0.0, %v2451
    %v2453 = vpop.f32.mrf.mxu0
    %2454 = vdwg.mxu0
    %v2456 = vsel %vm2260, %v2254, 0
    %v2459 = vand.u32 %v1756, %v2267
    %2461 = vmatpush.bf16.msra.mxu0 0
    %2462 = vmatpush.bf16.msra.mxu0 0
    %2463 = vmatpush.bf16.msra.mxu0 0
    %2464 = vmatpush.bf16.msra.mxu0 0
    %2465 = vmatpush.bf16.msra.mxu0 0
    %2466 = vmatpush.bf16.msra.mxu0 0
    %2467 = vmatpush.bf16.msra.mxu0 0
    %2468 = vmatpush.bf16.msra.mxu0 %v2459
    %2469 = vmatmul.bf16.gmra.mxu0 %v2456
    %v2470 = vpop.f32.mrf.mxu0
    %v2471 = vadd.f32 0.0, %v2470
    %v2472 = vpop.f32.mrf.mxu0
    %2473 = vdwg.mxu0
    %v2475 = vsel %vm2260, %v2255, 0
    %v2478 = vand.u32 %v1757, %v2267
    %2480 = vmatpush.bf16.msra.mxu0 0
    %2481 = vmatpush.bf16.msra.mxu0 0
    %2482 = vmatpush.bf16.msra.mxu0 0
    %2483 = vmatpush.bf16.msra.mxu0 0
    %2484 = vmatpush.bf16.msra.mxu0 0
    %2485 = vmatpush.bf16.msra.mxu0 0
    %2486 = vmatpush.bf16.msra.mxu0 0
    %2487 = vmatpush.bf16.msra.mxu0 %v2478
    %2488 = vmatmul.bf16.gmra.mxu0 %v2475
    %v2489 = vpop.f32.mrf.mxu0
    %v2490 = vadd.f32 0.0, %v2489
    %v2491 = vpop.f32.mrf.mxu0
    %2492 = vdwg.mxu0
    %v2494 = vsel %vm2260, %v2256, 0
    %v2497 = vand.u32 %v1758, %v2267
    %2499 = vmatpush.bf16.msra.mxu0 0
    %2500 = vmatpush.bf16.msra.mxu0 0
    %2501 = vmatpush.bf16.msra.mxu0 0
    %2502 = vmatpush.bf16.msra.mxu0 0
    %2503 = vmatpush.bf16.msra.mxu0 0
    %2504 = vmatpush.bf16.msra.mxu0 0
    %2505 = vmatpush.bf16.msra.mxu0 0
    %2506 = vmatpush.bf16.msra.mxu0 %v2497
    %2507 = vmatmul.bf16.gmra.mxu0 %v2494
    %v2508 = vpop.f32.mrf.mxu0
    %v2509 = vadd.f32 0.0, %v2508
    %v2510 = vpop.f32.mrf.mxu0
    %2511 = vdwg.mxu0
    %v2513 = vsel %vm2260, %v2257, 0
    %v2516 = vand.u32 %v1759, %v2267
    %2518 = vmatpush.bf16.msra.mxu0 0
    %2519 = vmatpush.bf16.msra.mxu0 0
    %2520 = vmatpush.bf16.msra.mxu0 0
    %2521 = vmatpush.bf16.msra.mxu0 0
    %2522 = vmatpush.bf16.msra.mxu0 0
    %2523 = vmatpush.bf16.msra.mxu0 0
    %2524 = vmatpush.bf16.msra.mxu0 0
    %2525 = vmatpush.bf16.msra.mxu0 %v2516
    %2526 = vmatmul.bf16.gmra.mxu0 %v2513
    %v2527 = vpop.f32.mrf.mxu0
    %v2528 = vadd.f32 0.0, %v2527
    %v2529 = vpop.f32.mrf.mxu0
    %2530 = vdwg.mxu0
    %v2532 = vsel %vm2260, %v2258, 0
    %v2535 = vand.u32 %v1760, %v2267
    %2537 = vmatpush.bf16.msra.mxu0 0
    %2538 = vmatpush.bf16.msra.mxu0 0
    %2539 = vmatpush.bf16.msra.mxu0 0
    %2540 = vmatpush.bf16.msra.mxu0 0
    %2541 = vmatpush.bf16.msra.mxu0 0
    %2542 = vmatpush.bf16.msra.mxu0 0
    %2543 = vmatpush.bf16.msra.mxu0 0
    %2544 = vmatpush.bf16.msra.mxu0 %v2535
    %2545 = vmatmul.bf16.gmra.mxu0 %v2532
    %v2546 = vpop.f32.mrf.mxu0
    %v2547 = vadd.f32 0.0, %v2546
    %v2548 = vpop.f32.mrf.mxu0
    %2549 = vdwg.mxu0
    %v2551 = vsel %vm2260, %v2259, 0
    %v2554 = vand.u32 %v1761, %v2267
    %2556 = vmatpush.bf16.msra.mxu0 0
    %2557 = vmatpush.bf16.msra.mxu0 0
    %2558 = vmatpush.bf16.msra.mxu0 0
    %2559 = vmatpush.bf16.msra.mxu0 0
    %2560 = vmatpush.bf16.msra.mxu0 0
    %2561 = vmatpush.bf16.msra.mxu0 0
    %2562 = vmatpush.bf16.msra.mxu0 0
    %2563 = vmatpush.bf16.msra.mxu0 %v2554
    %2564 = vmatmul.bf16.gmra.mxu0 %v2551
    %v2565 = vpop.f32.mrf.mxu0
    %v2566 = vadd.f32 0.0, %v2565
    %v2567 = vpop.f32.mrf.mxu0
    %2568 = vdwg.mxu0
    %v2585 = vrot.slane %v2281, 1
    %v2586 = vrot.slane %v2281, 2
    %v2587 = vrot.slane %v2281, 3
    %v2588 = vrot.slane %v2281, 4
    %v2589 = vrot.slane %v2300, 1
    %v2590 = vrot.slane %v2300, 2
    %v2591 = vrot.slane %v2300, 3
    %v2592 = vrot.slane %v2300, 4
    %v2593 = vrot.slane %v2319, 1
    %v2594 = vrot.slane %v2319, 2
    %v2595 = vrot.slane %v2319, 3
    %v2596 = vrot.slane %v2319, 4
    %v2597 = vrot.slane %v2338, 1
    %v2598 = vrot.slane %v2338, 2
    %v2599 = vrot.slane %v2338, 3
    %v2600 = vrot.slane %v2338, 4
    %v2601 = vrot.slane %v2357, 1
    %v2602 = vrot.slane %v2357, 2
    %v2603 = vrot.slane %v2357, 3
    %v2604 = vrot.slane %v2357, 4
    %v2605 = vrot.slane %v2376, 1
    %v2606 = vrot.slane %v2376, 2
    %v2607 = vrot.slane %v2376, 3
    %v2608 = vrot.slane %v2376, 4
    %v2609 = vrot.slane %v2395, 1
    %v2610 = vrot.slane %v2395, 2
    %v2611 = vrot.slane %v2395, 3
    %v2612 = vrot.slane %v2395, 4
    %v2613 = vrot.slane %v2414, 1
    %v2614 = vrot.slane %v2414, 2
    %v2615 = vrot.slane %v2414, 3
    %v2616 = vrot.slane %v2414, 4
    %v2617 = vrot.slane %v2433, 1
    %v2618 = vrot.slane %v2433, 2
    %v2619 = vrot.slane %v2433, 3
    %v2620 = vrot.slane %v2433, 4
    %v2621 = vrot.slane %v2452, 1
    %v2622 = vrot.slane %v2452, 2
    %v2623 = vrot.slane %v2452, 3
    %v2624 = vrot.slane %v2452, 4
    %v2625 = vrot.slane %v2471, 1
    %v2626 = vrot.slane %v2471, 2
    %v2627 = vrot.slane %v2471, 3
    %v2628 = vrot.slane %v2471, 4
    %v2629 = vrot.slane %v2490, 1
    %v2630 = vrot.slane %v2490, 2
    %v2631 = vrot.slane %v2490, 3
    %v2632 = vrot.slane %v2490, 4
    %v2633 = vrot.slane %v2509, 1
    %v2634 = vrot.slane %v2509, 2
    %v2635 = vrot.slane %v2509, 3
    %v2636 = vrot.slane %v2509, 4
    %v2637 = vrot.slane %v2528, 1
    %v2638 = vrot.slane %v2528, 2
    %v2639 = vrot.slane %v2528, 3
    %v2640 = vrot.slane %v2528, 4
    %v2641 = vrot.slane %v2547, 1
    %v2642 = vrot.slane %v2547, 2
    %v2643 = vrot.slane %v2547, 3
    %v2644 = vrot.slane %v2547, 4
    %v2645 = vrot.slane %v2566, 1
    %v2646 = vrot.slane %v2566, 2
    %v2647 = vrot.slane %v2566, 3
    %v2648 = vrot.slane %v2566, 4
    %2649 = vst [vmem:[#allocation1] ss:$9 sm:$0xff] %v2281
    %s2650 = scalar_lea.vmem [#allocation1], 1
    %2651 = vst [vmem:[%s2650] ss:$9 sm:$0xff] %v2585
    %s2652 = scalar_lea.vmem [#allocation1], 2
    %2653 = vst [vmem:[%s2652] ss:$9 sm:$0xff] %v2586
    %s2654 = scalar_lea.vmem [#allocation1], 3
    %2655 = vst [vmem:[%s2654] ss:$9 sm:$0xff] %v2587
    %s2656 = scalar_lea.vmem [#allocation1], 4
    %2657 = vst [vmem:[%s2656] ss:$9 sm:$0xff] %v2588
    %s2658 = scalar_lea.vmem [#allocation1], 5
    %2659 = vst [vmem:[%s2658] ss:$9 sm:$0xff] %v2300
    %s2660 = scalar_lea.vmem [#allocation1], 6
    %2661 = vst [vmem:[%s2660] ss:$9 sm:$0xff] %v2589
    %s2662 = scalar_lea.vmem [#allocation1], 7
    %2663 = vst [vmem:[%s2662] ss:$9 sm:$0xff] %v2590
    %v2664 = vld [vmem:[#allocation1] sm:$0xff]
    %2665 = vst [vmem:[#allocation1] ss:$9 sm:$0xff] %v2591
    %2666 = vst [vmem:[%s2650] ss:$9 sm:$0xff] %v2592
    %2667 = vst [vmem:[%s2652] ss:$9 sm:$0xff] %v2319
    %2668 = vst [vmem:[%s2654] ss:$9 sm:$0xff] %v2593
    %2669 = vst [vmem:[%s2656] ss:$9 sm:$0xff] %v2594
    %2670 = vst [vmem:[%s2658] ss:$9 sm:$0xff] %v2595
    %2671 = vst [vmem:[%s2660] ss:$9 sm:$0xff] %v2596
    %2672 = vst [vmem:[%s2662] ss:$9 sm:$0xff] %v2338
    %v2673 = vld [vmem:[#allocation1] sm:$0xff]
    %2674 = vst [vmem:[#allocation1] ss:$9 sm:$0xff] %v2597
    %2675 = vst [vmem:[%s2650] ss:$9 sm:$0xff] %v2598
    %2676 = vst [vmem:[%s2652] ss:$9 sm:$0xff] %v2599
    %2677 = vst [vmem:[%s2654] ss:$9 sm:$0xff] %v2600
    %2678 = vst [vmem:[%s2656] ss:$9 sm:$0xff] %v2357
    %2679 = vst [vmem:[%s2658] ss:$9 sm:$0xff] %v2601
    %2680 = vst [vmem:[%s2660] ss:$9 sm:$0xff] %v2602
    %2681 = vst [vmem:[%s2662] ss:$9 sm:$0xff] %v2603
    %v2682 = vld [vmem:[#allocation1] sm:$0xff]
    %2683 = vst [vmem:[#allocation1] ss:$9 sm:$0xff] %v2604
    %2684 = vst [vmem:[%s2650] ss:$9 sm:$0xff] %v2376
    %2685 = vst [vmem:[%s2652] ss:$9 sm:$0xff] %v2605
    %2686 = vst [vmem:[%s2654] ss:$9 sm:$0xff] %v2606
    %2687 = vst [vmem:[%s2656] ss:$9 sm:$0xff] %v2607
    %2688 = vst [vmem:[%s2658] ss:$9 sm:$0xff] %v2608
    %2689 = vst [vmem:[%s2660] ss:$9 sm:$0xff] %v2395
    %2690 = vst [vmem:[%s2662] ss:$9 sm:$0xff] %v2609
    %v2691 = vld [vmem:[#allocation1] sm:$0xff]
    %2692 = vst [vmem:[#allocation1] ss:$9 sm:$0xff] %v2610
    %2693 = vst [vmem:[%s2650] ss:$9 sm:$0xff] %v2611
    %2694 = vst [vmem:[%s2652] ss:$9 sm:$0xff] %v2612
    %2695 = vst [vmem:[%s2654] ss:$9 sm:$0xff] %v2414
    %2696 = vst [vmem:[%s2656] ss:$9 sm:$0xff] %v2613
    %2697 = vst [vmem:[%s2658] ss:$9 sm:$0xff] %v2614
    %2698 = vst [vmem:[%s2660] ss:$9 sm:$0xff] %v2615
    %2699 = vst [vmem:[%s2662] ss:$9 sm:$0xff] %v2616
    %v2700 = vld [vmem:[#allocation1] sm:$0xff]
    %2701 = vst [vmem:[#allocation1] ss:$9 sm:$0xff] %v2433
    %2702 = vst [vmem:[%s2650] ss:$9 sm:$0xff] %v2617
    %2703 = vst [vmem:[%s2652] ss:$9 sm:$0xff] %v2618
    %2704 = vst [vmem:[%s2654] ss:$9 sm:$0xff] %v2619
    %2705 = vst [vmem:[%s2656] ss:$9 sm:$0xff] %v2620
    %2706 = vst [vmem:[%s2658] ss:$9 sm:$0xff] %v2452
    %2707 = vst [vmem:[%s2660] ss:$9 sm:$0xff] %v2621
    %2708 = vst [vmem:[%s2662] ss:$9 sm:$0xff] %v2622
    %v2709 = vld [vmem:[#allocation1] sm:$0xff]
    %2710 = vst [vmem:[#allocation1] ss:$9 sm:$0xff] %v2623
    %2711 = vst [vmem:[%s2650] ss:$9 sm:$0xff] %v2624
    %2712 = vst [vmem:[%s2652] ss:$9 sm:$0xff] %v2471
    %2713 = vst [vmem:[%s2654] ss:$9 sm:$0xff] %v2625
    %2714 = vst [vmem:[%s2656] ss:$9 sm:$0xff] %v2626
    %2715 = vst [vmem:[%s2658] ss:$9 sm:$0xff] %v2627
    %2716 = vst [vmem:[%s2660] ss:$9 sm:$0xff] %v2628
    %2717 = vst [vmem:[%s2662] ss:$9 sm:$0xff] %v2490
    %v2718 = vld [vmem:[#allocation1] sm:$0xff]
    %2719 = vst [vmem:[#allocation1] ss:$9 sm:$0xff] %v2629
    %2720 = vst [vmem:[%s2650] ss:$9 sm:$0xff] %v2630
    %2721 = vst [vmem:[%s2652] ss:$9 sm:$0xff] %v2631
    %2722 = vst [vmem:[%s2654] ss:$9 sm:$0xff] %v2632
    %2723 = vst [vmem:[%s2656] ss:$9 sm:$0xff] %v2509
    %2724 = vst [vmem:[%s2658] ss:$9 sm:$0xff] %v2633
    %2725 = vst [vmem:[%s2660] ss:$9 sm:$0xff] %v2634
    %2726 = vst [vmem:[%s2662] ss:$9 sm:$0xff] %v2635
    %v2727 = vld [vmem:[#allocation1] sm:$0xff]
    %2728 = vst [vmem:[#allocation1] ss:$9 sm:$0xff] %v2636
    %2729 = vst [vmem:[%s2650] ss:$9 sm:$0xff] %v2528
    %2730 = vst [vmem:[%s2652] ss:$9 sm:$0xff] %v2637
    %2731 = vst [vmem:[%s2654] ss:$9 sm:$0xff] %v2638
    %2732 = vst [vmem:[%s2656] ss:$9 sm:$0xff] %v2639
    %2733 = vst [vmem:[%s2658] ss:$9 sm:$0xff] %v2640
    %2734 = vst [vmem:[%s2660] ss:$9 sm:$0xff] %v2547
    %2735 = vst [vmem:[%s2662] ss:$9 sm:$0xff] %v2641
    %v2736 = vld [vmem:[#allocation1] sm:$0xff]
    %2737 = vst [vmem:[#allocation1] ss:$9 sm:$0xff] %v2642
    %2738 = vst [vmem:[%s2650] ss:$9 sm:$0xff] %v2643
    %2739 = vst [vmem:[%s2652] ss:$9 sm:$0xff] %v2644
    %2740 = vst [vmem:[%s2654] ss:$9 sm:$0xff] %v2566
    %2741 = vst [vmem:[%s2656] ss:$9 sm:$0xff] %v2645
    %2742 = vst [vmem:[%s2658] ss:$9 sm:$0xff] %v2646
    %2743 = vst [vmem:[%s2660] ss:$9 sm:$0xff] %v2647
    %2744 = vst [vmem:[%s2662] ss:$9 sm:$0xff] %v2648
    %v2745 = vld [vmem:[#allocation1] sm:$0xff]
    %v2756 = vpack.c.bf16 %v2673, %v2664
    %v2757 = vpack.c.bf16 %v2691, %v2682
    %v2758 = vpack.c.bf16 %v2709, %v2700
    %v2759 = vpack.c.bf16 %v2727, %v2718
    %v2760 = vpack.c.bf16 %v2745, %v2736
    %v2761 = vld [vmem:[%s13] sm:$0xf]
    %v2762 = vld [vmem:[%s13 + $0x4] sm:$0xf]
    %v2763 = vld [vmem:[%s13 + $0x8] sm:$0xf]
    %v2764 = vld [vmem:[%s13 + $0xc] sm:$0xf]
    %v2765 = vld [vmem:[%s13 + $0x10] sm:$0xf]
    %v2766 = vld [vmem:[%s13 + $0x14] sm:$0xf]
    %v2767 = vld [vmem:[%s13 + $0x18] sm:$0xf]
    %v2768 = vld [vmem:[%s13 + $0x1c] sm:$0xf]
    %s2769 = scalar_lea.vmem %s7, 64
    %v2770 = vld [vmem:[%s2769] sm:$0xf]
    %v2771 = vld [vmem:[%s2769 + $0x4] sm:$0xf]
    %v2772 = vld [vmem:[%s2769 + $0x8] sm:$0xf]
    %v2773 = vld [vmem:[%s2769 + $0xc] sm:$0xf]
    %v2774 = vld [vmem:[%s2769 + $0x10] sm:$0xf]
    %v2775 = vld [vmem:[%s2769 + $0x14] sm:$0xf]
    %v2776 = vld [vmem:[%s2769 + $0x18] sm:$0xf]
    %v2777 = vld [vmem:[%s2769 + $0x1c] sm:$0xf]
    %v2778 = vld [vmem:[%s2769 + $0x20] sm:$0xf]
    %v2779 = vld [vmem:[%s2769 + $0x24] sm:$0xf]
    %v2780 = vld [vmem:[%s2769 + $0x28] sm:$0xf]
    %v2781 = vld [vmem:[%s2769 + $0x2c] sm:$0xf]
    %v2782 = vld [vmem:[%s2769 + $0x30] sm:$0xf]
    %v2783 = vld [vmem:[%s2769 + $0x34] sm:$0xf]
    %v2784 = vld [vmem:[%s2769 + $0x38] sm:$0xf]
    %v2785 = vld [vmem:[%s2769 + $0x3c] sm:$0xf]
    %s2786 = scalar_lea.vmem %s8, 1
    %v2787 = vld [vmem:[%s2786] sm:$0x1]
    %v2789 = vperm.slane %v2787, 0
    %v2807 = vunpack.c.l.b16 %v2770
    %v2808 = vunpack.c.l.b16 %v2771
    %v2809 = vunpack.c.l.b16 %v2772
    %v2810 = vunpack.c.l.b16 %v2773
    %v2811 = vunpack.c.l.b16 %v2774
    %v2812 = vunpack.c.l.b16 %v2775
    %v2813 = vunpack.c.l.b16 %v2776
    %v2814 = vunpack.c.l.b16 %v2777
    %v2815 = vunpack.c.l.b16 %v2778
    %v2816 = vunpack.c.l.b16 %v2779
    %v2817 = vunpack.c.l.b16 %v2780
    %v2818 = vunpack.c.l.b16 %v2781
    %v2819 = vunpack.c.l.b16 %v2782
    %v2820 = vunpack.c.l.b16 %v2783
    %v2821 = vunpack.c.l.b16 %v2784
    %v2822 = vunpack.c.l.b16 %v2785
    %v2823 = vpack.c.b16 %v2808, %v2807
    %v2824 = vpack.c.b16 %v2810, %v2809
    %v2825 = vpack.c.b16 %v2812, %v2811
    %v2826 = vpack.c.b16 %v2814, %v2813
    %v2827 = vpack.c.b16 %v2816, %v2815
    %v2828 = vpack.c.b16 %v2818, %v2817
    %v2829 = vpack.c.b16 %v2820, %v2819
    %v2830 = vpack.c.b16 %v2822, %v2821
    %2839 = vmatpush.bf16.msra.mxu0 %v2830
    %2840 = vmatpush.bf16.msra.mxu0 %v2829
    %2841 = vmatpush.bf16.msra.mxu0 %v2828
    %2842 = vmatpush.bf16.msra.mxu0 %v2827
    %2843 = vmatpush.bf16.msra.mxu0 %v2826
    %2844 = vmatpush.bf16.msra.mxu0 %v2825
    %2845 = vmatpush.bf16.msra.mxu0 %v2824
    %2846 = vmatpush.bf16.msra.mxu0 %v2823
    %2847 = vmatmul.bf16.gmra.mxu0 %v815
    %v2848 = vpop.f32.mrf.mxu0
    %v2849 = vadd.f32 %v2789, %v2848
    %v2850 = vpop.f32.mrf.mxu0
    %v2851 = vadd.f32 %v2789, %v2850
    %2852 = vmatmul.bf16.gmra.mxu0 %v816
    %v2853 = vpop.f32.mrf.mxu0
    %v2854 = vadd.f32 %v2789, %v2853
    %v2855 = vpop.f32.mrf.mxu0
    %v2856 = vadd.f32 %v2789, %v2855
    %2857 = vmatmul.bf16.gmra.mxu0 %v817
    %v2858 = vpop.f32.mrf.mxu0
    %v2859 = vadd.f32 %v2789, %v2858
    %v2860 = vpop.f32.mrf.mxu0
    %v2861 = vadd.f32 %v2789, %v2860
    %2862 = vmatmul.bf16.gmra.mxu0 %v818
    %v2863 = vpop.f32.mrf.mxu0
    %v2864 = vadd.f32 %v2789, %v2863
    %v2865 = vpop.f32.mrf.mxu0
    %v2866 = vadd.f32 %v2789, %v2865
    %2867 = vmatmul.bf16.gmra.mxu0 %v819
    %v2868 = vpop.f32.mrf.mxu0
    %v2869 = vadd.f32 %v2789, %v2868
    %v2870 = vpop.f32.mrf.mxu0
    %v2871 = vadd.f32 %v2789, %v2870
    %2872 = vdwg.mxu0
    %s2873 = scalar_lea.vmem %s9, 64
    %v2874 = vld [vmem:[%s2873] sm:$0xf]
    %v2875 = vld [vmem:[%s2873 + $0x4] sm:$0xf]
    %v2876 = vld [vmem:[%s2873 + $0x8] sm:$0xf]
    %v2877 = vld [vmem:[%s2873 + $0xc] sm:$0xf]
    %v2878 = vld [vmem:[%s2873 + $0x10] sm:$0xf]
    %v2879 = vld [vmem:[%s2873 + $0x14] sm:$0xf]
    %v2880 = vld [vmem:[%s2873 + $0x18] sm:$0xf]
    %v2881 = vld [vmem:[%s2873 + $0x1c] sm:$0xf]
    %v2882 = vld [vmem:[%s2873 + $0x20] sm:$0xf]
    %v2883 = vld [vmem:[%s2873 + $0x24] sm:$0xf]
    %v2884 = vld [vmem:[%s2873 + $0x28] sm:$0xf]
    %v2885 = vld [vmem:[%s2873 + $0x2c] sm:$0xf]
    %v2886 = vld [vmem:[%s2873 + $0x30] sm:$0xf]
    %v2887 = vld [vmem:[%s2873 + $0x34] sm:$0xf]
    %v2888 = vld [vmem:[%s2873 + $0x38] sm:$0xf]
    %v2889 = vld [vmem:[%s2873 + $0x3c] sm:$0xf]
    %s2890 = scalar_lea.vmem %s10, 1
    %v2891 = vld [vmem:[%s2890] sm:$0x1]
    %v2893 = vperm.slane %v2891, 0
    %v2911 = vunpack.c.l.b16 %v2874
    %v2912 = vunpack.c.l.b16 %v2875
    %v2913 = vunpack.c.l.b16 %v2876
    %v2914 = vunpack.c.l.b16 %v2877
    %v2915 = vunpack.c.l.b16 %v2878
    %v2916 = vunpack.c.l.b16 %v2879
    %v2917 = vunpack.c.l.b16 %v2880
    %v2918 = vunpack.c.l.b16 %v2881
    %v2919 = vunpack.c.l.b16 %v2882
    %v2920 = vunpack.c.l.b16 %v2883
    %v2921 = vunpack.c.l.b16 %v2884
    %v2922 = vunpack.c.l.b16 %v2885
    %v2923 = vunpack.c.l.b16 %v2886
    %v2924 = vunpack.c.l.b16 %v2887
    %v2925 = vunpack.c.l.b16 %v2888
    %v2926 = vunpack.c.l.b16 %v2889
    %v2927 = vpack.c.b16 %v2912, %v2911
    %v2928 = vpack.c.b16 %v2914, %v2913
    %v2929 = vpack.c.b16 %v2916, %v2915
    %v2930 = vpack.c.b16 %v2918, %v2917
    %v2931 = vpack.c.b16 %v2920, %v2919
    %v2932 = vpack.c.b16 %v2922, %v2921
    %v2933 = vpack.c.b16 %v2924, %v2923
    %v2934 = vpack.c.b16 %v2926, %v2925
    %2943 = vmatpush.bf16.msra.mxu0 %v2934
    %2944 = vmatpush.bf16.msra.mxu0 %v2933
    %2945 = vmatpush.bf16.msra.mxu0 %v2932
    %2946 = vmatpush.bf16.msra.mxu0 %v2931
    %2947 = vmatpush.bf16.msra.mxu0 %v2930
    %2948 = vmatpush.bf16.msra.mxu0 %v2929
    %2949 = vmatpush.bf16.msra.mxu0 %v2928
    %2950 = vmatpush.bf16.msra.mxu0 %v2927
    %2951 = vmatmul.bf16.gmra.mxu0 %v815
    %v2952 = vpop.f32.mrf.mxu0
    %v2953 = vadd.f32 %v2893, %v2952
    %v2954 = vpop.f32.mrf.mxu0
    %v2955 = vadd.f32 %v2893, %v2954
    %2956 = vmatmul.bf16.gmra.mxu0 %v816
    %v2957 = vpop.f32.mrf.mxu0
    %v2958 = vadd.f32 %v2893, %v2957
    %v2959 = vpop.f32.mrf.mxu0
    %v2960 = vadd.f32 %v2893, %v2959
    %2961 = vmatmul.bf16.gmra.mxu0 %v817
    %v2962 = vpop.f32.mrf.mxu0
    %v2963 = vadd.f32 %v2893, %v2962
    %v2964 = vpop.f32.mrf.mxu0
    %v2965 = vadd.f32 %v2893, %v2964
    %2966 = vmatmul.bf16.gmra.mxu0 %v818
    %v2967 = vpop.f32.mrf.mxu0
    %v2968 = vadd.f32 %v2893, %v2967
    %v2969 = vpop.f32.mrf.mxu0
    %v2970 = vadd.f32 %v2893, %v2969
    %2971 = vmatmul.bf16.gmra.mxu0 %v819
    %v2972 = vpop.f32.mrf.mxu0
    %v2973 = vadd.f32 %v2893, %v2972
    %v2974 = vpop.f32.mrf.mxu0
    %v2975 = vadd.f32 %v2893, %v2974
    %2976 = vdwg.mxu0
    %s2977 = scalar_lea.vmem %s11, 64
    %v2978 = vld [vmem:[%s2977] sm:$0xf]
    %v2979 = vld [vmem:[%s2977 + $0x4] sm:$0xf]
    %v2980 = vld [vmem:[%s2977 + $0x8] sm:$0xf]
    %v2981 = vld [vmem:[%s2977 + $0xc] sm:$0xf]
    %v2982 = vld [vmem:[%s2977 + $0x10] sm:$0xf]
    %v2983 = vld [vmem:[%s2977 + $0x14] sm:$0xf]
    %v2984 = vld [vmem:[%s2977 + $0x18] sm:$0xf]
    %v2985 = vld [vmem:[%s2977 + $0x1c] sm:$0xf]
    %v2986 = vld [vmem:[%s2977 + $0x20] sm:$0xf]
    %v2987 = vld [vmem:[%s2977 + $0x24] sm:$0xf]
    %v2988 = vld [vmem:[%s2977 + $0x28] sm:$0xf]
    %v2989 = vld [vmem:[%s2977 + $0x2c] sm:$0xf]
    %v2990 = vld [vmem:[%s2977 + $0x30] sm:$0xf]
    %v2991 = vld [vmem:[%s2977 + $0x34] sm:$0xf]
    %v2992 = vld [vmem:[%s2977 + $0x38] sm:$0xf]
    %v2993 = vld [vmem:[%s2977 + $0x3c] sm:$0xf]
    %s2994 = scalar_lea.vmem %s12, 1
    %v2995 = vld [vmem:[%s2994] sm:$0x1]
    %v2997 = vperm.slane %v2995, 0
    %v3015 = vunpack.c.l.b16 %v2978
    %v3016 = vunpack.c.l.b16 %v2979
    %v3017 = vunpack.c.l.b16 %v2980
    %v3018 = vunpack.c.l.b16 %v2981
    %v3019 = vunpack.c.l.b16 %v2982
    %v3020 = vunpack.c.l.b16 %v2983
    %v3021 = vunpack.c.l.b16 %v2984
    %v3022 = vunpack.c.l.b16 %v2985
    %v3023 = vunpack.c.l.b16 %v2986
    %v3024 = vunpack.c.l.b16 %v2987
    %v3025 = vunpack.c.l.b16 %v2988
    %v3026 = vunpack.c.l.b16 %v2989
    %v3027 = vunpack.c.l.b16 %v2990
    %v3028 = vunpack.c.l.b16 %v2991
    %v3029 = vunpack.c.l.b16 %v2992
    %v3030 = vunpack.c.l.b16 %v2993
    %v3031 = vpack.c.b16 %v3016, %v3015
    %v3032 = vpack.c.b16 %v3018, %v3017
    %v3033 = vpack.c.b16 %v3020, %v3019
    %v3034 = vpack.c.b16 %v3022, %v3021
    %v3035 = vpack.c.b16 %v3024, %v3023
    %v3036 = vpack.c.b16 %v3026, %v3025
    %v3037 = vpack.c.b16 %v3028, %v3027
    %v3038 = vpack.c.b16 %v3030, %v3029
    %3047 = vmatpush.bf16.msra.mxu0 %v3038
    %3048 = vmatpush.bf16.msra.mxu0 %v3037
    %3049 = vmatpush.bf16.msra.mxu0 %v3036
    %3050 = vmatpush.bf16.msra.mxu0 %v3035
    %3051 = vmatpush.bf16.msra.mxu0 %v3034
    %3052 = vmatpush.bf16.msra.mxu0 %v3033
    %3053 = vmatpush.bf16.msra.mxu0 %v3032
    %3054 = vmatpush.bf16.msra.mxu0 %v3031
    %3055 = vmatmul.bf16.gmra.mxu0 %v815
    %v3056 = vpop.f32.mrf.mxu0
    %v3057 = vadd.f32 %v2997, %v3056
    %v3058 = vpop.f32.mrf.mxu0
    %v3059 = vadd.f32 %v2997, %v3058
    %3060 = vmatmul.bf16.gmra.mxu0 %v816
    %v3061 = vpop.f32.mrf.mxu0
    %v3062 = vadd.f32 %v2997, %v3061
    %v3063 = vpop.f32.mrf.mxu0
    %v3064 = vadd.f32 %v2997, %v3063
    %3065 = vmatmul.bf16.gmra.mxu0 %v817
    %v3066 = vpop.f32.mrf.mxu0
    %v3067 = vadd.f32 %v2997, %v3066
    %v3068 = vpop.f32.mrf.mxu0
    %v3069 = vadd.f32 %v2997, %v3068
    %3070 = vmatmul.bf16.gmra.mxu0 %v818
    %v3071 = vpop.f32.mrf.mxu0
    %v3072 = vadd.f32 %v2997, %v3071
    %v3073 = vpop.f32.mrf.mxu0
    %v3074 = vadd.f32 %v2997, %v3073
    %3075 = vmatmul.bf16.gmra.mxu0 %v819
    %v3076 = vpop.f32.mrf.mxu0
    %v3077 = vadd.f32 %v2997, %v3076
    %v3078 = vpop.f32.mrf.mxu0
    %v3079 = vadd.f32 %v2997, %v3078
    %3080 = vdwg.mxu0
    %v3091 = vrot.slane %v2849, 1
    %v3092 = vrot.slane %v2849, 2
    %v3093 = vrot.slane %v2849, 3
    %v3094 = vrot.slane %v2849, 4
    %v3095 = vrot.slane %v2849, 5
    %v3096 = vrot.slane %v2849, 6
    %v3097 = vrot.slane %v2849, 7
    %v3098 = vrot.slane %v2851, 1
    %v3099 = vrot.slane %v2851, 2
    %v3100 = vrot.slane %v2851, 3
    %v3101 = vrot.slane %v2851, 4
    %v3102 = vrot.slane %v2851, 5
    %v3103 = vrot.slane %v2851, 6
    %v3104 = vrot.slane %v2851, 7
    %v3105 = vrot.slane %v2854, 1
    %v3106 = vrot.slane %v2854, 2
    %v3107 = vrot.slane %v2854, 3
    %v3108 = vrot.slane %v2854, 4
    %v3109 = vrot.slane %v2854, 5
    %v3110 = vrot.slane %v2854, 6
    %v3111 = vrot.slane %v2854, 7
    %v3112 = vrot.slane %v2856, 1
    %v3113 = vrot.slane %v2856, 2
    %v3114 = vrot.slane %v2856, 3
    %v3115 = vrot.slane %v2856, 4
    %v3116 = vrot.slane %v2856, 5
    %v3117 = vrot.slane %v2856, 6
    %v3118 = vrot.slane %v2856, 7
    %v3119 = vrot.slane %v2859, 1
    %v3120 = vrot.slane %v2859, 2
    %v3121 = vrot.slane %v2859, 3
    %v3122 = vrot.slane %v2859, 4
    %v3123 = vrot.slane %v2859, 5
    %v3124 = vrot.slane %v2859, 6
    %v3125 = vrot.slane %v2859, 7
    %v3126 = vrot.slane %v2861, 1
    %v3127 = vrot.slane %v2861, 2
    %v3128 = vrot.slane %v2861, 3
    %v3129 = vrot.slane %v2861, 4
    %v3130 = vrot.slane %v2861, 5
    %v3131 = vrot.slane %v2861, 6
    %v3132 = vrot.slane %v2861, 7
    %v3133 = vrot.slane %v2864, 1
    %v3134 = vrot.slane %v2864, 2
    %v3135 = vrot.slane %v2864, 3
    %v3136 = vrot.slane %v2864, 4
    %v3137 = vrot.slane %v2864, 5
    %v3138 = vrot.slane %v2864, 6
    %v3139 = vrot.slane %v2864, 7
    %v3140 = vrot.slane %v2866, 1
    %v3141 = vrot.slane %v2866, 2
    %v3142 = vrot.slane %v2866, 3
    %v3143 = vrot.slane %v2866, 4
    %v3144 = vrot.slane %v2866, 5
    %v3145 = vrot.slane %v2866, 6
    %v3146 = vrot.slane %v2866, 7
    %v3147 = vrot.slane %v2869, 1
    %v3148 = vrot.slane %v2869, 2
    %v3149 = vrot.slane %v2869, 3
    %v3150 = vrot.slane %v2869, 4
    %v3151 = vrot.slane %v2869, 5
    %v3152 = vrot.slane %v2869, 6
    %v3153 = vrot.slane %v2869, 7
    %v3154 = vrot.slane %v2871, 1
    %v3155 = vrot.slane %v2871, 2
    %v3156 = vrot.slane %v2871, 3
    %v3157 = vrot.slane %v2871, 4
    %v3158 = vrot.slane %v2871, 5
    %v3159 = vrot.slane %v2871, 6
    %v3160 = vrot.slane %v2871, 7
    %3161 = vst [vmem:[#allocation1] ss:$9 sm:$0xff] %v2849
    %s3162 = scalar_lea.vmem [#allocation1], 1
    %3163 = vst [vmem:[%s3162] ss:$9 sm:$0xff] %v3091
    %s3164 = scalar_lea.vmem [#allocation1], 2
    %3165 = vst [vmem:[%s3164] ss:$9 sm:$0xff] %v3092
    %s3166 = scalar_lea.vmem [#allocation1], 3
    %3167 = vst [vmem:[%s3166] ss:$9 sm:$0xff] %v3093
    %s3168 = scalar_lea.vmem [#allocation1], 4
    %3169 = vst [vmem:[%s3168] ss:$9 sm:$0xff] %v3094
    %v3170 = vld [vmem:[#allocation1] sm:$0xff]
    %3171 = vst [vmem:[#allocation1] ss:$9 sm:$0xff] %v3095
    %3172 = vst [vmem:[%s3162] ss:$9 sm:$0xff] %v3096
    %3173 = vst [vmem:[%s3164] ss:$9 sm:$0xff] %v3097
    %3174 = vst [vmem:[%s3166] ss:$9 sm:$0xff] %v2851
    %3175 = vst [vmem:[%s3168] ss:$9 sm:$0xff] %v3098
    %v3176 = vld [vmem:[#allocation1] sm:$0xff]
    %3177 = vst [vmem:[#allocation1] ss:$9 sm:$0xff] %v3099
    %3178 = vst [vmem:[%s3162] ss:$9 sm:$0xff] %v3100
    %3179 = vst [vmem:[%s3164] ss:$9 sm:$0xff] %v3101
    %3180 = vst [vmem:[%s3166] ss:$9 sm:$0xff] %v3102
    %3181 = vst [vmem:[%s3168] ss:$9 sm:$0xff] %v3103
    %v3182 = vld [vmem:[#allocation1] sm:$0xff]
    %3183 = vst [vmem:[#allocation1] ss:$9 sm:$0xff] %v3104
    %3184 = vst [vmem:[%s3162] ss:$9 sm:$0xff] %v2854
    %3185 = vst [vmem:[%s3164] ss:$9 sm:$0xff] %v3105
    %3186 = vst [vmem:[%s3166] ss:$9 sm:$0xff] %v3106
    %3187 = vst [vmem:[%s3168] ss:$9 sm:$0xff] %v3107
    %v3188 = vld [vmem:[#allocation1] sm:$0xff]
    %3189 = vst [vmem:[#allocation1] ss:$9 sm:$0xff] %v3108
    %3190 = vst [vmem:[%s3162] ss:$9 sm:$0xff] %v3109
    %3191 = vst [vmem:[%s3164] ss:$9 sm:$0xff] %v3110
    %3192 = vst [vmem:[%s3166] ss:$9 sm:$0xff] %v3111
    %3193 = vst [vmem:[%s3168] ss:$9 sm:$0xff] %v2856
    %v3194 = vld [vmem:[#allocation1] sm:$0xff]
    %3195 = vst [vmem:[#allocation1] ss:$9 sm:$0xff] %v3112
    %3196 = vst [vmem:[%s3162] ss:$9 sm:$0xff] %v3113
    %3197 = vst [vmem:[%s3164] ss:$9 sm:$0xff] %v3114
    %3198 = vst [vmem:[%s3166] ss:$9 sm:$0xff] %v3115
    %3199 = vst [vmem:[%s3168] ss:$9 sm:$0xff] %v3116
    %v3200 = vld [vmem:[#allocation1] sm:$0xff]
    %3201 = vst [vmem:[#allocation1] ss:$9 sm:$0xff] %v3117
    %3202 = vst [vmem:[%s3162] ss:$9 sm:$0xff] %v3118
    %3203 = vst [vmem:[%s3164] ss:$9 sm:$0xff] %v2859
    %3204 = vst [vmem:[%s3166] ss:$9 sm:$0xff] %v3119
    %3205 = vst [vmem:[%s3168] ss:$9 sm:$0xff] %v3120
    %v3206 = vld [vmem:[#allocation1] sm:$0xff]
    %3207 = vst [vmem:[#allocation1] ss:$9 sm:$0xff] %v3121
    %3208 = vst [vmem:[%s3162] ss:$9 sm:$0xff] %v3122
    %3209 = vst [vmem:[%s3164] ss:$9 sm:$0xff] %v3123
    %3210 = vst [vmem:[%s3166] ss:$9 sm:$0xff] %v3124
    %3211 = vst [vmem:[%s3168] ss:$9 sm:$0xff] %v3125
    %v3212 = vld [vmem:[#allocation1] sm:$0xff]
    %3213 = vst [vmem:[#allocation1] ss:$9 sm:$0xff] %v2861
    %3214 = vst [vmem:[%s3162] ss:$9 sm:$0xff] %v3126
    %3215 = vst [vmem:[%s3164] ss:$9 sm:$0xff] %v3127
    %3216 = vst [vmem:[%s3166] ss:$9 sm:$0xff] %v3128
    %3217 = vst [vmem:[%s3168] ss:$9 sm:$0xff] %v3129
    %v3218 = vld [vmem:[#allocation1] sm:$0xff]
    %3219 = vst [vmem:[#allocation1] ss:$9 sm:$0xff] %v3130
    %3220 = vst [vmem:[%s3162] ss:$9 sm:$0xff] %v3131
    %3221 = vst [vmem:[%s3164] ss:$9 sm:$0xff] %v3132
    %3222 = vst [vmem:[%s3166] ss:$9 sm:$0xff] %v2864
    %3223 = vst [vmem:[%s3168] ss:$9 sm:$0xff] %v3133
    %v3224 = vld [vmem:[#allocation1] sm:$0xff]
    %3225 = vst [vmem:[#allocation1] ss:$9 sm:$0xff] %v3134
    %3226 = vst [vmem:[%s3162] ss:$9 sm:$0xff] %v3135
    %3227 = vst [vmem:[%s3164] ss:$9 sm:$0xff] %v3136
    %3228 = vst [vmem:[%s3166] ss:$9 sm:$0xff] %v3137
    %3229 = vst [vmem:[%s3168] ss:$9 sm:$0xff] %v3138
    %v3230 = vld [vmem:[#allocation1] sm:$0xff]
    %3231 = vst [vmem:[#allocation1] ss:$9 sm:$0xff] %v3139
    %3232 = vst [vmem:[%s3162] ss:$9 sm:$0xff] %v2866
    %3233 = vst [vmem:[%s3164] ss:$9 sm:$0xff] %v3140
    %3234 = vst [vmem:[%s3166] ss:$9 sm:$0xff] %v3141
    %3235 = vst [vmem:[%s3168] ss:$9 sm:$0xff] %v3142
    %v3236 = vld [vmem:[#allocation1] sm:$0xff]
    %3237 = vst [vmem:[#allocation1] ss:$9 sm:$0xff] %v3143
    %3238 = vst [vmem:[%s3162] ss:$9 sm:$0xff] %v3144
    %3239 = vst [vmem:[%s3164] ss:$9 sm:$0xff] %v3145
    %3240 = vst [vmem:[%s3166] ss:$9 sm:$0xff] %v3146
    %3241 = vst [vmem:[%s3168] ss:$9 sm:$0xff] %v2869
    %v3242 = vld [vmem:[#allocation1] sm:$0xff]
    %3243 = vst [vmem:[#allocation1] ss:$9 sm:$0xff] %v3147
    %3244 = vst [vmem:[%s3162] ss:$9 sm:$0xff] %v3148
    %3245 = vst [vmem:[%s3164] ss:$9 sm:$0xff] %v3149
    %3246 = vst [vmem:[%s3166] ss:$9 sm:$0xff] %v3150
    %3247 = vst [vmem:[%s3168] ss:$9 sm:$0xff] %v3151
    %v3248 = vld [vmem:[#allocation1] sm:$0xff]
    %3249 = vst [vmem:[#allocation1] ss:$9 sm:$0xff] %v3152
    %3250 = vst [vmem:[%s3162] ss:$9 sm:$0xff] %v3153
    %3251 = vst [vmem:[%s3164] ss:$9 sm:$0xff] %v2871
    %3252 = vst [vmem:[%s3166] ss:$9 sm:$0xff] %v3154
    %3253 = vst [vmem:[%s3168] ss:$9 sm:$0xff] %v3155
    %v3254 = vld [vmem:[#allocation1] sm:$0xff]
    %3255 = vst [vmem:[#allocation1] ss:$9 sm:$0xff] %v3156
    %3256 = vst [vmem:[%s3162] ss:$9 sm:$0xff] %v3157
    %3257 = vst [vmem:[%s3164] ss:$9 sm:$0xff] %v3158
    %3258 = vst [vmem:[%s3166] ss:$9 sm:$0xff] %v3159
    %3259 = vst [vmem:[%s3168] ss:$9 sm:$0xff] %v3160
    %v3260 = vld [vmem:[#allocation1] sm:$0xff]
    %v3277 = vpack.c.bf16 %v3170, %v3170
    %v3278 = vpack.c.bf16 %v3176, %v3176
    %v3279 = vpack.c.bf16 %v3182, %v3182
    %v3280 = vpack.c.bf16 %v3188, %v3188
    %v3281 = vpack.c.bf16 %v3194, %v3194
    %v3282 = vpack.c.bf16 %v3200, %v3200
    %v3283 = vpack.c.bf16 %v3206, %v3206
    %v3284 = vpack.c.bf16 %v3212, %v3212
    %v3285 = vpack.c.bf16 %v3218, %v3218
    %v3286 = vpack.c.bf16 %v3224, %v3224
    %v3287 = vpack.c.bf16 %v3230, %v3230
    %v3288 = vpack.c.bf16 %v3236, %v3236
    %v3289 = vpack.c.bf16 %v3242, %v3242
    %v3290 = vpack.c.bf16 %v3248, %v3248
    %v3291 = vpack.c.bf16 %v3254, %v3254
    %v3292 = vpack.c.bf16 %v3260, %v3260
    %v3303 = vrot.slane %v2953, 1
    %v3304 = vrot.slane %v2953, 2
    %v3305 = vrot.slane %v2953, 3
    %v3306 = vrot.slane %v2953, 4
    %v3307 = vrot.slane %v2953, 5
    %v3308 = vrot.slane %v2953, 6
    %v3309 = vrot.slane %v2953, 7
    %v3310 = vrot.slane %v2955, 1
    %v3311 = vrot.slane %v2955, 2
    %v3312 = vrot.slane %v2955, 3
    %v3313 = vrot.slane %v2955, 4
    %v3314 = vrot.slane %v2955, 5
    %v3315 = vrot.slane %v2955, 6
    %v3316 = vrot.slane %v2955, 7
    %v3317 = vrot.slane %v2958, 1
    %v3318 = vrot.slane %v2958, 2
    %v3319 = vrot.slane %v2958, 3
    %v3320 = vrot.slane %v2958, 4
    %v3321 = vrot.slane %v2958, 5
    %v3322 = vrot.slane %v2958, 6
    %v3323 = vrot.slane %v2958, 7
    %v3324 = vrot.slane %v2960, 1
    %v3325 = vrot.slane %v2960, 2
    %v3326 = vrot.slane %v2960, 3
    %v3327 = vrot.slane %v2960, 4
    %v3328 = vrot.slane %v2960, 5
    %v3329 = vrot.slane %v2960, 6
    %v3330 = vrot.slane %v2960, 7
    %v3331 = vrot.slane %v2963, 1
    %v3332 = vrot.slane %v2963, 2
    %v3333 = vrot.slane %v2963, 3
    %v3334 = vrot.slane %v2963, 4
    %v3335 = vrot.slane %v2963, 5
    %v3336 = vrot.slane %v2963, 6
    %v3337 = vrot.slane %v2963, 7
    %v3338 = vrot.slane %v2965, 1
    %v3339 = vrot.slane %v2965, 2
    %v3340 = vrot.slane %v2965, 3
    %v3341 = vrot.slane %v2965, 4
    %v3342 = vrot.slane %v2965, 5
    %v3343 = vrot.slane %v2965, 6
    %v3344 = vrot.slane %v2965, 7
    %v3345 = vrot.slane %v2968, 1
    %v3346 = vrot.slane %v2968, 2
    %v3347 = vrot.slane %v2968, 3
    %v3348 = vrot.slane %v2968, 4
    %v3349 = vrot.slane %v2968, 5
    %v3350 = vrot.slane %v2968, 6
    %v3351 = vrot.slane %v2968, 7
    %v3352 = vrot.slane %v2970, 1
    %v3353 = vrot.slane %v2970, 2
    %v3354 = vrot.slane %v2970, 3
    %v3355 = vrot.slane %v2970, 4
    %v3356 = vrot.slane %v2970, 5
    %v3357 = vrot.slane %v2970, 6
    %v3358 = vrot.slane %v2970, 7
    %v3359 = vrot.slane %v2973, 1
    %v3360 = vrot.slane %v2973, 2
    %v3361 = vrot.slane %v2973, 3
    %v3362 = vrot.slane %v2973, 4
    %v3363 = vrot.slane %v2973, 5
    %v3364 = vrot.slane %v2973, 6
    %v3365 = vrot.slane %v2973, 7
    %v3366 = vrot.slane %v2975, 1
    %v3367 = vrot.slane %v2975, 2
    %v3368 = vrot.slane %v2975, 3
    %v3369 = vrot.slane %v2975, 4
    %v3370 = vrot.slane %v2975, 5
    %v3371 = vrot.slane %v2975, 6
    %v3372 = vrot.slane %v2975, 7
    %3373 = vst [vmem:[#allocation1] ss:$9 sm:$0xff] %v2953
    %s3374 = scalar_lea.vmem [#allocation1], 1
    %3375 = vst [vmem:[%s3374] ss:$9 sm:$0xff] %v3303
    %s3376 = scalar_lea.vmem [#allocation1], 2
    %3377 = vst [vmem:[%s3376] ss:$9 sm:$0xff] %v3304
    %s3378 = scalar_lea.vmem [#allocation1], 3
    %3379 = vst [vmem:[%s3378] ss:$9 sm:$0xff] %v3305
    %s3380 = scalar_lea.vmem [#allocation1], 4
    %3381 = vst [vmem:[%s3380] ss:$9 sm:$0xff] %v3306
    %v3382 = vld [vmem:[#allocation1] sm:$0xff]
    %3383 = vst [vmem:[#allocation1] ss:$9 sm:$0xff] %v3307
    %3384 = vst [vmem:[%s3374] ss:$9 sm:$0xff] %v3308
    %3385 = vst [vmem:[%s3376] ss:$9 sm:$0xff] %v3309
    %3386 = vst [vmem:[%s3378] ss:$9 sm:$0xff] %v2955
    %3387 = vst [vmem:[%s3380] ss:$9 sm:$0xff] %v3310
    %v3388 = vld [vmem:[#allocation1] sm:$0xff]
    %3389 = vst [vmem:[#allocation1] ss:$9 sm:$0xff] %v3311
    %3390 = vst [vmem:[%s3374] ss:$9 sm:$0xff] %v3312
    %3391 = vst [vmem:[%s3376] ss:$9 sm:$0xff] %v3313
    %3392 = vst [vmem:[%s3378] ss:$9 sm:$0xff] %v3314
    %3393 = vst [vmem:[%s3380] ss:$9 sm:$0xff] %v3315
    %v3394 = vld [vmem:[#allocation1] sm:$0xff]
    %3395 = vst [vmem:[#allocation1] ss:$9 sm:$0xff] %v3316
    %3396 = vst [vmem:[%s3374] ss:$9 sm:$0xff] %v2958
    %3397 = vst [vmem:[%s3376] ss:$9 sm:$0xff] %v3317
    %3398 = vst [vmem:[%s3378] ss:$9 sm:$0xff] %v3318
    %3399 = vst [vmem:[%s3380] ss:$9 sm:$0xff] %v3319
    %v3400 = vld [vmem:[#allocation1] sm:$0xff]
    %3401 = vst [vmem:[#allocation1] ss:$9 sm:$0xff] %v3320
    %3402 = vst [vmem:[%s3374] ss:$9 sm:$0xff] %v3321
    %3403 = vst [vmem:[%s3376] ss:$9 sm:$0xff] %v3322
    %3404 = vst [vmem:[%s3378] ss:$9 sm:$0xff] %v3323
    %3405 = vst [vmem:[%s3380] ss:$9 sm:$0xff] %v2960
    %v3406 = vld [vmem:[#allocation1] sm:$0xff]
    %3407 = vst [vmem:[#allocation1] ss:$9 sm:$0xff] %v3324
    %3408 = vst [vmem:[%s3374] ss:$9 sm:$0xff] %v3325
    %3409 = vst [vmem:[%s3376] ss:$9 sm:$0xff] %v3326
    %3410 = vst [vmem:[%s3378] ss:$9 sm:$0xff] %v3327
    %3411 = vst [vmem:[%s3380] ss:$9 sm:$0xff] %v3328
    %v3412 = vld [vmem:[#allocation1] sm:$0xff]
    %3413 = vst [vmem:[#allocation1] ss:$9 sm:$0xff] %v3329
    %3414 = vst [vmem:[%s3374] ss:$9 sm:$0xff] %v3330
    %3415 = vst [vmem:[%s3376] ss:$9 sm:$0xff] %v2963
    %3416 = vst [vmem:[%s3378] ss:$9 sm:$0xff] %v3331
    %3417 = vst [vmem:[%s3380] ss:$9 sm:$0xff] %v3332
    %v3418 = vld [vmem:[#allocation1] sm:$0xff]
    %3419 = vst [vmem:[#allocation1] ss:$9 sm:$0xff] %v3333
    %3420 = vst [vmem:[%s3374] ss:$9 sm:$0xff] %v3334
    %3421 = vst [vmem:[%s3376] ss:$9 sm:$0xff] %v3335
    %3422 = vst [vmem:[%s3378] ss:$9 sm:$0xff] %v3336
    %3423 = vst [vmem:[%s3380] ss:$9 sm:$0xff] %v3337
    %v3424 = vld [vmem:[#allocation1] sm:$0xff]
    %3425 = vst [vmem:[#allocation1] ss:$9 sm:$0xff] %v2965
    %3426 = vst [vmem:[%s3374] ss:$9 sm:$0xff] %v3338
    %3427 = vst [vmem:[%s3376] ss:$9 sm:$0xff] %v3339
    %3428 = vst [vmem:[%s3378] ss:$9 sm:$0xff] %v3340
    %3429 = vst [vmem:[%s3380] ss:$9 sm:$0xff] %v3341
    %v3430 = vld [vmem:[#allocation1] sm:$0xff]
    %3431 = vst [vmem:[#allocation1] ss:$9 sm:$0xff] %v3342
    %3432 = vst [vmem:[%s3374] ss:$9 sm:$0xff] %v3343
    %3433 = vst [vmem:[%s3376] ss:$9 sm:$0xff] %v3344
    %3434 = vst [vmem:[%s3378] ss:$9 sm:$0xff] %v2968
    %3435 = vst [vmem:[%s3380] ss:$9 sm:$0xff] %v3345
    %v3436 = vld [vmem:[#allocation1] sm:$0xff]
    %3437 = vst [vmem:[#allocation1] ss:$9 sm:$0xff] %v3346
    %3438 = vst [vmem:[%s3374] ss:$9 sm:$0xff] %v3347
    %3439 = vst [vmem:[%s3376] ss:$9 sm:$0xff] %v3348
    %3440 = vst [vmem:[%s3378] ss:$9 sm:$0xff] %v3349
    %3441 = vst [vmem:[%s3380] ss:$9 sm:$0xff] %v3350
    %v3442 = vld [vmem:[#allocation1] sm:$0xff]
    %3443 = vst [vmem:[#allocation1] ss:$9 sm:$0xff] %v3351
    %3444 = vst [vmem:[%s3374] ss:$9 sm:$0xff] %v2970
    %3445 = vst [vmem:[%s3376] ss:$9 sm:$0xff] %v3352
    %3446 = vst [vmem:[%s3378] ss:$9 sm:$0xff] %v3353
    %3447 = vst [vmem:[%s3380] ss:$9 sm:$0xff] %v3354
    %v3448 = vld [vmem:[#allocation1] sm:$0xff]
    %3449 = vst [vmem:[#allocation1] ss:$9 sm:$0xff] %v3355
    %3450 = vst [vmem:[%s3374] ss:$9 sm:$0xff] %v3356
    %3451 = vst [vmem:[%s3376] ss:$9 sm:$0xff] %v3357
    %3452 = vst [vmem:[%s3378] ss:$9 sm:$0xff] %v3358
    %3453 = vst [vmem:[%s3380] ss:$9 sm:$0xff] %v2973
    %v3454 = vld [vmem:[#allocation1] sm:$0xff]
    %3455 = vst [vmem:[#allocation1] ss:$9 sm:$0xff] %v3359
    %3456 = vst [vmem:[%s3374] ss:$9 sm:$0xff] %v3360
    %3457 = vst [vmem:[%s3376] ss:$9 sm:$0xff] %v3361
    %3458 = vst [vmem:[%s3378] ss:$9 sm:$0xff] %v3362
    %3459 = vst [vmem:[%s3380] ss:$9 sm:$0xff] %v3363
    %v3460 = vld [vmem:[#allocation1] sm:$0xff]
    %3461 = vst [vmem:[#allocation1] ss:$9 sm:$0xff] %v3364
    %3462 = vst [vmem:[%s3374] ss:$9 sm:$0xff] %v3365
    %3463 = vst [vmem:[%s3376] ss:$9 sm:$0xff] %v2975
    %3464 = vst [vmem:[%s3378] ss:$9 sm:$0xff] %v3366
    %3465 = vst [vmem:[%s3380] ss:$9 sm:$0xff] %v3367
    %v3466 = vld [vmem:[#allocation1] sm:$0xff]
    %3467 = vst [vmem:[#allocation1] ss:$9 sm:$0xff] %v3368
    %3468 = vst [vmem:[%s3374] ss:$9 sm:$0xff] %v3369
    %3469 = vst [vmem:[%s3376] ss:$9 sm:$0xff] %v3370
    %3470 = vst [vmem:[%s3378] ss:$9 sm:$0xff] %v3371
    %3471 = vst [vmem:[%s3380] ss:$9 sm:$0xff] %v3372
    %v3472 = vld [vmem:[#allocation1] sm:$0xff]
    %v3489 = vpack.c.bf16 %v3382, %v3382
    %v3490 = vpack.c.bf16 %v3388, %v3388
    %v3491 = vpack.c.bf16 %v3394, %v3394
    %v3492 = vpack.c.bf16 %v3400, %v3400
    %v3493 = vpack.c.bf16 %v3406, %v3406
    %v3494 = vpack.c.bf16 %v3412, %v3412
    %v3495 = vpack.c.bf16 %v3418, %v3418
    %v3496 = vpack.c.bf16 %v3424, %v3424
    %v3497 = vpack.c.bf16 %v3430, %v3430
    %v3498 = vpack.c.bf16 %v3436, %v3436
    %v3499 = vpack.c.bf16 %v3442, %v3442
    %v3500 = vpack.c.bf16 %v3448, %v3448
    %v3501 = vpack.c.bf16 %v3454, %v3454
    %v3502 = vpack.c.bf16 %v3460, %v3460
    %v3503 = vpack.c.bf16 %v3466, %v3466
    %v3504 = vpack.c.bf16 %v3472, %v3472
    %v3515 = vrot.slane %v3057, 1
    %v3516 = vrot.slane %v3057, 2
    %v3517 = vrot.slane %v3057, 3
    %v3518 = vrot.slane %v3057, 4
    %v3519 = vrot.slane %v3057, 5
    %v3520 = vrot.slane %v3057, 6
    %v3521 = vrot.slane %v3057, 7
    %v3522 = vrot.slane %v3059, 1
    %v3523 = vrot.slane %v3059, 2
    %v3524 = vrot.slane %v3059, 3
    %v3525 = vrot.slane %v3059, 4
    %v3526 = vrot.slane %v3059, 5
    %v3527 = vrot.slane %v3059, 6
    %v3528 = vrot.slane %v3059, 7
    %v3529 = vrot.slane %v3062, 1
    %v3530 = vrot.slane %v3062, 2
    %v3531 = vrot.slane %v3062, 3
    %v3532 = vrot.slane %v3062, 4
    %v3533 = vrot.slane %v3062, 5
    %v3534 = vrot.slane %v3062, 6
    %v3535 = vrot.slane %v3062, 7
    %v3536 = vrot.slane %v3064, 1
    %v3537 = vrot.slane %v3064, 2
    %v3538 = vrot.slane %v3064, 3
    %v3539 = vrot.slane %v3064, 4
    %v3540 = vrot.slane %v3064, 5
    %v3541 = vrot.slane %v3064, 6
    %v3542 = vrot.slane %v3064, 7
    %v3543 = vrot.slane %v3067, 1
    %v3544 = vrot.slane %v3067, 2
    %v3545 = vrot.slane %v3067, 3
    %v3546 = vrot.slane %v3067, 4
    %v3547 = vrot.slane %v3067, 5
    %v3548 = vrot.slane %v3067, 6
    %v3549 = vrot.slane %v3067, 7
    %v3550 = vrot.slane %v3069, 1
    %v3551 = vrot.slane %v3069, 2
    %v3552 = vrot.slane %v3069, 3
    %v3553 = vrot.slane %v3069, 4
    %v3554 = vrot.slane %v3069, 5
    %v3555 = vrot.slane %v3069, 6
    %v3556 = vrot.slane %v3069, 7
    %v3557 = vrot.slane %v3072, 1
    %v3558 = vrot.slane %v3072, 2
    %v3559 = vrot.slane %v3072, 3
    %v3560 = vrot.slane %v3072, 4
    %v3561 = vrot.slane %v3072, 5
    %v3562 = vrot.slane %v3072, 6
    %v3563 = vrot.slane %v3072, 7
    %v3564 = vrot.slane %v3074, 1
    %v3565 = vrot.slane %v3074, 2
    %v3566 = vrot.slane %v3074, 3
    %v3567 = vrot.slane %v3074, 4
    %v3568 = vrot.slane %v3074, 5
    %v3569 = vrot.slane %v3074, 6
    %v3570 = vrot.slane %v3074, 7
    %v3571 = vrot.slane %v3077, 1
    %v3572 = vrot.slane %v3077, 2
    %v3573 = vrot.slane %v3077, 3
    %v3574 = vrot.slane %v3077, 4
    %v3575 = vrot.slane %v3077, 5
    %v3576 = vrot.slane %v3077, 6
    %v3577 = vrot.slane %v3077, 7
    %v3578 = vrot.slane %v3079, 1
    %v3579 = vrot.slane %v3079, 2
    %v3580 = vrot.slane %v3079, 3
    %v3581 = vrot.slane %v3079, 4
    %v3582 = vrot.slane %v3079, 5
    %v3583 = vrot.slane %v3079, 6
    %v3584 = vrot.slane %v3079, 7
    %3585 = vst [vmem:[#allocation1] ss:$9 sm:$0xff] %v3057
    %s3586 = scalar_lea.vmem [#allocation1], 1
    %3587 = vst [vmem:[%s3586] ss:$9 sm:$0xff] %v3515
    %s3588 = scalar_lea.vmem [#allocation1], 2
    %3589 = vst [vmem:[%s3588] ss:$9 sm:$0xff] %v3516
    %s3590 = scalar_lea.vmem [#allocation1], 3
    %3591 = vst [vmem:[%s3590] ss:$9 sm:$0xff] %v3517
    %s3592 = scalar_lea.vmem [#allocation1], 4
    %3593 = vst [vmem:[%s3592] ss:$9 sm:$0xff] %v3518
    %v3594 = vld [vmem:[#allocation1] sm:$0xff]
    %3595 = vst [vmem:[#allocation1] ss:$9 sm:$0xff] %v3519
    %3596 = vst [vmem:[%s3586] ss:$9 sm:$0xff] %v3520
    %3597 = vst [vmem:[%s3588] ss:$9 sm:$0xff] %v3521
    %3598 = vst [vmem:[%s3590] ss:$9 sm:$0xff] %v3059
    %3599 = vst [vmem:[%s3592] ss:$9 sm:$0xff] %v3522
    %v3600 = vld [vmem:[#allocation1] sm:$0xff]
    %3601 = vst [vmem:[#allocation1] ss:$9 sm:$0xff] %v3523
    %3602 = vst [vmem:[%s3586] ss:$9 sm:$0xff] %v3524
    %3603 = vst [vmem:[%s3588] ss:$9 sm:$0xff] %v3525
    %3604 = vst [vmem:[%s3590] ss:$9 sm:$0xff] %v3526
    %3605 = vst [vmem:[%s3592] ss:$9 sm:$0xff] %v3527
    %v3606 = vld [vmem:[#allocation1] sm:$0xff]
    %3607 = vst [vmem:[#allocation1] ss:$9 sm:$0xff] %v3528
    %3608 = vst [vmem:[%s3586] ss:$9 sm:$0xff] %v3062
    %3609 = vst [vmem:[%s3588] ss:$9 sm:$0xff] %v3529
    %3610 = vst [vmem:[%s3590] ss:$9 sm:$0xff] %v3530
    %3611 = vst [vmem:[%s3592] ss:$9 sm:$0xff] %v3531
    %v3612 = vld [vmem:[#allocation1] sm:$0xff]
    %3613 = vst [vmem:[#allocation1] ss:$9 sm:$0xff] %v3532
    %3614 = vst [vmem:[%s3586] ss:$9 sm:$0xff] %v3533
    %3615 = vst [vmem:[%s3588] ss:$9 sm:$0xff] %v3534
    %3616 = vst [vmem:[%s3590] ss:$9 sm:$0xff] %v3535
    %3617 = vst [vmem:[%s3592] ss:$9 sm:$0xff] %v3064
    %v3618 = vld [vmem:[#allocation1] sm:$0xff]
    %3619 = vst [vmem:[#allocation1] ss:$9 sm:$0xff] %v3536
    %3620 = vst [vmem:[%s3586] ss:$9 sm:$0xff] %v3537
    %3621 = vst [vmem:[%s3588] ss:$9 sm:$0xff] %v3538
    %3622 = vst [vmem:[%s3590] ss:$9 sm:$0xff] %v3539
    %3623 = vst [vmem:[%s3592] ss:$9 sm:$0xff] %v3540
    %v3624 = vld [vmem:[#allocation1] sm:$0xff]
    %3625 = vst [vmem:[#allocation1] ss:$9 sm:$0xff] %v3541
    %3626 = vst [vmem:[%s3586] ss:$9 sm:$0xff] %v3542
    %3627 = vst [vmem:[%s3588] ss:$9 sm:$0xff] %v3067
    %3628 = vst [vmem:[%s3590] ss:$9 sm:$0xff] %v3543
    %3629 = vst [vmem:[%s3592] ss:$9 sm:$0xff] %v3544
    %v3630 = vld [vmem:[#allocation1] sm:$0xff]
    %3631 = vst [vmem:[#allocation1] ss:$9 sm:$0xff] %v3545
    %3632 = vst [vmem:[%s3586] ss:$9 sm:$0xff] %v3546
    %3633 = vst [vmem:[%s3588] ss:$9 sm:$0xff] %v3547
    %3634 = vst [vmem:[%s3590] ss:$9 sm:$0xff] %v3548
    %3635 = vst [vmem:[%s3592] ss:$9 sm:$0xff] %v3549
    %v3636 = vld [vmem:[#allocation1] sm:$0xff]
    %3637 = vst [vmem:[#allocation1] ss:$9 sm:$0xff] %v3069
    %3638 = vst [vmem:[%s3586] ss:$9 sm:$0xff] %v3550
    %3639 = vst [vmem:[%s3588] ss:$9 sm:$0xff] %v3551
    %3640 = vst [vmem:[%s3590] ss:$9 sm:$0xff] %v3552
    %3641 = vst [vmem:[%s3592] ss:$9 sm:$0xff] %v3553
    %v3642 = vld [vmem:[#allocation1] sm:$0xff]
    %3643 = vst [vmem:[#allocation1] ss:$9 sm:$0xff] %v3554
    %3644 = vst [vmem:[%s3586] ss:$9 sm:$0xff] %v3555
    %3645 = vst [vmem:[%s3588] ss:$9 sm:$0xff] %v3556
    %3646 = vst [vmem:[%s3590] ss:$9 sm:$0xff] %v3072
    %3647 = vst [vmem:[%s3592] ss:$9 sm:$0xff] %v3557
    %v3648 = vld [vmem:[#allocation1] sm:$0xff]
    %3649 = vst [vmem:[#allocation1] ss:$9 sm:$0xff] %v3558
    %3650 = vst [vmem:[%s3586] ss:$9 sm:$0xff] %v3559
    %3651 = vst [vmem:[%s3588] ss:$9 sm:$0xff] %v3560
    %3652 = vst [vmem:[%s3590] ss:$9 sm:$0xff] %v3561
    %3653 = vst [vmem:[%s3592] ss:$9 sm:$0xff] %v3562
    %v3654 = vld [vmem:[#allocation1] sm:$0xff]
    %3655 = vst [vmem:[#allocation1] ss:$9 sm:$0xff] %v3563
    %3656 = vst [vmem:[%s3586] ss:$9 sm:$0xff] %v3074
    %3657 = vst [vmem:[%s3588] ss:$9 sm:$0xff] %v3564
    %3658 = vst [vmem:[%s3590] ss:$9 sm:$0xff] %v3565
    %3659 = vst [vmem:[%s3592] ss:$9 sm:$0xff] %v3566
    %v3660 = vld [vmem:[#allocation1] sm:$0xff]
    %3661 = vst [vmem:[#allocation1] ss:$9 sm:$0xff] %v3567
    %3662 = vst [vmem:[%s3586] ss:$9 sm:$0xff] %v3568
    %3663 = vst [vmem:[%s3588] ss:$9 sm:$0xff] %v3569
    %3664 = vst [vmem:[%s3590] ss:$9 sm:$0xff] %v3570
    %3665 = vst [vmem:[%s3592] ss:$9 sm:$0xff] %v3077
    %v3666 = vld [vmem:[#allocation1] sm:$0xff]
    %3667 = vst [vmem:[#allocation1] ss:$9 sm:$0xff] %v3571
    %3668 = vst [vmem:[%s3586] ss:$9 sm:$0xff] %v3572
    %3669 = vst [vmem:[%s3588] ss:$9 sm:$0xff] %v3573
    %3670 = vst [vmem:[%s3590] ss:$9 sm:$0xff] %v3574
    %3671 = vst [vmem:[%s3592] ss:$9 sm:$0xff] %v3575
    %v3672 = vld [vmem:[#allocation1] sm:$0xff]
    %3673 = vst [vmem:[#allocation1] ss:$9 sm:$0xff] %v3576
    %3674 = vst [vmem:[%s3586] ss:$9 sm:$0xff] %v3577
    %3675 = vst [vmem:[%s3588] ss:$9 sm:$0xff] %v3079
    %3676 = vst [vmem:[%s3590] ss:$9 sm:$0xff] %v3578
    %3677 = vst [vmem:[%s3592] ss:$9 sm:$0xff] %v3579
    %v3678 = vld [vmem:[#allocation1] sm:$0xff]
    %3679 = vst [vmem:[#allocation1] ss:$9 sm:$0xff] %v3580
    %3680 = vst [vmem:[%s3586] ss:$9 sm:$0xff] %v3581
    %3681 = vst [vmem:[%s3588] ss:$9 sm:$0xff] %v3582
    %3682 = vst [vmem:[%s3590] ss:$9 sm:$0xff] %v3583
    %3683 = vst [vmem:[%s3592] ss:$9 sm:$0xff] %v3584
    %v3684 = vld [vmem:[#allocation1] sm:$0xff]
    %v3701 = vpack.c.bf16 %v3594, %v3594
    %v3702 = vpack.c.bf16 %v3600, %v3600
    %v3703 = vpack.c.bf16 %v3606, %v3606
    %v3704 = vpack.c.bf16 %v3612, %v3612
    %v3705 = vpack.c.bf16 %v3618, %v3618
    %v3706 = vpack.c.bf16 %v3624, %v3624
    %v3707 = vpack.c.bf16 %v3630, %v3630
    %v3708 = vpack.c.bf16 %v3636, %v3636
    %v3709 = vpack.c.bf16 %v3642, %v3642
    %v3710 = vpack.c.bf16 %v3648, %v3648
    %v3711 = vpack.c.bf16 %v3654, %v3654
    %v3712 = vpack.c.bf16 %v3660, %v3660
    %v3713 = vpack.c.bf16 %v3666, %v3666
    %v3714 = vpack.c.bf16 %v3672, %v3672
    %v3715 = vpack.c.bf16 %v3678, %v3678
    %v3716 = vpack.c.bf16 %v3684, %v3684
    %v3718 = vsel %vm1762, %v3277, 0
    %v3721 = vsel %vm1762, %v3489, 0
    %3723 = vmatpush.bf16.xpose.msra.mxu0 0
    %3724 = vmatpush.bf16.xpose.msra.mxu0 0
    %3725 = vmatpush.bf16.xpose.msra.mxu0 0
    %3726 = vmatpush.bf16.xpose.msra.mxu0 0
    %3727 = vmatpush.bf16.xpose.msra.mxu0 0
    %3728 = vmatpush.bf16.xpose.msra.mxu0 0
    %3729 = vmatpush.bf16.xpose.msra.mxu0 0
    %3730 = vmatpush.bf16.xpose.msra.mxu0 %v3721
    %3731 = vmatmul.bf16.gmra.mxu0 %v3718
    %v3732 = vpop.f32.mrf.mxu0
    %v3733 = vadd.f32 0.0, %v3732
    %v3734 = vpop.f32.mrf.mxu0
    %3735 = vdwg.mxu0
    %v3737 = vsel %vm1762, %v3278, 0
    %v3740 = vsel %vm1762, %v3490, 0
    %3742 = vmatpush.bf16.xpose.msra.mxu0 0
    %3743 = vmatpush.bf16.xpose.msra.mxu0 0
    %3744 = vmatpush.bf16.xpose.msra.mxu0 0
    %3745 = vmatpush.bf16.xpose.msra.mxu0 0
    %3746 = vmatpush.bf16.xpose.msra.mxu0 0
    %3747 = vmatpush.bf16.xpose.msra.mxu0 0
    %3748 = vmatpush.bf16.xpose.msra.mxu0 0
    %3749 = vmatpush.bf16.xpose.msra.mxu0 %v3740
    %3750 = vmatmul.bf16.gmra.mxu0 %v3737
    %v3751 = vpop.f32.mrf.mxu0
    %v3752 = vadd.f32 0.0, %v3751
    %v3753 = vpop.f32.mrf.mxu0
    %3754 = vdwg.mxu0
    %v3756 = vsel %vm1762, %v3279, 0
    %v3759 = vsel %vm1762, %v3491, 0
    %3761 = vmatpush.bf16.xpose.msra.mxu0 0
    %3762 = vmatpush.bf16.xpose.msra.mxu0 0
    %3763 = vmatpush.bf16.xpose.msra.mxu0 0
    %3764 = vmatpush.bf16.xpose.msra.mxu0 0
    %3765 = vmatpush.bf16.xpose.msra.mxu0 0
    %3766 = vmatpush.bf16.xpose.msra.mxu0 0
    %3767 = vmatpush.bf16.xpose.msra.mxu0 0
    %3768 = vmatpush.bf16.xpose.msra.mxu0 %v3759
    %3769 = vmatmul.bf16.gmra.mxu0 %v3756
    %v3770 = vpop.f32.mrf.mxu0
    %v3771 = vadd.f32 0.0, %v3770
    %v3772 = vpop.f32.mrf.mxu0
    %3773 = vdwg.mxu0
    %v3775 = vsel %vm1762, %v3280, 0
    %v3778 = vsel %vm1762, %v3492, 0
    %3780 = vmatpush.bf16.xpose.msra.mxu0 0
    %3781 = vmatpush.bf16.xpose.msra.mxu0 0
    %3782 = vmatpush.bf16.xpose.msra.mxu0 0
    %3783 = vmatpush.bf16.xpose.msra.mxu0 0
    %3784 = vmatpush.bf16.xpose.msra.mxu0 0
    %3785 = vmatpush.bf16.xpose.msra.mxu0 0
    %3786 = vmatpush.bf16.xpose.msra.mxu0 0
    %3787 = vmatpush.bf16.xpose.msra.mxu0 %v3778
    %3788 = vmatmul.bf16.gmra.mxu0 %v3775
    %v3789 = vpop.f32.mrf.mxu0
    %v3790 = vadd.f32 0.0, %v3789
    %v3791 = vpop.f32.mrf.mxu0
    %3792 = vdwg.mxu0
    %v3794 = vsel %vm1762, %v3281, 0
    %v3797 = vsel %vm1762, %v3493, 0
    %3799 = vmatpush.bf16.xpose.msra.mxu0 0
    %3800 = vmatpush.bf16.xpose.msra.mxu0 0
    %3801 = vmatpush.bf16.xpose.msra.mxu0 0
    %3802 = vmatpush.bf16.xpose.msra.mxu0 0
    %3803 = vmatpush.bf16.xpose.msra.mxu0 0
    %3804 = vmatpush.bf16.xpose.msra.mxu0 0
    %3805 = vmatpush.bf16.xpose.msra.mxu0 0
    %3806 = vmatpush.bf16.xpose.msra.mxu0 %v3797
    %3807 = vmatmul.bf16.gmra.mxu0 %v3794
    %v3808 = vpop.f32.mrf.mxu0
    %v3809 = vadd.f32 0.0, %v3808
    %v3810 = vpop.f32.mrf.mxu0
    %3811 = vdwg.mxu0
    %v3813 = vsel %vm1762, %v3282, 0
    %v3816 = vsel %vm1762, %v3494, 0
    %3818 = vmatpush.bf16.xpose.msra.mxu0 0
    %3819 = vmatpush.bf16.xpose.msra.mxu0 0
    %3820 = vmatpush.bf16.xpose.msra.mxu0 0
    %3821 = vmatpush.bf16.xpose.msra.mxu0 0
    %3822 = vmatpush.bf16.xpose.msra.mxu0 0
    %3823 = vmatpush.bf16.xpose.msra.mxu0 0
    %3824 = vmatpush.bf16.xpose.msra.mxu0 0
    %3825 = vmatpush.bf16.xpose.msra.mxu0 %v3816
    %3826 = vmatmul.bf16.gmra.mxu0 %v3813
    %v3827 = vpop.f32.mrf.mxu0
    %v3828 = vadd.f32 0.0, %v3827
    %v3829 = vpop.f32.mrf.mxu0
    %3830 = vdwg.mxu0
    %v3832 = vsel %vm1762, %v3283, 0
    %v3835 = vsel %vm1762, %v3495, 0
    %3837 = vmatpush.bf16.xpose.msra.mxu0 0
    %3838 = vmatpush.bf16.xpose.msra.mxu0 0
    %3839 = vmatpush.bf16.xpose.msra.mxu0 0
    %3840 = vmatpush.bf16.xpose.msra.mxu0 0
    %3841 = vmatpush.bf16.xpose.msra.mxu0 0
    %3842 = vmatpush.bf16.xpose.msra.mxu0 0
    %3843 = vmatpush.bf16.xpose.msra.mxu0 0
    %3844 = vmatpush.bf16.xpose.msra.mxu0 %v3835
    %3845 = vmatmul.bf16.gmra.mxu0 %v3832
    %v3846 = vpop.f32.mrf.mxu0
    %v3847 = vadd.f32 0.0, %v3846
    %v3848 = vpop.f32.mrf.mxu0
    %3849 = vdwg.mxu0
    %v3851 = vsel %vm1762, %v3284, 0
    %v3854 = vsel %vm1762, %v3496, 0
    %3856 = vmatpush.bf16.xpose.msra.mxu0 0
    %3857 = vmatpush.bf16.xpose.msra.mxu0 0
    %3858 = vmatpush.bf16.xpose.msra.mxu0 0
    %3859 = vmatpush.bf16.xpose.msra.mxu0 0
    %3860 = vmatpush.bf16.xpose.msra.mxu0 0
    %3861 = vmatpush.bf16.xpose.msra.mxu0 0
    %3862 = vmatpush.bf16.xpose.msra.mxu0 0
    %3863 = vmatpush.bf16.xpose.msra.mxu0 %v3854
    %3864 = vmatmul.bf16.gmra.mxu0 %v3851
    %v3865 = vpop.f32.mrf.mxu0
    %v3866 = vadd.f32 0.0, %v3865
    %v3867 = vpop.f32.mrf.mxu0
    %3868 = vdwg.mxu0
    %v3870 = vsel %vm1762, %v3285, 0
    %v3873 = vsel %vm1762, %v3497, 0
    %3875 = vmatpush.bf16.xpose.msra.mxu0 0
    %3876 = vmatpush.bf16.xpose.msra.mxu0 0
    %3877 = vmatpush.bf16.xpose.msra.mxu0 0
    %3878 = vmatpush.bf16.xpose.msra.mxu0 0
    %3879 = vmatpush.bf16.xpose.msra.mxu0 0
    %3880 = vmatpush.bf16.xpose.msra.mxu0 0
    %3881 = vmatpush.bf16.xpose.msra.mxu0 0
    %3882 = vmatpush.bf16.xpose.msra.mxu0 %v3873
    %3883 = vmatmul.bf16.gmra.mxu0 %v3870
    %v3884 = vpop.f32.mrf.mxu0
    %v3885 = vadd.f32 0.0, %v3884
    %v3886 = vpop.f32.mrf.mxu0
    %3887 = vdwg.mxu0
    %v3889 = vsel %vm1762, %v3286, 0
    %v3892 = vsel %vm1762, %v3498, 0
    %3894 = vmatpush.bf16.xpose.msra.mxu0 0
    %3895 = vmatpush.bf16.xpose.msra.mxu0 0
    %3896 = vmatpush.bf16.xpose.msra.mxu0 0
    %3897 = vmatpush.bf16.xpose.msra.mxu0 0
    %3898 = vmatpush.bf16.xpose.msra.mxu0 0
    %3899 = vmatpush.bf16.xpose.msra.mxu0 0
    %3900 = vmatpush.bf16.xpose.msra.mxu0 0
    %3901 = vmatpush.bf16.xpose.msra.mxu0 %v3892
    %3902 = vmatmul.bf16.gmra.mxu0 %v3889
    %v3903 = vpop.f32.mrf.mxu0
    %v3904 = vadd.f32 0.0, %v3903
    %v3905 = vpop.f32.mrf.mxu0
    %3906 = vdwg.mxu0
    %v3908 = vsel %vm1762, %v3287, 0
    %v3911 = vsel %vm1762, %v3499, 0
    %3913 = vmatpush.bf16.xpose.msra.mxu0 0
    %3914 = vmatpush.bf16.xpose.msra.mxu0 0
    %3915 = vmatpush.bf16.xpose.msra.mxu0 0
    %3916 = vmatpush.bf16.xpose.msra.mxu0 0
    %3917 = vmatpush.bf16.xpose.msra.mxu0 0
    %3918 = vmatpush.bf16.xpose.msra.mxu0 0
    %3919 = vmatpush.bf16.xpose.msra.mxu0 0
    %3920 = vmatpush.bf16.xpose.msra.mxu0 %v3911
    %3921 = vmatmul.bf16.gmra.mxu0 %v3908
    %v3922 = vpop.f32.mrf.mxu0
    %v3923 = vadd.f32 0.0, %v3922
    %v3924 = vpop.f32.mrf.mxu0
    %3925 = vdwg.mxu0
    %v3927 = vsel %vm1762, %v3288, 0
    %v3930 = vsel %vm1762, %v3500, 0
    %3932 = vmatpush.bf16.xpose.msra.mxu0 0
    %3933 = vmatpush.bf16.xpose.msra.mxu0 0
    %3934 = vmatpush.bf16.xpose.msra.mxu0 0
    %3935 = vmatpush.bf16.xpose.msra.mxu0 0
    %3936 = vmatpush.bf16.xpose.msra.mxu0 0
    %3937 = vmatpush.bf16.xpose.msra.mxu0 0
    %3938 = vmatpush.bf16.xpose.msra.mxu0 0
    %3939 = vmatpush.bf16.xpose.msra.mxu0 %v3930
    %3940 = vmatmul.bf16.gmra.mxu0 %v3927
    %v3941 = vpop.f32.mrf.mxu0
    %v3942 = vadd.f32 0.0, %v3941
    %v3943 = vpop.f32.mrf.mxu0
    %3944 = vdwg.mxu0
    %v3946 = vsel %vm1762, %v3289, 0
    %v3949 = vsel %vm1762, %v3501, 0
    %3951 = vmatpush.bf16.xpose.msra.mxu0 0
    %3952 = vmatpush.bf16.xpose.msra.mxu0 0
    %3953 = vmatpush.bf16.xpose.msra.mxu0 0
    %3954 = vmatpush.bf16.xpose.msra.mxu0 0
    %3955 = vmatpush.bf16.xpose.msra.mxu0 0
    %3956 = vmatpush.bf16.xpose.msra.mxu0 0
    %3957 = vmatpush.bf16.xpose.msra.mxu0 0
    %3958 = vmatpush.bf16.xpose.msra.mxu0 %v3949
    %3959 = vmatmul.bf16.gmra.mxu0 %v3946
    %v3960 = vpop.f32.mrf.mxu0
    %v3961 = vadd.f32 0.0, %v3960
    %v3962 = vpop.f32.mrf.mxu0
    %3963 = vdwg.mxu0
    %v3965 = vsel %vm1762, %v3290, 0
    %v3968 = vsel %vm1762, %v3502, 0
    %3970 = vmatpush.bf16.xpose.msra.mxu0 0
    %3971 = vmatpush.bf16.xpose.msra.mxu0 0
    %3972 = vmatpush.bf16.xpose.msra.mxu0 0
    %3973 = vmatpush.bf16.xpose.msra.mxu0 0
    %3974 = vmatpush.bf16.xpose.msra.mxu0 0
    %3975 = vmatpush.bf16.xpose.msra.mxu0 0
    %3976 = vmatpush.bf16.xpose.msra.mxu0 0
    %3977 = vmatpush.bf16.xpose.msra.mxu0 %v3968
    %3978 = vmatmul.bf16.gmra.mxu0 %v3965
    %v3979 = vpop.f32.mrf.mxu0
    %v3980 = vadd.f32 0.0, %v3979
    %v3981 = vpop.f32.mrf.mxu0
    %3982 = vdwg.mxu0
    %v3984 = vsel %vm1762, %v3291, 0
    %v3987 = vsel %vm1762, %v3503, 0
    %3989 = vmatpush.bf16.xpose.msra.mxu0 0
    %3990 = vmatpush.bf16.xpose.msra.mxu0 0
    %3991 = vmatpush.bf16.xpose.msra.mxu0 0
    %3992 = vmatpush.bf16.xpose.msra.mxu0 0
    %3993 = vmatpush.bf16.xpose.msra.mxu0 0
    %3994 = vmatpush.bf16.xpose.msra.mxu0 0
    %3995 = vmatpush.bf16.xpose.msra.mxu0 0
    %3996 = vmatpush.bf16.xpose.msra.mxu0 %v3987
    %3997 = vmatmul.bf16.gmra.mxu0 %v3984
    %v3998 = vpop.f32.mrf.mxu0
    %v3999 = vadd.f32 0.0, %v3998
    %v4000 = vpop.f32.mrf.mxu0
    %4001 = vdwg.mxu0
    %v4003 = vsel %vm1762, %v3292, 0
    %v4006 = vsel %vm1762, %v3504, 0
    %4008 = vmatpush.bf16.xpose.msra.mxu0 0
    %4009 = vmatpush.bf16.xpose.msra.mxu0 0
    %4010 = vmatpush.bf16.xpose.msra.mxu0 0
    %4011 = vmatpush.bf16.xpose.msra.mxu0 0
    %4012 = vmatpush.bf16.xpose.msra.mxu0 0
    %4013 = vmatpush.bf16.xpose.msra.mxu0 0
    %4014 = vmatpush.bf16.xpose.msra.mxu0 0
    %4015 = vmatpush.bf16.xpose.msra.mxu0 %v4006
    %4016 = vmatmul.bf16.gmra.mxu0 %v4003
    %v4017 = vpop.f32.mrf.mxu0
    %v4018 = vadd.f32 0.0, %v4017
    %v4019 = vpop.f32.mrf.mxu0
    %4020 = vdwg.mxu0
    %v4021 = vsel %vm2067, %v3733, -inf
    %4022 = vmax.xlane.f32.xlu0 %v4021
    %v4023 = vpop.xlane.xlu0 %4022
    %v4024 = vsel %vm2067, %v3752, -inf
    %4025 = vmax.xlane.f32.xlu0 %v4024
    %v4026 = vpop.xlane.xlu0 %4025
    %v4027 = vsel %vm2067, %v3771, -inf
    %4028 = vmax.xlane.f32.xlu0 %v4027
    %v4029 = vpop.xlane.xlu0 %4028
    %v4030 = vsel %vm2067, %v3790, -inf
    %4031 = vmax.xlane.f32.xlu0 %v4030
    %v4032 = vpop.xlane.xlu0 %4031
    %v4033 = vsel %vm2067, %v3809, -inf
    %4034 = vmax.xlane.f32.xlu0 %v4033
    %v4035 = vpop.xlane.xlu0 %4034
    %v4036 = vsel %vm2067, %v3828, -inf
    %4037 = vmax.xlane.f32.xlu0 %v4036
    %v4038 = vpop.xlane.xlu0 %4037
    %v4039 = vsel %vm2067, %v3847, -inf
    %4040 = vmax.xlane.f32.xlu0 %v4039
    %v4041 = vpop.xlane.xlu0 %4040
    %v4042 = vsel %vm2067, %v3866, -inf
    %4043 = vmax.xlane.f32.xlu0 %v4042
    %v4044 = vpop.xlane.xlu0 %4043
    %v4045 = vsel %vm2067, %v3885, -inf
    %4046 = vmax.xlane.f32.xlu0 %v4045
    %v4047 = vpop.xlane.xlu0 %4046
    %v4048 = vsel %vm2067, %v3904, -inf
    %4049 = vmax.xlane.f32.xlu0 %v4048
    %v4050 = vpop.xlane.xlu0 %4049
    %v4051 = vsel %vm2067, %v3923, -inf
    %4052 = vmax.xlane.f32.xlu0 %v4051
    %v4053 = vpop.xlane.xlu0 %4052
    %v4054 = vsel %vm2067, %v3942, -inf
    %4055 = vmax.xlane.f32.xlu0 %v4054
    %v4056 = vpop.xlane.xlu0 %4055
    %v4057 = vsel %vm2067, %v3961, -inf
    %4058 = vmax.xlane.f32.xlu0 %v4057
    %v4059 = vpop.xlane.xlu0 %4058
    %v4060 = vsel %vm2067, %v3980, -inf
    %4061 = vmax.xlane.f32.xlu0 %v4060
    %v4062 = vpop.xlane.xlu0 %4061
    %v4063 = vsel %vm2067, %v3999, -inf
    %4064 = vmax.xlane.f32.xlu0 %v4063
    %v4065 = vpop.xlane.xlu0 %4064
    %v4066 = vsel %vm2067, %v4018, -inf
    %4067 = vmax.xlane.f32.xlu0 %v4066
    %v4068 = vpop.xlane.xlu0 %4067
    %v4069 = vsub.f32 %v3733, %v4023
    %v4070 = vsub.f32 %v3752, %v4026
    %v4071 = vsub.f32 %v3771, %v4029
    %v4072 = vsub.f32 %v3790, %v4032
    %v4073 = vsub.f32 %v3809, %v4035
    %v4074 = vsub.f32 %v3828, %v4038
    %v4075 = vsub.f32 %v3847, %v4041
    %v4076 = vsub.f32 %v3866, %v4044
    %v4077 = vsub.f32 %v3885, %v4047
    %v4078 = vsub.f32 %v3904, %v4050
    %v4079 = vsub.f32 %v3923, %v4053
    %v4080 = vsub.f32 %v3942, %v4056
    %v4081 = vsub.f32 %v3961, %v4059
    %v4082 = vsub.f32 %v3980, %v4062
    %v4083 = vsub.f32 %v3999, %v4065
    %v4084 = vsub.f32 %v4018, %v4068
    %v4085 = vmul.f32 %v4069, 1.442695
    %v4086 = vpow.pop %v4085
    %v4087 = vmul.f32 %v4070, 1.442695
    %v4088 = vpow.pop %v4087
    %v4089 = vmul.f32 %v4071, 1.442695
    %v4090 = vpow.pop %v4089
    %v4091 = vmul.f32 %v4072, 1.442695
    %v4092 = vpow.pop %v4091
    %v4093 = vmul.f32 %v4073, 1.442695
    %v4094 = vpow.pop %v4093
    %v4095 = vmul.f32 %v4074, 1.442695
    %v4096 = vpow.pop %v4095
    %v4097 = vmul.f32 %v4075, 1.442695
    %v4098 = vpow.pop %v4097
    %v4099 = vmul.f32 %v4076, 1.442695
    %v4100 = vpow.pop %v4099
    %v4101 = vmul.f32 %v4077, 1.442695
    %v4102 = vpow.pop %v4101
    %v4103 = vmul.f32 %v4078, 1.442695
    %v4104 = vpow.pop %v4103
    %v4105 = vmul.f32 %v4079, 1.442695
    %v4106 = vpow.pop %v4105
    %v4107 = vmul.f32 %v4080, 1.442695
    %v4108 = vpow.pop %v4107
    %v4109 = vmul.f32 %v4081, 1.442695
    %v4110 = vpow.pop %v4109
    %v4111 = vmul.f32 %v4082, 1.442695
    %v4112 = vpow.pop %v4111
    %v4113 = vmul.f32 %v4083, 1.442695
    %v4114 = vpow.pop %v4113
    %v4115 = vmul.f32 %v4084, 1.442695
    %v4116 = vpow.pop %v4115
    %v4117 = vsel %vm2067, %v4086, 0.0
    %4118 = vadd.xlane.f32.xlu0 %v4117
    %v4119 = vpop.xlane.xlu0 %4118
    %v4120 = vsel %vm2067, %v4088, 0.0
    %4121 = vadd.xlane.f32.xlu0 %v4120
    %v4122 = vpop.xlane.xlu0 %4121
    %v4123 = vsel %vm2067, %v4090, 0.0
    %4124 = vadd.xlane.f32.xlu0 %v4123
    %v4125 = vpop.xlane.xlu0 %4124
    %v4126 = vsel %vm2067, %v4092, 0.0
    %4127 = vadd.xlane.f32.xlu0 %v4126
    %v4128 = vpop.xlane.xlu0 %4127
    %v4129 = vsel %vm2067, %v4094, 0.0
    %4130 = vadd.xlane.f32.xlu0 %v4129
    %v4131 = vpop.xlane.xlu0 %4130
    %v4132 = vsel %vm2067, %v4096, 0.0
    %4133 = vadd.xlane.f32.xlu0 %v4132
    %v4134 = vpop.xlane.xlu0 %4133
    %v4135 = vsel %vm2067, %v4098, 0.0
    %4136 = vadd.xlane.f32.xlu0 %v4135
    %v4137 = vpop.xlane.xlu0 %4136
    %v4138 = vsel %vm2067, %v4100, 0.0
    %4139 = vadd.xlane.f32.xlu0 %v4138
    %v4140 = vpop.xlane.xlu0 %4139
    %v4141 = vsel %vm2067, %v4102, 0.0
    %4142 = vadd.xlane.f32.xlu0 %v4141
    %v4143 = vpop.xlane.xlu0 %4142
    %v4144 = vsel %vm2067, %v4104, 0.0
    %4145 = vadd.xlane.f32.xlu0 %v4144
    %v4146 = vpop.xlane.xlu0 %4145
    %v4147 = vsel %vm2067, %v4106, 0.0
    %4148 = vadd.xlane.f32.xlu0 %v4147
    %v4149 = vpop.xlane.xlu0 %4148
    %v4150 = vsel %vm2067, %v4108, 0.0
    %4151 = vadd.xlane.f32.xlu0 %v4150
    %v4152 = vpop.xlane.xlu0 %4151
    %v4153 = vsel %vm2067, %v4110, 0.0
    %4154 = vadd.xlane.f32.xlu0 %v4153
    %v4155 = vpop.xlane.xlu0 %4154
    %v4156 = vsel %vm2067, %v4112, 0.0
    %4157 = vadd.xlane.f32.xlu0 %v4156
    %v4158 = vpop.xlane.xlu0 %4157
    %v4159 = vsel %vm2067, %v4114, 0.0
    %4160 = vadd.xlane.f32.xlu0 %v4159
    %v4161 = vpop.xlane.xlu0 %4160
    %v4162 = vsel %vm2067, %v4116, 0.0
    %4163 = vadd.xlane.f32.xlu0 %v4162
    %v4164 = vpop.xlane.xlu0 %4163
    %v4165 = vrcp.pop %v4119
    %v4166 = vrcp.pop %v4122
    %v4167 = vrcp.pop %v4125
    %v4168 = vrcp.pop %v4128
    %v4169 = vrcp.pop %v4131
    %v4170 = vrcp.pop %v4134
    %v4171 = vrcp.pop %v4137
    %v4172 = vrcp.pop %v4140
    %v4173 = vrcp.pop %v4143
    %v4174 = vrcp.pop %v4146
    %v4175 = vrcp.pop %v4149
    %v4176 = vrcp.pop %v4152
    %v4177 = vrcp.pop %v4155
    %v4178 = vrcp.pop %v4158
    %v4179 = vrcp.pop %v4161
    %v4180 = vrcp.pop %v4164
    %v4181 = vmul.f32 %v4086, %v4165
    %v4182 = vmul.f32 %v4088, %v4166
    %v4183 = vmul.f32 %v4090, %v4167
    %v4184 = vmul.f32 %v4092, %v4168
    %v4185 = vmul.f32 %v4094, %v4169
    %v4186 = vmul.f32 %v4096, %v4170
    %v4187 = vmul.f32 %v4098, %v4171
    %v4188 = vmul.f32 %v4100, %v4172
    %v4189 = vmul.f32 %v4102, %v4173
    %v4190 = vmul.f32 %v4104, %v4174
    %v4191 = vmul.f32 %v4106, %v4175
    %v4192 = vmul.f32 %v4108, %v4176
    %v4193 = vmul.f32 %v4110, %v4177
    %v4194 = vmul.f32 %v4112, %v4178
    %v4195 = vmul.f32 %v4114, %v4179
    %v4196 = vmul.f32 %v4116, %v4180
    %v4197 = vpack.c.bf16 %v4181, %v4181
    %v4198 = vpack.c.bf16 %v4182, %v4182
    %v4199 = vpack.c.bf16 %v4183, %v4183
    %v4200 = vpack.c.bf16 %v4184, %v4184
    %v4201 = vpack.c.bf16 %v4185, %v4185
    %v4202 = vpack.c.bf16 %v4186, %v4186
    %v4203 = vpack.c.bf16 %v4187, %v4187
    %v4204 = vpack.c.bf16 %v4188, %v4188
    %v4205 = vpack.c.bf16 %v4189, %v4189
    %v4206 = vpack.c.bf16 %v4190, %v4190
    %v4207 = vpack.c.bf16 %v4191, %v4191
    %v4208 = vpack.c.bf16 %v4192, %v4192
    %v4209 = vpack.c.bf16 %v4193, %v4193
    %v4210 = vpack.c.bf16 %v4194, %v4194
    %v4211 = vpack.c.bf16 %v4195, %v4195
    %v4212 = vpack.c.bf16 %v4196, %v4196
    %v4214 = vsel %vm2260, %v4197, 0
    %v4217 = vand.u32 %v3701, %v2267
    %4219 = vmatpush.bf16.msra.mxu0 0
    %4220 = vmatpush.bf16.msra.mxu0 0
    %4221 = vmatpush.bf16.msra.mxu0 0
    %4222 = vmatpush.bf16.msra.mxu0 0
    %4223 = vmatpush.bf16.msra.mxu0 0
    %4224 = vmatpush.bf16.msra.mxu0 0
    %4225 = vmatpush.bf16.msra.mxu0 0
    %4226 = vmatpush.bf16.msra.mxu0 %v4217
    %4227 = vmatmul.bf16.gmra.mxu0 %v4214
    %v4228 = vpop.f32.mrf.mxu0
    %v4229 = vadd.f32 0.0, %v4228
    %v4230 = vpop.f32.mrf.mxu0
    %4231 = vdwg.mxu0
    %v4233 = vsel %vm2260, %v4198, 0
    %v4236 = vand.u32 %v3702, %v2267
    %4238 = vmatpush.bf16.msra.mxu0 0
    %4239 = vmatpush.bf16.msra.mxu0 0
    %4240 = vmatpush.bf16.msra.mxu0 0
    %4241 = vmatpush.bf16.msra.mxu0 0
    %4242 = vmatpush.bf16.msra.mxu0 0
    %4243 = vmatpush.bf16.msra.mxu0 0
    %4244 = vmatpush.bf16.msra.mxu0 0
    %4245 = vmatpush.bf16.msra.mxu0 %v4236
    %4246 = vmatmul.bf16.gmra.mxu0 %v4233
    %v4247 = vpop.f32.mrf.mxu0
    %v4248 = vadd.f32 0.0, %v4247
    %v4249 = vpop.f32.mrf.mxu0
    %4250 = vdwg.mxu0
    %v4252 = vsel %vm2260, %v4199, 0
    %v4255 = vand.u32 %v3703, %v2267
    %4257 = vmatpush.bf16.msra.mxu0 0
    %4258 = vmatpush.bf16.msra.mxu0 0
    %4259 = vmatpush.bf16.msra.mxu0 0
    %4260 = vmatpush.bf16.msra.mxu0 0
    %4261 = vmatpush.bf16.msra.mxu0 0
    %4262 = vmatpush.bf16.msra.mxu0 0
    %4263 = vmatpush.bf16.msra.mxu0 0
    %4264 = vmatpush.bf16.msra.mxu0 %v4255
    %4265 = vmatmul.bf16.gmra.mxu0 %v4252
    %v4266 = vpop.f32.mrf.mxu0
    %v4267 = vadd.f32 0.0, %v4266
    %v4268 = vpop.f32.mrf.mxu0
    %4269 = vdwg.mxu0
    %v4271 = vsel %vm2260, %v4200, 0
    %v4274 = vand.u32 %v3704, %v2267
    %4276 = vmatpush.bf16.msra.mxu0 0
    %4277 = vmatpush.bf16.msra.mxu0 0
    %4278 = vmatpush.bf16.msra.mxu0 0
    %4279 = vmatpush.bf16.msra.mxu0 0
    %4280 = vmatpush.bf16.msra.mxu0 0
    %4281 = vmatpush.bf16.msra.mxu0 0
    %4282 = vmatpush.bf16.msra.mxu0 0
    %4283 = vmatpush.bf16.msra.mxu0 %v4274
    %4284 = vmatmul.bf16.gmra.mxu0 %v4271
    %v4285 = vpop.f32.mrf.mxu0
    %v4286 = vadd.f32 0.0, %v4285
    %v4287 = vpop.f32.mrf.mxu0
    %4288 = vdwg.mxu0
    %v4290 = vsel %vm2260, %v4201, 0
    %v4293 = vand.u32 %v3705, %v2267
    %4295 = vmatpush.bf16.msra.mxu0 0
    %4296 = vmatpush.bf16.msra.mxu0 0
    %4297 = vmatpush.bf16.msra.mxu0 0
    %4298 = vmatpush.bf16.msra.mxu0 0
    %4299 = vmatpush.bf16.msra.mxu0 0
    %4300 = vmatpush.bf16.msra.mxu0 0
    %4301 = vmatpush.bf16.msra.mxu0 0
    %4302 = vmatpush.bf16.msra.mxu0 %v4293
    %4303 = vmatmul.bf16.gmra.mxu0 %v4290
    %v4304 = vpop.f32.mrf.mxu0
    %v4305 = vadd.f32 0.0, %v4304
    %v4306 = vpop.f32.mrf.mxu0
    %4307 = vdwg.mxu0
    %v4309 = vsel %vm2260, %v4202, 0
    %v4312 = vand.u32 %v3706, %v2267
    %4314 = vmatpush.bf16.msra.mxu0 0
    %4315 = vmatpush.bf16.msra.mxu0 0
    %4316 = vmatpush.bf16.msra.mxu0 0
    %4317 = vmatpush.bf16.msra.mxu0 0
    %4318 = vmatpush.bf16.msra.mxu0 0
    %4319 = vmatpush.bf16.msra.mxu0 0
    %4320 = vmatpush.bf16.msra.mxu0 0
    %4321 = vmatpush.bf16.msra.mxu0 %v4312
    %4322 = vmatmul.bf16.gmra.mxu0 %v4309
    %v4323 = vpop.f32.mrf.mxu0
    %v4324 = vadd.f32 0.0, %v4323
    %v4325 = vpop.f32.mrf.mxu0
    %4326 = vdwg.mxu0
    %v4328 = vsel %vm2260, %v4203, 0
    %v4331 = vand.u32 %v3707, %v2267
    %4333 = vmatpush.bf16.msra.mxu0 0
    %4334 = vmatpush.bf16.msra.mxu0 0
    %4335 = vmatpush.bf16.msra.mxu0 0
    %4336 = vmatpush.bf16.msra.mxu0 0
    %4337 = vmatpush.bf16.msra.mxu0 0
    %4338 = vmatpush.bf16.msra.mxu0 0
    %4339 = vmatpush.bf16.msra.mxu0 0
    %4340 = vmatpush.bf16.msra.mxu0 %v4331
    %4341 = vmatmul.bf16.gmra.mxu0 %v4328
    %v4342 = vpop.f32.mrf.mxu0
    %v4343 = vadd.f32 0.0, %v4342
    %v4344 = vpop.f32.mrf.mxu0
    %4345 = vdwg.mxu0
    %v4347 = vsel %vm2260, %v4204, 0
    %v4350 = vand.u32 %v3708, %v2267
    %4352 = vmatpush.bf16.msra.mxu0 0
    %4353 = vmatpush.bf16.msra.mxu0 0
    %4354 = vmatpush.bf16.msra.mxu0 0
    %4355 = vmatpush.bf16.msra.mxu0 0
    %4356 = vmatpush.bf16.msra.mxu0 0
    %4357 = vmatpush.bf16.msra.mxu0 0
    %4358 = vmatpush.bf16.msra.mxu0 0
    %4359 = vmatpush.bf16.msra.mxu0 %v4350
    %4360 = vmatmul.bf16.gmra.mxu0 %v4347
    %v4361 = vpop.f32.mrf.mxu0
    %v4362 = vadd.f32 0.0, %v4361
    %v4363 = vpop.f32.mrf.mxu0
    %4364 = vdwg.mxu0
    %v4366 = vsel %vm2260, %v4205, 0
    %v4369 = vand.u32 %v3709, %v2267
    %4371 = vmatpush.bf16.msra.mxu0 0
    %4372 = vmatpush.bf16.msra.mxu0 0
    %4373 = vmatpush.bf16.msra.mxu0 0
    %4374 = vmatpush.bf16.msra.mxu0 0
    %4375 = vmatpush.bf16.msra.mxu0 0
    %4376 = vmatpush.bf16.msra.mxu0 0
    %4377 = vmatpush.bf16.msra.mxu0 0
    %4378 = vmatpush.bf16.msra.mxu0 %v4369
    %4379 = vmatmul.bf16.gmra.mxu0 %v4366
    %v4380 = vpop.f32.mrf.mxu0
    %v4381 = vadd.f32 0.0, %v4380
    %v4382 = vpop.f32.mrf.mxu0
    %4383 = vdwg.mxu0
    %v4385 = vsel %vm2260, %v4206, 0
    %v4388 = vand.u32 %v3710, %v2267
    %4390 = vmatpush.bf16.msra.mxu0 0
    %4391 = vmatpush.bf16.msra.mxu0 0
    %4392 = vmatpush.bf16.msra.mxu0 0
    %4393 = vmatpush.bf16.msra.mxu0 0
    %4394 = vmatpush.bf16.msra.mxu0 0
    %4395 = vmatpush.bf16.msra.mxu0 0
    %4396 = vmatpush.bf16.msra.mxu0 0
    %4397 = vmatpush.bf16.msra.mxu0 %v4388
    %4398 = vmatmul.bf16.gmra.mxu0 %v4385
    %v4399 = vpop.f32.mrf.mxu0
    %v4400 = vadd.f32 0.0, %v4399
    %v4401 = vpop.f32.mrf.mxu0
    %4402 = vdwg.mxu0
    %v4404 = vsel %vm2260, %v4207, 0
    %v4407 = vand.u32 %v3711, %v2267
    %4409 = vmatpush.bf16.msra.mxu0 0
    %4410 = vmatpush.bf16.msra.mxu0 0
    %4411 = vmatpush.bf16.msra.mxu0 0
    %4412 = vmatpush.bf16.msra.mxu0 0
    %4413 = vmatpush.bf16.msra.mxu0 0
    %4414 = vmatpush.bf16.msra.mxu0 0
    %4415 = vmatpush.bf16.msra.mxu0 0
    %4416 = vmatpush.bf16.msra.mxu0 %v4407
    %4417 = vmatmul.bf16.gmra.mxu0 %v4404
    %v4418 = vpop.f32.mrf.mxu0
    %v4419 = vadd.f32 0.0, %v4418
    %v4420 = vpop.f32.mrf.mxu0
    %4421 = vdwg.mxu0
    %v4423 = vsel %vm2260, %v4208, 0
    %v4426 = vand.u32 %v3712, %v2267
    %4428 = vmatpush.bf16.msra.mxu0 0
    %4429 = vmatpush.bf16.msra.mxu0 0
    %4430 = vmatpush.bf16.msra.mxu0 0
    %4431 = vmatpush.bf16.msra.mxu0 0
    %4432 = vmatpush.bf16.msra.mxu0 0
    %4433 = vmatpush.bf16.msra.mxu0 0
    %4434 = vmatpush.bf16.msra.mxu0 0
    %4435 = vmatpush.bf16.msra.mxu0 %v4426
    %4436 = vmatmul.bf16.gmra.mxu0 %v4423
    %v4437 = vpop.f32.mrf.mxu0
    %v4438 = vadd.f32 0.0, %v4437
    %v4439 = vpop.f32.mrf.mxu0
    %4440 = vdwg.mxu0
    %v4442 = vsel %vm2260, %v4209, 0
    %v4445 = vand.u32 %v3713, %v2267
    %4447 = vmatpush.bf16.msra.mxu0 0
    %4448 = vmatpush.bf16.msra.mxu0 0
    %4449 = vmatpush.bf16.msra.mxu0 0
    %4450 = vmatpush.bf16.msra.mxu0 0
    %4451 = vmatpush.bf16.msra.mxu0 0
    %4452 = vmatpush.bf16.msra.mxu0 0
    %4453 = vmatpush.bf16.msra.mxu0 0
    %4454 = vmatpush.bf16.msra.mxu0 %v4445
    %4455 = vmatmul.bf16.gmra.mxu0 %v4442
    %v4456 = vpop.f32.mrf.mxu0
    %v4457 = vadd.f32 0.0, %v4456
    %v4458 = vpop.f32.mrf.mxu0
    %4459 = vdwg.mxu0
    %v4461 = vsel %vm2260, %v4210, 0
    %v4464 = vand.u32 %v3714, %v2267
    %4466 = vmatpush.bf16.msra.mxu0 0
    %4467 = vmatpush.bf16.msra.mxu0 0
    %4468 = vmatpush.bf16.msra.mxu0 0
    %4469 = vmatpush.bf16.msra.mxu0 0
    %4470 = vmatpush.bf16.msra.mxu0 0
    %4471 = vmatpush.bf16.msra.mxu0 0
    %4472 = vmatpush.bf16.msra.mxu0 0
    %4473 = vmatpush.bf16.msra.mxu0 %v4464
    %4474 = vmatmul.bf16.gmra.mxu0 %v4461
    %v4475 = vpop.f32.mrf.mxu0
    %v4476 = vadd.f32 0.0, %v4475
    %v4477 = vpop.f32.mrf.mxu0
    %4478 = vdwg.mxu0
    %v4480 = vsel %vm2260, %v4211, 0
    %v4483 = vand.u32 %v3715, %v2267
    %4485 = vmatpush.bf16.msra.mxu0 0
    %4486 = vmatpush.bf16.msra.mxu0 0
    %4487 = vmatpush.bf16.msra.mxu0 0
    %4488 = vmatpush.bf16.msra.mxu0 0
    %4489 = vmatpush.bf16.msra.mxu0 0
    %4490 = vmatpush.bf16.msra.mxu0 0
    %4491 = vmatpush.bf16.msra.mxu0 0
    %4492 = vmatpush.bf16.msra.mxu0 %v4483
    %4493 = vmatmul.bf16.gmra.mxu0 %v4480
    %v4494 = vpop.f32.mrf.mxu0
    %v4495 = vadd.f32 0.0, %v4494
    %v4496 = vpop.f32.mrf.mxu0
    %4497 = vdwg.mxu0
    %v4499 = vsel %vm2260, %v4212, 0
    %v4502 = vand.u32 %v3716, %v2267
    %4504 = vmatpush.bf16.msra.mxu0 0
    %4505 = vmatpush.bf16.msra.mxu0 0
    %4506 = vmatpush.bf16.msra.mxu0 0
    %4507 = vmatpush.bf16.msra.mxu0 0
    %4508 = vmatpush.bf16.msra.mxu0 0
    %4509 = vmatpush.bf16.msra.mxu0 0
    %4510 = vmatpush.bf16.msra.mxu0 0
    %4511 = vmatpush.bf16.msra.mxu0 %v4502
    %4512 = vmatmul.bf16.gmra.mxu0 %v4499
    %v4513 = vpop.f32.mrf.mxu0
    %v4514 = vadd.f32 0.0, %v4513
    %v4515 = vpop.f32.mrf.mxu0
    %4516 = vdwg.mxu0
    %v4533 = vrot.slane %v4229, 1
    %v4534 = vrot.slane %v4229, 2
    %v4535 = vrot.slane %v4229, 3
    %v4536 = vrot.slane %v4229, 4
    %v4537 = vrot.slane %v4248, 1
    %v4538 = vrot.slane %v4248, 2
    %v4539 = vrot.slane %v4248, 3
    %v4540 = vrot.slane %v4248, 4
    %v4541 = vrot.slane %v4267, 1
    %v4542 = vrot.slane %v4267, 2
    %v4543 = vrot.slane %v4267, 3
    %v4544 = vrot.slane %v4267, 4
    %v4545 = vrot.slane %v4286, 1
    %v4546 = vrot.slane %v4286, 2
    %v4547 = vrot.slane %v4286, 3
    %v4548 = vrot.slane %v4286, 4
    %v4549 = vrot.slane %v4305, 1
    %v4550 = vrot.slane %v4305, 2
    %v4551 = vrot.slane %v4305, 3
    %v4552 = vrot.slane %v4305, 4
    %v4553 = vrot.slane %v4324, 1
    %v4554 = vrot.slane %v4324, 2
    %v4555 = vrot.slane %v4324, 3
    %v4556 = vrot.slane %v4324, 4
    %v4557 = vrot.slane %v4343, 1
    %v4558 = vrot.slane %v4343, 2
    %v4559 = vrot.slane %v4343, 3
    %v4560 = vrot.slane %v4343, 4
    %v4561 = vrot.slane %v4362, 1
    %v4562 = vrot.slane %v4362, 2
    %v4563 = vrot.slane %v4362, 3
    %v4564 = vrot.slane %v4362, 4
    %v4565 = vrot.slane %v4381, 1
    %v4566 = vrot.slane %v4381, 2
    %v4567 = vrot.slane %v4381, 3
    %v4568 = vrot.slane %v4381, 4
    %v4569 = vrot.slane %v4400, 1
    %v4570 = vrot.slane %v4400, 2
    %v4571 = vrot.slane %v4400, 3
    %v4572 = vrot.slane %v4400, 4
    %v4573 = vrot.slane %v4419, 1
    %v4574 = vrot.slane %v4419, 2
    %v4575 = vrot.slane %v4419, 3
    %v4576 = vrot.slane %v4419, 4
    %v4577 = vrot.slane %v4438, 1
    %v4578 = vrot.slane %v4438, 2
    %v4579 = vrot.slane %v4438, 3
    %v4580 = vrot.slane %v4438, 4
    %v4581 = vrot.slane %v4457, 1
    %v4582 = vrot.slane %v4457, 2
    %v4583 = vrot.slane %v4457, 3
    %v4584 = vrot.slane %v4457, 4
    %v4585 = vrot.slane %v4476, 1
    %v4586 = vrot.slane %v4476, 2
    %v4587 = vrot.slane %v4476, 3
    %v4588 = vrot.slane %v4476, 4
    %v4589 = vrot.slane %v4495, 1
    %v4590 = vrot.slane %v4495, 2
    %v4591 = vrot.slane %v4495, 3
    %v4592 = vrot.slane %v4495, 4
    %v4593 = vrot.slane %v4514, 1
    %v4594 = vrot.slane %v4514, 2
    %v4595 = vrot.slane %v4514, 3
    %v4596 = vrot.slane %v4514, 4
    %4597 = vst [vmem:[#allocation1] ss:$9 sm:$0xff] %v4229
    %s4598 = scalar_lea.vmem [#allocation1], 1
    %4599 = vst [vmem:[%s4598] ss:$9 sm:$0xff] %v4533
    %s4600 = scalar_lea.vmem [#allocation1], 2
    %4601 = vst [vmem:[%s4600] ss:$9 sm:$0xff] %v4534
    %s4602 = scalar_lea.vmem [#allocation1], 3
    %4603 = vst [vmem:[%s4602] ss:$9 sm:$0xff] %v4535
    %s4604 = scalar_lea.vmem [#allocation1], 4
    %4605 = vst [vmem:[%s4604] ss:$9 sm:$0xff] %v4536
    %s4606 = scalar_lea.vmem [#allocation1], 5
    %4607 = vst [vmem:[%s4606] ss:$9 sm:$0xff] %v4248
    %s4608 = scalar_lea.vmem [#allocation1], 6
    %4609 = vst [vmem:[%s4608] ss:$9 sm:$0xff] %v4537
    %s4610 = scalar_lea.vmem [#allocation1], 7
    %4611 = vst [vmem:[%s4610] ss:$9 sm:$0xff] %v4538
    %v4612 = vld [vmem:[#allocation1] sm:$0xff]
    %4613 = vst [vmem:[#allocation1] ss:$9 sm:$0xff] %v4539
    %4614 = vst [vmem:[%s4598] ss:$9 sm:$0xff] %v4540
    %4615 = vst [vmem:[%s4600] ss:$9 sm:$0xff] %v4267
    %4616 = vst [vmem:[%s4602] ss:$9 sm:$0xff] %v4541
    %4617 = vst [vmem:[%s4604] ss:$9 sm:$0xff] %v4542
    %4618 = vst [vmem:[%s4606] ss:$9 sm:$0xff] %v4543
    %4619 = vst [vmem:[%s4608] ss:$9 sm:$0xff] %v4544
    %4620 = vst [vmem:[%s4610] ss:$9 sm:$0xff] %v4286
    %v4621 = vld [vmem:[#allocation1] sm:$0xff]
    %4622 = vst [vmem:[#allocation1] ss:$9 sm:$0xff] %v4545
    %4623 = vst [vmem:[%s4598] ss:$9 sm:$0xff] %v4546
    %4624 = vst [vmem:[%s4600] ss:$9 sm:$0xff] %v4547
    %4625 = vst [vmem:[%s4602] ss:$9 sm:$0xff] %v4548
    %4626 = vst [vmem:[%s4604] ss:$9 sm:$0xff] %v4305
    %4627 = vst [vmem:[%s4606] ss:$9 sm:$0xff] %v4549
    %4628 = vst [vmem:[%s4608] ss:$9 sm:$0xff] %v4550
    %4629 = vst [vmem:[%s4610] ss:$9 sm:$0xff] %v4551
    %v4630 = vld [vmem:[#allocation1] sm:$0xff]
    %4631 = vst [vmem:[#allocation1] ss:$9 sm:$0xff] %v4552
    %4632 = vst [vmem:[%s4598] ss:$9 sm:$0xff] %v4324
    %4633 = vst [vmem:[%s4600] ss:$9 sm:$0xff] %v4553
    %4634 = vst [vmem:[%s4602] ss:$9 sm:$0xff] %v4554
    %4635 = vst [vmem:[%s4604] ss:$9 sm:$0xff] %v4555
    %4636 = vst [vmem:[%s4606] ss:$9 sm:$0xff] %v4556
    %4637 = vst [vmem:[%s4608] ss:$9 sm:$0xff] %v4343
    %4638 = vst [vmem:[%s4610] ss:$9 sm:$0xff] %v4557
    %v4639 = vld [vmem:[#allocation1] sm:$0xff]
    %4640 = vst [vmem:[#allocation1] ss:$9 sm:$0xff] %v4558
    %4641 = vst [vmem:[%s4598] ss:$9 sm:$0xff] %v4559
    %4642 = vst [vmem:[%s4600] ss:$9 sm:$0xff] %v4560
    %4643 = vst [vmem:[%s4602] ss:$9 sm:$0xff] %v4362
    %4644 = vst [vmem:[%s4604] ss:$9 sm:$0xff] %v4561
    %4645 = vst [vmem:[%s4606] ss:$9 sm:$0xff] %v4562
    %4646 = vst [vmem:[%s4608] ss:$9 sm:$0xff] %v4563
    %4647 = vst [vmem:[%s4610] ss:$9 sm:$0xff] %v4564
    %v4648 = vld [vmem:[#allocation1] sm:$0xff]
    %4649 = vst [vmem:[#allocation1] ss:$9 sm:$0xff] %v4381
    %4650 = vst [vmem:[%s4598] ss:$9 sm:$0xff] %v4565
    %4651 = vst [vmem:[%s4600] ss:$9 sm:$0xff] %v4566
    %4652 = vst [vmem:[%s4602] ss:$9 sm:$0xff] %v4567
    %4653 = vst [vmem:[%s4604] ss:$9 sm:$0xff] %v4568
    %4654 = vst [vmem:[%s4606] ss:$9 sm:$0xff] %v4400
    %4655 = vst [vmem:[%s4608] ss:$9 sm:$0xff] %v4569
    %4656 = vst [vmem:[%s4610] ss:$9 sm:$0xff] %v4570
    %v4657 = vld [vmem:[#allocation1] sm:$0xff]
    %4658 = vst [vmem:[#allocation1] ss:$9 sm:$0xff] %v4571
    %4659 = vst [vmem:[%s4598] ss:$9 sm:$0xff] %v4572
    %4660 = vst [vmem:[%s4600] ss:$9 sm:$0xff] %v4419
    %4661 = vst [vmem:[%s4602] ss:$9 sm:$0xff] %v4573
    %4662 = vst [vmem:[%s4604] ss:$9 sm:$0xff] %v4574
    %4663 = vst [vmem:[%s4606] ss:$9 sm:$0xff] %v4575
    %4664 = vst [vmem:[%s4608] ss:$9 sm:$0xff] %v4576
    %4665 = vst [vmem:[%s4610] ss:$9 sm:$0xff] %v4438
    %v4666 = vld [vmem:[#allocation1] sm:$0xff]
    %4667 = vst [vmem:[#allocation1] ss:$9 sm:$0xff] %v4577
    %4668 = vst [vmem:[%s4598] ss:$9 sm:$0xff] %v4578
    %4669 = vst [vmem:[%s4600] ss:$9 sm:$0xff] %v4579
    %4670 = vst [vmem:[%s4602] ss:$9 sm:$0xff] %v4580
    %4671 = vst [vmem:[%s4604] ss:$9 sm:$0xff] %v4457
    %4672 = vst [vmem:[%s4606] ss:$9 sm:$0xff] %v4581
    %4673 = vst [vmem:[%s4608] ss:$9 sm:$0xff] %v4582
    %4674 = vst [vmem:[%s4610] ss:$9 sm:$0xff] %v4583
    %v4675 = vld [vmem:[#allocation1] sm:$0xff]
    %4676 = vst [vmem:[#allocation1] ss:$9 sm:$0xff] %v4584
    %4677 = vst [vmem:[%s4598] ss:$9 sm:$0xff] %v4476
    %4678 = vst [vmem:[%s4600] ss:$9 sm:$0xff] %v4585
    %4679 = vst [vmem:[%s4602] ss:$9 sm:$0xff] %v4586
    %4680 = vst [vmem:[%s4604] ss:$9 sm:$0xff] %v4587
    %4681 = vst [vmem:[%s4606] ss:$9 sm:$0xff] %v4588
    %4682 = vst [vmem:[%s4608] ss:$9 sm:$0xff] %v4495
    %4683 = vst [vmem:[%s4610] ss:$9 sm:$0xff] %v4589
    %v4684 = vld [vmem:[#allocation1] sm:$0xff]
    %4685 = vst [vmem:[#allocation1] ss:$9 sm:$0xff] %v4590
    %4686 = vst [vmem:[%s4598] ss:$9 sm:$0xff] %v4591
    %4687 = vst [vmem:[%s4600] ss:$9 sm:$0xff] %v4592
    %4688 = vst [vmem:[%s4602] ss:$9 sm:$0xff] %v4514
    %4689 = vst [vmem:[%s4604] ss:$9 sm:$0xff] %v4593
    %4690 = vst [vmem:[%s4606] ss:$9 sm:$0xff] %v4594
    %4691 = vst [vmem:[%s4608] ss:$9 sm:$0xff] %v4595
    %4692 = vst [vmem:[%s4610] ss:$9 sm:$0xff] %v4596
    %v4693 = vld [vmem:[#allocation1] sm:$0xff]
    %v4704 = vpack.c.bf16 %v4621, %v4612
    %v4705 = vpack.c.bf16 %v4639, %v4630
    %v4706 = vpack.c.bf16 %v4657, %v4648
    %v4707 = vpack.c.bf16 %v4675, %v4666
    %v4708 = vpack.c.bf16 %v4693, %v4684
    %s4709 = scalar_lea.vmem %s13, 32
    %v4710 = vld [vmem:[%s4709] sm:$0xf]
    %v4711 = vld [vmem:[%s4709 + $0x4] sm:$0xf]
    %v4712 = vld [vmem:[%s4709 + $0x8] sm:$0xf]
    %v4713 = vld [vmem:[%s4709 + $0xc] sm:$0xf]
    %v4714 = vld [vmem:[%s4709 + $0x10] sm:$0xf]
    %v4715 = vld [vmem:[%s4709 + $0x14] sm:$0xf]
    %v4716 = vld [vmem:[%s4709 + $0x18] sm:$0xf]
    %v4717 = vld [vmem:[%s4709 + $0x1c] sm:$0xf]
    %v4726 = vunpack.c.l.b16 %v4710
    %v4727 = vunpack.c.l.b16 %v4711
    %v4728 = vunpack.c.l.b16 %v4712
    %v4729 = vunpack.c.l.b16 %v4713
    %v4730 = vunpack.c.l.b16 %v4714
    %v4731 = vunpack.c.l.b16 %v4715
    %v4732 = vunpack.c.l.b16 %v4716
    %v4733 = vunpack.c.l.b16 %v4717
    %v4734 = vpack.c.b16 %v4727, %v4726
    %v4735 = vpack.c.b16 %v4729, %v4728
    %v4736 = vpack.c.b16 %v4731, %v4730
    %v4737 = vpack.c.b16 %v4733, %v4732
    %v4743 = vsel %vm1762, %v4704, 0
    %v4746 = vsel %vm1762, %v4705, 0
    %v4749 = vsel %vm1762, %v4706, 0
    %v4752 = vsel %vm1762, %v4707, 0
    %v4755 = vsel %vm1762, %v4708, 0
    %4757 = vmatpush.bf16.msra.mxu0 0
    %4758 = vmatpush.bf16.msra.mxu0 0
    %4759 = vmatpush.bf16.msra.mxu0 0
    %4760 = vmatpush.bf16.msra.mxu0 0
    %4761 = vmatpush.bf16.msra.mxu0 %v4737
    %4762 = vmatpush.bf16.msra.mxu0 %v4736
    %4763 = vmatpush.bf16.msra.mxu0 %v4735
    %4764 = vmatpush.bf16.msra.mxu0 %v4734
    %4765 = vmatmul.bf16.gmra.mxu0 %v4743
    %v4766 = vpop.f32.mrf.mxu0
    %v4767 = vadd.f32 0.0, %v4766
    %v4768 = vpop.f32.mrf.mxu0
    %v4769 = vadd.f32 0.0, %v4768
    %4770 = vmatmul.bf16.gmra.mxu0 %v4746
    %v4771 = vpop.f32.mrf.mxu0
    %v4772 = vadd.f32 0.0, %v4771
    %v4773 = vpop.f32.mrf.mxu0
    %v4774 = vadd.f32 0.0, %v4773
    %4775 = vmatmul.bf16.gmra.mxu0 %v4749
    %v4776 = vpop.f32.mrf.mxu0
    %v4777 = vadd.f32 0.0, %v4776
    %v4778 = vpop.f32.mrf.mxu0
    %v4779 = vadd.f32 0.0, %v4778
    %4780 = vmatmul.bf16.gmra.mxu0 %v4752
    %v4781 = vpop.f32.mrf.mxu0
    %v4782 = vadd.f32 0.0, %v4781
    %v4783 = vpop.f32.mrf.mxu0
    %v4784 = vadd.f32 0.0, %v4783
    %4785 = vmatmul.bf16.gmra.mxu0 %v4755
    %v4786 = vpop.f32.mrf.mxu0
    %v4787 = vadd.f32 0.0, %v4786
    %v4788 = vpop.f32.mrf.mxu0
    %v4789 = vadd.f32 0.0, %v4788
    %4790 = vdwg.mxu0
    %v4799 = vunpack.c.l.b16 %v2761
    %v4800 = vunpack.c.l.b16 %v2762
    %v4801 = vunpack.c.l.b16 %v2763
    %v4802 = vunpack.c.l.b16 %v2764
    %v4803 = vunpack.c.l.b16 %v2765
    %v4804 = vunpack.c.l.b16 %v2766
    %v4805 = vunpack.c.l.b16 %v2767
    %v4806 = vunpack.c.l.b16 %v2768
    %v4807 = vpack.c.b16 %v4800, %v4799
    %v4808 = vpack.c.b16 %v4802, %v4801
    %v4809 = vpack.c.b16 %v4804, %v4803
    %v4810 = vpack.c.b16 %v4806, %v4805
    %v4816 = vsel %vm1762, %v2756, 0
    %v4819 = vsel %vm1762, %v2757, 0
    %v4822 = vsel %vm1762, %v2758, 0
    %v4825 = vsel %vm1762, %v2759, 0
    %v4828 = vsel %vm1762, %v2760, 0
    %4830 = vmatpush.bf16.msra.mxu0 0
    %4831 = vmatpush.bf16.msra.mxu0 0
    %4832 = vmatpush.bf16.msra.mxu0 0
    %4833 = vmatpush.bf16.msra.mxu0 0
    %4834 = vmatpush.bf16.msra.mxu0 %v4810
    %4835 = vmatpush.bf16.msra.mxu0 %v4809
    %4836 = vmatpush.bf16.msra.mxu0 %v4808
    %4837 = vmatpush.bf16.msra.mxu0 %v4807
    %4838 = vmatmul.bf16.gmra.mxu0 %v4816
    %v4839 = vpop.f32.mrf.mxu0
    %v4840 = vadd.f32 %v4767, %v4839
    %v4841 = vpop.f32.mrf.mxu0
    %v4842 = vadd.f32 %v4769, %v4841
    %4843 = vmatmul.bf16.gmra.mxu0 %v4819
    %v4844 = vpop.f32.mrf.mxu0
    %v4845 = vadd.f32 %v4772, %v4844
    %v4846 = vpop.f32.mrf.mxu0
    %v4847 = vadd.f32 %v4774, %v4846
    %4848 = vmatmul.bf16.gmra.mxu0 %v4822
    %v4849 = vpop.f32.mrf.mxu0
    %v4850 = vadd.f32 %v4777, %v4849
    %v4851 = vpop.f32.mrf.mxu0
    %v4852 = vadd.f32 %v4779, %v4851
    %4853 = vmatmul.bf16.gmra.mxu0 %v4825
    %v4854 = vpop.f32.mrf.mxu0
    %v4855 = vadd.f32 %v4782, %v4854
    %v4856 = vpop.f32.mrf.mxu0
    %v4857 = vadd.f32 %v4784, %v4856
    %4858 = vmatmul.bf16.gmra.mxu0 %v4828
    %v4859 = vpop.f32.mrf.mxu0
    %v4860 = vadd.f32 %v4787, %v4859
    %v4861 = vpop.f32.mrf.mxu0
    %v4862 = vadd.f32 %v4789, %v4861
    %4863 = vdwg.mxu0
    %v4864 = vadd.f32 %v577, %v4840
    %v4865 = vadd.f32 %v578, %v4842
    %v4866 = vadd.f32 %v579, %v4845
    %v4867 = vadd.f32 %v580, %v4847
    %v4868 = vadd.f32 %v581, %v4850
    %v4869 = vadd.f32 %v582, %v4852
    %v4870 = vadd.f32 %v583, %v4855
    %v4871 = vadd.f32 %v584, %v4857
    %v4872 = vadd.f32 %v585, %v4860
    %v4873 = vadd.f32 %v586, %v4862
    %v4874 = vld [vmem:[%s14] sm:$0x1]
    %v4876 = vperm.slane %v4874, 0
    %v4878 = vadd.f32 %v4864, %v4876
    %v4879 = vadd.f32 %v4865, %v4876
    %v4880 = vadd.f32 %v4866, %v4876
    %v4881 = vadd.f32 %v4867, %v4876
    %v4882 = vadd.f32 %v4868, %v4876
    %v4883 = vadd.f32 %v4869, %v4876
    %v4884 = vadd.f32 %v4870, %v4876
    %v4885 = vadd.f32 %v4871, %v4876
    %v4886 = vadd.f32 %v4872, %v4876
    %v4887 = vadd.f32 %v4873, %v4876
    %v4888 = vld [vmem:[%s15] sm:$0x1]
    %v4889 = vld [vmem:[%s16] sm:$0x1]
    %4890 = vadd.xlane.f32.xlu0 %v4878
    %v4891 = vpop.xlane.xlu0 %4890
    %4892 = vadd.xlane.f32.xlu0 %v4879
    %v4893 = vpop.xlane.xlu0 %4892
    %4894 = vadd.xlane.f32.xlu0 %v4880
    %v4895 = vpop.xlane.xlu0 %4894
    %4896 = vadd.xlane.f32.xlu0 %v4881
    %v4897 = vpop.xlane.xlu0 %4896
    %4898 = vadd.xlane.f32.xlu0 %v4882
    %v4899 = vpop.xlane.xlu0 %4898
    %4900 = vadd.xlane.f32.xlu0 %v4883
    %v4901 = vpop.xlane.xlu0 %4900
    %4902 = vadd.xlane.f32.xlu0 %v4884
    %v4903 = vpop.xlane.xlu0 %4902
    %4904 = vadd.xlane.f32.xlu0 %v4885
    %v4905 = vpop.xlane.xlu0 %4904
    %4906 = vadd.xlane.f32.xlu0 %v4886
    %v4907 = vpop.xlane.xlu0 %4906
    %4908 = vadd.xlane.f32.xlu0 %v4887
    %v4909 = vpop.xlane.xlu0 %4908
    %v4910 = vmul.f32 %v4891, %v380
    %v4911 = vmul.f32 %v4893, %v380
    %v4912 = vmul.f32 %v4895, %v380
    %v4913 = vmul.f32 %v4897, %v380
    %v4914 = vmul.f32 %v4899, %v380
    %v4915 = vmul.f32 %v4901, %v380
    %v4916 = vmul.f32 %v4903, %v380
    %v4917 = vmul.f32 %v4905, %v380
    %v4918 = vmul.f32 %v4907, %v380
    %v4919 = vmul.f32 %v4909, %v380
    %v4920 = vsub.f32 %v4878, %v4910
    %v4921 = vsub.f32 %v4879, %v4911
    %v4922 = vsub.f32 %v4880, %v4912
    %v4923 = vsub.f32 %v4881, %v4913
    %v4924 = vsub.f32 %v4882, %v4914
    %v4925 = vsub.f32 %v4883, %v4915
    %v4926 = vsub.f32 %v4884, %v4916
    %v4927 = vsub.f32 %v4885, %v4917
    %v4928 = vsub.f32 %v4886, %v4918
    %v4929 = vsub.f32 %v4887, %v4919
    %v4930 = vmul.f32 %v4920, %v4920
    %v4931 = vmul.f32 %v4921, %v4921
    %v4932 = vmul.f32 %v4922, %v4922
    %v4933 = vmul.f32 %v4923, %v4923
    %v4934 = vmul.f32 %v4924, %v4924
    %v4935 = vmul.f32 %v4925, %v4925
    %v4936 = vmul.f32 %v4926, %v4926
    %v4937 = vmul.f32 %v4927, %v4927
    %v4938 = vmul.f32 %v4928, %v4928
    %v4939 = vmul.f32 %v4929, %v4929
    %4940 = vadd.xlane.f32.xlu0 %v4930
    %v4941 = vpop.xlane.xlu0 %4940
    %4942 = vadd.xlane.f32.xlu0 %v4931
    %v4943 = vpop.xlane.xlu0 %4942
    %4944 = vadd.xlane.f32.xlu0 %v4932
    %v4945 = vpop.xlane.xlu0 %4944
    %4946 = vadd.xlane.f32.xlu0 %v4933
    %v4947 = vpop.xlane.xlu0 %4946
    %4948 = vadd.xlane.f32.xlu0 %v4934
    %v4949 = vpop.xlane.xlu0 %4948
    %4950 = vadd.xlane.f32.xlu0 %v4935
    %v4951 = vpop.xlane.xlu0 %4950
    %4952 = vadd.xlane.f32.xlu0 %v4936
    %v4953 = vpop.xlane.xlu0 %4952
    %4954 = vadd.xlane.f32.xlu0 %v4937
    %v4955 = vpop.xlane.xlu0 %4954
    %4956 = vadd.xlane.f32.xlu0 %v4938
    %v4957 = vpop.xlane.xlu0 %4956
    %4958 = vadd.xlane.f32.xlu0 %v4939
    %v4959 = vpop.xlane.xlu0 %4958
    %v4960 = vmul.f32 %v4941, %v380
    %v4961 = vmul.f32 %v4943, %v380
    %v4962 = vmul.f32 %v4945, %v380
    %v4963 = vmul.f32 %v4947, %v380
    %v4964 = vmul.f32 %v4949, %v380
    %v4965 = vmul.f32 %v4951, %v380
    %v4966 = vmul.f32 %v4953, %v380
    %v4967 = vmul.f32 %v4955, %v380
    %v4968 = vmul.f32 %v4957, %v380
    %v4969 = vmul.f32 %v4959, %v380
    %v4970 = vadd.f32 %v4960, 1e-05
    %v4971 = vadd.f32 %v4961, 1e-05
    %v4972 = vadd.f32 %v4962, 1e-05
    %v4973 = vadd.f32 %v4963, 1e-05
    %v4974 = vadd.f32 %v4964, 1e-05
    %v4975 = vadd.f32 %v4965, 1e-05
    %v4976 = vadd.f32 %v4966, 1e-05
    %v4977 = vadd.f32 %v4967, 1e-05
    %v4978 = vadd.f32 %v4968, 1e-05
    %v4979 = vadd.f32 %v4969, 1e-05
    %v4980 = vrsqrt.pop %v4970
    %v4981 = vmul.f32 %v4980, %v4970
    %v4982 = vmul.f32 %v4981, %v4980
    %v4983 = vmul.f32 0.5, %v4982
    %v4984 = vsub.f32 1.5, %v4983
    %v4985 = vmul.f32 %v4980, %v4984
    %vm4986 = vweird.f32 %v4970
    %vm4987 = vweird.f32 %v4980
    %vm4988 = vmor %vm4986, %vm4987
    %v4989 = vsel %vm4988, %v4980, %v4985
    %v4990 = vrsqrt.pop %v4971
    %v4991 = vmul.f32 %v4990, %v4971
    %v4992 = vmul.f32 %v4991, %v4990
    %v4993 = vmul.f32 0.5, %v4992
    %v4994 = vsub.f32 1.5, %v4993
    %v4995 = vmul.f32 %v4990, %v4994
    %vm4996 = vweird.f32 %v4971
    %vm4997 = vweird.f32 %v4990
    %vm4998 = vmor %vm4996, %vm4997
    %v4999 = vsel %vm4998, %v4990, %v4995
    %v5000 = vrsqrt.pop %v4972
    %v5001 = vmul.f32 %v5000, %v4972
    %v5002 = vmul.f32 %v5001, %v5000
    %v5003 = vmul.f32 0.5, %v5002
    %v5004 = vsub.f32 1.5, %v5003
    %v5005 = vmul.f32 %v5000, %v5004
    %vm5006 = vweird.f32 %v4972
    %vm5007 = vweird.f32 %v5000
    %vm5008 = vmor %vm5006, %vm5007
    %v5009 = vsel %vm5008, %v5000, %v5005
    %v5010 = vrsqrt.pop %v4973
    %v5011 = vmul.f32 %v5010, %v4973
    %v5012 = vmul.f32 %v5011, %v5010
    %v5013 = vmul.f32 0.5, %v5012
    %v5014 = vsub.f32 1.5, %v5013
    %v5015 = vmul.f32 %v5010, %v5014
    %vm5016 = vweird.f32 %v4973
    %vm5017 = vweird.f32 %v5010
    %vm5018 = vmor %vm5016, %vm5017
    %v5019 = vsel %vm5018, %v5010, %v5015
    %v5020 = vrsqrt.pop %v4974
    %v5021 = vmul.f32 %v5020, %v4974
    %v5022 = vmul.f32 %v5021, %v5020
    %v5023 = vmul.f32 0.5, %v5022
    %v5024 = vsub.f32 1.5, %v5023
    %v5025 = vmul.f32 %v5020, %v5024
    %vm5026 = vweird.f32 %v4974
    %vm5027 = vweird.f32 %v5020
    %vm5028 = vmor %vm5026, %vm5027
    %v5029 = vsel %vm5028, %v5020, %v5025
    %v5030 = vrsqrt.pop %v4975
    %v5031 = vmul.f32 %v5030, %v4975
    %v5032 = vmul.f32 %v5031, %v5030
    %v5033 = vmul.f32 0.5, %v5032
    %v5034 = vsub.f32 1.5, %v5033
    %v5035 = vmul.f32 %v5030, %v5034
    %vm5036 = vweird.f32 %v4975
    %vm5037 = vweird.f32 %v5030
    %vm5038 = vmor %vm5036, %vm5037
    %v5039 = vsel %vm5038, %v5030, %v5035
    %v5040 = vrsqrt.pop %v4976
    %v5041 = vmul.f32 %v5040, %v4976
    %v5042 = vmul.f32 %v5041, %v5040
    %v5043 = vmul.f32 0.5, %v5042
    %v5044 = vsub.f32 1.5, %v5043
    %v5045 = vmul.f32 %v5040, %v5044
    %vm5046 = vweird.f32 %v4976
    %vm5047 = vweird.f32 %v5040
    %vm5048 = vmor %vm5046, %vm5047
    %v5049 = vsel %vm5048, %v5040, %v5045
    %v5050 = vrsqrt.pop %v4977
    %v5051 = vmul.f32 %v5050, %v4977
    %v5052 = vmul.f32 %v5051, %v5050
    %v5053 = vmul.f32 0.5, %v5052
    %v5054 = vsub.f32 1.5, %v5053
    %v5055 = vmul.f32 %v5050, %v5054
    %vm5056 = vweird.f32 %v4977
    %vm5057 = vweird.f32 %v5050
    %vm5058 = vmor %vm5056, %vm5057
    %v5059 = vsel %vm5058, %v5050, %v5055
    %v5060 = vrsqrt.pop %v4978
    %v5061 = vmul.f32 %v5060, %v4978
    %v5062 = vmul.f32 %v5061, %v5060
    %v5063 = vmul.f32 0.5, %v5062
    %v5064 = vsub.f32 1.5, %v5063
    %v5065 = vmul.f32 %v5060, %v5064
    %vm5066 = vweird.f32 %v4978
    %vm5067 = vweird.f32 %v5060
    %vm5068 = vmor %vm5066, %vm5067
    %v5069 = vsel %vm5068, %v5060, %v5065
    %v5070 = vrsqrt.pop %v4979
    %v5071 = vmul.f32 %v5070, %v4979
    %v5072 = vmul.f32 %v5071, %v5070
    %v5073 = vmul.f32 0.5, %v5072
    %v5074 = vsub.f32 1.5, %v5073
    %v5075 = vmul.f32 %v5070, %v5074
    %vm5076 = vweird.f32 %v4979
    %vm5077 = vweird.f32 %v5070
    %vm5078 = vmor %vm5076, %vm5077
    %v5079 = vsel %vm5078, %v5070, %v5075
    %v5080 = vmul.f32 %v4920, %v4989
    %v5081 = vmul.f32 %v4921, %v4999
    %v5082 = vmul.f32 %v4922, %v5009
    %v5083 = vmul.f32 %v4923, %v5019
    %v5084 = vmul.f32 %v4924, %v5029
    %v5085 = vmul.f32 %v4925, %v5039
    %v5086 = vmul.f32 %v4926, %v5049
    %v5087 = vmul.f32 %v4927, %v5059
    %v5088 = vmul.f32 %v4928, %v5069
    %v5089 = vmul.f32 %v4929, %v5079
    %v5091 = vperm.slane %v4888, 0
    %v5093 = vmul.f32 %v5080, %v5091
    %v5094 = vmul.f32 %v5081, %v5091
    %v5095 = vmul.f32 %v5082, %v5091
    %v5096 = vmul.f32 %v5083, %v5091
    %v5097 = vmul.f32 %v5084, %v5091
    %v5098 = vmul.f32 %v5085, %v5091
    %v5099 = vmul.f32 %v5086, %v5091
    %v5100 = vmul.f32 %v5087, %v5091
    %v5101 = vmul.f32 %v5088, %v5091
    %v5102 = vmul.f32 %v5089, %v5091
    %v5104 = vperm.slane %v4889, 0
    %v5106 = vadd.f32 %v5093, %v5104
    %v5107 = vadd.f32 %v5094, %v5104
    %v5108 = vadd.f32 %v5095, %v5104
    %v5109 = vadd.f32 %v5096, %v5104
    %v5110 = vadd.f32 %v5097, %v5104
    %v5111 = vadd.f32 %v5098, %v5104
    %v5112 = vadd.f32 %v5099, %v5104
    %v5113 = vadd.f32 %v5100, %v5104
    %v5114 = vadd.f32 %v5101, %v5104
    %v5115 = vadd.f32 %v5102, %v5104
    %v5116 = vpack.c.bf16 %v5107, %v5106
    %v5117 = vpack.c.bf16 %v5109, %v5108
    %v5118 = vpack.c.bf16 %v5111, %v5110
    %v5119 = vpack.c.bf16 %v5113, %v5112
    %v5120 = vpack.c.bf16 %v5115, %v5114
    %v5121 = vld [vmem:[%s17] sm:$0xff]
    %v5122 = vld [vmem:[%s17 + $0x8] sm:$0xff]
    %v5123 = vld [vmem:[%s17 + $0x10] sm:$0xff]
    %v5124 = vld [vmem:[%s17 + $0x18] sm:$0xff]
    %v5125 = vld [vmem:[%s17 + $0x20] sm:$0xff]
    %v5126 = vld [vmem:[%s17 + $0x28] sm:$0xff]
    %v5127 = vld [vmem:[%s17 + $0x30] sm:$0xff]
    %v5128 = vld [vmem:[%s17 + $0x38] sm:$0xff]
    %v5129 = vld [vmem:[%s17 + $0x40] sm:$0xff]
    %v5130 = vld [vmem:[%s17 + $0x48] sm:$0xff]
    %v5131 = vld [vmem:[%s17 + $0x50] sm:$0xff]
    %v5132 = vld [vmem:[%s17 + $0x58] sm:$0xff]
    %v5133 = vld [vmem:[%s17 + $0x60] sm:$0xff]
    %v5134 = vld [vmem:[%s17 + $0x68] sm:$0xff]
    %v5135 = vld [vmem:[%s17 + $0x70] sm:$0xff]
    %v5136 = vld [vmem:[%s17 + $0x78] sm:$0xff]
    %v5137 = vld [vmem:[%s18] sm:$0x3]
    %v5139 = vperm.slane %v5137, 0
    %v5140 = vperm.slane %v5137, 1
    %v5159 = vunpack.c.l.b16 %v5121
    %v5160 = vunpack.c.h.b16 %v5121
    %v5161 = vunpack.c.l.b16 %v5122
    %v5162 = vunpack.c.h.b16 %v5122
    %v5163 = vunpack.c.l.b16 %v5123
    %v5164 = vunpack.c.h.b16 %v5123
    %v5165 = vunpack.c.l.b16 %v5124
    %v5166 = vunpack.c.h.b16 %v5124
    %v5167 = vunpack.c.l.b16 %v5125
    %v5168 = vunpack.c.h.b16 %v5125
    %v5169 = vunpack.c.l.b16 %v5126
    %v5170 = vunpack.c.h.b16 %v5126
    %v5171 = vunpack.c.l.b16 %v5127
    %v5172 = vunpack.c.h.b16 %v5127
    %v5173 = vunpack.c.l.b16 %v5128
    %v5174 = vunpack.c.h.b16 %v5128
    %v5175 = vunpack.c.l.b16 %v5129
    %v5176 = vunpack.c.h.b16 %v5129
    %v5177 = vunpack.c.l.b16 %v5130
    %v5178 = vunpack.c.h.b16 %v5130
    %v5179 = vunpack.c.l.b16 %v5131
    %v5180 = vunpack.c.h.b16 %v5131
    %v5181 = vunpack.c.l.b16 %v5132
    %v5182 = vunpack.c.h.b16 %v5132
    %v5183 = vunpack.c.l.b16 %v5133
    %v5184 = vunpack.c.h.b16 %v5133
    %v5185 = vunpack.c.l.b16 %v5134
    %v5186 = vunpack.c.h.b16 %v5134
    %v5187 = vunpack.c.l.b16 %v5135
    %v5188 = vunpack.c.h.b16 %v5135
    %v5189 = vunpack.c.l.b16 %v5136
    %v5190 = vunpack.c.h.b16 %v5136
    %v5191 = vpack.c.b16 %v5161, %v5159
    %v5192 = vpack.c.b16 %v5162, %v5160
    %v5193 = vpack.c.b16 %v5165, %v5163
    %v5194 = vpack.c.b16 %v5166, %v5164
    %v5195 = vpack.c.b16 %v5169, %v5167
    %v5196 = vpack.c.b16 %v5170, %v5168
    %v5197 = vpack.c.b16 %v5173, %v5171
    %v5198 = vpack.c.b16 %v5174, %v5172
    %v5199 = vpack.c.b16 %v5177, %v5175
    %v5200 = vpack.c.b16 %v5178, %v5176
    %v5201 = vpack.c.b16 %v5181, %v5179
    %v5202 = vpack.c.b16 %v5182, %v5180
    %v5203 = vpack.c.b16 %v5185, %v5183
    %v5204 = vpack.c.b16 %v5186, %v5184
    %v5205 = vpack.c.b16 %v5189, %v5187
    %v5206 = vpack.c.b16 %v5190, %v5188
    %5223 = vmatpush.bf16.msra.mxu0 %v5205
    %5224 = vmatpush.bf16.msra.mxu0 %v5203
    %5225 = vmatpush.bf16.msra.mxu0 %v5201
    %5226 = vmatpush.bf16.msra.mxu0 %v5199
    %5227 = vmatpush.bf16.msra.mxu0 %v5197
    %5228 = vmatpush.bf16.msra.mxu0 %v5195
    %5229 = vmatpush.bf16.msra.mxu0 %v5193
    %5230 = vmatpush.bf16.msra.mxu0 %v5191
    %5231 = vmatmul.bf16.gmra.mxu0 %v5116
    %v5232 = vpop.f32.mrf.mxu0
    %v5233 = vadd.f32 %v5139, %v5232
    %v5234 = vpop.f32.mrf.mxu0
    %v5235 = vadd.f32 %v5139, %v5234
    %5236 = vmatmul.bf16.gmra.mxu0 %v5117
    %v5237 = vpop.f32.mrf.mxu0
    %v5238 = vadd.f32 %v5139, %v5237
    %v5239 = vpop.f32.mrf.mxu0
    %v5240 = vadd.f32 %v5139, %v5239
    %5241 = vmatmul.bf16.gmra.mxu0 %v5118
    %v5242 = vpop.f32.mrf.mxu0
    %v5243 = vadd.f32 %v5139, %v5242
    %v5244 = vpop.f32.mrf.mxu0
    %v5245 = vadd.f32 %v5139, %v5244
    %5246 = vmatmul.bf16.gmra.mxu0 %v5119
    %v5247 = vpop.f32.mrf.mxu0
    %v5248 = vadd.f32 %v5139, %v5247
    %v5249 = vpop.f32.mrf.mxu0
    %v5250 = vadd.f32 %v5139, %v5249
    %5251 = vmatmul.bf16.gmra.mxu0 %v5120
    %v5252 = vpop.f32.mrf.mxu0
    %v5253 = vadd.f32 %v5139, %v5252
    %v5254 = vpop.f32.mrf.mxu0
    %v5255 = vadd.f32 %v5139, %v5254
    %5256 = vdwg.mxu0
    %5257 = vmatpush.bf16.msra.mxu0 %v5206
    %5258 = vmatpush.bf16.msra.mxu0 %v5204
    %5259 = vmatpush.bf16.msra.mxu0 %v5202
    %5260 = vmatpush.bf16.msra.mxu0 %v5200
    %5261 = vmatpush.bf16.msra.mxu0 %v5198
    %5262 = vmatpush.bf16.msra.mxu0 %v5196
    %5263 = vmatpush.bf16.msra.mxu0 %v5194
    %5264 = vmatpush.bf16.msra.mxu0 %v5192
    %5265 = vmatmul.bf16.gmra.mxu0 %v5116
    %v5266 = vpop.f32.mrf.mxu0
    %v5267 = vadd.f32 %v5140, %v5266
    %v5268 = vpop.f32.mrf.mxu0
    %v5269 = vadd.f32 %v5140, %v5268
    %5270 = vmatmul.bf16.gmra.mxu0 %v5117
    %v5271 = vpop.f32.mrf.mxu0
    %v5272 = vadd.f32 %v5140, %v5271
    %v5273 = vpop.f32.mrf.mxu0
    %v5274 = vadd.f32 %v5140, %v5273
    %5275 = vmatmul.bf16.gmra.mxu0 %v5118
    %v5276 = vpop.f32.mrf.mxu0
    %v5277 = vadd.f32 %v5140, %v5276
    %v5278 = vpop.f32.mrf.mxu0
    %v5279 = vadd.f32 %v5140, %v5278
    %5280 = vmatmul.bf16.gmra.mxu0 %v5119
    %v5281 = vpop.f32.mrf.mxu0
    %v5282 = vadd.f32 %v5140, %v5281
    %v5283 = vpop.f32.mrf.mxu0
    %v5284 = vadd.f32 %v5140, %v5283
    %5285 = vmatmul.bf16.gmra.mxu0 %v5120
    %v5286 = vpop.f32.mrf.mxu0
    %v5287 = vadd.f32 %v5140, %v5286
    %v5288 = vpop.f32.mrf.mxu0
    %v5289 = vadd.f32 %v5140, %v5288
    %5290 = vdwg.mxu0
    %v5291 = vmul.f32 %v5233, 1.702
    %v5292 = vmul.f32 %v5267, 1.702
    %v5293 = vmul.f32 %v5235, 1.702
    %v5294 = vmul.f32 %v5269, 1.702
    %v5295 = vmul.f32 %v5238, 1.702
    %v5296 = vmul.f32 %v5272, 1.702
    %v5297 = vmul.f32 %v5240, 1.702
    %v5298 = vmul.f32 %v5274, 1.702
    %v5299 = vmul.f32 %v5243, 1.702
    %v5300 = vmul.f32 %v5277, 1.702
    %v5301 = vmul.f32 %v5245, 1.702
    %v5302 = vmul.f32 %v5279, 1.702
    %v5303 = vmul.f32 %v5248, 1.702
    %v5304 = vmul.f32 %v5282, 1.702
    %v5305 = vmul.f32 %v5250, 1.702
    %v5306 = vmul.f32 %v5284, 1.702
    %v5307 = vmul.f32 %v5253, 1.702
    %v5308 = vmul.f32 %v5287, 1.702
    %v5309 = vmul.f32 %v5255, 1.702
    %v5310 = vmul.f32 %v5289, 1.702
    %v5311 = vxor.u32 %v5291, 2147483648
    %v5312 = vxor.u32 %v5292, 2147483648
    %v5313 = vxor.u32 %v5293, 2147483648
    %v5314 = vxor.u32 %v5294, 2147483648
    %v5315 = vxor.u32 %v5295, 2147483648
    %v5316 = vxor.u32 %v5296, 2147483648
    %v5317 = vxor.u32 %v5297, 2147483648
    %v5318 = vxor.u32 %v5298, 2147483648
    %v5319 = vxor.u32 %v5299, 2147483648
    %v5320 = vxor.u32 %v5300, 2147483648
    %v5321 = vxor.u32 %v5301, 2147483648
    %v5322 = vxor.u32 %v5302, 2147483648
    %v5323 = vxor.u32 %v5303, 2147483648
    %v5324 = vxor.u32 %v5304, 2147483648
    %v5325 = vxor.u32 %v5305, 2147483648
    %v5326 = vxor.u32 %v5306, 2147483648
    %v5327 = vxor.u32 %v5307, 2147483648
    %v5328 = vxor.u32 %v5308, 2147483648
    %v5329 = vxor.u32 %v5309, 2147483648
    %v5330 = vxor.u32 %v5310, 2147483648
    %v5331 = vmul.f32 %v5311, 1.442695
    %v5332 = vpow.pop %v5331
    %v5333 = vmul.f32 %v5312, 1.442695
    %v5334 = vpow.pop %v5333
    %v5335 = vmul.f32 %v5313, 1.442695
    %v5336 = vpow.pop %v5335
    %v5337 = vmul.f32 %v5314, 1.442695
    %v5338 = vpow.pop %v5337
    %v5339 = vmul.f32 %v5315, 1.442695
    %v5340 = vpow.pop %v5339
    %v5341 = vmul.f32 %v5316, 1.442695
    %v5342 = vpow.pop %v5341
    %v5343 = vmul.f32 %v5317, 1.442695
    %v5344 = vpow.pop %v5343
    %v5345 = vmul.f32 %v5318, 1.442695
    %v5346 = vpow.pop %v5345
    %v5347 = vmul.f32 %v5319, 1.442695
    %v5348 = vpow.pop %v5347
    %v5349 = vmul.f32 %v5320, 1.442695
    %v5350 = vpow.pop %v5349
    %v5351 = vmul.f32 %v5321, 1.442695
    %v5352 = vpow.pop %v5351
    %v5353 = vmul.f32 %v5322, 1.442695
    %v5354 = vpow.pop %v5353
    %v5355 = vmul.f32 %v5323, 1.442695
    %v5356 = vpow.pop %v5355
    %v5357 = vmul.f32 %v5324, 1.442695
    %v5358 = vpow.pop %v5357
    %v5359 = vmul.f32 %v5325, 1.442695
    %v5360 = vpow.pop %v5359
    %v5361 = vmul.f32 %v5326, 1.442695
    %v5362 = vpow.pop %v5361
    %v5363 = vmul.f32 %v5327, 1.442695
    %v5364 = vpow.pop %v5363
    %v5365 = vmul.f32 %v5328, 1.442695
    %v5366 = vpow.pop %v5365
    %v5367 = vmul.f32 %v5329, 1.442695
    %v5368 = vpow.pop %v5367
    %v5369 = vmul.f32 %v5330, 1.442695
    %v5370 = vpow.pop %v5369
    %v5371 = vadd.f32 %v5332, 1.0
    %v5372 = vadd.f32 %v5334, 1.0
    %v5373 = vadd.f32 %v5336, 1.0
    %v5374 = vadd.f32 %v5338, 1.0
    %v5375 = vadd.f32 %v5340, 1.0
    %v5376 = vadd.f32 %v5342, 1.0
    %v5377 = vadd.f32 %v5344, 1.0
    %v5378 = vadd.f32 %v5346, 1.0
    %v5379 = vadd.f32 %v5348, 1.0
    %v5380 = vadd.f32 %v5350, 1.0
    %v5381 = vadd.f32 %v5352, 1.0
    %v5382 = vadd.f32 %v5354, 1.0
    %v5383 = vadd.f32 %v5356, 1.0
    %v5384 = vadd.f32 %v5358, 1.0
    %v5385 = vadd.f32 %v5360, 1.0
    %v5386 = vadd.f32 %v5362, 1.0
    %v5387 = vadd.f32 %v5364, 1.0
    %v5388 = vadd.f32 %v5366, 1.0
    %v5389 = vadd.f32 %v5368, 1.0
    %v5390 = vadd.f32 %v5370, 1.0
    %v5391 = vrcp.pop %v5371
    %v5392 = vmul.f32 %v5371, %v5391
    %v5393 = vsub.f32 1.0, %v5392
    %v5394 = vmul.f32 %v5391, %v5393
    %v5395 = vadd.f32 %v5391, %v5394
    %vm5396 = vweird.f32 %v5371
    %vm5397 = vweird.f32 %v5391
    %vm5398 = vmor %vm5396, %vm5397
    %v5399 = vsel %vm5398, %v5391, %v5395
    %v5400 = vand.u32 2147483647, %v5371
    %vm5401 = vcmp.eq.f32.partialorder %v5400, 8.507059e+37
    %v5402 = vand.u32 %v5371, 2147483648
    %v5403 = vor.u32 1.1754944e-38, %v5402
    %v5404 = vsel %vm5401, %v5403, %v5399
    %v5405 = vmul.f32 1.0, %v5404
    %v5406 = vrcp.pop %v5372
    %v5407 = vmul.f32 %v5372, %v5406
    %v5408 = vsub.f32 1.0, %v5407
    %v5409 = vmul.f32 %v5406, %v5408
    %v5410 = vadd.f32 %v5406, %v5409
    %vm5411 = vweird.f32 %v5372
    %vm5412 = vweird.f32 %v5406
    %vm5413 = vmor %vm5411, %vm5412
    %v5414 = vsel %vm5413, %v5406, %v5410
    %v5415 = vand.u32 2147483647, %v5372
    %vm5416 = vcmp.eq.f32.partialorder %v5415, 8.507059e+37
    %v5417 = vand.u32 %v5372, 2147483648
    %v5418 = vor.u32 1.1754944e-38, %v5417
    %v5419 = vsel %vm5416, %v5418, %v5414
    %v5420 = vmul.f32 1.0, %v5419
    %v5421 = vrcp.pop %v5373
    %v5422 = vmul.f32 %v5373, %v5421
    %v5423 = vsub.f32 1.0, %v5422
    %v5424 = vmul.f32 %v5421, %v5423
    %v5425 = vadd.f32 %v5421, %v5424
    %vm5426 = vweird.f32 %v5373
    %vm5427 = vweird.f32 %v5421
    %vm5428 = vmor %vm5426, %vm5427
    %v5429 = vsel %vm5428, %v5421, %v5425
    %v5430 = vand.u32 2147483647, %v5373
    %vm5431 = vcmp.eq.f32.partialorder %v5430, 8.507059e+37
    %v5432 = vand.u32 %v5373, 2147483648
    %v5433 = vor.u32 1.1754944e-38, %v5432
    %v5434 = vsel %vm5431, %v5433, %v5429
    %v5435 = vmul.f32 1.0, %v5434
    %v5436 = vrcp.pop %v5374
    %v5437 = vmul.f32 %v5374, %v5436
    %v5438 = vsub.f32 1.0, %v5437
    %v5439 = vmul.f32 %v5436, %v5438
    %v5440 = vadd.f32 %v5436, %v5439
    %vm5441 = vweird.f32 %v5374
    %vm5442 = vweird.f32 %v5436
    %vm5443 = vmor %vm5441, %vm5442
    %v5444 = vsel %vm5443, %v5436, %v5440
    %v5445 = vand.u32 2147483647, %v5374
    %vm5446 = vcmp.eq.f32.partialorder %v5445, 8.507059e+37
    %v5447 = vand.u32 %v5374, 2147483648
    %v5448 = vor.u32 1.1754944e-38, %v5447
    %v5449 = vsel %vm5446, %v5448, %v5444
    %v5450 = vmul.f32 1.0, %v5449
    %v5451 = vrcp.pop %v5375
    %v5452 = vmul.f32 %v5375, %v5451
    %v5453 = vsub.f32 1.0, %v5452
    %v5454 = vmul.f32 %v5451, %v5453
    %v5455 = vadd.f32 %v5451, %v5454
    %vm5456 = vweird.f32 %v5375
    %vm5457 = vweird.f32 %v5451
    %vm5458 = vmor %vm5456, %vm5457
    %v5459 = vsel %vm5458, %v5451, %v5455
    %v5460 = vand.u32 2147483647, %v5375
    %vm5461 = vcmp.eq.f32.partialorder %v5460, 8.507059e+37
    %v5462 = vand.u32 %v5375, 2147483648
    %v5463 = vor.u32 1.1754944e-38, %v5462
    %v5464 = vsel %vm5461, %v5463, %v5459
    %v5465 = vmul.f32 1.0, %v5464
    %v5466 = vrcp.pop %v5376
    %v5467 = vmul.f32 %v5376, %v5466
    %v5468 = vsub.f32 1.0, %v5467
    %v5469 = vmul.f32 %v5466, %v5468
    %v5470 = vadd.f32 %v5466, %v5469
    %vm5471 = vweird.f32 %v5376
    %vm5472 = vweird.f32 %v5466
    %vm5473 = vmor %vm5471, %vm5472
    %v5474 = vsel %vm5473, %v5466, %v5470
    %v5475 = vand.u32 2147483647, %v5376
    %vm5476 = vcmp.eq.f32.partialorder %v5475, 8.507059e+37
    %v5477 = vand.u32 %v5376, 2147483648
    %v5478 = vor.u32 1.1754944e-38, %v5477
    %v5479 = vsel %vm5476, %v5478, %v5474
    %v5480 = vmul.f32 1.0, %v5479
    %v5481 = vrcp.pop %v5377
    %v5482 = vmul.f32 %v5377, %v5481
    %v5483 = vsub.f32 1.0, %v5482
    %v5484 = vmul.f32 %v5481, %v5483
    %v5485 = vadd.f32 %v5481, %v5484
    %vm5486 = vweird.f32 %v5377
    %vm5487 = vweird.f32 %v5481
    %vm5488 = vmor %vm5486, %vm5487
    %v5489 = vsel %vm5488, %v5481, %v5485
    %v5490 = vand.u32 2147483647, %v5377
    %vm5491 = vcmp.eq.f32.partialorder %v5490, 8.507059e+37
    %v5492 = vand.u32 %v5377, 2147483648
    %v5493 = vor.u32 1.1754944e-38, %v5492
    %v5494 = vsel %vm5491, %v5493, %v5489
    %v5495 = vmul.f32 1.0, %v5494
    %v5496 = vrcp.pop %v5378
    %v5497 = vmul.f32 %v5378, %v5496
    %v5498 = vsub.f32 1.0, %v5497
    %v5499 = vmul.f32 %v5496, %v5498
    %v5500 = vadd.f32 %v5496, %v5499
    %vm5501 = vweird.f32 %v5378
    %vm5502 = vweird.f32 %v5496
    %vm5503 = vmor %vm5501, %vm5502
    %v5504 = vsel %vm5503, %v5496, %v5500
    %v5505 = vand.u32 2147483647, %v5378
    %vm5506 = vcmp.eq.f32.partialorder %v5505, 8.507059e+37
    %v5507 = vand.u32 %v5378, 2147483648
    %v5508 = vor.u32 1.1754944e-38, %v5507
    %v5509 = vsel %vm5506, %v5508, %v5504
    %v5510 = vmul.f32 1.0, %v5509
    %v5511 = vrcp.pop %v5379
    %v5512 = vmul.f32 %v5379, %v5511
    %v5513 = vsub.f32 1.0, %v5512
    %v5514 = vmul.f32 %v5511, %v5513
    %v5515 = vadd.f32 %v5511, %v5514
    %vm5516 = vweird.f32 %v5379
    %vm5517 = vweird.f32 %v5511
    %vm5518 = vmor %vm5516, %vm5517
    %v5519 = vsel %vm5518, %v5511, %v5515
    %v5520 = vand.u32 2147483647, %v5379
    %vm5521 = vcmp.eq.f32.partialorder %v5520, 8.507059e+37
    %v5522 = vand.u32 %v5379, 2147483648
    %v5523 = vor.u32 1.1754944e-38, %v5522
    %v5524 = vsel %vm5521, %v5523, %v5519
    %v5525 = vmul.f32 1.0, %v5524
    %v5526 = vrcp.pop %v5380
    %v5527 = vmul.f32 %v5380, %v5526
    %v5528 = vsub.f32 1.0, %v5527
    %v5529 = vmul.f32 %v5526, %v5528
    %v5530 = vadd.f32 %v5526, %v5529
    %vm5531 = vweird.f32 %v5380
    %vm5532 = vweird.f32 %v5526
    %vm5533 = vmor %vm5531, %vm5532
    %v5534 = vsel %vm5533, %v5526, %v5530
    %v5535 = vand.u32 2147483647, %v5380
    %vm5536 = vcmp.eq.f32.partialorder %v5535, 8.507059e+37
    %v5537 = vand.u32 %v5380, 2147483648
    %v5538 = vor.u32 1.1754944e-38, %v5537
    %v5539 = vsel %vm5536, %v5538, %v5534
    %v5540 = vmul.f32 1.0, %v5539
    %v5541 = vrcp.pop %v5381
    %v5542 = vmul.f32 %v5381, %v5541
    %v5543 = vsub.f32 1.0, %v5542
    %v5544 = vmul.f32 %v5541, %v5543
    %v5545 = vadd.f32 %v5541, %v5544
    %vm5546 = vweird.f32 %v5381
    %vm5547 = vweird.f32 %v5541
    %vm5548 = vmor %vm5546, %vm5547
    %v5549 = vsel %vm5548, %v5541, %v5545
    %v5550 = vand.u32 2147483647, %v5381
    %vm5551 = vcmp.eq.f32.partialorder %v5550, 8.507059e+37
    %v5552 = vand.u32 %v5381, 2147483648
    %v5553 = vor.u32 1.1754944e-38, %v5552
    %v5554 = vsel %vm5551, %v5553, %v5549
    %v5555 = vmul.f32 1.0, %v5554
    %v5556 = vrcp.pop %v5382
    %v5557 = vmul.f32 %v5382, %v5556
    %v5558 = vsub.f32 1.0, %v5557
    %v5559 = vmul.f32 %v5556, %v5558
    %v5560 = vadd.f32 %v5556, %v5559
    %vm5561 = vweird.f32 %v5382
    %vm5562 = vweird.f32 %v5556
    %vm5563 = vmor %vm5561, %vm5562
    %v5564 = vsel %vm5563, %v5556, %v5560
    %v5565 = vand.u32 2147483647, %v5382
    %vm5566 = vcmp.eq.f32.partialorder %v5565, 8.507059e+37
    %v5567 = vand.u32 %v5382, 2147483648
    %v5568 = vor.u32 1.1754944e-38, %v5567
    %v5569 = vsel %vm5566, %v5568, %v5564
    %v5570 = vmul.f32 1.0, %v5569
    %v5571 = vrcp.pop %v5383
    %v5572 = vmul.f32 %v5383, %v5571
    %v5573 = vsub.f32 1.0, %v5572
    %v5574 = vmul.f32 %v5571, %v5573
    %v5575 = vadd.f32 %v5571, %v5574
    %vm5576 = vweird.f32 %v5383
    %vm5577 = vweird.f32 %v5571
    %vm5578 = vmor %vm5576, %vm5577
    %v5579 = vsel %vm5578, %v5571, %v5575
    %v5580 = vand.u32 2147483647, %v5383
    %vm5581 = vcmp.eq.f32.partialorder %v5580, 8.507059e+37
    %v5582 = vand.u32 %v5383, 2147483648
    %v5583 = vor.u32 1.1754944e-38, %v5582
    %v5584 = vsel %vm5581, %v5583, %v5579
    %v5585 = vmul.f32 1.0, %v5584
    %v5586 = vrcp.pop %v5384
    %v5587 = vmul.f32 %v5384, %v5586
    %v5588 = vsub.f32 1.0, %v5587
    %v5589 = vmul.f32 %v5586, %v5588
    %v5590 = vadd.f32 %v5586, %v5589
    %vm5591 = vweird.f32 %v5384
    %vm5592 = vweird.f32 %v5586
    %vm5593 = vmor %vm5591, %vm5592
    %v5594 = vsel %vm5593, %v5586, %v5590
    %v5595 = vand.u32 2147483647, %v5384
    %vm5596 = vcmp.eq.f32.partialorder %v5595, 8.507059e+37
    %v5597 = vand.u32 %v5384, 2147483648
    %v5598 = vor.u32 1.1754944e-38, %v5597
    %v5599 = vsel %vm5596, %v5598, %v5594
    %v5600 = vmul.f32 1.0, %v5599
    %v5601 = vrcp.pop %v5385
    %v5602 = vmul.f32 %v5385, %v5601
    %v5603 = vsub.f32 1.0, %v5602
    %v5604 = vmul.f32 %v5601, %v5603
    %v5605 = vadd.f32 %v5601, %v5604
    %vm5606 = vweird.f32 %v5385
    %vm5607 = vweird.f32 %v5601
    %vm5608 = vmor %vm5606, %vm5607
    %v5609 = vsel %vm5608, %v5601, %v5605
    %v5610 = vand.u32 2147483647, %v5385
    %vm5611 = vcmp.eq.f32.partialorder %v5610, 8.507059e+37
    %v5612 = vand.u32 %v5385, 2147483648
    %v5613 = vor.u32 1.1754944e-38, %v5612
    %v5614 = vsel %vm5611, %v5613, %v5609
    %v5615 = vmul.f32 1.0, %v5614
    %v5616 = vrcp.pop %v5386
    %v5617 = vmul.f32 %v5386, %v5616
    %v5618 = vsub.f32 1.0, %v5617
    %v5619 = vmul.f32 %v5616, %v5618
    %v5620 = vadd.f32 %v5616, %v5619
    %vm5621 = vweird.f32 %v5386
    %vm5622 = vweird.f32 %v5616
    %vm5623 = vmor %vm5621, %vm5622
    %v5624 = vsel %vm5623, %v5616, %v5620
    %v5625 = vand.u32 2147483647, %v5386
    %vm5626 = vcmp.eq.f32.partialorder %v5625, 8.507059e+37
    %v5627 = vand.u32 %v5386, 2147483648
    %v5628 = vor.u32 1.1754944e-38, %v5627
    %v5629 = vsel %vm5626, %v5628, %v5624
    %v5630 = vmul.f32 1.0, %v5629
    %v5631 = vrcp.pop %v5387
    %v5632 = vmul.f32 %v5387, %v5631
    %v5633 = vsub.f32 1.0, %v5632
    %v5634 = vmul.f32 %v5631, %v5633
    %v5635 = vadd.f32 %v5631, %v5634
    %vm5636 = vweird.f32 %v5387
    %vm5637 = vweird.f32 %v5631
    %vm5638 = vmor %vm5636, %vm5637
    %v5639 = vsel %vm5638, %v5631, %v5635
    %v5640 = vand.u32 2147483647, %v5387
    %vm5641 = vcmp.eq.f32.partialorder %v5640, 8.507059e+37
    %v5642 = vand.u32 %v5387, 2147483648
    %v5643 = vor.u32 1.1754944e-38, %v5642
    %v5644 = vsel %vm5641, %v5643, %v5639
    %v5645 = vmul.f32 1.0, %v5644
    %v5646 = vrcp.pop %v5388
    %v5647 = vmul.f32 %v5388, %v5646
    %v5648 = vsub.f32 1.0, %v5647
    %v5649 = vmul.f32 %v5646, %v5648
    %v5650 = vadd.f32 %v5646, %v5649
    %vm5651 = vweird.f32 %v5388
    %vm5652 = vweird.f32 %v5646
    %vm5653 = vmor %vm5651, %vm5652
    %v5654 = vsel %vm5653, %v5646, %v5650
    %v5655 = vand.u32 2147483647, %v5388
    %vm5656 = vcmp.eq.f32.partialorder %v5655, 8.507059e+37
    %v5657 = vand.u32 %v5388, 2147483648
    %v5658 = vor.u32 1.1754944e-38, %v5657
    %v5659 = vsel %vm5656, %v5658, %v5654
    %v5660 = vmul.f32 1.0, %v5659
    %v5661 = vrcp.pop %v5389
    %v5662 = vmul.f32 %v5389, %v5661
    %v5663 = vsub.f32 1.0, %v5662
    %v5664 = vmul.f32 %v5661, %v5663
    %v5665 = vadd.f32 %v5661, %v5664
    %vm5666 = vweird.f32 %v5389
    %vm5667 = vweird.f32 %v5661
    %vm5668 = vmor %vm5666, %vm5667
    %v5669 = vsel %vm5668, %v5661, %v5665
    %v5670 = vand.u32 2147483647, %v5389
    %vm5671 = vcmp.eq.f32.partialorder %v5670, 8.507059e+37
    %v5672 = vand.u32 %v5389, 2147483648
    %v5673 = vor.u32 1.1754944e-38, %v5672
    %v5674 = vsel %vm5671, %v5673, %v5669
    %v5675 = vmul.f32 1.0, %v5674
    %v5676 = vrcp.pop %v5390
    %v5677 = vmul.f32 %v5390, %v5676
    %v5678 = vsub.f32 1.0, %v5677
    %v5679 = vmul.f32 %v5676, %v5678
    %v5680 = vadd.f32 %v5676, %v5679
    %vm5681 = vweird.f32 %v5390
    %vm5682 = vweird.f32 %v5676
    %vm5683 = vmor %vm5681, %vm5682
    %v5684 = vsel %vm5683, %v5676, %v5680
    %v5685 = vand.u32 2147483647, %v5390
    %vm5686 = vcmp.eq.f32.partialorder %v5685, 8.507059e+37
    %v5687 = vand.u32 %v5390, 2147483648
    %v5688 = vor.u32 1.1754944e-38, %v5687
    %v5689 = vsel %vm5686, %v5688, %v5684
    %v5690 = vmul.f32 1.0, %v5689
    %v5691 = vmul.f32 %v5233, %v5405
    %v5692 = vmul.f32 %v5267, %v5420
    %v5693 = vmul.f32 %v5235, %v5435
    %v5694 = vmul.f32 %v5269, %v5450
    %v5695 = vmul.f32 %v5238, %v5465
    %v5696 = vmul.f32 %v5272, %v5480
    %v5697 = vmul.f32 %v5240, %v5495
    %v5698 = vmul.f32 %v5274, %v5510
    %v5699 = vmul.f32 %v5243, %v5525
    %v5700 = vmul.f32 %v5277, %v5540
    %v5701 = vmul.f32 %v5245, %v5555
    %v5702 = vmul.f32 %v5279, %v5570
    %v5703 = vmul.f32 %v5248, %v5585
    %v5704 = vmul.f32 %v5282, %v5600
    %v5705 = vmul.f32 %v5250, %v5615
    %v5706 = vmul.f32 %v5284, %v5630
    %v5707 = vmul.f32 %v5253, %v5645
    %v5708 = vmul.f32 %v5287, %v5660
    %v5709 = vmul.f32 %v5255, %v5675
    %v5710 = vmul.f32 %v5289, %v5690
    %v5711 = vpack.c.bf16 %v5693, %v5691
    %v5712 = vpack.c.bf16 %v5694, %v5692
    %v5713 = vpack.c.bf16 %v5697, %v5695
    %v5714 = vpack.c.bf16 %v5698, %v5696
    %v5715 = vpack.c.bf16 %v5701, %v5699
    %v5716 = vpack.c.bf16 %v5702, %v5700
    %v5717 = vpack.c.bf16 %v5705, %v5703
    %v5718 = vpack.c.bf16 %v5706, %v5704
    %v5719 = vpack.c.bf16 %v5709, %v5707
    %v5720 = vpack.c.bf16 %v5710, %v5708
    %v5721 = vld [vmem:[%s19] sm:$0xf]
    %v5722 = vld [vmem:[%s19 + $0x4] sm:$0xf]
    %v5723 = vld [vmem:[%s19 + $0x8] sm:$0xf]
    %v5724 = vld [vmem:[%s19 + $0xc] sm:$0xf]
    %v5725 = vld [vmem:[%s19 + $0x10] sm:$0xf]
    %v5726 = vld [vmem:[%s19 + $0x14] sm:$0xf]
    %v5727 = vld [vmem:[%s19 + $0x18] sm:$0xf]
    %v5728 = vld [vmem:[%s19 + $0x1c] sm:$0xf]
    %v5729 = vld [vmem:[%s19 + $0x20] sm:$0xf]
    %v5730 = vld [vmem:[%s19 + $0x24] sm:$0xf]
    %v5731 = vld [vmem:[%s19 + $0x28] sm:$0xf]
    %v5732 = vld [vmem:[%s19 + $0x2c] sm:$0xf]
    %v5733 = vld [vmem:[%s19 + $0x30] sm:$0xf]
    %v5734 = vld [vmem:[%s19 + $0x34] sm:$0xf]
    %v5735 = vld [vmem:[%s19 + $0x38] sm:$0xf]
    %v5736 = vld [vmem:[%s19 + $0x3c] sm:$0xf]
    %v5737 = vld [vmem:[%s19 + $0x40] sm:$0xf]
    %v5738 = vld [vmem:[%s19 + $0x44] sm:$0xf]
    %v5739 = vld [vmem:[%s19 + $0x48] sm:$0xf]
    %v5740 = vld [vmem:[%s19 + $0x4c] sm:$0xf]
    %v5741 = vld [vmem:[%s19 + $0x50] sm:$0xf]
    %v5742 = vld [vmem:[%s19 + $0x54] sm:$0xf]
    %v5743 = vld [vmem:[%s19 + $0x58] sm:$0xf]
    %v5744 = vld [vmem:[%s19 + $0x5c] sm:$0xf]
    %v5745 = vld [vmem:[%s19 + $0x60] sm:$0xf]
    %v5746 = vld [vmem:[%s19 + $0x64] sm:$0xf]
    %v5747 = vld [vmem:[%s19 + $0x68] sm:$0xf]
    %v5748 = vld [vmem:[%s19 + $0x6c] sm:$0xf]
    %v5749 = vld [vmem:[%s19 + $0x70] sm:$0xf]
    %v5750 = vld [vmem:[%s19 + $0x74] sm:$0xf]
    %v5751 = vld [vmem:[%s19 + $0x78] sm:$0xf]
    %v5752 = vld [vmem:[%s19 + $0x7c] sm:$0xf]
    %v5753 = vld [vmem:[%s20] sm:$0x1]
    %v5755 = vperm.slane %v5753, 0
    %v5789 = vunpack.c.l.b16 %v5721
    %v5790 = vunpack.c.l.b16 %v5722
    %v5791 = vunpack.c.l.b16 %v5723
    %v5792 = vunpack.c.l.b16 %v5724
    %v5793 = vunpack.c.l.b16 %v5725
    %v5794 = vunpack.c.l.b16 %v5726
    %v5795 = vunpack.c.l.b16 %v5727
    %v5796 = vunpack.c.l.b16 %v5728
    %v5797 = vunpack.c.l.b16 %v5729
    %v5798 = vunpack.c.l.b16 %v5730
    %v5799 = vunpack.c.l.b16 %v5731
    %v5800 = vunpack.c.l.b16 %v5732
    %v5801 = vunpack.c.l.b16 %v5733
    %v5802 = vunpack.c.l.b16 %v5734
    %v5803 = vunpack.c.l.b16 %v5735
    %v5804 = vunpack.c.l.b16 %v5736
    %v5805 = vunpack.c.l.b16 %v5737
    %v5806 = vunpack.c.l.b16 %v5738
    %v5807 = vunpack.c.l.b16 %v5739
    %v5808 = vunpack.c.l.b16 %v5740
    %v5809 = vunpack.c.l.b16 %v5741
    %v5810 = vunpack.c.l.b16 %v5742
    %v5811 = vunpack.c.l.b16 %v5743
    %v5812 = vunpack.c.l.b16 %v5744
    %v5813 = vunpack.c.l.b16 %v5745
    %v5814 = vunpack.c.l.b16 %v5746
    %v5815 = vunpack.c.l.b16 %v5747
    %v5816 = vunpack.c.l.b16 %v5748
    %v5817 = vunpack.c.l.b16 %v5749
    %v5818 = vunpack.c.l.b16 %v5750
    %v5819 = vunpack.c.l.b16 %v5751
    %v5820 = vunpack.c.l.b16 %v5752
    %v5821 = vpack.c.b16 %v5790, %v5789
    %v5822 = vpack.c.b16 %v5792, %v5791
    %v5823 = vpack.c.b16 %v5794, %v5793
    %v5824 = vpack.c.b16 %v5796, %v5795
    %v5825 = vpack.c.b16 %v5798, %v5797
    %v5826 = vpack.c.b16 %v5800, %v5799
    %v5827 = vpack.c.b16 %v5802, %v5801
    %v5828 = vpack.c.b16 %v5804, %v5803
    %v5829 = vpack.c.b16 %v5806, %v5805
    %v5830 = vpack.c.b16 %v5808, %v5807
    %v5831 = vpack.c.b16 %v5810, %v5809
    %v5832 = vpack.c.b16 %v5812, %v5811
    %v5833 = vpack.c.b16 %v5814, %v5813
    %v5834 = vpack.c.b16 %v5816, %v5815
    %v5835 = vpack.c.b16 %v5818, %v5817
    %v5836 = vpack.c.b16 %v5820, %v5819
    %5853 = vmatpush.bf16.msra.mxu0 %v5828
    %5854 = vmatpush.bf16.msra.mxu0 %v5827
    %5855 = vmatpush.bf16.msra.mxu0 %v5826
    %5856 = vmatpush.bf16.msra.mxu0 %v5825
    %5857 = vmatpush.bf16.msra.mxu0 %v5824
    %5858 = vmatpush.bf16.msra.mxu0 %v5823
    %5859 = vmatpush.bf16.msra.mxu0 %v5822
    %5860 = vmatpush.bf16.msra.mxu0 %v5821
    %5861 = vmatmul.bf16.gmra.mxu0 %v5711
    %v5862 = vpop.f32.mrf.mxu0
    %v5863 = vadd.f32 %v5755, %v5862
    %v5864 = vpop.f32.mrf.mxu0
    %v5865 = vadd.f32 %v5755, %v5864
    %5866 = vmatmul.bf16.gmra.mxu0 %v5713
    %v5867 = vpop.f32.mrf.mxu0
    %v5868 = vadd.f32 %v5755, %v5867
    %v5869 = vpop.f32.mrf.mxu0
    %v5870 = vadd.f32 %v5755, %v5869
    %5871 = vmatmul.bf16.gmra.mxu0 %v5715
    %v5872 = vpop.f32.mrf.mxu0
    %v5873 = vadd.f32 %v5755, %v5872
    %v5874 = vpop.f32.mrf.mxu0
    %v5875 = vadd.f32 %v5755, %v5874
    %5876 = vmatmul.bf16.gmra.mxu0 %v5717
    %v5877 = vpop.f32.mrf.mxu0
    %v5878 = vadd.f32 %v5755, %v5877
    %v5879 = vpop.f32.mrf.mxu0
    %v5880 = vadd.f32 %v5755, %v5879
    %5881 = vmatmul.bf16.gmra.mxu0 %v5719
    %v5882 = vpop.f32.mrf.mxu0
    %v5883 = vadd.f32 %v5755, %v5882
    %v5884 = vpop.f32.mrf.mxu0
    %v5885 = vadd.f32 %v5755, %v5884
    %5886 = vdwg.mxu0
    %5887 = vmatpush.bf16.msra.mxu0 %v5836
    %5888 = vmatpush.bf16.msra.mxu0 %v5835
    %5889 = vmatpush.bf16.msra.mxu0 %v5834
    %5890 = vmatpush.bf16.msra.mxu0 %v5833
    %5891 = vmatpush.bf16.msra.mxu0 %v5832
    %5892 = vmatpush.bf16.msra.mxu0 %v5831
    %5893 = vmatpush.bf16.msra.mxu0 %v5830
    %5894 = vmatpush.bf16.msra.mxu0 %v5829
    %5895 = vmatmul.bf16.gmra.mxu0 %v5712
    %v5896 = vpop.f32.mrf.mxu0
    %v5897 = vadd.f32 %v5863, %v5896
    %v5898 = vpop.f32.mrf.mxu0
    %v5899 = vadd.f32 %v5865, %v5898
    %5900 = vmatmul.bf16.gmra.mxu0 %v5714
    %v5901 = vpop.f32.mrf.mxu0
    %v5902 = vadd.f32 %v5868, %v5901
    %v5903 = vpop.f32.mrf.mxu0
    %v5904 = vadd.f32 %v5870, %v5903
    %5905 = vmatmul.bf16.gmra.mxu0 %v5716
    %v5906 = vpop.f32.mrf.mxu0
    %v5907 = vadd.f32 %v5873, %v5906
    %v5908 = vpop.f32.mrf.mxu0
    %v5909 = vadd.f32 %v5875, %v5908
    %5910 = vmatmul.bf16.gmra.mxu0 %v5718
    %v5911 = vpop.f32.mrf.mxu0
    %v5912 = vadd.f32 %v5878, %v5911
    %v5913 = vpop.f32.mrf.mxu0
    %v5914 = vadd.f32 %v5880, %v5913
    %5915 = vmatmul.bf16.gmra.mxu0 %v5720
    %v5916 = vpop.f32.mrf.mxu0
    %v5917 = vadd.f32 %v5883, %v5916
    %v5918 = vpop.f32.mrf.mxu0
    %v5919 = vadd.f32 %v5885, %v5918
    %5920 = vdwg.mxu0
    %v5921 = vadd.f32 %v4878, %v5897
    %v5922 = vadd.f32 %v4879, %v5899
    %v5923 = vadd.f32 %v4880, %v5902
    %v5924 = vadd.f32 %v4881, %v5904
    %v5925 = vadd.f32 %v4882, %v5907
    %v5926 = vadd.f32 %v4883, %v5909
    %v5927 = vadd.f32 %v4884, %v5912
    %v5928 = vadd.f32 %v4885, %v5914
    %v5929 = vadd.f32 %v4886, %v5917
    %v5930 = vadd.f32 %v4887, %v5919
    %s5931 = scalar_lea.vmem %s5, 1
    %v5932 = vld [vmem:[%s5931] sm:$0x1]
    %s5933 = scalar_lea.vmem %s6, 1
    %v5934 = vld [vmem:[%s5933] sm:$0x1]
    %5935 = vadd.xlane.f32.xlu0 %v5921
    %v5936 = vpop.xlane.xlu0 %5935
    %5937 = vadd.xlane.f32.xlu0 %v5922
    %v5938 = vpop.xlane.xlu0 %5937
    %5939 = vadd.xlane.f32.xlu0 %v5923
    %v5940 = vpop.xlane.xlu0 %5939
    %5941 = vadd.xlane.f32.xlu0 %v5924
    %v5942 = vpop.xlane.xlu0 %5941
    %5943 = vadd.xlane.f32.xlu0 %v5925
    %v5944 = vpop.xlane.xlu0 %5943
    %5945 = vadd.xlane.f32.xlu0 %v5926
    %v5946 = vpop.xlane.xlu0 %5945
    %5947 = vadd.xlane.f32.xlu0 %v5927
    %v5948 = vpop.xlane.xlu0 %5947
    %5949 = vadd.xlane.f32.xlu0 %v5928
    %v5950 = vpop.xlane.xlu0 %5949
    %5951 = vadd.xlane.f32.xlu0 %v5929
    %v5952 = vpop.xlane.xlu0 %5951
    %5953 = vadd.xlane.f32.xlu0 %v5930
    %v5954 = vpop.xlane.xlu0 %5953
    %v5955 = vmul.f32 %v5936, %v380
    %v5956 = vmul.f32 %v5938, %v380
    %v5957 = vmul.f32 %v5940, %v380
    %v5958 = vmul.f32 %v5942, %v380
    %v5959 = vmul.f32 %v5944, %v380
    %v5960 = vmul.f32 %v5946, %v380
    %v5961 = vmul.f32 %v5948, %v380
    %v5962 = vmul.f32 %v5950, %v380
    %v5963 = vmul.f32 %v5952, %v380
    %v5964 = vmul.f32 %v5954, %v380
    %v5965 = vsub.f32 %v5921, %v5955
    %v5966 = vsub.f32 %v5922, %v5956
    %v5967 = vsub.f32 %v5923, %v5957
    %v5968 = vsub.f32 %v5924, %v5958
    %v5969 = vsub.f32 %v5925, %v5959
    %v5970 = vsub.f32 %v5926, %v5960
    %v5971 = vsub.f32 %v5927, %v5961
    %v5972 = vsub.f32 %v5928, %v5962
    %v5973 = vsub.f32 %v5929, %v5963
    %v5974 = vsub.f32 %v5930, %v5964
    %v5975 = vmul.f32 %v5965, %v5965
    %v5976 = vmul.f32 %v5966, %v5966
    %v5977 = vmul.f32 %v5967, %v5967
    %v5978 = vmul.f32 %v5968, %v5968
    %v5979 = vmul.f32 %v5969, %v5969
    %v5980 = vmul.f32 %v5970, %v5970
    %v5981 = vmul.f32 %v5971, %v5971
    %v5982 = vmul.f32 %v5972, %v5972
    %v5983 = vmul.f32 %v5973, %v5973
    %v5984 = vmul.f32 %v5974, %v5974
    %5985 = vadd.xlane.f32.xlu0 %v5975
    %v5986 = vpop.xlane.xlu0 %5985
    %5987 = vadd.xlane.f32.xlu0 %v5976
    %v5988 = vpop.xlane.xlu0 %5987
    %5989 = vadd.xlane.f32.xlu0 %v5977
    %v5990 = vpop.xlane.xlu0 %5989
    %5991 = vadd.xlane.f32.xlu0 %v5978
    %v5992 = vpop.xlane.xlu0 %5991
    %5993 = vadd.xlane.f32.xlu0 %v5979
    %v5994 = vpop.xlane.xlu0 %5993
    %5995 = vadd.xlane.f32.xlu0 %v5980
    %v5996 = vpop.xlane.xlu0 %5995
    %5997 = vadd.xlane.f32.xlu0 %v5981
    %v5998 = vpop.xlane.xlu0 %5997
    %5999 = vadd.xlane.f32.xlu0 %v5982
    %v6000 = vpop.xlane.xlu0 %5999
    %6001 = vadd.xlane.f32.xlu0 %v5983
    %v6002 = vpop.xlane.xlu0 %6001
    %6003 = vadd.xlane.f32.xlu0 %v5984
    %v6004 = vpop.xlane.xlu0 %6003
    %v6005 = vmul.f32 %v5986, %v380
    %v6006 = vmul.f32 %v5988, %v380
    %v6007 = vmul.f32 %v5990, %v380
    %v6008 = vmul.f32 %v5992, %v380
    %v6009 = vmul.f32 %v5994, %v380
    %v6010 = vmul.f32 %v5996, %v380
    %v6011 = vmul.f32 %v5998, %v380
    %v6012 = vmul.f32 %v6000, %v380
    %v6013 = vmul.f32 %v6002, %v380
    %v6014 = vmul.f32 %v6004, %v380
    %v6015 = vadd.f32 %v6005, 1e-05
    %v6016 = vadd.f32 %v6006, 1e-05
    %v6017 = vadd.f32 %v6007, 1e-05
    %v6018 = vadd.f32 %v6008, 1e-05
    %v6019 = vadd.f32 %v6009, 1e-05
    %v6020 = vadd.f32 %v6010, 1e-05
    %v6021 = vadd.f32 %v6011, 1e-05
    %v6022 = vadd.f32 %v6012, 1e-05
    %v6023 = vadd.f32 %v6013, 1e-05
    %v6024 = vadd.f32 %v6014, 1e-05
    %v6025 = vrsqrt.pop %v6015
    %v6026 = vmul.f32 %v6025, %v6015
    %v6027 = vmul.f32 %v6026, %v6025
    %v6028 = vmul.f32 0.5, %v6027
    %v6029 = vsub.f32 1.5, %v6028
    %v6030 = vmul.f32 %v6025, %v6029
    %vm6031 = vweird.f32 %v6015
    %vm6032 = vweird.f32 %v6025
    %vm6033 = vmor %vm6031, %vm6032
    %v6034 = vsel %vm6033, %v6025, %v6030
    %v6035 = vrsqrt.pop %v6016
    %v6036 = vmul.f32 %v6035, %v6016
    %v6037 = vmul.f32 %v6036, %v6035
    %v6038 = vmul.f32 0.5, %v6037
    %v6039 = vsub.f32 1.5, %v6038
    %v6040 = vmul.f32 %v6035, %v6039
    %vm6041 = vweird.f32 %v6016
    %vm6042 = vweird.f32 %v6035
    %vm6043 = vmor %vm6041, %vm6042
    %v6044 = vsel %vm6043, %v6035, %v6040
    %v6045 = vrsqrt.pop %v6017
    %v6046 = vmul.f32 %v6045, %v6017
    %v6047 = vmul.f32 %v6046, %v6045
    %v6048 = vmul.f32 0.5, %v6047
    %v6049 = vsub.f32 1.5, %v6048
    %v6050 = vmul.f32 %v6045, %v6049
    %vm6051 = vweird.f32 %v6017
    %vm6052 = vweird.f32 %v6045
    %vm6053 = vmor %vm6051, %vm6052
    %v6054 = vsel %vm6053, %v6045, %v6050
    %v6055 = vrsqrt.pop %v6018
    %v6056 = vmul.f32 %v6055, %v6018
    %v6057 = vmul.f32 %v6056, %v6055
    %v6058 = vmul.f32 0.5, %v6057
    %v6059 = vsub.f32 1.5, %v6058
    %v6060 = vmul.f32 %v6055, %v6059
    %vm6061 = vweird.f32 %v6018
    %vm6062 = vweird.f32 %v6055
    %vm6063 = vmor %vm6061, %vm6062
    %v6064 = vsel %vm6063, %v6055, %v6060
    %v6065 = vrsqrt.pop %v6019
    %v6066 = vmul.f32 %v6065, %v6019
    %v6067 = vmul.f32 %v6066, %v6065
    %v6068 = vmul.f32 0.5, %v6067
    %v6069 = vsub.f32 1.5, %v6068
    %v6070 = vmul.f32 %v6065, %v6069
    %vm6071 = vweird.f32 %v6019
    %vm6072 = vweird.f32 %v6065
    %vm6073 = vmor %vm6071, %vm6072
    %v6074 = vsel %vm6073, %v6065, %v6070
    %v6075 = vrsqrt.pop %v6020
    %v6076 = vmul.f32 %v6075, %v6020
    %v6077 = vmul.f32 %v6076, %v6075
    %v6078 = vmul.f32 0.5, %v6077
    %v6079 = vsub.f32 1.5, %v6078
    %v6080 = vmul.f32 %v6075, %v6079
    %vm6081 = vweird.f32 %v6020
    %vm6082 = vweird.f32 %v6075
    %vm6083 = vmor %vm6081, %vm6082
    %v6084 = vsel %vm6083, %v6075, %v6080
    %v6085 = vrsqrt.pop %v6021
    %v6086 = vmul.f32 %v6085, %v6021
    %v6087 = vmul.f32 %v6086, %v6085
    %v6088 = vmul.f32 0.5, %v6087
    %v6089 = vsub.f32 1.5, %v6088
    %v6090 = vmul.f32 %v6085, %v6089
    %vm6091 = vweird.f32 %v6021
    %vm6092 = vweird.f32 %v6085
    %vm6093 = vmor %vm6091, %vm6092
    %v6094 = vsel %vm6093, %v6085, %v6090
    %v6095 = vrsqrt.pop %v6022
    %v6096 = vmul.f32 %v6095, %v6022
    %v6097 = vmul.f32 %v6096, %v6095
    %v6098 = vmul.f32 0.5, %v6097
    %v6099 = vsub.f32 1.5, %v6098
    %v6100 = vmul.f32 %v6095, %v6099
    %vm6101 = vweird.f32 %v6022
    %vm6102 = vweird.f32 %v6095
    %vm6103 = vmor %vm6101, %vm6102
    %v6104 = vsel %vm6103, %v6095, %v6100
    %v6105 = vrsqrt.pop %v6023
    %v6106 = vmul.f32 %v6105, %v6023
    %v6107 = vmul.f32 %v6106, %v6105
    %v6108 = vmul.f32 0.5, %v6107
    %v6109 = vsub.f32 1.5, %v6108
    %v6110 = vmul.f32 %v6105, %v6109
    %vm6111 = vweird.f32 %v6023
    %vm6112 = vweird.f32 %v6105
    %vm6113 = vmor %vm6111, %vm6112
    %v6114 = vsel %vm6113, %v6105, %v6110
    %v6115 = vrsqrt.pop %v6024
    %v6116 = vmul.f32 %v6115, %v6024
    %v6117 = vmul.f32 %v6116, %v6115
    %v6118 = vmul.f32 0.5, %v6117
    %v6119 = vsub.f32 1.5, %v6118
    %v6120 = vmul.f32 %v6115, %v6119
    %vm6121 = vweird.f32 %v6024
    %vm6122 = vweird.f32 %v6115
    %vm6123 = vmor %vm6121, %vm6122
    %v6124 = vsel %vm6123, %v6115, %v6120
    %v6125 = vmul.f32 %v5965, %v6034
    %v6126 = vmul.f32 %v5966, %v6044
    %v6127 = vmul.f32 %v5967, %v6054
    %v6128 = vmul.f32 %v5968, %v6064
    %v6129 = vmul.f32 %v5969, %v6074
    %v6130 = vmul.f32 %v5970, %v6084
    %v6131 = vmul.f32 %v5971, %v6094
    %v6132 = vmul.f32 %v5972, %v6104
    %v6133 = vmul.f32 %v5973, %v6114
    %v6134 = vmul.f32 %v5974, %v6124
    %v6136 = vperm.slane %v5932, 0
    %v6138 = vmul.f32 %v6125, %v6136
    %v6139 = vmul.f32 %v6126, %v6136
    %v6140 = vmul.f32 %v6127, %v6136
    %v6141 = vmul.f32 %v6128, %v6136
    %v6142 = vmul.f32 %v6129, %v6136
    %v6143 = vmul.f32 %v6130, %v6136
    %v6144 = vmul.f32 %v6131, %v6136
    %v6145 = vmul.f32 %v6132, %v6136
    %v6146 = vmul.f32 %v6133, %v6136
    %v6147 = vmul.f32 %v6134, %v6136
    %v6149 = vperm.slane %v5934, 0
    %v6151 = vadd.f32 %v6138, %v6149
    %v6152 = vadd.f32 %v6139, %v6149
    %v6153 = vadd.f32 %v6140, %v6149
    %v6154 = vadd.f32 %v6141, %v6149
    %v6155 = vadd.f32 %v6142, %v6149
    %v6156 = vadd.f32 %v6143, %v6149
    %v6157 = vadd.f32 %v6144, %v6149
    %v6158 = vadd.f32 %v6145, %v6149
    %v6159 = vadd.f32 %v6146, %v6149
    %v6160 = vadd.f32 %v6147, %v6149
    %v6161 = vpack.c.bf16 %v6152, %v6151
    %v6162 = vpack.c.bf16 %v6154, %v6153
    %v6163 = vpack.c.bf16 %v6156, %v6155
    %v6164 = vpack.c.bf16 %v6158, %v6157
    %v6165 = vpack.c.bf16 %v6160, %v6159
    %s6166 = scalar_lea.vmem %s7, 128
    %v6167 = vld [vmem:[%s6166] sm:$0xf]
    %v6168 = vld [vmem:[%s6166 + $0x4] sm:$0xf]
    %v6169 = vld [vmem:[%s6166 + $0x8] sm:$0xf]
    %v6170 = vld [vmem:[%s6166 + $0xc] sm:$0xf]
    %v6171 = vld [vmem:[%s6166 + $0x10] sm:$0xf]
    %v6172 = vld [vmem:[%s6166 + $0x14] sm:$0xf]
    %v6173 = vld [vmem:[%s6166 + $0x18] sm:$0xf]
    %v6174 = vld [vmem:[%s6166 + $0x1c] sm:$0xf]
    %v6175 = vld [vmem:[%s6166 + $0x20] sm:$0xf]
    %v6176 = vld [vmem:[%s6166 + $0x24] sm:$0xf]
    %v6177 = vld [vmem:[%s6166 + $0x28] sm:$0xf]
    %v6178 = vld [vmem:[%s6166 + $0x2c] sm:$0xf]
    %v6179 = vld [vmem:[%s6166 + $0x30] sm:$0xf]
    %v6180 = vld [vmem:[%s6166 + $0x34] sm:$0xf]
    %v6181 = vld [vmem:[%s6166 + $0x38] sm:$0xf]
    %v6182 = vld [vmem:[%s6166 + $0x3c] sm:$0xf]
    %s6183 = scalar_lea.vmem %s8, 2
    %v6184 = vld [vmem:[%s6183] sm:$0x1]
    %v6186 = vperm.slane %v6184, 0
    %v6204 = vunpack.c.l.b16 %v6167
    %v6205 = vunpack.c.l.b16 %v6168
    %v6206 = vunpack.c.l.b16 %v6169
    %v6207 = vunpack.c.l.b16 %v6170
    %v6208 = vunpack.c.l.b16 %v6171
    %v6209 = vunpack.c.l.b16 %v6172
    %v6210 = vunpack.c.l.b16 %v6173
    %v6211 = vunpack.c.l.b16 %v6174
    %v6212 = vunpack.c.l.b16 %v6175
    %v6213 = vunpack.c.l.b16 %v6176
    %v6214 = vunpack.c.l.b16 %v6177
    %v6215 = vunpack.c.l.b16 %v6178
    %v6216 = vunpack.c.l.b16 %v6179
    %v6217 = vunpack.c.l.b16 %v6180
    %v6218 = vunpack.c.l.b16 %v6181
    %v6219 = vunpack.c.l.b16 %v6182
    %v6220 = vpack.c.b16 %v6205, %v6204
    %v6221 = vpack.c.b16 %v6207, %v6206
    %v6222 = vpack.c.b16 %v6209, %v6208
    %v6223 = vpack.c.b16 %v6211, %v6210
    %v6224 = vpack.c.b16 %v6213, %v6212
    %v6225 = vpack.c.b16 %v6215, %v6214
    %v6226 = vpack.c.b16 %v6217, %v6216
    %v6227 = vpack.c.b16 %v6219, %v6218
    %6236 = vmatpush.bf16.msra.mxu0 %v6227
    %6237 = vmatpush.bf16.msra.mxu0 %v6226
    %6238 = vmatpush.bf16.msra.mxu0 %v6225
    %6239 = vmatpush.bf16.msra.mxu0 %v6224
    %6240 = vmatpush.bf16.msra.mxu0 %v6223
    %6241 = vmatpush.bf16.msra.mxu0 %v6222
    %6242 = vmatpush.bf16.msra.mxu0 %v6221
    %6243 = vmatpush.bf16.msra.mxu0 %v6220
    %6244 = vmatmul.bf16.gmra.mxu0 %v6161
    %v6245 = vpop.f32.mrf.mxu0
    %v6246 = vadd.f32 %v6186, %v6245
    %v6247 = vpop.f32.mrf.mxu0
    %v6248 = vadd.f32 %v6186, %v6247
    %6249 = vmatmul.bf16.gmra.mxu0 %v6162
    %v6250 = vpop.f32.mrf.mxu0
    %v6251 = vadd.f32 %v6186, %v6250
    %v6252 = vpop.f32.mrf.mxu0
    %v6253 = vadd.f32 %v6186, %v6252
    %6254 = vmatmul.bf16.gmra.mxu0 %v6163
    %v6255 = vpop.f32.mrf.mxu0
    %v6256 = vadd.f32 %v6186, %v6255
    %v6257 = vpop.f32.mrf.mxu0
    %v6258 = vadd.f32 %v6186, %v6257
    %6259 = vmatmul.bf16.gmra.mxu0 %v6164
    %v6260 = vpop.f32.mrf.mxu0
    %v6261 = vadd.f32 %v6186, %v6260
    %v6262 = vpop.f32.mrf.mxu0
    %v6263 = vadd.f32 %v6186, %v6262
    %6264 = vmatmul.bf16.gmra.mxu0 %v6165
    %v6265 = vpop.f32.mrf.mxu0
    %v6266 = vadd.f32 %v6186, %v6265
    %v6267 = vpop.f32.mrf.mxu0
    %v6268 = vadd.f32 %v6186, %v6267
    %6269 = vdwg.mxu0
    %s6270 = scalar_lea.vmem %s9, 128
    %v6271 = vld [vmem:[%s6270] sm:$0xf]
    %v6272 = vld [vmem:[%s6270 + $0x4] sm:$0xf]
    %v6273 = vld [vmem:[%s6270 + $0x8] sm:$0xf]
    %v6274 = vld [vmem:[%s6270 + $0xc] sm:$0xf]
    %v6275 = vld [vmem:[%s6270 + $0x10] sm:$0xf]
    %v6276 = vld [vmem:[%s6270 + $0x14] sm:$0xf]
    %v6277 = vld [vmem:[%s6270 + $0x18] sm:$0xf]
    %v6278 = vld [vmem:[%s6270 + $0x1c] sm:$0xf]
    %v6279 = vld [vmem:[%s6270 + $0x20] sm:$0xf]
    %v6280 = vld [vmem:[%s6270 + $0x24] sm:$0xf]
    %v6281 = vld [vmem:[%s6270 + $0x28] sm:$0xf]
    %v6282 = vld [vmem:[%s6270 + $0x2c] sm:$0xf]
    %v6283 = vld [vmem:[%s6270 + $0x30] sm:$0xf]
    %v6284 = vld [vmem:[%s6270 + $0x34] sm:$0xf]
    %v6285 = vld [vmem:[%s6270 + $0x38] sm:$0xf]
    %v6286 = vld [vmem:[%s6270 + $0x3c] sm:$0xf]
    %s6287 = scalar_lea.vmem %s10, 2
    %v6288 = vld [vmem:[%s6287] sm:$0x1]
    %v6290 = vperm.slane %v6288, 0
    %v6308 = vunpack.c.l.b16 %v6271
    %v6309 = vunpack.c.l.b16 %v6272
    %v6310 = vunpack.c.l.b16 %v6273
    %v6311 = vunpack.c.l.b16 %v6274
    %v6312 = vunpack.c.l.b16 %v6275
    %v6313 = vunpack.c.l.b16 %v6276
    %v6314 = vunpack.c.l.b16 %v6277
    %v6315 = vunpack.c.l.b16 %v6278
    %v6316 = vunpack.c.l.b16 %v6279
    %v6317 = vunpack.c.l.b16 %v6280
    %v6318 = vunpack.c.l.b16 %v6281
    %v6319 = vunpack.c.l.b16 %v6282
    %v6320 = vunpack.c.l.b16 %v6283
    %v6321 = vunpack.c.l.b16 %v6284
    %v6322 = vunpack.c.l.b16 %v6285
    %v6323 = vunpack.c.l.b16 %v6286
    %v6324 = vpack.c.b16 %v6309, %v6308
    %v6325 = vpack.c.b16 %v6311, %v6310
    %v6326 = vpack.c.b16 %v6313, %v6312
    %v6327 = vpack.c.b16 %v6315, %v6314
    %v6328 = vpack.c.b16 %v6317, %v6316
    %v6329 = vpack.c.b16 %v6319, %v6318
    %v6330 = vpack.c.b16 %v6321, %v6320
    %v6331 = vpack.c.b16 %v6323, %v6322
    %6340 = vmatpush.bf16.msra.mxu0 %v6331
    %6341 = vmatpush.bf16.msra.mxu0 %v6330
    %6342 = vmatpush.bf16.msra.mxu0 %v6329
    %6343 = vmatpush.bf16.msra.mxu0 %v6328
    %6344 = vmatpush.bf16.msra.mxu0 %v6327
    %6345 = vmatpush.bf16.msra.mxu0 %v6326
    %6346 = vmatpush.bf16.msra.mxu0 %v6325
    %6347 = vmatpush.bf16.msra.mxu0 %v6324
    %6348 = vmatmul.bf16.gmra.mxu0 %v6161
    %v6349 = vpop.f32.mrf.mxu0
    %v6350 = vadd.f32 %v6290, %v6349
    %v6351 = vpop.f32.mrf.mxu0
    %v6352 = vadd.f32 %v6290, %v6351
    %6353 = vmatmul.bf16.gmra.mxu0 %v6162
    %v6354 = vpop.f32.mrf.mxu0
    %v6355 = vadd.f32 %v6290, %v6354
    %v6356 = vpop.f32.mrf.mxu0
    %v6357 = vadd.f32 %v6290, %v6356
    %6358 = vmatmul.bf16.gmra.mxu0 %v6163
    %v6359 = vpop.f32.mrf.mxu0
    %v6360 = vadd.f32 %v6290, %v6359
    %v6361 = vpop.f32.mrf.mxu0
    %v6362 = vadd.f32 %v6290, %v6361
    %6363 = vmatmul.bf16.gmra.mxu0 %v6164
    %v6364 = vpop.f32.mrf.mxu0
    %v6365 = vadd.f32 %v6290, %v6364
    %v6366 = vpop.f32.mrf.mxu0
    %v6367 = vadd.f32 %v6290, %v6366
    %6368 = vmatmul.bf16.gmra.mxu0 %v6165
    %v6369 = vpop.f32.mrf.mxu0
    %v6370 = vadd.f32 %v6290, %v6369
    %v6371 = vpop.f32.mrf.mxu0
    %v6372 = vadd.f32 %v6290, %v6371
    %6373 = vdwg.mxu0
    %s6374 = scalar_lea.vmem %s11, 128
    %v6375 = vld [vmem:[%s6374] sm:$0xf]
    %v6376 = vld [vmem:[%s6374 + $0x4] sm:$0xf]
    %v6377 = vld [vmem:[%s6374 + $0x8] sm:$0xf]
    %v6378 = vld [vmem:[%s6374 + $0xc] sm:$0xf]
    %v6379 = vld [vmem:[%s6374 + $0x10] sm:$0xf]
    %v6380 = vld [vmem:[%s6374 + $0x14] sm:$0xf]
    %v6381 = vld [vmem:[%s6374 + $0x18] sm:$0xf]
    %v6382 = vld [vmem:[%s6374 + $0x1c] sm:$0xf]
    %v6383 = vld [vmem:[%s6374 + $0x20] sm:$0xf]
    %v6384 = vld [vmem:[%s6374 + $0x24] sm:$0xf]
    %v6385 = vld [vmem:[%s6374 + $0x28] sm:$0xf]
    %v6386 = vld [vmem:[%s6374 + $0x2c] sm:$0xf]
    %v6387 = vld [vmem:[%s6374 + $0x30] sm:$0xf]
    %v6388 = vld [vmem:[%s6374 + $0x34] sm:$0xf]
    %v6389 = vld [vmem:[%s6374 + $0x38] sm:$0xf]
    %v6390 = vld [vmem:[%s6374 + $0x3c] sm:$0xf]
    %s6391 = scalar_lea.vmem %s12, 2
    %v6392 = vld [vmem:[%s6391] sm:$0x1]
    %v6394 = vperm.slane %v6392, 0
    %v6412 = vunpack.c.l.b16 %v6375
    %v6413 = vunpack.c.l.b16 %v6376
    %v6414 = vunpack.c.l.b16 %v6377
    %v6415 = vunpack.c.l.b16 %v6378
    %v6416 = vunpack.c.l.b16 %v6379
    %v6417 = vunpack.c.l.b16 %v6380
    %v6418 = vunpack.c.l.b16 %v6381
    %v6419 = vunpack.c.l.b16 %v6382
    %v6420 = vunpack.c.l.b16 %v6383
    %v6421 = vunpack.c.l.b16 %v6384
    %v6422 = vunpack.c.l.b16 %v6385
    %v6423 = vunpack.c.l.b16 %v6386
    %v6424 = vunpack.c.l.b16 %v6387
    %v6425 = vunpack.c.l.b16 %v6388
    %v6426 = vunpack.c.l.b16 %v6389
    %v6427 = vunpack.c.l.b16 %v6390
    %v6428 = vpack.c.b16 %v6413, %v6412
    %v6429 = vpack.c.b16 %v6415, %v6414
    %v6430 = vpack.c.b16 %v6417, %v6416
    %v6431 = vpack.c.b16 %v6419, %v6418
    %v6432 = vpack.c.b16 %v6421, %v6420
    %v6433 = vpack.c.b16 %v6423, %v6422
    %v6434 = vpack.c.b16 %v6425, %v6424
    %v6435 = vpack.c.b16 %v6427, %v6426
    %6444 = vmatpush.bf16.msra.mxu0 %v6435
    %6445 = vmatpush.bf16.msra.mxu0 %v6434
    %6446 = vmatpush.bf16.msra.mxu0 %v6433
    %6447 = vmatpush.bf16.msra.mxu0 %v6432
    %6448 = vmatpush.bf16.msra.mxu0 %v6431
    %6449 = vmatpush.bf16.msra.mxu0 %v6430
    %6450 = vmatpush.bf16.msra.mxu0 %v6429
    %6451 = vmatpush.bf16.msra.mxu0 %v6428
    %6452 = vmatmul.bf16.gmra.mxu0 %v6161
    %v6453 = vpop.f32.mrf.mxu0
    %v6454 = vadd.f32 %v6394, %v6453
    %v6455 = vpop.f32.mrf.mxu0
    %v6456 = vadd.f32 %v6394, %v6455
    %6457 = vmatmul.bf16.gmra.mxu0 %v6162
    %v6458 = vpop.f32.mrf.mxu0
    %v6459 = vadd.f32 %v6394, %v6458
    %v6460 = vpop.f32.mrf.mxu0
    %v6461 = vadd.f32 %v6394, %v6460
    %6462 = vmatmul.bf16.gmra.mxu0 %v6163
    %v6463 = vpop.f32.mrf.mxu0
    %v6464 = vadd.f32 %v6394, %v6463
    %v6465 = vpop.f32.mrf.mxu0
    %v6466 = vadd.f32 %v6394, %v6465
    %6467 = vmatmul.bf16.gmra.mxu0 %v6164
    %v6468 = vpop.f32.mrf.mxu0
    %v6469 = vadd.f32 %v6394, %v6468
    %v6470 = vpop.f32.mrf.mxu0
    %v6471 = vadd.f32 %v6394, %v6470
    %6472 = vmatmul.bf16.gmra.mxu0 %v6165
    %v6473 = vpop.f32.mrf.mxu0
    %v6474 = vadd.f32 %v6394, %v6473
    %v6475 = vpop.f32.mrf.mxu0
    %v6476 = vadd.f32 %v6394, %v6475
    %6477 = vdwg.mxu0
    %v6488 = vrot.slane %v6246, 1
    %v6489 = vrot.slane %v6246, 2
    %v6490 = vrot.slane %v6246, 3
    %v6491 = vrot.slane %v6246, 4
    %v6492 = vrot.slane %v6246, 5
    %v6493 = vrot.slane %v6246, 6
    %v6494 = vrot.slane %v6246, 7
    %v6495 = vrot.slane %v6248, 1
    %v6496 = vrot.slane %v6248, 2
    %v6497 = vrot.slane %v6248, 3
    %v6498 = vrot.slane %v6248, 4
    %v6499 = vrot.slane %v6248, 5
    %v6500 = vrot.slane %v6248, 6
    %v6501 = vrot.slane %v6248, 7
    %v6502 = vrot.slane %v6251, 1
    %v6503 = vrot.slane %v6251, 2
    %v6504 = vrot.slane %v6251, 3
    %v6505 = vrot.slane %v6251, 4
    %v6506 = vrot.slane %v6251, 5
    %v6507 = vrot.slane %v6251, 6
    %v6508 = vrot.slane %v6251, 7
    %v6509 = vrot.slane %v6253, 1
    %v6510 = vrot.slane %v6253, 2
    %v6511 = vrot.slane %v6253, 3
    %v6512 = vrot.slane %v6253, 4
    %v6513 = vrot.slane %v6253, 5
    %v6514 = vrot.slane %v6253, 6
    %v6515 = vrot.slane %v6253, 7
    %v6516 = vrot.slane %v6256, 1
    %v6517 = vrot.slane %v6256, 2
    %v6518 = vrot.slane %v6256, 3
    %v6519 = vrot.slane %v6256, 4
    %v6520 = vrot.slane %v6256, 5
    %v6521 = vrot.slane %v6256, 6
    %v6522 = vrot.slane %v6256, 7
    %v6523 = vrot.slane %v6258, 1
    %v6524 = vrot.slane %v6258, 2
    %v6525 = vrot.slane %v6258, 3
    %v6526 = vrot.slane %v6258, 4
    %v6527 = vrot.slane %v6258, 5
    %v6528 = vrot.slane %v6258, 6
    %v6529 = vrot.slane %v6258, 7
    %v6530 = vrot.slane %v6261, 1
    %v6531 = vrot.slane %v6261, 2
    %v6532 = vrot.slane %v6261, 3
    %v6533 = vrot.slane %v6261, 4
    %v6534 = vrot.slane %v6261, 5
    %v6535 = vrot.slane %v6261, 6
    %v6536 = vrot.slane %v6261, 7
    %v6537 = vrot.slane %v6263, 1
    %v6538 = vrot.slane %v6263, 2
    %v6539 = vrot.slane %v6263, 3
    %v6540 = vrot.slane %v6263, 4
    %v6541 = vrot.slane %v6263, 5
    %v6542 = vrot.slane %v6263, 6
    %v6543 = vrot.slane %v6263, 7
    %v6544 = vrot.slane %v6266, 1
    %v6545 = vrot.slane %v6266, 2
    %v6546 = vrot.slane %v6266, 3
    %v6547 = vrot.slane %v6266, 4
    %v6548 = vrot.slane %v6266, 5
    %v6549 = vrot.slane %v6266, 6
    %v6550 = vrot.slane %v6266, 7
    %v6551 = vrot.slane %v6268, 1
    %v6552 = vrot.slane %v6268, 2
    %v6553 = vrot.slane %v6268, 3
    %v6554 = vrot.slane %v6268, 4
    %v6555 = vrot.slane %v6268, 5
    %v6556 = vrot.slane %v6268, 6
    %v6557 = vrot.slane %v6268, 7
    %6558 = vst [vmem:[#allocation1] ss:$9 sm:$0xff] %v6246
    %s6559 = scalar_lea.vmem [#allocation1], 1
    %6560 = vst [vmem:[%s6559] ss:$9 sm:$0xff] %v6488
    %s6561 = scalar_lea.vmem [#allocation1], 2
    %6562 = vst [vmem:[%s6561] ss:$9 sm:$0xff] %v6489
    %s6563 = scalar_lea.vmem [#allocation1], 3
    %6564 = vst [vmem:[%s6563] ss:$9 sm:$0xff] %v6490
    %s6565 = scalar_lea.vmem [#allocation1], 4
    %6566 = vst [vmem:[%s6565] ss:$9 sm:$0xff] %v6491
    %v6567 = vld [vmem:[#allocation1] sm:$0xff]
    %6568 = vst [vmem:[#allocation1] ss:$9 sm:$0xff] %v6492
    %6569 = vst [vmem:[%s6559] ss:$9 sm:$0xff] %v6493
    %6570 = vst [vmem:[%s6561] ss:$9 sm:$0xff] %v6494
    %6571 = vst [vmem:[%s6563] ss:$9 sm:$0xff] %v6248
    %6572 = vst [vmem:[%s6565] ss:$9 sm:$0xff] %v6495
    %v6573 = vld [vmem:[#allocation1] sm:$0xff]
    %6574 = vst [vmem:[#allocation1] ss:$9 sm:$0xff] %v6496
    %6575 = vst [vmem:[%s6559] ss:$9 sm:$0xff] %v6497
    %6576 = vst [vmem:[%s6561] ss:$9 sm:$0xff] %v6498
    %6577 = vst [vmem:[%s6563] ss:$9 sm:$0xff] %v6499
    %6578 = vst [vmem:[%s6565] ss:$9 sm:$0xff] %v6500
    %v6579 = vld [vmem:[#allocation1] sm:$0xff]
    %6580 = vst [vmem:[#allocation1] ss:$9 sm:$0xff] %v6501
    %6581 = vst [vmem:[%s6559] ss:$9 sm:$0xff] %v6251
    %6582 = vst [vmem:[%s6561] ss:$9 sm:$0xff] %v6502
    %6583 = vst [vmem:[%s6563] ss:$9 sm:$0xff] %v6503
    %6584 = vst [vmem:[%s6565] ss:$9 sm:$0xff] %v6504
    %v6585 = vld [vmem:[#allocation1] sm:$0xff]
    %6586 = vst [vmem:[#allocation1] ss:$9 sm:$0xff] %v6505
    %6587 = vst [vmem:[%s6559] ss:$9 sm:$0xff] %v6506
    %6588 = vst [vmem:[%s6561] ss:$9 sm:$0xff] %v6507
    %6589 = vst [vmem:[%s6563] ss:$9 sm:$0xff] %v6508
    %6590 = vst [vmem:[%s6565] ss:$9 sm:$0xff] %v6253
    %v6591 = vld [vmem:[#allocation1] sm:$0xff]
    %6592 = vst [vmem:[#allocation1] ss:$9 sm:$0xff] %v6509
    %6593 = vst [vmem:[%s6559] ss:$9 sm:$0xff] %v6510
    %6594 = vst [vmem:[%s6561] ss:$9 sm:$0xff] %v6511
    %6595 = vst [vmem:[%s6563] ss:$9 sm:$0xff] %v6512
    %6596 = vst [vmem:[%s6565] ss:$9 sm:$0xff] %v6513
    %v6597 = vld [vmem:[#allocation1] sm:$0xff]
    %6598 = vst [vmem:[#allocation1] ss:$9 sm:$0xff] %v6514
    %6599 = vst [vmem:[%s6559] ss:$9 sm:$0xff] %v6515
    %6600 = vst [vmem:[%s6561] ss:$9 sm:$0xff] %v6256
    %6601 = vst [vmem:[%s6563] ss:$9 sm:$0xff] %v6516
    %6602 = vst [vmem:[%s6565] ss:$9 sm:$0xff] %v6517
    %v6603 = vld [vmem:[#allocation1] sm:$0xff]
    %6604 = vst [vmem:[#allocation1] ss:$9 sm:$0xff] %v6518
    %6605 = vst [vmem:[%s6559] ss:$9 sm:$0xff] %v6519
    %6606 = vst [vmem:[%s6561] ss:$9 sm:$0xff] %v6520
    %6607 = vst [vmem:[%s6563] ss:$9 sm:$0xff] %v6521
    %6608 = vst [vmem:[%s6565] ss:$9 sm:$0xff] %v6522
    %v6609 = vld [vmem:[#allocation1] sm:$0xff]
    %6610 = vst [vmem:[#allocation1] ss:$9 sm:$0xff] %v6258
    %6611 = vst [vmem:[%s6559] ss:$9 sm:$0xff] %v6523
    %6612 = vst [vmem:[%s6561] ss:$9 sm:$0xff] %v6524
    %6613 = vst [vmem:[%s6563] ss:$9 sm:$0xff] %v6525
    %6614 = vst [vmem:[%s6565] ss:$9 sm:$0xff] %v6526
    %v6615 = vld [vmem:[#allocation1] sm:$0xff]
    %6616 = vst [vmem:[#allocation1] ss:$9 sm:$0xff] %v6527
    %6617 = vst [vmem:[%s6559] ss:$9 sm:$0xff] %v6528
    %6618 = vst [vmem:[%s6561] ss:$9 sm:$0xff] %v6529
    %6619 = vst [vmem:[%s6563] ss:$9 sm:$0xff] %v6261
    %6620 = vst [vmem:[%s6565] ss:$9 sm:$0xff] %v6530
    %v6621 = vld [vmem:[#allocation1] sm:$0xff]
    %6622 = vst [vmem:[#allocation1] ss:$9 sm:$0xff] %v6531
    %6623 = vst [vmem:[%s6559] ss:$9 sm:$0xff] %v6532
    %6624 = vst [vmem:[%s6561] ss:$9 sm:$0xff] %v6533
    %6625 = vst [vmem:[%s6563] ss:$9 sm:$0xff] %v6534
    %6626 = vst [vmem:[%s6565] ss:$9 sm:$0xff] %v6535
    %v6627 = vld [vmem:[#allocation1] sm:$0xff]
    %6628 = vst [vmem:[#allocation1] ss:$9 sm:$0xff] %v6536
    %6629 = vst [vmem:[%s6559] ss:$9 sm:$0xff] %v6263
    %6630 = vst [vmem:[%s6561] ss:$9 sm:$0xff] %v6537
    %6631 = vst [vmem:[%s6563] ss:$9 sm:$0xff] %v6538
    %6632 = vst [vmem:[%s6565] ss:$9 sm:$0xff] %v6539
    %v6633 = vld [vmem:[#allocation1] sm:$0xff]
    %6634 = vst [vmem:[#allocation1] ss:$9 sm:$0xff] %v6540
    %6635 = vst [vmem:[%s6559] ss:$9 sm:$0xff] %v6541
    %6636 = vst [vmem:[%s6561] ss:$9 sm:$0xff] %v6542
    %6637 = vst [vmem:[%s6563] ss:$9 sm:$0xff] %v6543
    %6638 = vst [vmem:[%s6565] ss:$9 sm:$0xff] %v6266
    %v6639 = vld [vmem:[#allocation1] sm:$0xff]
    %6640 = vst [vmem:[#allocation1] ss:$9 sm:$0xff] %v6544
    %6641 = vst [vmem:[%s6559] ss:$9 sm:$0xff] %v6545
    %6642 = vst [vmem:[%s6561] ss:$9 sm:$0xff] %v6546
    %6643 = vst [vmem:[%s6563] ss:$9 sm:$0xff] %v6547
    %6644 = vst [vmem:[%s6565] ss:$9 sm:$0xff] %v6548
    %v6645 = vld [vmem:[#allocation1] sm:$0xff]
    %6646 = vst [vmem:[#allocation1] ss:$9 sm:$0xff] %v6549
    %6647 = vst [vmem:[%s6559] ss:$9 sm:$0xff] %v6550
    %6648 = vst [vmem:[%s6561] ss:$9 sm:$0xff] %v6268
    %6649 = vst [vmem:[%s6563] ss:$9 sm:$0xff] %v6551
    %6650 = vst [vmem:[%s6565] ss:$9 sm:$0xff] %v6552
    %v6651 = vld [vmem:[#allocation1] sm:$0xff]
    %6652 = vst [vmem:[#allocation1] ss:$9 sm:$0xff] %v6553
    %6653 = vst [vmem:[%s6559] ss:$9 sm:$0xff] %v6554
    %6654 = vst [vmem:[%s6561] ss:$9 sm:$0xff] %v6555
    %6655 = vst [vmem:[%s6563] ss:$9 sm:$0xff] %v6556
    %6656 = vst [vmem:[%s6565] ss:$9 sm:$0xff] %v6557
    %v6657 = vld [vmem:[#allocation1] sm:$0xff]
    %v6674 = vpack.c.bf16 %v6567, %v6567
    %v6675 = vpack.c.bf16 %v6573, %v6573
    %v6676 = vpack.c.bf16 %v6579, %v6579
    %v6677 = vpack.c.bf16 %v6585, %v6585
    %v6678 = vpack.c.bf16 %v6591, %v6591
    %v6679 = vpack.c.bf16 %v6597, %v6597
    %v6680 = vpack.c.bf16 %v6603, %v6603
    %v6681 = vpack.c.bf16 %v6609, %v6609
    %v6682 = vpack.c.bf16 %v6615, %v6615
    %v6683 = vpack.c.bf16 %v6621, %v6621
    %v6684 = vpack.c.bf16 %v6627, %v6627
    %v6685 = vpack.c.bf16 %v6633, %v6633
    %v6686 = vpack.c.bf16 %v6639, %v6639
    %v6687 = vpack.c.bf16 %v6645, %v6645
    %v6688 = vpack.c.bf16 %v6651, %v6651
    %v6689 = vpack.c.bf16 %v6657, %v6657
    %v6700 = vrot.slane %v6350, 1
    %v6701 = vrot.slane %v6350, 2
    %v6702 = vrot.slane %v6350, 3
    %v6703 = vrot.slane %v6350, 4
    %v6704 = vrot.slane %v6350, 5
    %v6705 = vrot.slane %v6350, 6
    %v6706 = vrot.slane %v6350, 7
    %v6707 = vrot.slane %v6352, 1
    %v6708 = vrot.slane %v6352, 2
    %v6709 = vrot.slane %v6352, 3
    %v6710 = vrot.slane %v6352, 4
    %v6711 = vrot.slane %v6352, 5
    %v6712 = vrot.slane %v6352, 6
    %v6713 = vrot.slane %v6352, 7
    %v6714 = vrot.slane %v6355, 1
    %v6715 = vrot.slane %v6355, 2
    %v6716 = vrot.slane %v6355, 3
    %v6717 = vrot.slane %v6355, 4
    %v6718 = vrot.slane %v6355, 5
    %v6719 = vrot.slane %v6355, 6
    %v6720 = vrot.slane %v6355, 7
    %v6721 = vrot.slane %v6357, 1
    %v6722 = vrot.slane %v6357, 2
    %v6723 = vrot.slane %v6357, 3
    %v6724 = vrot.slane %v6357, 4
    %v6725 = vrot.slane %v6357, 5
    %v6726 = vrot.slane %v6357, 6
    %v6727 = vrot.slane %v6357, 7
    %v6728 = vrot.slane %v6360, 1
    %v6729 = vrot.slane %v6360, 2
    %v6730 = vrot.slane %v6360, 3
    %v6731 = vrot.slane %v6360, 4
    %v6732 = vrot.slane %v6360, 5
    %v6733 = vrot.slane %v6360, 6
    %v6734 = vrot.slane %v6360, 7
    %v6735 = vrot.slane %v6362, 1
    %v6736 = vrot.slane %v6362, 2
    %v6737 = vrot.slane %v6362, 3
    %v6738 = vrot.slane %v6362, 4
    %v6739 = vrot.slane %v6362, 5
    %v6740 = vrot.slane %v6362, 6
    %v6741 = vrot.slane %v6362, 7
    %v6742 = vrot.slane %v6365, 1
    %v6743 = vrot.slane %v6365, 2
    %v6744 = vrot.slane %v6365, 3
    %v6745 = vrot.slane %v6365, 4
    %v6746 = vrot.slane %v6365, 5
    %v6747 = vrot.slane %v6365, 6
    %v6748 = vrot.slane %v6365, 7
    %v6749 = vrot.slane %v6367, 1
    %v6750 = vrot.slane %v6367, 2
    %v6751 = vrot.slane %v6367, 3
    %v6752 = vrot.slane %v6367, 4
    %v6753 = vrot.slane %v6367, 5
    %v6754 = vrot.slane %v6367, 6
    %v6755 = vrot.slane %v6367, 7
    %v6756 = vrot.slane %v6370, 1
    %v6757 = vrot.slane %v6370, 2
    %v6758 = vrot.slane %v6370, 3
    %v6759 = vrot.slane %v6370, 4
    %v6760 = vrot.slane %v6370, 5
    %v6761 = vrot.slane %v6370, 6
    %v6762 = vrot.slane %v6370, 7
    %v6763 = vrot.slane %v6372, 1
    %v6764 = vrot.slane %v6372, 2
    %v6765 = vrot.slane %v6372, 3
    %v6766 = vrot.slane %v6372, 4
    %v6767 = vrot.slane %v6372, 5
    %v6768 = vrot.slane %v6372, 6
    %v6769 = vrot.slane %v6372, 7
    %6770 = vst [vmem:[#allocation1] ss:$9 sm:$0xff] %v6350
    %s6771 = scalar_lea.vmem [#allocation1], 1
    %6772 = vst [vmem:[%s6771] ss:$9 sm:$0xff] %v6700
    %s6773 = scalar_lea.vmem [#allocation1], 2
    %6774 = vst [vmem:[%s6773] ss:$9 sm:$0xff] %v6701
    %s6775 = scalar_lea.vmem [#allocation1], 3
    %6776 = vst [vmem:[%s6775] ss:$9 sm:$0xff] %v6702
    %s6777 = scalar_lea.vmem [#allocation1], 4
    %6778 = vst [vmem:[%s6777] ss:$9 sm:$0xff] %v6703
    %v6779 = vld [vmem:[#allocation1] sm:$0xff]
    %6780 = vst [vmem:[#allocation1] ss:$9 sm:$0xff] %v6704
    %6781 = vst [vmem:[%s6771] ss:$9 sm:$0xff] %v6705
    %6782 = vst [vmem:[%s6773] ss:$9 sm:$0xff] %v6706
    %6783 = vst [vmem:[%s6775] ss:$9 sm:$0xff] %v6352
    %6784 = vst [vmem:[%s6777] ss:$9 sm:$0xff] %v6707
    %v6785 = vld [vmem:[#allocation1] sm:$0xff]
    %6786 = vst [vmem:[#allocation1] ss:$9 sm:$0xff] %v6708
    %6787 = vst [vmem:[%s6771] ss:$9 sm:$0xff] %v6709
    %6788 = vst [vmem:[%s6773] ss:$9 sm:$0xff] %v6710
    %6789 = vst [vmem:[%s6775] ss:$9 sm:$0xff] %v6711
    %6790 = vst [vmem:[%s6777] ss:$9 sm:$0xff] %v6712
    %v6791 = vld [vmem:[#allocation1] sm:$0xff]
    %6792 = vst [vmem:[#allocation1] ss:$9 sm:$0xff] %v6713
    %6793 = vst [vmem:[%s6771] ss:$9 sm:$0xff] %v6355
    %6794 = vst [vmem:[%s6773] ss:$9 sm:$0xff] %v6714
    %6795 = vst [vmem:[%s6775] ss:$9 sm:$0xff] %v6715
    %6796 = vst [vmem:[%s6777] ss:$9 sm:$0xff] %v6716
    %v6797 = vld [vmem:[#allocation1] sm:$0xff]
    %6798 = vst [vmem:[#allocation1] ss:$9 sm:$0xff] %v6717
    %6799 = vst [vmem:[%s6771] ss:$9 sm:$0xff] %v6718
    %6800 = vst [vmem:[%s6773] ss:$9 sm:$0xff] %v6719
    %6801 = vst [vmem:[%s6775] ss:$9 sm:$0xff] %v6720
    %6802 = vst [vmem:[%s6777] ss:$9 sm:$0xff] %v6357
    %v6803 = vld [vmem:[#allocation1] sm:$0xff]
    %6804 = vst [vmem:[#allocation1] ss:$9 sm:$0xff] %v6721
    %6805 = vst [vmem:[%s6771] ss:$9 sm:$0xff] %v6722
    %6806 = vst [vmem:[%s6773] ss:$9 sm:$0xff] %v6723
    %6807 = vst [vmem:[%s6775] ss:$9 sm:$0xff] %v6724
    %6808 = vst [vmem:[%s6777] ss:$9 sm:$0xff] %v6725
    %v6809 = vld [vmem:[#allocation1] sm:$0xff]
    %6810 = vst [vmem:[#allocation1] ss:$9 sm:$0xff] %v6726
    %6811 = vst [vmem:[%s6771] ss:$9 sm:$0xff] %v6727
    %6812 = vst [vmem:[%s6773] ss:$9 sm:$0xff] %v6360
    %6813 = vst [vmem:[%s6775] ss:$9 sm:$0xff] %v6728
    %6814 = vst [vmem:[%s6777] ss:$9 sm:$0xff] %v6729
    %v6815 = vld [vmem:[#allocation1] sm:$0xff]
    %6816 = vst [vmem:[#allocation1] ss:$9 sm:$0xff] %v6730
    %6817 = vst [vmem:[%s6771] ss:$9 sm:$0xff] %v6731
    %6818 = vst [vmem:[%s6773] ss:$9 sm:$0xff] %v6732
    %6819 = vst [vmem:[%s6775] ss:$9 sm:$0xff] %v6733
    %6820 = vst [vmem:[%s6777] ss:$9 sm:$0xff] %v6734
    %v6821 = vld [vmem:[#allocation1] sm:$0xff]
    %6822 = vst [vmem:[#allocation1] ss:$9 sm:$0xff] %v6362
    %6823 = vst [vmem:[%s6771] ss:$9 sm:$0xff] %v6735
    %6824 = vst [vmem:[%s6773] ss:$9 sm:$0xff] %v6736
    %6825 = vst [vmem:[%s6775] ss:$9 sm:$0xff] %v6737
    %6826 = vst [vmem:[%s6777] ss:$9 sm:$0xff] %v6738
    %v6827 = vld [vmem:[#allocation1] sm:$0xff]
    %6828 = vst [vmem:[#allocation1] ss:$9 sm:$0xff] %v6739
    %6829 = vst [vmem:[%s6771] ss:$9 sm:$0xff] %v6740
    %6830 = vst [vmem:[%s6773] ss:$9 sm:$0xff] %v6741
    %6831 = vst [vmem:[%s6775] ss:$9 sm:$0xff] %v6365
    %6832 = vst [vmem:[%s6777] ss:$9 sm:$0xff] %v6742
    %v6833 = vld [vmem:[#allocation1] sm:$0xff]
    %6834 = vst [vmem:[#allocation1] ss:$9 sm:$0xff] %v6743
    %6835 = vst [vmem:[%s6771] ss:$9 sm:$0xff] %v6744
    %6836 = vst [vmem:[%s6773] ss:$9 sm:$0xff] %v6745
    %6837 = vst [vmem:[%s6775] ss:$9 sm:$0xff] %v6746
    %6838 = vst [vmem:[%s6777] ss:$9 sm:$0xff] %v6747
    %v6839 = vld [vmem:[#allocation1] sm:$0xff]
    %6840 = vst [vmem:[#allocation1] ss:$9 sm:$0xff] %v6748
    %6841 = vst [vmem:[%s6771] ss:$9 sm:$0xff] %v6367
    %6842 = vst [vmem:[%s6773] ss:$9 sm:$0xff] %v6749
    %6843 = vst [vmem:[%s6775] ss:$9 sm:$0xff] %v6750
    %6844 = vst [vmem:[%s6777] ss:$9 sm:$0xff] %v6751
    %v6845 = vld [vmem:[#allocation1] sm:$0xff]
    %6846 = vst [vmem:[#allocation1] ss:$9 sm:$0xff] %v6752
    %6847 = vst [vmem:[%s6771] ss:$9 sm:$0xff] %v6753
    %6848 = vst [vmem:[%s6773] ss:$9 sm:$0xff] %v6754
    %6849 = vst [vmem:[%s6775] ss:$9 sm:$0xff] %v6755
    %6850 = vst [vmem:[%s6777] ss:$9 sm:$0xff] %v6370
    %v6851 = vld [vmem:[#allocation1] sm:$0xff]
    %6852 = vst [vmem:[#allocation1] ss:$9 sm:$0xff] %v6756
    %6853 = vst [vmem:[%s6771] ss:$9 sm:$0xff] %v6757
    %6854 = vst [vmem:[%s6773] ss:$9 sm:$0xff] %v6758
    %6855 = vst [vmem:[%s6775] ss:$9 sm:$0xff] %v6759
    %6856 = vst [vmem:[%s6777] ss:$9 sm:$0xff] %v6760
    %v6857 = vld [vmem:[#allocation1] sm:$0xff]
    %6858 = vst [vmem:[#allocation1] ss:$9 sm:$0xff] %v6761
    %6859 = vst [vmem:[%s6771] ss:$9 sm:$0xff] %v6762
    %6860 = vst [vmem:[%s6773] ss:$9 sm:$0xff] %v6372
    %6861 = vst [vmem:[%s6775] ss:$9 sm:$0xff] %v6763
    %6862 = vst [vmem:[%s6777] ss:$9 sm:$0xff] %v6764
    %v6863 = vld [vmem:[#allocation1] sm:$0xff]
    %6864 = vst [vmem:[#allocation1] ss:$9 sm:$0xff] %v6765
    %6865 = vst [vmem:[%s6771] ss:$9 sm:$0xff] %v6766
    %6866 = vst [vmem:[%s6773] ss:$9 sm:$0xff] %v6767
    %6867 = vst [vmem:[%s6775] ss:$9 sm:$0xff] %v6768
    %6868 = vst [vmem:[%s6777] ss:$9 sm:$0xff] %v6769
    %v6869 = vld [vmem:[#allocation1] sm:$0xff]
    %v6886 = vpack.c.bf16 %v6779, %v6779
    %v6887 = vpack.c.bf16 %v6785, %v6785
    %v6888 = vpack.c.bf16 %v6791, %v6791
    %v6889 = vpack.c.bf16 %v6797, %v6797
    %v6890 = vpack.c.bf16 %v6803, %v6803
    %v6891 = vpack.c.bf16 %v6809, %v6809
    %v6892 = vpack.c.bf16 %v6815, %v6815
    %v6893 = vpack.c.bf16 %v6821, %v6821
    %v6894 = vpack.c.bf16 %v6827, %v6827
    %v6895 = vpack.c.bf16 %v6833, %v6833
    %v6896 = vpack.c.bf16 %v6839, %v6839
    %v6897 = vpack.c.bf16 %v6845, %v6845
    %v6898 = vpack.c.bf16 %v6851, %v6851
    %v6899 = vpack.c.bf16 %v6857, %v6857
    %v6900 = vpack.c.bf16 %v6863, %v6863
    %v6901 = vpack.c.bf16 %v6869, %v6869
    %v6912 = vrot.slane %v6454, 1
    %v6913 = vrot.slane %v6454, 2
    %v6914 = vrot.slane %v6454, 3
    %v6915 = vrot.slane %v6454, 4
    %v6916 = vrot.slane %v6454, 5
    %v6917 = vrot.slane %v6454, 6
    %v6918 = vrot.slane %v6454, 7
    %v6919 = vrot.slane %v6456, 1
    %v6920 = vrot.slane %v6456, 2
    %v6921 = vrot.slane %v6456, 3
    %v6922 = vrot.slane %v6456, 4
    %v6923 = vrot.slane %v6456, 5
    %v6924 = vrot.slane %v6456, 6
    %v6925 = vrot.slane %v6456, 7
    %v6926 = vrot.slane %v6459, 1
    %v6927 = vrot.slane %v6459, 2
    %v6928 = vrot.slane %v6459, 3
    %v6929 = vrot.slane %v6459, 4
    %v6930 = vrot.slane %v6459, 5
    %v6931 = vrot.slane %v6459, 6
    %v6932 = vrot.slane %v6459, 7
    %v6933 = vrot.slane %v6461, 1
    %v6934 = vrot.slane %v6461, 2
    %v6935 = vrot.slane %v6461, 3
    %v6936 = vrot.slane %v6461, 4
    %v6937 = vrot.slane %v6461, 5
    %v6938 = vrot.slane %v6461, 6
    %v6939 = vrot.slane %v6461, 7
    %v6940 = vrot.slane %v6464, 1
    %v6941 = vrot.slane %v6464, 2
    %v6942 = vrot.slane %v6464, 3
    %v6943 = vrot.slane %v6464, 4
    %v6944 = vrot.slane %v6464, 5
    %v6945 = vrot.slane %v6464, 6
    %v6946 = vrot.slane %v6464, 7
    %v6947 = vrot.slane %v6466, 1
    %v6948 = vrot.slane %v6466, 2
    %v6949 = vrot.slane %v6466, 3
    %v6950 = vrot.slane %v6466, 4
    %v6951 = vrot.slane %v6466, 5
    %v6952 = vrot.slane %v6466, 6
    %v6953 = vrot.slane %v6466, 7
    %v6954 = vrot.slane %v6469, 1
    %v6955 = vrot.slane %v6469, 2
    %v6956 = vrot.slane %v6469, 3
    %v6957 = vrot.slane %v6469, 4
    %v6958 = vrot.slane %v6469, 5
    %v6959 = vrot.slane %v6469, 6
    %v6960 = vrot.slane %v6469, 7
    %v6961 = vrot.slane %v6471, 1
    %v6962 = vrot.slane %v6471, 2
    %v6963 = vrot.slane %v6471, 3
    %v6964 = vrot.slane %v6471, 4
    %v6965 = vrot.slane %v6471, 5
    %v6966 = vrot.slane %v6471, 6
    %v6967 = vrot.slane %v6471, 7
    %v6968 = vrot.slane %v6474, 1
    %v6969 = vrot.slane %v6474, 2
    %v6970 = vrot.slane %v6474, 3
    %v6971 = vrot.slane %v6474, 4
    %v6972 = vrot.slane %v6474, 5
    %v6973 = vrot.slane %v6474, 6
    %v6974 = vrot.slane %v6474, 7
    %v6975 = vrot.slane %v6476, 1
    %v6976 = vrot.slane %v6476, 2
    %v6977 = vrot.slane %v6476, 3
    %v6978 = vrot.slane %v6476, 4
    %v6979 = vrot.slane %v6476, 5
    %v6980 = vrot.slane %v6476, 6
    %v6981 = vrot.slane %v6476, 7
    %6982 = vst [vmem:[#allocation1] ss:$9 sm:$0xff] %v6454
    %s6983 = scalar_lea.vmem [#allocation1], 1
    %6984 = vst [vmem:[%s6983] ss:$9 sm:$0xff] %v6912
    %s6985 = scalar_lea.vmem [#allocation1], 2
    %6986 = vst [vmem:[%s6985] ss:$9 sm:$0xff] %v6913
    %s6987 = scalar_lea.vmem [#allocation1], 3
    %6988 = vst [vmem:[%s6987] ss:$9 sm:$0xff] %v6914
    %s6989 = scalar_lea.vmem [#allocation1], 4
    %6990 = vst [vmem:[%s6989] ss:$9 sm:$0xff] %v6915
    %v6991 = vld [vmem:[#allocation1] sm:$0xff]
    %6992 = vst [vmem:[#allocation1] ss:$9 sm:$0xff] %v6916
    %6993 = vst [vmem:[%s6983] ss:$9 sm:$0xff] %v6917
    %6994 = vst [vmem:[%s6985] ss:$9 sm:$0xff] %v6918
    %6995 = vst [vmem:[%s6987] ss:$9 sm:$0xff] %v6456
    %6996 = vst [vmem:[%s6989] ss:$9 sm:$0xff] %v6919
    %v6997 = vld [vmem:[#allocation1] sm:$0xff]
    %6998 = vst [vmem:[#allocation1] ss:$9 sm:$0xff] %v6920
    %6999 = vst [vmem:[%s6983] ss:$9 sm:$0xff] %v6921
    %7000 = vst [vmem:[%s6985] ss:$9 sm:$0xff] %v6922
    %7001 = vst [vmem:[%s6987] ss:$9 sm:$0xff] %v6923
    %7002 = vst [vmem:[%s6989] ss:$9 sm:$0xff] %v6924
    %v7003 = vld [vmem:[#allocation1] sm:$0xff]
    %7004 = vst [vmem:[#allocation1] ss:$9 sm:$0xff] %v6925
    %7005 = vst [vmem:[%s6983] ss:$9 sm:$0xff] %v6459
    %7006 = vst [vmem:[%s6985] ss:$9 sm:$0xff] %v6926
    %7007 = vst [vmem:[%s6987] ss:$9 sm:$0xff] %v6927
    %7008 = vst [vmem:[%s6989] ss:$9 sm:$0xff] %v6928
    %v7009 = vld [vmem:[#allocation1] sm:$0xff]
    %7010 = vst [vmem:[#allocation1] ss:$9 sm:$0xff] %v6929
    %7011 = vst [vmem:[%s6983] ss:$9 sm:$0xff] %v6930
    %7012 = vst [vmem:[%s6985] ss:$9 sm:$0xff] %v6931
    %7013 = vst [vmem:[%s6987] ss:$9 sm:$0xff] %v6932
    %7014 = vst [vmem:[%s6989] ss:$9 sm:$0xff] %v6461
    %v7015 = vld [vmem:[#allocation1] sm:$0xff]
    %7016 = vst [vmem:[#allocation1] ss:$9 sm:$0xff] %v6933
    %7017 = vst [vmem:[%s6983] ss:$9 sm:$0xff] %v6934
    %7018 = vst [vmem:[%s6985] ss:$9 sm:$0xff] %v6935
    %7019 = vst [vmem:[%s6987] ss:$9 sm:$0xff] %v6936
    %7020 = vst [vmem:[%s6989] ss:$9 sm:$0xff] %v6937
    %v7021 = vld [vmem:[#allocation1] sm:$0xff]
    %7022 = vst [vmem:[#allocation1] ss:$9 sm:$0xff] %v6938
    %7023 = vst [vmem:[%s6983] ss:$9 sm:$0xff] %v6939
    %7024 = vst [vmem:[%s6985] ss:$9 sm:$0xff] %v6464
    %7025 = vst [vmem:[%s6987] ss:$9 sm:$0xff] %v6940
    %7026 = vst [vmem:[%s6989] ss:$9 sm:$0xff] %v6941
    %v7027 = vld [vmem:[#allocation1] sm:$0xff]
    %7028 = vst [vmem:[#allocation1] ss:$9 sm:$0xff] %v6942
    %7029 = vst [vmem:[%s6983] ss:$9 sm:$0xff] %v6943
    %7030 = vst [vmem:[%s6985] ss:$9 sm:$0xff] %v6944
    %7031 = vst [vmem:[%s6987] ss:$9 sm:$0xff] %v6945
    %7032 = vst [vmem:[%s6989] ss:$9 sm:$0xff] %v6946
    %v7033 = vld [vmem:[#allocation1] sm:$0xff]
    %7034 = vst [vmem:[#allocation1] ss:$9 sm:$0xff] %v6466
    %7035 = vst [vmem:[%s6983] ss:$9 sm:$0xff] %v6947
    %7036 = vst [vmem:[%s6985] ss:$9 sm:$0xff] %v6948
    %7037 = vst [vmem:[%s6987] ss:$9 sm:$0xff] %v6949
    %7038 = vst [vmem:[%s6989] ss:$9 sm:$0xff] %v6950
    %v7039 = vld [vmem:[#allocation1] sm:$0xff]
    %7040 = vst [vmem:[#allocation1] ss:$9 sm:$0xff] %v6951
    %7041 = vst [vmem:[%s6983] ss:$9 sm:$0xff] %v6952
    %7042 = vst [vmem:[%s6985] ss:$9 sm:$0xff] %v6953
    %7043 = vst [vmem:[%s6987] ss:$9 sm:$0xff] %v6469
    %7044 = vst [vmem:[%s6989] ss:$9 sm:$0xff] %v6954
    %v7045 = vld [vmem:[#allocation1] sm:$0xff]
    %7046 = vst [vmem:[#allocation1] ss:$9 sm:$0xff] %v6955
    %7047 = vst [vmem:[%s6983] ss:$9 sm:$0xff] %v6956
    %7048 = vst [vmem:[%s6985] ss:$9 sm:$0xff] %v6957
    %7049 = vst [vmem:[%s6987] ss:$9 sm:$0xff] %v6958
    %7050 = vst [vmem:[%s6989] ss:$9 sm:$0xff] %v6959
    %v7051 = vld [vmem:[#allocation1] sm:$0xff]
    %7052 = vst [vmem:[#allocation1] ss:$9 sm:$0xff] %v6960
    %7053 = vst [vmem:[%s6983] ss:$9 sm:$0xff] %v6471
    %7054 = vst [vmem:[%s6985] ss:$9 sm:$0xff] %v6961
    %7055 = vst [vmem:[%s6987] ss:$9 sm:$0xff] %v6962
    %7056 = vst [vmem:[%s6989] ss:$9 sm:$0xff] %v6963
    %v7057 = vld [vmem:[#allocation1] sm:$0xff]
    %7058 = vst [vmem:[#allocation1] ss:$9 sm:$0xff] %v6964
    %7059 = vst [vmem:[%s6983] ss:$9 sm:$0xff] %v6965
    %7060 = vst [vmem:[%s6985] ss:$9 sm:$0xff] %v6966
    %7061 = vst [vmem:[%s6987] ss:$9 sm:$0xff] %v6967
    %7062 = vst [vmem:[%s6989] ss:$9 sm:$0xff] %v6474
    %v7063 = vld [vmem:[#allocation1] sm:$0xff]
    %7064 = vst [vmem:[#allocation1] ss:$9 sm:$0xff] %v6968
    %7065 = vst [vmem:[%s6983] ss:$9 sm:$0xff] %v6969
    %7066 = vst [vmem:[%s6985] ss:$9 sm:$0xff] %v6970
    %7067 = vst [vmem:[%s6987] ss:$9 sm:$0xff] %v6971
    %7068 = vst [vmem:[%s6989] ss:$9 sm:$0xff] %v6972
    %v7069 = vld [vmem:[#allocation1] sm:$0xff]
    %7070 = vst [vmem:[#allocation1] ss:$9 sm:$0xff] %v6973
    %7071 = vst [vmem:[%s6983] ss:$9 sm:$0xff] %v6974
    %7072 = vst [vmem:[%s6985] ss:$9 sm:$0xff] %v6476
    %7073 = vst [vmem:[%s6987] ss:$9 sm:$0xff] %v6975
    %7074 = vst [vmem:[%s6989] ss:$9 sm:$0xff] %v6976
    %v7075 = vld [vmem:[#allocation1] sm:$0xff]
    %7076 = vst [vmem:[#allocation1] ss:$9 sm:$0xff] %v6977
    %7077 = vst [vmem:[%s6983] ss:$9 sm:$0xff] %v6978
    %7078 = vst [vmem:[%s6985] ss:$9 sm:$0xff] %v6979
    %7079 = vst [vmem:[%s6987] ss:$9 sm:$0xff] %v6980
    %7080 = vst [vmem:[%s6989] ss:$9 sm:$0xff] %v6981
    %v7081 = vld [vmem:[#allocation1] sm:$0xff]
    %v7098 = vpack.c.bf16 %v6991, %v6991
    %v7099 = vpack.c.bf16 %v6997, %v6997
    %v7100 = vpack.c.bf16 %v7003, %v7003
    %v7101 = vpack.c.bf16 %v7009, %v7009
    %v7102 = vpack.c.bf16 %v7015, %v7015
    %v7103 = vpack.c.bf16 %v7021, %v7021
    %v7104 = vpack.c.bf16 %v7027, %v7027
    %v7105 = vpack.c.bf16 %v7033, %v7033
    %v7106 = vpack.c.bf16 %v7039, %v7039
    %v7107 = vpack.c.bf16 %v7045, %v7045
    %v7108 = vpack.c.bf16 %v7051, %v7051
    %v7109 = vpack.c.bf16 %v7057, %v7057
    %v7110 = vpack.c.bf16 %v7063, %v7063
    %v7111 = vpack.c.bf16 %v7069, %v7069
    %v7112 = vpack.c.bf16 %v7075, %v7075
    %v7113 = vpack.c.bf16 %v7081, %v7081
    %v7115 = vsel %vm1762, %v6674, 0
    %v7118 = vsel %vm1762, %v6886, 0
    %7120 = vmatpush.bf16.xpose.msra.mxu0 0
    %7121 = vmatpush.bf16.xpose.msra.mxu0 0
    %7122 = vmatpush.bf16.xpose.msra.mxu0 0
    %7123 = vmatpush.bf16.xpose.msra.mxu0 0
    %7124 = vmatpush.bf16.xpose.msra.mxu0 0
    %7125 = vmatpush.bf16.xpose.msra.mxu0 0
    %7126 = vmatpush.bf16.xpose.msra.mxu0 0
    %7127 = vmatpush.bf16.xpose.msra.mxu0 %v7118
    %7128 = vmatmul.bf16.gmra.mxu0 %v7115
    %v7129 = vpop.f32.mrf.mxu0
    %v7130 = vadd.f32 0.0, %v7129
    %v7131 = vpop.f32.mrf.mxu0
    %7132 = vdwg.mxu0
    %v7134 = vsel %vm1762, %v6675, 0
    %v7137 = vsel %vm1762, %v6887, 0
    %7139 = vmatpush.bf16.xpose.msra.mxu0 0
    %7140 = vmatpush.bf16.xpose.msra.mxu0 0
    %7141 = vmatpush.bf16.xpose.msra.mxu0 0
    %7142 = vmatpush.bf16.xpose.msra.mxu0 0
    %7143 = vmatpush.bf16.xpose.msra.mxu0 0
    %7144 = vmatpush.bf16.xpose.msra.mxu0 0
    %7145 = vmatpush.bf16.xpose.msra.mxu0 0
    %7146 = vmatpush.bf16.xpose.msra.mxu0 %v7137
    %7147 = vmatmul.bf16.gmra.mxu0 %v7134
    %v7148 = vpop.f32.mrf.mxu0
    %v7149 = vadd.f32 0.0, %v7148
    %v7150 = vpop.f32.mrf.mxu0
    %7151 = vdwg.mxu0
    %v7153 = vsel %vm1762, %v6676, 0
    %v7156 = vsel %vm1762, %v6888, 0
    %7158 = vmatpush.bf16.xpose.msra.mxu0 0
    %7159 = vmatpush.bf16.xpose.msra.mxu0 0
    %7160 = vmatpush.bf16.xpose.msra.mxu0 0
    %7161 = vmatpush.bf16.xpose.msra.mxu0 0
    %7162 = vmatpush.bf16.xpose.msra.mxu0 0
    %7163 = vmatpush.bf16.xpose.msra.mxu0 0
    %7164 = vmatpush.bf16.xpose.msra.mxu0 0
    %7165 = vmatpush.bf16.xpose.msra.mxu0 %v7156
    %7166 = vmatmul.bf16.gmra.mxu0 %v7153
    %v7167 = vpop.f32.mrf.mxu0
    %v7168 = vadd.f32 0.0, %v7167
    %v7169 = vpop.f32.mrf.mxu0
    %7170 = vdwg.mxu0
    %v7172 = vsel %vm1762, %v6677, 0
    %v7175 = vsel %vm1762, %v6889, 0
    %7177 = vmatpush.bf16.xpose.msra.mxu0 0
    %7178 = vmatpush.bf16.xpose.msra.mxu0 0
    %7179 = vmatpush.bf16.xpose.msra.mxu0 0
    %7180 = vmatpush.bf16.xpose.msra.mxu0 0
    %7181 = vmatpush.bf16.xpose.msra.mxu0 0
    %7182 = vmatpush.bf16.xpose.msra.mxu0 0
    %7183 = vmatpush.bf16.xpose.msra.mxu0 0
    %7184 = vmatpush.bf16.xpose.msra.mxu0 %v7175
    %7185 = vmatmul.bf16.gmra.mxu0 %v7172
    %v7186 = vpop.f32.mrf.mxu0
    %v7187 = vadd.f32 0.0, %v7186
    %v7188 = vpop.f32.mrf.mxu0
    %7189 = vdwg.mxu0
    %v7191 = vsel %vm1762, %v6678, 0
    %v7194 = vsel %vm1762, %v6890, 0
    %7196 = vmatpush.bf16.xpose.msra.mxu0 0
    %7197 = vmatpush.bf16.xpose.msra.mxu0 0
    %7198 = vmatpush.bf16.xpose.msra.mxu0 0
    %7199 = vmatpush.bf16.xpose.msra.mxu0 0
    %7200 = vmatpush.bf16.xpose.msra.mxu0 0
    %7201 = vmatpush.bf16.xpose.msra.mxu0 0
    %7202 = vmatpush.bf16.xpose.msra.mxu0 0
    %7203 = vmatpush.bf16.xpose.msra.mxu0 %v7194
    %7204 = vmatmul.bf16.gmra.mxu0 %v7191
    %v7205 = vpop.f32.mrf.mxu0
    %v7206 = vadd.f32 0.0, %v7205
    %v7207 = vpop.f32.mrf.mxu0
    %7208 = vdwg.mxu0
    %v7210 = vsel %vm1762, %v6679, 0
    %v7213 = vsel %vm1762, %v6891, 0
    %7215 = vmatpush.bf16.xpose.msra.mxu0 0
    %7216 = vmatpush.bf16.xpose.msra.mxu0 0
    %7217 = vmatpush.bf16.xpose.msra.mxu0 0
    %7218 = vmatpush.bf16.xpose.msra.mxu0 0
    %7219 = vmatpush.bf16.xpose.msra.mxu0 0
    %7220 = vmatpush.bf16.xpose.msra.mxu0 0
    %7221 = vmatpush.bf16.xpose.msra.mxu0 0
    %7222 = vmatpush.bf16.xpose.msra.mxu0 %v7213
    %7223 = vmatmul.bf16.gmra.mxu0 %v7210
    %v7224 = vpop.f32.mrf.mxu0
    %v7225 = vadd.f32 0.0, %v7224
    %v7226 = vpop.f32.mrf.mxu0
    %7227 = vdwg.mxu0
    %v7229 = vsel %vm1762, %v6680, 0
    %v7232 = vsel %vm1762, %v6892, 0
    %7234 = vmatpush.bf16.xpose.msra.mxu0 0
    %7235 = vmatpush.bf16.xpose.msra.mxu0 0
    %7236 = vmatpush.bf16.xpose.msra.mxu0 0
    %7237 = vmatpush.bf16.xpose.msra.mxu0 0
    %7238 = vmatpush.bf16.xpose.msra.mxu0 0
    %7239 = vmatpush.bf16.xpose.msra.mxu0 0
    %7240 = vmatpush.bf16.xpose.msra.mxu0 0
    %7241 = vmatpush.bf16.xpose.msra.mxu0 %v7232
    %7242 = vmatmul.bf16.gmra.mxu0 %v7229
    %v7243 = vpop.f32.mrf.mxu0
    %v7244 = vadd.f32 0.0, %v7243
    %v7245 = vpop.f32.mrf.mxu0
    %7246 = vdwg.mxu0
    %v7248 = vsel %vm1762, %v6681, 0
    %v7251 = vsel %vm1762, %v6893, 0
    %7253 = vmatpush.bf16.xpose.msra.mxu0 0
    %7254 = vmatpush.bf16.xpose.msra.mxu0 0
    %7255 = vmatpush.bf16.xpose.msra.mxu0 0
    %7256 = vmatpush.bf16.xpose.msra.mxu0 0
    %7257 = vmatpush.bf16.xpose.msra.mxu0 0
    %7258 = vmatpush.bf16.xpose.msra.mxu0 0
    %7259 = vmatpush.bf16.xpose.msra.mxu0 0
    %7260 = vmatpush.bf16.xpose.msra.mxu0 %v7251
    %7261 = vmatmul.bf16.gmra.mxu0 %v7248
    %v7262 = vpop.f32.mrf.mxu0
    %v7263 = vadd.f32 0.0, %v7262
    %v7264 = vpop.f32.mrf.mxu0
    %7265 = vdwg.mxu0
    %v7267 = vsel %vm1762, %v6682, 0
    %v7270 = vsel %vm1762, %v6894, 0
    %7272 = vmatpush.bf16.xpose.msra.mxu0 0
    %7273 = vmatpush.bf16.xpose.msra.mxu0 0
    %7274 = vmatpush.bf16.xpose.msra.mxu0 0
    %7275 = vmatpush.bf16.xpose.msra.mxu0 0
    %7276 = vmatpush.bf16.xpose.msra.mxu0 0
    %7277 = vmatpush.bf16.xpose.msra.mxu0 0
    %7278 = vmatpush.bf16.xpose.msra.mxu0 0
    %7279 = vmatpush.bf16.xpose.msra.mxu0 %v7270
    %7280 = vmatmul.bf16.gmra.mxu0 %v7267
    %v7281 = vpop.f32.mrf.mxu0
    %v7282 = vadd.f32 0.0, %v7281
    %v7283 = vpop.f32.mrf.mxu0
    %7284 = vdwg.mxu0
    %v7286 = vsel %vm1762, %v6683, 0
    %v7289 = vsel %vm1762, %v6895, 0
    %7291 = vmatpush.bf16.xpose.msra.mxu0 0
    %7292 = vmatpush.bf16.xpose.msra.mxu0 0
    %7293 = vmatpush.bf16.xpose.msra.mxu0 0
    %7294 = vmatpush.bf16.xpose.msra.mxu0 0
    %7295 = vmatpush.bf16.xpose.msra.mxu0 0
    %7296 = vmatpush.bf16.xpose.msra.mxu0 0
    %7297 = vmatpush.bf16.xpose.msra.mxu0 0
    %7298 = vmatpush.bf16.xpose.msra.mxu0 %v7289
    %7299 = vmatmul.bf16.gmra.mxu0 %v7286
    %v7300 = vpop.f32.mrf.mxu0
    %v7301 = vadd.f32 0.0, %v7300
    %v7302 = vpop.f32.mrf.mxu0
    %7303 = vdwg.mxu0
    %v7305 = vsel %vm1762, %v6684, 0
    %v7308 = vsel %vm1762, %v6896, 0
    %7310 = vmatpush.bf16.xpose.msra.mxu0 0
    %7311 = vmatpush.bf16.xpose.msra.mxu0 0
    %7312 = vmatpush.bf16.xpose.msra.mxu0 0
    %7313 = vmatpush.bf16.xpose.msra.mxu0 0
    %7314 = vmatpush.bf16.xpose.msra.mxu0 0
    %7315 = vmatpush.bf16.xpose.msra.mxu0 0
    %7316 = vmatpush.bf16.xpose.msra.mxu0 0
    %7317 = vmatpush.bf16.xpose.msra.mxu0 %v7308
    %7318 = vmatmul.bf16.gmra.mxu0 %v7305
    %v7319 = vpop.f32.mrf.mxu0
    %v7320 = vadd.f32 0.0, %v7319
    %v7321 = vpop.f32.mrf.mxu0
    %7322 = vdwg.mxu0
    %v7324 = vsel %vm1762, %v6685, 0
    %v7327 = vsel %vm1762, %v6897, 0
    %7329 = vmatpush.bf16.xpose.msra.mxu0 0
    %7330 = vmatpush.bf16.xpose.msra.mxu0 0
    %7331 = vmatpush.bf16.xpose.msra.mxu0 0
    %7332 = vmatpush.bf16.xpose.msra.mxu0 0
    %7333 = vmatpush.bf16.xpose.msra.mxu0 0
    %7334 = vmatpush.bf16.xpose.msra.mxu0 0
    %7335 = vmatpush.bf16.xpose.msra.mxu0 0
    %7336 = vmatpush.bf16.xpose.msra.mxu0 %v7327
    %7337 = vmatmul.bf16.gmra.mxu0 %v7324
    %v7338 = vpop.f32.mrf.mxu0
    %v7339 = vadd.f32 0.0, %v7338
    %v7340 = vpop.f32.mrf.mxu0
    %7341 = vdwg.mxu0
    %v7343 = vsel %vm1762, %v6686, 0
    %v7346 = vsel %vm1762, %v6898, 0
    %7348 = vmatpush.bf16.xpose.msra.mxu0 0
    %7349 = vmatpush.bf16.xpose.msra.mxu0 0
    %7350 = vmatpush.bf16.xpose.msra.mxu0 0
    %7351 = vmatpush.bf16.xpose.msra.mxu0 0
    %7352 = vmatpush.bf16.xpose.msra.mxu0 0
    %7353 = vmatpush.bf16.xpose.msra.mxu0 0
    %7354 = vmatpush.bf16.xpose.msra.mxu0 0
    %7355 = vmatpush.bf16.xpose.msra.mxu0 %v7346
    %7356 = vmatmul.bf16.gmra.mxu0 %v7343
    %v7357 = vpop.f32.mrf.mxu0
    %v7358 = vadd.f32 0.0, %v7357
    %v7359 = vpop.f32.mrf.mxu0
    %7360 = vdwg.mxu0
    %v7362 = vsel %vm1762, %v6687, 0
    %v7365 = vsel %vm1762, %v6899, 0
    %7367 = vmatpush.bf16.xpose.msra.mxu0 0
    %7368 = vmatpush.bf16.xpose.msra.mxu0 0
    %7369 = vmatpush.bf16.xpose.msra.mxu0 0
    %7370 = vmatpush.bf16.xpose.msra.mxu0 0
    %7371 = vmatpush.bf16.xpose.msra.mxu0 0
    %7372 = vmatpush.bf16.xpose.msra.mxu0 0
    %7373 = vmatpush.bf16.xpose.msra.mxu0 0
    %7374 = vmatpush.bf16.xpose.msra.mxu0 %v7365
    %7375 = vmatmul.bf16.gmra.mxu0 %v7362
    %v7376 = vpop.f32.mrf.mxu0
    %v7377 = vadd.f32 0.0, %v7376
    %v7378 = vpop.f32.mrf.mxu0
    %7379 = vdwg.mxu0
    %v7381 = vsel %vm1762, %v6688, 0
    %v7384 = vsel %vm1762, %v6900, 0
    %7386 = vmatpush.bf16.xpose.msra.mxu0 0
    %7387 = vmatpush.bf16.xpose.msra.mxu0 0
    %7388 = vmatpush.bf16.xpose.msra.mxu0 0
    %7389 = vmatpush.bf16.xpose.msra.mxu0 0
    %7390 = vmatpush.bf16.xpose.msra.mxu0 0
    %7391 = vmatpush.bf16.xpose.msra.mxu0 0
    %7392 = vmatpush.bf16.xpose.msra.mxu0 0
    %7393 = vmatpush.bf16.xpose.msra.mxu0 %v7384
    %7394 = vmatmul.bf16.gmra.mxu0 %v7381
    %v7395 = vpop.f32.mrf.mxu0
    %v7396 = vadd.f32 0.0, %v7395
    %v7397 = vpop.f32.mrf.mxu0
    %7398 = vdwg.mxu0
    %v7400 = vsel %vm1762, %v6689, 0
    %v7403 = vsel %vm1762, %v6901, 0
    %7405 = vmatpush.bf16.xpose.msra.mxu0 0
    %7406 = vmatpush.bf16.xpose.msra.mxu0 0
    %7407 = vmatpush.bf16.xpose.msra.mxu0 0
    %7408 = vmatpush.bf16.xpose.msra.mxu0 0
    %7409 = vmatpush.bf16.xpose.msra.mxu0 0
    %7410 = vmatpush.bf16.xpose.msra.mxu0 0
    %7411 = vmatpush.bf16.xpose.msra.mxu0 0
    %7412 = vmatpush.bf16.xpose.msra.mxu0 %v7403
    %7413 = vmatmul.bf16.gmra.mxu0 %v7400
    %v7414 = vpop.f32.mrf.mxu0
    %v7415 = vadd.f32 0.0, %v7414
    %v7416 = vpop.f32.mrf.mxu0
    %7417 = vdwg.mxu0
    %v7418 = vsel %vm2067, %v7130, -inf
    %7419 = vmax.xlane.f32.xlu0 %v7418
    %v7420 = vpop.xlane.xlu0 %7419
    %v7421 = vsel %vm2067, %v7149, -inf
    %7422 = vmax.xlane.f32.xlu0 %v7421
    %v7423 = vpop.xlane.xlu0 %7422
    %v7424 = vsel %vm2067, %v7168, -inf
    %7425 = vmax.xlane.f32.xlu0 %v7424
    %v7426 = vpop.xlane.xlu0 %7425
    %v7427 = vsel %vm2067, %v7187, -inf
    %7428 = vmax.xlane.f32.xlu0 %v7427
    %v7429 = vpop.xlane.xlu0 %7428
    %v7430 = vsel %vm2067, %v7206, -inf
    %7431 = vmax.xlane.f32.xlu0 %v7430
    %v7432 = vpop.xlane.xlu0 %7431
    %v7433 = vsel %vm2067, %v7225, -inf
    %7434 = vmax.xlane.f32.xlu0 %v7433
    %v7435 = vpop.xlane.xlu0 %7434
    %v7436 = vsel %vm2067, %v7244, -inf
    %7437 = vmax.xlane.f32.xlu0 %v7436
    %v7438 = vpop.xlane.xlu0 %7437
    %v7439 = vsel %vm2067, %v7263, -inf
    %7440 = vmax.xlane.f32.xlu0 %v7439
    %v7441 = vpop.xlane.xlu0 %7440
    %v7442 = vsel %vm2067, %v7282, -inf
    %7443 = vmax.xlane.f32.xlu0 %v7442
    %v7444 = vpop.xlane.xlu0 %7443
    %v7445 = vsel %vm2067, %v7301, -inf
    %7446 = vmax.xlane.f32.xlu0 %v7445
    %v7447 = vpop.xlane.xlu0 %7446
    %v7448 = vsel %vm2067, %v7320, -inf
    %7449 = vmax.xlane.f32.xlu0 %v7448
    %v7450 = vpop.xlane.xlu0 %7449
    %v7451 = vsel %vm2067, %v7339, -inf
    %7452 = vmax.xlane.f32.xlu0 %v7451
    %v7453 = vpop.xlane.xlu0 %7452
    %v7454 = vsel %vm2067, %v7358, -inf
    %7455 = vmax.xlane.f32.xlu0 %v7454
    %v7456 = vpop.xlane.xlu0 %7455
    %v7457 = vsel %vm2067, %v7377, -inf
    %7458 = vmax.xlane.f32.xlu0 %v7457
    %v7459 = vpop.xlane.xlu0 %7458
    %v7460 = vsel %vm2067, %v7396, -inf
    %7461 = vmax.xlane.f32.xlu0 %v7460
    %v7462 = vpop.xlane.xlu0 %7461
    %v7463 = vsel %vm2067, %v7415, -inf
    %7464 = vmax.xlane.f32.xlu0 %v7463
    %v7465 = vpop.xlane.xlu0 %7464
    %v7466 = vsub.f32 %v7130, %v7420
    %v7467 = vsub.f32 %v7149, %v7423
    %v7468 = vsub.f32 %v7168, %v7426
    %v7469 = vsub.f32 %v7187, %v7429
    %v7470 = vsub.f32 %v7206, %v7432
    %v7471 = vsub.f32 %v7225, %v7435
    %v7472 = vsub.f32 %v7244, %v7438
    %v7473 = vsub.f32 %v7263, %v7441
    %v7474 = vsub.f32 %v7282, %v7444
    %v7475 = vsub.f32 %v7301, %v7447
    %v7476 = vsub.f32 %v7320, %v7450
    %v7477 = vsub.f32 %v7339, %v7453
    %v7478 = vsub.f32 %v7358, %v7456
    %v7479 = vsub.f32 %v7377, %v7459
    %v7480 = vsub.f32 %v7396, %v7462
    %v7481 = vsub.f32 %v7415, %v7465
    %v7482 = vmul.f32 %v7466, 1.442695
    %v7483 = vpow.pop %v7482
    %v7484 = vmul.f32 %v7467, 1.442695
    %v7485 = vpow.pop %v7484
    %v7486 = vmul.f32 %v7468, 1.442695
    %v7487 = vpow.pop %v7486
    %v7488 = vmul.f32 %v7469, 1.442695
    %v7489 = vpow.pop %v7488
    %v7490 = vmul.f32 %v7470, 1.442695
    %v7491 = vpow.pop %v7490
    %v7492 = vmul.f32 %v7471, 1.442695
    %v7493 = vpow.pop %v7492
    %v7494 = vmul.f32 %v7472, 1.442695
    %v7495 = vpow.pop %v7494
    %v7496 = vmul.f32 %v7473, 1.442695
    %v7497 = vpow.pop %v7496
    %v7498 = vmul.f32 %v7474, 1.442695
    %v7499 = vpow.pop %v7498
    %v7500 = vmul.f32 %v7475, 1.442695
    %v7501 = vpow.pop %v7500
    %v7502 = vmul.f32 %v7476, 1.442695
    %v7503 = vpow.pop %v7502
    %v7504 = vmul.f32 %v7477, 1.442695
    %v7505 = vpow.pop %v7504
    %v7506 = vmul.f32 %v7478, 1.442695
    %v7507 = vpow.pop %v7506
    %v7508 = vmul.f32 %v7479, 1.442695
    %v7509 = vpow.pop %v7508
    %v7510 = vmul.f32 %v7480, 1.442695
    %v7511 = vpow.pop %v7510
    %v7512 = vmul.f32 %v7481, 1.442695
    %v7513 = vpow.pop %v7512
    %v7514 = vsel %vm2067, %v7483, 0.0
    %7515 = vadd.xlane.f32.xlu0 %v7514
    %v7516 = vpop.xlane.xlu0 %7515
    %v7517 = vsel %vm2067, %v7485, 0.0
    %7518 = vadd.xlane.f32.xlu0 %v7517
    %v7519 = vpop.xlane.xlu0 %7518
    %v7520 = vsel %vm2067, %v7487, 0.0
    %7521 = vadd.xlane.f32.xlu0 %v7520
    %v7522 = vpop.xlane.xlu0 %7521
    %v7523 = vsel %vm2067, %v7489, 0.0
    %7524 = vadd.xlane.f32.xlu0 %v7523
    %v7525 = vpop.xlane.xlu0 %7524
    %v7526 = vsel %vm2067, %v7491, 0.0
    %7527 = vadd.xlane.f32.xlu0 %v7526
    %v7528 = vpop.xlane.xlu0 %7527
    %v7529 = vsel %vm2067, %v7493, 0.0
    %7530 = vadd.xlane.f32.xlu0 %v7529
    %v7531 = vpop.xlane.xlu0 %7530
    %v7532 = vsel %vm2067, %v7495, 0.0
    %7533 = vadd.xlane.f32.xlu0 %v7532
    %v7534 = vpop.xlane.xlu0 %7533
    %v7535 = vsel %vm2067, %v7497, 0.0
    %7536 = vadd.xlane.f32.xlu0 %v7535
    %v7537 = vpop.xlane.xlu0 %7536
    %v7538 = vsel %vm2067, %v7499, 0.0
    %7539 = vadd.xlane.f32.xlu0 %v7538
    %v7540 = vpop.xlane.xlu0 %7539
    %v7541 = vsel %vm2067, %v7501, 0.0
    %7542 = vadd.xlane.f32.xlu0 %v7541
    %v7543 = vpop.xlane.xlu0 %7542
    %v7544 = vsel %vm2067, %v7503, 0.0
    %7545 = vadd.xlane.f32.xlu0 %v7544
    %v7546 = vpop.xlane.xlu0 %7545
    %v7547 = vsel %vm2067, %v7505, 0.0
    %7548 = vadd.xlane.f32.xlu0 %v7547
    %v7549 = vpop.xlane.xlu0 %7548
    %v7550 = vsel %vm2067, %v7507, 0.0
    %7551 = vadd.xlane.f32.xlu0 %v7550
    %v7552 = vpop.xlane.xlu0 %7551
    %v7553 = vsel %vm2067, %v7509, 0.0
    %7554 = vadd.xlane.f32.xlu0 %v7553
    %v7555 = vpop.xlane.xlu0 %7554
    %v7556 = vsel %vm2067, %v7511, 0.0
    %7557 = vadd.xlane.f32.xlu0 %v7556
    %v7558 = vpop.xlane.xlu0 %7557
    %v7559 = vsel %vm2067, %v7513, 0.0
    %7560 = vadd.xlane.f32.xlu0 %v7559
    %v7561 = vpop.xlane.xlu0 %7560
    %v7562 = vrcp.pop %v7516
    %v7563 = vrcp.pop %v7519
    %v7564 = vrcp.pop %v7522
    %v7565 = vrcp.pop %v7525
    %v7566 = vrcp.pop %v7528
    %v7567 = vrcp.pop %v7531
    %v7568 = vrcp.pop %v7534
    %v7569 = vrcp.pop %v7537
    %v7570 = vrcp.pop %v7540
    %v7571 = vrcp.pop %v7543
    %v7572 = vrcp.pop %v7546
    %v7573 = vrcp.pop %v7549
    %v7574 = vrcp.pop %v7552
    %v7575 = vrcp.pop %v7555
    %v7576 = vrcp.pop %v7558
    %v7577 = vrcp.pop %v7561
    %v7578 = vmul.f32 %v7483, %v7562
    %v7579 = vmul.f32 %v7485, %v7563
    %v7580 = vmul.f32 %v7487, %v7564
    %v7581 = vmul.f32 %v7489, %v7565
    %v7582 = vmul.f32 %v7491, %v7566
    %v7583 = vmul.f32 %v7493, %v7567
    %v7584 = vmul.f32 %v7495, %v7568
    %v7585 = vmul.f32 %v7497, %v7569
    %v7586 = vmul.f32 %v7499, %v7570
    %v7587 = vmul.f32 %v7501, %v7571
    %v7588 = vmul.f32 %v7503, %v7572
    %v7589 = vmul.f32 %v7505, %v7573
    %v7590 = vmul.f32 %v7507, %v7574
    %v7591 = vmul.f32 %v7509, %v7575
    %v7592 = vmul.f32 %v7511, %v7576
    %v7593 = vmul.f32 %v7513, %v7577
    %v7594 = vpack.c.bf16 %v7578, %v7578
    %v7595 = vpack.c.bf16 %v7579, %v7579
    %v7596 = vpack.c.bf16 %v7580, %v7580
    %v7597 = vpack.c.bf16 %v7581, %v7581
    %v7598 = vpack.c.bf16 %v7582, %v7582
    %v7599 = vpack.c.bf16 %v7583, %v7583
    %v7600 = vpack.c.bf16 %v7584, %v7584
    %v7601 = vpack.c.bf16 %v7585, %v7585
    %v7602 = vpack.c.bf16 %v7586, %v7586
    %v7603 = vpack.c.bf16 %v7587, %v7587
    %v7604 = vpack.c.bf16 %v7588, %v7588
    %v7605 = vpack.c.bf16 %v7589, %v7589
    %v7606 = vpack.c.bf16 %v7590, %v7590
    %v7607 = vpack.c.bf16 %v7591, %v7591
    %v7608 = vpack.c.bf16 %v7592, %v7592
    %v7609 = vpack.c.bf16 %v7593, %v7593
    %v7611 = vsel %vm2260, %v7594, 0
    %v7614 = vand.u32 %v7098, %v2267
    %7616 = vmatpush.bf16.msra.mxu0 0
    %7617 = vmatpush.bf16.msra.mxu0 0
    %7618 = vmatpush.bf16.msra.mxu0 0
    %7619 = vmatpush.bf16.msra.mxu0 0
    %7620 = vmatpush.bf16.msra.mxu0 0
    %7621 = vmatpush.bf16.msra.mxu0 0
    %7622 = vmatpush.bf16.msra.mxu0 0
    %7623 = vmatpush.bf16.msra.mxu0 %v7614
    %7624 = vmatmul.bf16.gmra.mxu0 %v7611
    %v7625 = vpop.f32.mrf.mxu0
    %v7626 = vadd.f32 0.0, %v7625
    %v7627 = vpop.f32.mrf.mxu0
    %7628 = vdwg.mxu0
    %v7630 = vsel %vm2260, %v7595, 0
    %v7633 = vand.u32 %v7099, %v2267
    %7635 = vmatpush.bf16.msra.mxu0 0
    %7636 = vmatpush.bf16.msra.mxu0 0
    %7637 = vmatpush.bf16.msra.mxu0 0
    %7638 = vmatpush.bf16.msra.mxu0 0
    %7639 = vmatpush.bf16.msra.mxu0 0
    %7640 = vmatpush.bf16.msra.mxu0 0
    %7641 = vmatpush.bf16.msra.mxu0 0
    %7642 = vmatpush.bf16.msra.mxu0 %v7633
    %7643 = vmatmul.bf16.gmra.mxu0 %v7630
    %v7644 = vpop.f32.mrf.mxu0
    %v7645 = vadd.f32 0.0, %v7644
    %v7646 = vpop.f32.mrf.mxu0
    %7647 = vdwg.mxu0
    %v7649 = vsel %vm2260, %v7596, 0
    %v7652 = vand.u32 %v7100, %v2267
    %7654 = vmatpush.bf16.msra.mxu0 0
    %7655 = vmatpush.bf16.msra.mxu0 0
    %7656 = vmatpush.bf16.msra.mxu0 0
    %7657 = vmatpush.bf16.msra.mxu0 0
    %7658 = vmatpush.bf16.msra.mxu0 0
    %7659 = vmatpush.bf16.msra.mxu0 0
    %7660 = vmatpush.bf16.msra.mxu0 0
    %7661 = vmatpush.bf16.msra.mxu0 %v7652
    %7662 = vmatmul.bf16.gmra.mxu0 %v7649
    %v7663 = vpop.f32.mrf.mxu0
    %v7664 = vadd.f32 0.0, %v7663
    %v7665 = vpop.f32.mrf.mxu0
    %7666 = vdwg.mxu0
    %v7668 = vsel %vm2260, %v7597, 0
    %v7671 = vand.u32 %v7101, %v2267
    %7673 = vmatpush.bf16.msra.mxu0 0
    %7674 = vmatpush.bf16.msra.mxu0 0
    %7675 = vmatpush.bf16.msra.mxu0 0
    %7676 = vmatpush.bf16.msra.mxu0 0
    %7677 = vmatpush.bf16.msra.mxu0 0
    %7678 = vmatpush.bf16.msra.mxu0 0
    %7679 = vmatpush.bf16.msra.mxu0 0
    %7680 = vmatpush.bf16.msra.mxu0 %v7671
    %7681 = vmatmul.bf16.gmra.mxu0 %v7668
    %v7682 = vpop.f32.mrf.mxu0
    %v7683 = vadd.f32 0.0, %v7682
    %v7684 = vpop.f32.mrf.mxu0
    %7685 = vdwg.mxu0
    %v7687 = vsel %vm2260, %v7598, 0
    %v7690 = vand.u32 %v7102, %v2267
    %7692 = vmatpush.bf16.msra.mxu0 0
    %7693 = vmatpush.bf16.msra.mxu0 0
    %7694 = vmatpush.bf16.msra.mxu0 0
    %7695 = vmatpush.bf16.msra.mxu0 0
    %7696 = vmatpush.bf16.msra.mxu0 0
    %7697 = vmatpush.bf16.msra.mxu0 0
    %7698 = vmatpush.bf16.msra.mxu0 0
    %7699 = vmatpush.bf16.msra.mxu0 %v7690
    %7700 = vmatmul.bf16.gmra.mxu0 %v7687
    %v7701 = vpop.f32.mrf.mxu0
    %v7702 = vadd.f32 0.0, %v7701
    %v7703 = vpop.f32.mrf.mxu0
    %7704 = vdwg.mxu0
    %v7706 = vsel %vm2260, %v7599, 0
    %v7709 = vand.u32 %v7103, %v2267
    %7711 = vmatpush.bf16.msra.mxu0 0
    %7712 = vmatpush.bf16.msra.mxu0 0
    %7713 = vmatpush.bf16.msra.mxu0 0
    %7714 = vmatpush.bf16.msra.mxu0 0
    %7715 = vmatpush.bf16.msra.mxu0 0
    %7716 = vmatpush.bf16.msra.mxu0 0
    %7717 = vmatpush.bf16.msra.mxu0 0
    %7718 = vmatpush.bf16.msra.mxu0 %v7709
    %7719 = vmatmul.bf16.gmra.mxu0 %v7706
    %v7720 = vpop.f32.mrf.mxu0
    %v7721 = vadd.f32 0.0, %v7720
    %v7722 = vpop.f32.mrf.mxu0
    %7723 = vdwg.mxu0
    %v7725 = vsel %vm2260, %v7600, 0
    %v7728 = vand.u32 %v7104, %v2267
    %7730 = vmatpush.bf16.msra.mxu0 0
    %7731 = vmatpush.bf16.msra.mxu0 0
    %7732 = vmatpush.bf16.msra.mxu0 0
    %7733 = vmatpush.bf16.msra.mxu0 0
    %7734 = vmatpush.bf16.msra.mxu0 0
    %7735 = vmatpush.bf16.msra.mxu0 0
    %7736 = vmatpush.bf16.msra.mxu0 0
    %7737 = vmatpush.bf16.msra.mxu0 %v7728
    %7738 = vmatmul.bf16.gmra.mxu0 %v7725
    %v7739 = vpop.f32.mrf.mxu0
    %v7740 = vadd.f32 0.0, %v7739
    %v7741 = vpop.f32.mrf.mxu0
    %7742 = vdwg.mxu0
    %v7744 = vsel %vm2260, %v7601, 0
    %v7747 = vand.u32 %v7105, %v2267
    %7749 = vmatpush.bf16.msra.mxu0 0
    %7750 = vmatpush.bf16.msra.mxu0 0
    %7751 = vmatpush.bf16.msra.mxu0 0
    %7752 = vmatpush.bf16.msra.mxu0 0
    %7753 = vmatpush.bf16.msra.mxu0 0
    %7754 = vmatpush.bf16.msra.mxu0 0
    %7755 = vmatpush.bf16.msra.mxu0 0
    %7756 = vmatpush.bf16.msra.mxu0 %v7747
    %7757 = vmatmul.bf16.gmra.mxu0 %v7744
    %v7758 = vpop.f32.mrf.mxu0
    %v7759 = vadd.f32 0.0, %v7758
    %v7760 = vpop.f32.mrf.mxu0
    %7761 = vdwg.mxu0
    %v7763 = vsel %vm2260, %v7602, 0
    %v7766 = vand.u32 %v7106, %v2267
    %7768 = vmatpush.bf16.msra.mxu0 0
    %7769 = vmatpush.bf16.msra.mxu0 0
    %7770 = vmatpush.bf16.msra.mxu0 0
    %7771 = vmatpush.bf16.msra.mxu0 0
    %7772 = vmatpush.bf16.msra.mxu0 0
    %7773 = vmatpush.bf16.msra.mxu0 0
    %7774 = vmatpush.bf16.msra.mxu0 0
    %7775 = vmatpush.bf16.msra.mxu0 %v7766
    %7776 = vmatmul.bf16.gmra.mxu0 %v7763
    %v7777 = vpop.f32.mrf.mxu0
    %v7778 = vadd.f32 0.0, %v7777
    %v7779 = vpop.f32.mrf.mxu0
    %7780 = vdwg.mxu0
    %v7782 = vsel %vm2260, %v7603, 0
    %v7785 = vand.u32 %v7107, %v2267
    %7787 = vmatpush.bf16.msra.mxu0 0
    %7788 = vmatpush.bf16.msra.mxu0 0
    %7789 = vmatpush.bf16.msra.mxu0 0
    %7790 = vmatpush.bf16.msra.mxu0 0
    %7791 = vmatpush.bf16.msra.mxu0 0
    %7792 = vmatpush.bf16.msra.mxu0 0
    %7793 = vmatpush.bf16.msra.mxu0 0
    %7794 = vmatpush.bf16.msra.mxu0 %v7785
    %7795 = vmatmul.bf16.gmra.mxu0 %v7782
    %v7796 = vpop.f32.mrf.mxu0
    %v7797 = vadd.f32 0.0, %v7796
    %v7798 = vpop.f32.mrf.mxu0
    %7799 = vdwg.mxu0
    %v7801 = vsel %vm2260, %v7604, 0
    %v7804 = vand.u32 %v7108, %v2267
    %7806 = vmatpush.bf16.msra.mxu0 0
    %7807 = vmatpush.bf16.msra.mxu0 0
    %7808 = vmatpush.bf16.msra.mxu0 0
    %7809 = vmatpush.bf16.msra.mxu0 0
    %7810 = vmatpush.bf16.msra.mxu0 0
    %7811 = vmatpush.bf16.msra.mxu0 0
    %7812 = vmatpush.bf16.msra.mxu0 0
    %7813 = vmatpush.bf16.msra.mxu0 %v7804
    %7814 = vmatmul.bf16.gmra.mxu0 %v7801
    %v7815 = vpop.f32.mrf.mxu0
    %v7816 = vadd.f32 0.0, %v7815
    %v7817 = vpop.f32.mrf.mxu0
    %7818 = vdwg.mxu0
    %v7820 = vsel %vm2260, %v7605, 0
    %v7823 = vand.u32 %v7109, %v2267
    %7825 = vmatpush.bf16.msra.mxu0 0
    %7826 = vmatpush.bf16.msra.mxu0 0
    %7827 = vmatpush.bf16.msra.mxu0 0
    %7828 = vmatpush.bf16.msra.mxu0 0
    %7829 = vmatpush.bf16.msra.mxu0 0
    %7830 = vmatpush.bf16.msra.mxu0 0
    %7831 = vmatpush.bf16.msra.mxu0 0
    %7832 = vmatpush.bf16.msra.mxu0 %v7823
    %7833 = vmatmul.bf16.gmra.mxu0 %v7820
    %v7834 = vpop.f32.mrf.mxu0
    %v7835 = vadd.f32 0.0, %v7834
    %v7836 = vpop.f32.mrf.mxu0
    %7837 = vdwg.mxu0
    %v7839 = vsel %vm2260, %v7606, 0
    %v7842 = vand.u32 %v7110, %v2267
    %7844 = vmatpush.bf16.msra.mxu0 0
    %7845 = vmatpush.bf16.msra.mxu0 0
    %7846 = vmatpush.bf16.msra.mxu0 0
    %7847 = vmatpush.bf16.msra.mxu0 0
    %7848 = vmatpush.bf16.msra.mxu0 0
    %7849 = vmatpush.bf16.msra.mxu0 0
    %7850 = vmatpush.bf16.msra.mxu0 0
    %7851 = vmatpush.bf16.msra.mxu0 %v7842
    %7852 = vmatmul.bf16.gmra.mxu0 %v7839
    %v7853 = vpop.f32.mrf.mxu0
    %v7854 = vadd.f32 0.0, %v7853
    %v7855 = vpop.f32.mrf.mxu0
    %7856 = vdwg.mxu0
    %v7858 = vsel %vm2260, %v7607, 0
    %v7861 = vand.u32 %v7111, %v2267
    %7863 = vmatpush.bf16.msra.mxu0 0
    %7864 = vmatpush.bf16.msra.mxu0 0
    %7865 = vmatpush.bf16.msra.mxu0 0
    %7866 = vmatpush.bf16.msra.mxu0 0
    %7867 = vmatpush.bf16.msra.mxu0 0
    %7868 = vmatpush.bf16.msra.mxu0 0
    %7869 = vmatpush.bf16.msra.mxu0 0
    %7870 = vmatpush.bf16.msra.mxu0 %v7861
    %7871 = vmatmul.bf16.gmra.mxu0 %v7858
    %v7872 = vpop.f32.mrf.mxu0
    %v7873 = vadd.f32 0.0, %v7872
    %v7874 = vpop.f32.mrf.mxu0
    %7875 = vdwg.mxu0
    %v7877 = vsel %vm2260, %v7608, 0
    %v7880 = vand.u32 %v7112, %v2267
    %7882 = vmatpush.bf16.msra.mxu0 0
    %7883 = vmatpush.bf16.msra.mxu0 0
    %7884 = vmatpush.bf16.msra.mxu0 0
    %7885 = vmatpush.bf16.msra.mxu0 0
    %7886 = vmatpush.bf16.msra.mxu0 0
    %7887 = vmatpush.bf16.msra.mxu0 0
    %7888 = vmatpush.bf16.msra.mxu0 0
    %7889 = vmatpush.bf16.msra.mxu0 %v7880
    %7890 = vmatmul.bf16.gmra.mxu0 %v7877
    %v7891 = vpop.f32.mrf.mxu0
    %v7892 = vadd.f32 0.0, %v7891
    %v7893 = vpop.f32.mrf.mxu0
    %7894 = vdwg.mxu0
    %v7896 = vsel %vm2260, %v7609, 0
    %v7899 = vand.u32 %v7113, %v2267
    %7901 = vmatpush.bf16.msra.mxu0 0
    %7902 = vmatpush.bf16.msra.mxu0 0
    %7903 = vmatpush.bf16.msra.mxu0 0
    %7904 = vmatpush.bf16.msra.mxu0 0
    %7905 = vmatpush.bf16.msra.mxu0 0
    %7906 = vmatpush.bf16.msra.mxu0 0
    %7907 = vmatpush.bf16.msra.mxu0 0
    %7908 = vmatpush.bf16.msra.mxu0 %v7899
    %7909 = vmatmul.bf16.gmra.mxu0 %v7896
    %v7910 = vpop.f32.mrf.mxu0
    %v7911 = vadd.f32 0.0, %v7910
    %v7912 = vpop.f32.mrf.mxu0
    %7913 = vdwg.mxu0
    %v7930 = vrot.slane %v7626, 1
    %v7931 = vrot.slane %v7626, 2
    %v7932 = vrot.slane %v7626, 3
    %v7933 = vrot.slane %v7626, 4
    %v7934 = vrot.slane %v7645, 1
    %v7935 = vrot.slane %v7645, 2
    %v7936 = vrot.slane %v7645, 3
    %v7937 = vrot.slane %v7645, 4
    %v7938 = vrot.slane %v7664, 1
    %v7939 = vrot.slane %v7664, 2
    %v7940 = vrot.slane %v7664, 3
    %v7941 = vrot.slane %v7664, 4
    %v7942 = vrot.slane %v7683, 1
    %v7943 = vrot.slane %v7683, 2
    %v7944 = vrot.slane %v7683, 3
    %v7945 = vrot.slane %v7683, 4
    %v7946 = vrot.slane %v7702, 1
    %v7947 = vrot.slane %v7702, 2
    %v7948 = vrot.slane %v7702, 3
    %v7949 = vrot.slane %v7702, 4
    %v7950 = vrot.slane %v7721, 1
    %v7951 = vrot.slane %v7721, 2
    %v7952 = vrot.slane %v7721, 3
    %v7953 = vrot.slane %v7721, 4
    %v7954 = vrot.slane %v7740, 1
    %v7955 = vrot.slane %v7740, 2
    %v7956 = vrot.slane %v7740, 3
    %v7957 = vrot.slane %v7740, 4
    %v7958 = vrot.slane %v7759, 1
    %v7959 = vrot.slane %v7759, 2
    %v7960 = vrot.slane %v7759, 3
    %v7961 = vrot.slane %v7759, 4
    %v7962 = vrot.slane %v7778, 1
    %v7963 = vrot.slane %v7778, 2
    %v7964 = vrot.slane %v7778, 3
    %v7965 = vrot.slane %v7778, 4
    %v7966 = vrot.slane %v7797, 1
    %v7967 = vrot.slane %v7797, 2
    %v7968 = vrot.slane %v7797, 3
    %v7969 = vrot.slane %v7797, 4
    %v7970 = vrot.slane %v7816, 1
    %v7971 = vrot.slane %v7816, 2
    %v7972 = vrot.slane %v7816, 3
    %v7973 = vrot.slane %v7816, 4
    %v7974 = vrot.slane %v7835, 1
    %v7975 = vrot.slane %v7835, 2
    %v7976 = vrot.slane %v7835, 3
    %v7977 = vrot.slane %v7835, 4
    %v7978 = vrot.slane %v7854, 1
    %v7979 = vrot.slane %v7854, 2
    %v7980 = vrot.slane %v7854, 3
    %v7981 = vrot.slane %v7854, 4
    %v7982 = vrot.slane %v7873, 1
    %v7983 = vrot.slane %v7873, 2
    %v7984 = vrot.slane %v7873, 3
    %v7985 = vrot.slane %v7873, 4
    %v7986 = vrot.slane %v7892, 1
    %v7987 = vrot.slane %v7892, 2
    %v7988 = vrot.slane %v7892, 3
    %v7989 = vrot.slane %v7892, 4
    %v7990 = vrot.slane %v7911, 1
    %v7991 = vrot.slane %v7911, 2
    %v7992 = vrot.slane %v7911, 3
    %v7993 = vrot.slane %v7911, 4
    %7994 = vst [vmem:[#allocation1] ss:$9 sm:$0xff] %v7626
    %s7995 = scalar_lea.vmem [#allocation1], 1
    %7996 = vst [vmem:[%s7995] ss:$9 sm:$0xff] %v7930
    %s7997 = scalar_lea.vmem [#allocation1], 2
    %7998 = vst [vmem:[%s7997] ss:$9 sm:$0xff] %v7931
    %s7999 = scalar_lea.vmem [#allocation1], 3
    %8000 = vst [vmem:[%s7999] ss:$9 sm:$0xff] %v7932
    %s8001 = scalar_lea.vmem [#allocation1], 4
    %8002 = vst [vmem:[%s8001] ss:$9 sm:$0xff] %v7933
    %s8003 = scalar_lea.vmem [#allocation1], 5
    %8004 = vst [vmem:[%s8003] ss:$9 sm:$0xff] %v7645
    %s8005 = scalar_lea.vmem [#allocation1], 6
    %8006 = vst [vmem:[%s8005] ss:$9 sm:$0xff] %v7934
    %s8007 = scalar_lea.vmem [#allocation1], 7
    %8008 = vst [vmem:[%s8007] ss:$9 sm:$0xff] %v7935
    %v8009 = vld [vmem:[#allocation1] sm:$0xff]
    %8010 = vst [vmem:[#allocation1] ss:$9 sm:$0xff] %v7936
    %8011 = vst [vmem:[%s7995] ss:$9 sm:$0xff] %v7937
    %8012 = vst [vmem:[%s7997] ss:$9 sm:$0xff] %v7664
    %8013 = vst [vmem:[%s7999] ss:$9 sm:$0xff] %v7938
    %8014 = vst [vmem:[%s8001] ss:$9 sm:$0xff] %v7939
    %8015 = vst [vmem:[%s8003] ss:$9 sm:$0xff] %v7940
    %8016 = vst [vmem:[%s8005] ss:$9 sm:$0xff] %v7941
    %8017 = vst [vmem:[%s8007] ss:$9 sm:$0xff] %v7683
    %v8018 = vld [vmem:[#allocation1] sm:$0xff]
    %8019 = vst [vmem:[#allocation1] ss:$9 sm:$0xff] %v7942
    %8020 = vst [vmem:[%s7995] ss:$9 sm:$0xff] %v7943
    %8021 = vst [vmem:[%s7997] ss:$9 sm:$0xff] %v7944
    %8022 = vst [vmem:[%s7999] ss:$9 sm:$0xff] %v7945
    %8023 = vst [vmem:[%s8001] ss:$9 sm:$0xff] %v7702
    %8024 = vst [vmem:[%s8003] ss:$9 sm:$0xff] %v7946
    %8025 = vst [vmem:[%s8005] ss:$9 sm:$0xff] %v7947
    %8026 = vst [vmem:[%s8007] ss:$9 sm:$0xff] %v7948
    %v8027 = vld [vmem:[#allocation1] sm:$0xff]
    %8028 = vst [vmem:[#allocation1] ss:$9 sm:$0xff] %v7949
    %8029 = vst [vmem:[%s7995] ss:$9 sm:$0xff] %v7721
    %8030 = vst [vmem:[%s7997] ss:$9 sm:$0xff] %v7950
    %8031 = vst [vmem:[%s7999] ss:$9 sm:$0xff] %v7951
    %8032 = vst [vmem:[%s8001] ss:$9 sm:$0xff] %v7952
    %8033 = vst [vmem:[%s8003] ss:$9 sm:$0xff] %v7953
    %8034 = vst [vmem:[%s8005] ss:$9 sm:$0xff] %v7740
    %8035 = vst [vmem:[%s8007] ss:$9 sm:$0xff] %v7954
    %v8036 = vld [vmem:[#allocation1] sm:$0xff]
    %8037 = vst [vmem:[#allocation1] ss:$9 sm:$0xff] %v7955
    %8038 = vst [vmem:[%s7995] ss:$9 sm:$0xff] %v7956
    %8039 = vst [vmem:[%s7997] ss:$9 sm:$0xff] %v7957
    %8040 = vst [vmem:[%s7999] ss:$9 sm:$0xff] %v7759
    %8041 = vst [vmem:[%s8001] ss:$9 sm:$0xff] %v7958
    %8042 = vst [vmem:[%s8003] ss:$9 sm:$0xff] %v7959
    %8043 = vst [vmem:[%s8005] ss:$9 sm:$0xff] %v7960
    %8044 = vst [vmem:[%s8007] ss:$9 sm:$0xff] %v7961
    %v8045 = vld [vmem:[#allocation1] sm:$0xff]
    %8046 = vst [vmem:[#allocation1] ss:$9 sm:$0xff] %v7778
    %8047 = vst [vmem:[%s7995] ss:$9 sm:$0xff] %v7962
    %8048 = vst [vmem:[%s7997] ss:$9 sm:$0xff] %v7963
    %8049 = vst [vmem:[%s7999] ss:$9 sm:$0xff] %v7964
    %8050 = vst [vmem:[%s8001] ss:$9 sm:$0xff] %v7965
    %8051 = vst [vmem:[%s8003] ss:$9 sm:$0xff] %v7797
    %8052 = vst [vmem:[%s8005] ss:$9 sm:$0xff] %v7966
    %8053 = vst [vmem:[%s8007] ss:$9 sm:$0xff] %v7967
    %v8054 = vld [vmem:[#allocation1] sm:$0xff]
    %8055 = vst [vmem:[#allocation1] ss:$9 sm:$0xff] %v7968
    %8056 = vst [vmem:[%s7995] ss:$9 sm:$0xff] %v7969
    %8057 = vst [vmem:[%s7997] ss:$9 sm:$0xff] %v7816
    %8058 = vst [vmem:[%s7999] ss:$9 sm:$0xff] %v7970
    %8059 = vst [vmem:[%s8001] ss:$9 sm:$0xff] %v7971
    %8060 = vst [vmem:[%s8003] ss:$9 sm:$0xff] %v7972
    %8061 = vst [vmem:[%s8005] ss:$9 sm:$0xff] %v7973
    %8062 = vst [vmem:[%s8007] ss:$9 sm:$0xff] %v7835
    %v8063 = vld [vmem:[#allocation1] sm:$0xff]
    %8064 = vst [vmem:[#allocation1] ss:$9 sm:$0xff] %v7974
    %8065 = vst [vmem:[%s7995] ss:$9 sm:$0xff] %v7975
    %8066 = vst [vmem:[%s7997] ss:$9 sm:$0xff] %v7976
    %8067 = vst [vmem:[%s7999] ss:$9 sm:$0xff] %v7977
    %8068 = vst [vmem:[%s8001] ss:$9 sm:$0xff] %v7854
    %8069 = vst [vmem:[%s8003] ss:$9 sm:$0xff] %v7978
    %8070 = vst [vmem:[%s8005] ss:$9 sm:$0xff] %v7979
    %8071 = vst [vmem:[%s8007] ss:$9 sm:$0xff] %v7980
    %v8072 = vld [vmem:[#allocation1] sm:$0xff]
    %8073 = vst [vmem:[#allocation1] ss:$9 sm:$0xff] %v7981
    %8074 = vst [vmem:[%s7995] ss:$9 sm:$0xff] %v7873
    %8075 = vst [vmem:[%s7997] ss:$9 sm:$0xff] %v7982
    %8076 = vst [vmem:[%s7999] ss:$9 sm:$0xff] %v7983
    %8077 = vst [vmem:[%s8001] ss:$9 sm:$0xff] %v7984
    %8078 = vst [vmem:[%s8003] ss:$9 sm:$0xff] %v7985
    %8079 = vst [vmem:[%s8005] ss:$9 sm:$0xff] %v7892
    %8080 = vst [vmem:[%s8007] ss:$9 sm:$0xff] %v7986
    %v8081 = vld [vmem:[#allocation1] sm:$0xff]
    %8082 = vst [vmem:[#allocation1] ss:$9 sm:$0xff] %v7987
    %8083 = vst [vmem:[%s7995] ss:$9 sm:$0xff] %v7988
    %8084 = vst [vmem:[%s7997] ss:$9 sm:$0xff] %v7989
    %8085 = vst [vmem:[%s7999] ss:$9 sm:$0xff] %v7911
    %8086 = vst [vmem:[%s8001] ss:$9 sm:$0xff] %v7990
    %8087 = vst [vmem:[%s8003] ss:$9 sm:$0xff] %v7991
    %8088 = vst [vmem:[%s8005] ss:$9 sm:$0xff] %v7992
    %8089 = vst [vmem:[%s8007] ss:$9 sm:$0xff] %v7993
    %v8090 = vld [vmem:[#allocation1] sm:$0xff]
    %v8101 = vpack.c.bf16 %v8018, %v8009
    %v8102 = vpack.c.bf16 %v8036, %v8027
    %v8103 = vpack.c.bf16 %v8054, %v8045
    %v8104 = vpack.c.bf16 %v8072, %v8063
    %v8105 = vpack.c.bf16 %v8090, %v8081
    %s8106 = scalar_lea.vmem %s13, 64
    %v8107 = vld [vmem:[%s8106] sm:$0xf]
    %v8108 = vld [vmem:[%s8106 + $0x4] sm:$0xf]
    %v8109 = vld [vmem:[%s8106 + $0x8] sm:$0xf]
    %v8110 = vld [vmem:[%s8106 + $0xc] sm:$0xf]
    %v8111 = vld [vmem:[%s8106 + $0x10] sm:$0xf]
    %v8112 = vld [vmem:[%s8106 + $0x14] sm:$0xf]
    %v8113 = vld [vmem:[%s8106 + $0x18] sm:$0xf]
    %v8114 = vld [vmem:[%s8106 + $0x1c] sm:$0xf]
    %s8115 = scalar_lea.vmem %s7, 192
    %v8116 = vld [vmem:[%s8115] sm:$0xf]
    %v8117 = vld [vmem:[%s8115 + $0x4] sm:$0xf]
    %v8118 = vld [vmem:[%s8115 + $0x8] sm:$0xf]
    %v8119 = vld [vmem:[%s8115 + $0xc] sm:$0xf]
    %v8120 = vld [vmem:[%s8115 + $0x10] sm:$0xf]
    %v8121 = vld [vmem:[%s8115 + $0x14] sm:$0xf]
    %v8122 = vld [vmem:[%s8115 + $0x18] sm:$0xf]
    %v8123 = vld [vmem:[%s8115 + $0x1c] sm:$0xf]
    %v8124 = vld [vmem:[%s8115 + $0x20] sm:$0xf]
    %v8125 = vld [vmem:[%s8115 + $0x24] sm:$0xf]
    %v8126 = vld [vmem:[%s8115 + $0x28] sm:$0xf]
    %v8127 = vld [vmem:[%s8115 + $0x2c] sm:$0xf]
    %v8128 = vld [vmem:[%s8115 + $0x30] sm:$0xf]
    %v8129 = vld [vmem:[%s8115 + $0x34] sm:$0xf]
    %v8130 = vld [vmem:[%s8115 + $0x38] sm:$0xf]
    %v8131 = vld [vmem:[%s8115 + $0x3c] sm:$0xf]
    %s8132 = scalar_lea.vmem %s8, 3
    %v8133 = vld [vmem:[%s8132] sm:$0x1]
    %v8135 = vperm.slane %v8133, 0
    %v8153 = vunpack.c.l.b16 %v8116
    %v8154 = vunpack.c.l.b16 %v8117
    %v8155 = vunpack.c.l.b16 %v8118
    %v8156 = vunpack.c.l.b16 %v8119
    %v8157 = vunpack.c.l.b16 %v8120
    %v8158 = vunpack.c.l.b16 %v8121
    %v8159 = vunpack.c.l.b16 %v8122
    %v8160 = vunpack.c.l.b16 %v8123
    %v8161 = vunpack.c.l.b16 %v8124
    %v8162 = vunpack.c.l.b16 %v8125
    %v8163 = vunpack.c.l.b16 %v8126
    %v8164 = vunpack.c.l.b16 %v8127
    %v8165 = vunpack.c.l.b16 %v8128
    %v8166 = vunpack.c.l.b16 %v8129
    %v8167 = vunpack.c.l.b16 %v8130
    %v8168 = vunpack.c.l.b16 %v8131
    %v8169 = vpack.c.b16 %v8154, %v8153
    %v8170 = vpack.c.b16 %v8156, %v8155
    %v8171 = vpack.c.b16 %v8158, %v8157
    %v8172 = vpack.c.b16 %v8160, %v8159
    %v8173 = vpack.c.b16 %v8162, %v8161
    %v8174 = vpack.c.b16 %v8164, %v8163
    %v8175 = vpack.c.b16 %v8166, %v8165
    %v8176 = vpack.c.b16 %v8168, %v8167
    %8185 = vmatpush.bf16.msra.mxu0 %v8176
    %8186 = vmatpush.bf16.msra.mxu0 %v8175
    %8187 = vmatpush.bf16.msra.mxu0 %v8174
    %8188 = vmatpush.bf16.msra.mxu0 %v8173
    %8189 = vmatpush.bf16.msra.mxu0 %v8172
    %8190 = vmatpush.bf16.msra.mxu0 %v8171
    %8191 = vmatpush.bf16.msra.mxu0 %v8170
    %8192 = vmatpush.bf16.msra.mxu0 %v8169
    %8193 = vmatmul.bf16.gmra.mxu0 %v6161
    %v8194 = vpop.f32.mrf.mxu0
    %v8195 = vadd.f32 %v8135, %v8194
    %v8196 = vpop.f32.mrf.mxu0
    %v8197 = vadd.f32 %v8135, %v8196
    %8198 = vmatmul.bf16.gmra.mxu0 %v6162
    %v8199 = vpop.f32.mrf.mxu0
    %v8200 = vadd.f32 %v8135, %v8199
    %v8201 = vpop.f32.mrf.mxu0
    %v8202 = vadd.f32 %v8135, %v8201
    %8203 = vmatmul.bf16.gmra.mxu0 %v6163
    %v8204 = vpop.f32.mrf.mxu0
    %v8205 = vadd.f32 %v8135, %v8204
    %v8206 = vpop.f32.mrf.mxu0
    %v8207 = vadd.f32 %v8135, %v8206
    %8208 = vmatmul.bf16.gmra.mxu0 %v6164
    %v8209 = vpop.f32.mrf.mxu0
    %v8210 = vadd.f32 %v8135, %v8209
    %v8211 = vpop.f32.mrf.mxu0
    %v8212 = vadd.f32 %v8135, %v8211
    %8213 = vmatmul.bf16.gmra.mxu0 %v6165
    %v8214 = vpop.f32.mrf.mxu0
    %v8215 = vadd.f32 %v8135, %v8214
    %v8216 = vpop.f32.mrf.mxu0
    %v8217 = vadd.f32 %v8135, %v8216
    %8218 = vdwg.mxu0
    %s8219 = scalar_lea.vmem %s9, 192
    %v8220 = vld [vmem:[%s8219] sm:$0xf]
    %v8221 = vld [vmem:[%s8219 + $0x4] sm:$0xf]
    %v8222 = vld [vmem:[%s8219 + $0x8] sm:$0xf]
    %v8223 = vld [vmem:[%s8219 + $0xc] sm:$0xf]
    %v8224 = vld [vmem:[%s8219 + $0x10] sm:$0xf]
    %v8225 = vld [vmem:[%s8219 + $0x14] sm:$0xf]
    %v8226 = vld [vmem:[%s8219 + $0x18] sm:$0xf]
    %v8227 = vld [vmem:[%s8219 + $0x1c] sm:$0xf]
    %v8228 = vld [vmem:[%s8219 + $0x20] sm:$0xf]
    %v8229 = vld [vmem:[%s8219 + $0x24] sm:$0xf]
    %v8230 = vld [vmem:[%s8219 + $0x28] sm:$0xf]
    %v8231 = vld [vmem:[%s8219 + $0x2c] sm:$0xf]
    %v8232 = vld [vmem:[%s8219 + $0x30] sm:$0xf]
    %v8233 = vld [vmem:[%s8219 + $0x34] sm:$0xf]
    %v8234 = vld [vmem:[%s8219 + $0x38] sm:$0xf]
    %v8235 = vld [vmem:[%s8219 + $0x3c] sm:$0xf]
    %s8236 = scalar_lea.vmem %s10, 3
    %v8237 = vld [vmem:[%s8236] sm:$0x1]
    %v8239 = vperm.slane %v8237, 0
    %v8257 = vunpack.c.l.b16 %v8220
    %v8258 = vunpack.c.l.b16 %v8221
    %v8259 = vunpack.c.l.b16 %v8222
    %v8260 = vunpack.c.l.b16 %v8223
    %v8261 = vunpack.c.l.b16 %v8224
    %v8262 = vunpack.c.l.b16 %v8225
    %v8263 = vunpack.c.l.b16 %v8226
    %v8264 = vunpack.c.l.b16 %v8227
    %v8265 = vunpack.c.l.b16 %v8228
    %v8266 = vunpack.c.l.b16 %v8229
    %v8267 = vunpack.c.l.b16 %v8230
    %v8268 = vunpack.c.l.b16 %v8231
    %v8269 = vunpack.c.l.b16 %v8232
    %v8270 = vunpack.c.l.b16 %v8233
    %v8271 = vunpack.c.l.b16 %v8234
    %v8272 = vunpack.c.l.b16 %v8235
    %v8273 = vpack.c.b16 %v8258, %v8257
    %v8274 = vpack.c.b16 %v8260, %v8259
    %v8275 = vpack.c.b16 %v8262, %v8261
    %v8276 = vpack.c.b16 %v8264, %v8263
    %v8277 = vpack.c.b16 %v8266, %v8265
    %v8278 = vpack.c.b16 %v8268, %v8267
    %v8279 = vpack.c.b16 %v8270, %v8269
    %v8280 = vpack.c.b16 %v8272, %v8271
    %8289 = vmatpush.bf16.msra.mxu0 %v8280
    %8290 = vmatpush.bf16.msra.mxu0 %v8279
    %8291 = vmatpush.bf16.msra.mxu0 %v8278
    %8292 = vmatpush.bf16.msra.mxu0 %v8277
    %8293 = vmatpush.bf16.msra.mxu0 %v8276
    %8294 = vmatpush.bf16.msra.mxu0 %v8275
    %8295 = vmatpush.bf16.msra.mxu0 %v8274
    %8296 = vmatpush.bf16.msra.mxu0 %v8273
    %8297 = vmatmul.bf16.gmra.mxu0 %v6161
    %v8298 = vpop.f32.mrf.mxu0
    %v8299 = vadd.f32 %v8239, %v8298
    %v8300 = vpop.f32.mrf.mxu0
    %v8301 = vadd.f32 %v8239, %v8300
    %8302 = vmatmul.bf16.gmra.mxu0 %v6162
    %v8303 = vpop.f32.mrf.mxu0
    %v8304 = vadd.f32 %v8239, %v8303
    %v8305 = vpop.f32.mrf.mxu0
    %v8306 = vadd.f32 %v8239, %v8305
    %8307 = vmatmul.bf16.gmra.mxu0 %v6163
    %v8308 = vpop.f32.mrf.mxu0
    %v8309 = vadd.f32 %v8239, %v8308
    %v8310 = vpop.f32.mrf.mxu0
    %v8311 = vadd.f32 %v8239, %v8310
    %8312 = vmatmul.bf16.gmra.mxu0 %v6164
    %v8313 = vpop.f32.mrf.mxu0
    %v8314 = vadd.f32 %v8239, %v8313
    %v8315 = vpop.f32.mrf.mxu0
    %v8316 = vadd.f32 %v8239, %v8315
    %8317 = vmatmul.bf16.gmra.mxu0 %v6165
    %v8318 = vpop.f32.mrf.mxu0
    %v8319 = vadd.f32 %v8239, %v8318
    %v8320 = vpop.f32.mrf.mxu0
    %v8321 = vadd.f32 %v8239, %v8320
    %8322 = vdwg.mxu0
    %s8323 = scalar_lea.vmem %s11, 192
    %v8324 = vld [vmem:[%s8323] sm:$0xf]
    %v8325 = vld [vmem:[%s8323 + $0x4] sm:$0xf]
    %v8326 = vld [vmem:[%s8323 + $0x8] sm:$0xf]
    %v8327 = vld [vmem:[%s8323 + $0xc] sm:$0xf]
    %v8328 = vld [vmem:[%s8323 + $0x10] sm:$0xf]
    %v8329 = vld [vmem:[%s8323 + $0x14] sm:$0xf]
    %v8330 = vld [vmem:[%s8323 + $0x18] sm:$0xf]
    %v8331 = vld [vmem:[%s8323 + $0x1c] sm:$0xf]
    %v8332 = vld [vmem:[%s8323 + $0x20] sm:$0xf]
    %v8333 = vld [vmem:[%s8323 + $0x24] sm:$0xf]
    %v8334 = vld [vmem:[%s8323 + $0x28] sm:$0xf]
    %v8335 = vld [vmem:[%s8323 + $0x2c] sm:$0xf]
    %v8336 = vld [vmem:[%s8323 + $0x30] sm:$0xf]
    %v8337 = vld [vmem:[%s8323 + $0x34] sm:$0xf]
    %v8338 = vld [vmem:[%s8323 + $0x38] sm:$0xf]
    %v8339 = vld [vmem:[%s8323 + $0x3c] sm:$0xf]
    %s8340 = scalar_lea.vmem %s12, 3
    %v8341 = vld [vmem:[%s8340] sm:$0x1]
    %v8343 = vperm.slane %v8341, 0
    %v8361 = vunpack.c.l.b16 %v8324
    %v8362 = vunpack.c.l.b16 %v8325
    %v8363 = vunpack.c.l.b16 %v8326
    %v8364 = vunpack.c.l.b16 %v8327
    %v8365 = vunpack.c.l.b16 %v8328
    %v8366 = vunpack.c.l.b16 %v8329
    %v8367 = vunpack.c.l.b16 %v8330
    %v8368 = vunpack.c.l.b16 %v8331
    %v8369 = vunpack.c.l.b16 %v8332
    %v8370 = vunpack.c.l.b16 %v8333
    %v8371 = vunpack.c.l.b16 %v8334
    %v8372 = vunpack.c.l.b16 %v8335
    %v8373 = vunpack.c.l.b16 %v8336
    %v8374 = vunpack.c.l.b16 %v8337
    %v8375 = vunpack.c.l.b16 %v8338
    %v8376 = vunpack.c.l.b16 %v8339
    %v8377 = vpack.c.b16 %v8362, %v8361
    %v8378 = vpack.c.b16 %v8364, %v8363
    %v8379 = vpack.c.b16 %v8366, %v8365
    %v8380 = vpack.c.b16 %v8368, %v8367
    %v8381 = vpack.c.b16 %v8370, %v8369
    %v8382 = vpack.c.b16 %v8372, %v8371
    %v8383 = vpack.c.b16 %v8374, %v8373
    %v8384 = vpack.c.b16 %v8376, %v8375
    %8393 = vmatpush.bf16.msra.mxu0 %v8384
    %8394 = vmatpush.bf16.msra.mxu0 %v8383
    %8395 = vmatpush.bf16.msra.mxu0 %v8382
    %8396 = vmatpush.bf16.msra.mxu0 %v8381
    %8397 = vmatpush.bf16.msra.mxu0 %v8380
    %8398 = vmatpush.bf16.msra.mxu0 %v8379
    %8399 = vmatpush.bf16.msra.mxu0 %v8378
    %8400 = vmatpush.bf16.msra.mxu0 %v8377
    %8401 = vmatmul.bf16.gmra.mxu0 %v6161
    %v8402 = vpop.f32.mrf.mxu0
    %v8403 = vadd.f32 %v8343, %v8402
    %v8404 = vpop.f32.mrf.mxu0
    %v8405 = vadd.f32 %v8343, %v8404
    %8406 = vmatmul.bf16.gmra.mxu0 %v6162
    %v8407 = vpop.f32.mrf.mxu0
    %v8408 = vadd.f32 %v8343, %v8407
    %v8409 = vpop.f32.mrf.mxu0
    %v8410 = vadd.f32 %v8343, %v8409
    %8411 = vmatmul.bf16.gmra.mxu0 %v6163
    %v8412 = vpop.f32.mrf.mxu0
    %v8413 = vadd.f32 %v8343, %v8412
    %v8414 = vpop.f32.mrf.mxu0
    %v8415 = vadd.f32 %v8343, %v8414
    %8416 = vmatmul.bf16.gmra.mxu0 %v6164
    %v8417 = vpop.f32.mrf.mxu0
    %v8418 = vadd.f32 %v8343, %v8417
    %v8419 = vpop.f32.mrf.mxu0
    %v8420 = vadd.f32 %v8343, %v8419
    %8421 = vmatmul.bf16.gmra.mxu0 %v6165
    %v8422 = vpop.f32.mrf.mxu0
    %v8423 = vadd.f32 %v8343, %v8422
    %v8424 = vpop.f32.mrf.mxu0
    %v8425 = vadd.f32 %v8343, %v8424
    %8426 = vdwg.mxu0
    %v8437 = vrot.slane %v8195, 1
    %v8438 = vrot.slane %v8195, 2
    %v8439 = vrot.slane %v8195, 3
    %v8440 = vrot.slane %v8195, 4
    %v8441 = vrot.slane %v8195, 5
    %v8442 = vrot.slane %v8195, 6
    %v8443 = vrot.slane %v8195, 7
    %v8444 = vrot.slane %v8197, 1
    %v8445 = vrot.slane %v8197, 2
    %v8446 = vrot.slane %v8197, 3
    %v8447 = vrot.slane %v8197, 4
    %v8448 = vrot.slane %v8197, 5
    %v8449 = vrot.slane %v8197, 6
    %v8450 = vrot.slane %v8197, 7
    %v8451 = vrot.slane %v8200, 1
    %v8452 = vrot.slane %v8200, 2
    %v8453 = vrot.slane %v8200, 3
    %v8454 = vrot.slane %v8200, 4
    %v8455 = vrot.slane %v8200, 5
    %v8456 = vrot.slane %v8200, 6
    %v8457 = vrot.slane %v8200, 7
    %v8458 = vrot.slane %v8202, 1
    %v8459 = vrot.slane %v8202, 2
    %v8460 = vrot.slane %v8202, 3
    %v8461 = vrot.slane %v8202, 4
    %v8462 = vrot.slane %v8202, 5
    %v8463 = vrot.slane %v8202, 6
    %v8464 = vrot.slane %v8202, 7
    %v8465 = vrot.slane %v8205, 1
    %v8466 = vrot.slane %v8205, 2
    %v8467 = vrot.slane %v8205, 3
    %v8468 = vrot.slane %v8205, 4
    %v8469 = vrot.slane %v8205, 5
    %v8470 = vrot.slane %v8205, 6
    %v8471 = vrot.slane %v8205, 7
    %v8472 = vrot.slane %v8207, 1
    %v8473 = vrot.slane %v8207, 2
    %v8474 = vrot.slane %v8207, 3
    %v8475 = vrot.slane %v8207, 4
    %v8476 = vrot.slane %v8207, 5
    %v8477 = vrot.slane %v8207, 6
    %v8478 = vrot.slane %v8207, 7
    %v8479 = vrot.slane %v8210, 1
    %v8480 = vrot.slane %v8210, 2
    %v8481 = vrot.slane %v8210, 3
    %v8482 = vrot.slane %v8210, 4
    %v8483 = vrot.slane %v8210, 5
    %v8484 = vrot.slane %v8210, 6
    %v8485 = vrot.slane %v8210, 7
    %v8486 = vrot.slane %v8212, 1
    %v8487 = vrot.slane %v8212, 2
    %v8488 = vrot.slane %v8212, 3
    %v8489 = vrot.slane %v8212, 4
    %v8490 = vrot.slane %v8212, 5
    %v8491 = vrot.slane %v8212, 6
    %v8492 = vrot.slane %v8212, 7
    %v8493 = vrot.slane %v8215, 1
    %v8494 = vrot.slane %v8215, 2
    %v8495 = vrot.slane %v8215, 3
    %v8496 = vrot.slane %v8215, 4
    %v8497 = vrot.slane %v8215, 5
    %v8498 = vrot.slane %v8215, 6
    %v8499 = vrot.slane %v8215, 7
    %v8500 = vrot.slane %v8217, 1
    %v8501 = vrot.slane %v8217, 2
    %v8502 = vrot.slane %v8217, 3
    %v8503 = vrot.slane %v8217, 4
    %v8504 = vrot.slane %v8217, 5
    %v8505 = vrot.slane %v8217, 6
    %v8506 = vrot.slane %v8217, 7
    %8507 = vst [vmem:[#allocation1] ss:$9 sm:$0xff] %v8195
    %s8508 = scalar_lea.vmem [#allocation1], 1
    %8509 = vst [vmem:[%s8508] ss:$9 sm:$0xff] %v8437
    %s8510 = scalar_lea.vmem [#allocation1], 2
    %8511 = vst [vmem:[%s8510] ss:$9 sm:$0xff] %v8438
    %s8512 = scalar_lea.vmem [#allocation1], 3
    %8513 = vst [vmem:[%s8512] ss:$9 sm:$0xff] %v8439
    %s8514 = scalar_lea.vmem [#allocation1], 4
    %8515 = vst [vmem:[%s8514] ss:$9 sm:$0xff] %v8440
    %v8516 = vld [vmem:[#allocation1] sm:$0xff]
    %8517 = vst [vmem:[#allocation1] ss:$9 sm:$0xff] %v8441
    %8518 = vst [vmem:[%s8508] ss:$9 sm:$0xff] %v8442
    %8519 = vst [vmem:[%s8510] ss:$9 sm:$0xff] %v8443
    %8520 = vst [vmem:[%s8512] ss:$9 sm:$0xff] %v8197
    %8521 = vst [vmem:[%s8514] ss:$9 sm:$0xff] %v8444
    %v8522 = vld [vmem:[#allocation1] sm:$0xff]
    %8523 = vst [vmem:[#allocation1] ss:$9 sm:$0xff] %v8445
    %8524 = vst [vmem:[%s8508] ss:$9 sm:$0xff] %v8446
    %8525 = vst [vmem:[%s8510] ss:$9 sm:$0xff] %v8447
    %8526 = vst [vmem:[%s8512] ss:$9 sm:$0xff] %v8448
    %8527 = vst [vmem:[%s8514] ss:$9 sm:$0xff] %v8449
    %v8528 = vld [vmem:[#allocation1] sm:$0xff]
    %8529 = vst [vmem:[#allocation1] ss:$9 sm:$0xff] %v8450
    %8530 = vst [vmem:[%s8508] ss:$9 sm:$0xff] %v8200
    %8531 = vst [vmem:[%s8510] ss:$9 sm:$0xff] %v8451
    %8532 = vst [vmem:[%s8512] ss:$9 sm:$0xff] %v8452
    %8533 = vst [vmem:[%s8514] ss:$9 sm:$0xff] %v8453
    %v8534 = vld [vmem:[#allocation1] sm:$0xff]
    %8535 = vst [vmem:[#allocation1] ss:$9 sm:$0xff] %v8454
    %8536 = vst [vmem:[%s8508] ss:$9 sm:$0xff] %v8455
    %8537 = vst [vmem:[%s8510] ss:$9 sm:$0xff] %v8456
    %8538 = vst [vmem:[%s8512] ss:$9 sm:$0xff] %v8457
    %8539 = vst [vmem:[%s8514] ss:$9 sm:$0xff] %v8202
    %v8540 = vld [vmem:[#allocation1] sm:$0xff]
    %8541 = vst [vmem:[#allocation1] ss:$9 sm:$0xff] %v8458
    %8542 = vst [vmem:[%s8508] ss:$9 sm:$0xff] %v8459
    %8543 = vst [vmem:[%s8510] ss:$9 sm:$0xff] %v8460
    %8544 = vst [vmem:[%s8512] ss:$9 sm:$0xff] %v8461
    %8545 = vst [vmem:[%s8514] ss:$9 sm:$0xff] %v8462
    %v8546 = vld [vmem:[#allocation1] sm:$0xff]
    %8547 = vst [vmem:[#allocation1] ss:$9 sm:$0xff] %v8463
    %8548 = vst [vmem:[%s8508] ss:$9 sm:$0xff] %v8464
    %8549 = vst [vmem:[%s8510] ss:$9 sm:$0xff] %v8205
    %8550 = vst [vmem:[%s8512] ss:$9 sm:$0xff] %v8465
    %8551 = vst [vmem:[%s8514] ss:$9 sm:$0xff] %v8466
    %v8552 = vld [vmem:[#allocation1] sm:$0xff]
    %8553 = vst [vmem:[#allocation1] ss:$9 sm:$0xff] %v8467
    %8554 = vst [vmem:[%s8508] ss:$9 sm:$0xff] %v8468
    %8555 = vst [vmem:[%s8510] ss:$9 sm:$0xff] %v8469
    %8556 = vst [vmem:[%s8512] ss:$9 sm:$0xff] %v8470
    %8557 = vst [vmem:[%s8514] ss:$9 sm:$0xff] %v8471
    %v8558 = vld [vmem:[#allocation1] sm:$0xff]
    %8559 = vst [vmem:[#allocation1] ss:$9 sm:$0xff] %v8207
    %8560 = vst [vmem:[%s8508] ss:$9 sm:$0xff] %v8472
    %8561 = vst [vmem:[%s8510] ss:$9 sm:$0xff] %v8473
    %8562 = vst [vmem:[%s8512] ss:$9 sm:$0xff] %v8474
    %8563 = vst [vmem:[%s8514] ss:$9 sm:$0xff] %v8475
    %v8564 = vld [vmem:[#allocation1] sm:$0xff]
    %8565 = vst [vmem:[#allocation1] ss:$9 sm:$0xff] %v8476
    %8566 = vst [vmem:[%s8508] ss:$9 sm:$0xff] %v8477
    %8567 = vst [vmem:[%s8510] ss:$9 sm:$0xff] %v8478
    %8568 = vst [vmem:[%s8512] ss:$9 sm:$0xff] %v8210
    %8569 = vst [vmem:[%s8514] ss:$9 sm:$0xff] %v8479
    %v8570 = vld [vmem:[#allocation1] sm:$0xff]
    %8571 = vst [vmem:[#allocation1] ss:$9 sm:$0xff] %v8480
    %8572 = vst [vmem:[%s8508] ss:$9 sm:$0xff] %v8481
    %8573 = vst [vmem:[%s8510] ss:$9 sm:$0xff] %v8482
    %8574 = vst [vmem:[%s8512] ss:$9 sm:$0xff] %v8483
    %8575 = vst [vmem:[%s8514] ss:$9 sm:$0xff] %v8484
    %v8576 = vld [vmem:[#allocation1] sm:$0xff]
    %8577 = vst [vmem:[#allocation1] ss:$9 sm:$0xff] %v8485
    %8578 = vst [vmem:[%s8508] ss:$9 sm:$0xff] %v8212
    %8579 = vst [vmem:[%s8510] ss:$9 sm:$0xff] %v8486
    %8580 = vst [vmem:[%s8512] ss:$9 sm:$0xff] %v8487
    %8581 = vst [vmem:[%s8514] ss:$9 sm:$0xff] %v8488
    %v8582 = vld [vmem:[#allocation1] sm:$0xff]
    %8583 = vst [vmem:[#allocation1] ss:$9 sm:$0xff] %v8489
    %8584 = vst [vmem:[%s8508] ss:$9 sm:$0xff] %v8490
    %8585 = vst [vmem:[%s8510] ss:$9 sm:$0xff] %v8491
    %8586 = vst [vmem:[%s8512] ss:$9 sm:$0xff] %v8492
    %8587 = vst [vmem:[%s8514] ss:$9 sm:$0xff] %v8215
    %v8588 = vld [vmem:[#allocation1] sm:$0xff]
    %8589 = vst [vmem:[#allocation1] ss:$9 sm:$0xff] %v8493
    %8590 = vst [vmem:[%s8508] ss:$9 sm:$0xff] %v8494
    %8591 = vst [vmem:[%s8510] ss:$9 sm:$0xff] %v8495
    %8592 = vst [vmem:[%s8512] ss:$9 sm:$0xff] %v8496
    %8593 = vst [vmem:[%s8514] ss:$9 sm:$0xff] %v8497
    %v8594 = vld [vmem:[#allocation1] sm:$0xff]
    %8595 = vst [vmem:[#allocation1] ss:$9 sm:$0xff] %v8498
    %8596 = vst [vmem:[%s8508] ss:$9 sm:$0xff] %v8499
    %8597 = vst [vmem:[%s8510] ss:$9 sm:$0xff] %v8217
    %8598 = vst [vmem:[%s8512] ss:$9 sm:$0xff] %v8500
    %8599 = vst [vmem:[%s8514] ss:$9 sm:$0xff] %v8501
    %v8600 = vld [vmem:[#allocation1] sm:$0xff]
    %8601 = vst [vmem:[#allocation1] ss:$9 sm:$0xff] %v8502
    %8602 = vst [vmem:[%s8508] ss:$9 sm:$0xff] %v8503
    %8603 = vst [vmem:[%s8510] ss:$9 sm:$0xff] %v8504
    %8604 = vst [vmem:[%s8512] ss:$9 sm:$0xff] %v8505
    %8605 = vst [vmem:[%s8514] ss:$9 sm:$0xff] %v8506
    %v8606 = vld [vmem:[#allocation1] sm:$0xff]
    %v8623 = vpack.c.bf16 %v8516, %v8516
    %v8624 = vpack.c.bf16 %v8522, %v8522
    %v8625 = vpack.c.bf16 %v8528, %v8528
    %v8626 = vpack.c.bf16 %v8534, %v8534
    %v8627 = vpack.c.bf16 %v8540, %v8540
    %v8628 = vpack.c.bf16 %v8546, %v8546
    %v8629 = vpack.c.bf16 %v8552, %v8552
    %v8630 = vpack.c.bf16 %v8558, %v8558
    %v8631 = vpack.c.bf16 %v8564, %v8564
    %v8632 = vpack.c.bf16 %v8570, %v8570
    %v8633 = vpack.c.bf16 %v8576, %v8576
    %v8634 = vpack.c.bf16 %v8582, %v8582
    %v8635 = vpack.c.bf16 %v8588, %v8588
    %v8636 = vpack.c.bf16 %v8594, %v8594
    %v8637 = vpack.c.bf16 %v8600, %v8600
    %v8638 = vpack.c.bf16 %v8606, %v8606
    %v8649 = vrot.slane %v8299, 1
    %v8650 = vrot.slane %v8299, 2
    %v8651 = vrot.slane %v8299, 3
    %v8652 = vrot.slane %v8299, 4
    %v8653 = vrot.slane %v8299, 5
    %v8654 = vrot.slane %v8299, 6
    %v8655 = vrot.slane %v8299, 7
    %v8656 = vrot.slane %v8301, 1
    %v8657 = vrot.slane %v8301, 2
    %v8658 = vrot.slane %v8301, 3
    %v8659 = vrot.slane %v8301, 4
    %v8660 = vrot.slane %v8301, 5
    %v8661 = vrot.slane %v8301, 6
    %v8662 = vrot.slane %v8301, 7
    %v8663 = vrot.slane %v8304, 1
    %v8664 = vrot.slane %v8304, 2
    %v8665 = vrot.slane %v8304, 3
    %v8666 = vrot.slane %v8304, 4
    %v8667 = vrot.slane %v8304, 5
    %v8668 = vrot.slane %v8304, 6
    %v8669 = vrot.slane %v8304, 7
    %v8670 = vrot.slane %v8306, 1
    %v8671 = vrot.slane %v8306, 2
    %v8672 = vrot.slane %v8306, 3
    %v8673 = vrot.slane %v8306, 4
    %v8674 = vrot.slane %v8306, 5
    %v8675 = vrot.slane %v8306, 6
    %v8676 = vrot.slane %v8306, 7
    %v8677 = vrot.slane %v8309, 1
    %v8678 = vrot.slane %v8309, 2
    %v8679 = vrot.slane %v8309, 3
    %v8680 = vrot.slane %v8309, 4
    %v8681 = vrot.slane %v8309, 5
    %v8682 = vrot.slane %v8309, 6
    %v8683 = vrot.slane %v8309, 7
    %v8684 = vrot.slane %v8311, 1
    %v8685 = vrot.slane %v8311, 2
    %v8686 = vrot.slane %v8311, 3
    %v8687 = vrot.slane %v8311, 4
    %v8688 = vrot.slane %v8311, 5
    %v8689 = vrot.slane %v8311, 6
    %v8690 = vrot.slane %v8311, 7
    %v8691 = vrot.slane %v8314, 1
    %v8692 = vrot.slane %v8314, 2
    %v8693 = vrot.slane %v8314, 3
    %v8694 = vrot.slane %v8314, 4
    %v8695 = vrot.slane %v8314, 5
    %v8696 = vrot.slane %v8314, 6
    %v8697 = vrot.slane %v8314, 7
    %v8698 = vrot.slane %v8316, 1
    %v8699 = vrot.slane %v8316, 2
    %v8700 = vrot.slane %v8316, 3
    %v8701 = vrot.slane %v8316, 4
    %v8702 = vrot.slane %v8316, 5
    %v8703 = vrot.slane %v8316, 6
    %v8704 = vrot.slane %v8316, 7
    %v8705 = vrot.slane %v8319, 1
    %v8706 = vrot.slane %v8319, 2
    %v8707 = vrot.slane %v8319, 3
    %v8708 = vrot.slane %v8319, 4
    %v8709 = vrot.slane %v8319, 5
    %v8710 = vrot.slane %v8319, 6
    %v8711 = vrot.slane %v8319, 7
    %v8712 = vrot.slane %v8321, 1
    %v8713 = vrot.slane %v8321, 2
    %v8714 = vrot.slane %v8321, 3
    %v8715 = vrot.slane %v8321, 4
    %v8716 = vrot.slane %v8321, 5
    %v8717 = vrot.slane %v8321, 6
    %v8718 = vrot.slane %v8321, 7
    %8719 = vst [vmem:[#allocation1] ss:$9 sm:$0xff] %v8299
    %s8720 = scalar_lea.vmem [#allocation1], 1
    %8721 = vst [vmem:[%s8720] ss:$9 sm:$0xff] %v8649
    %s8722 = scalar_lea.vmem [#allocation1], 2
    %8723 = vst [vmem:[%s8722] ss:$9 sm:$0xff] %v8650
    %s8724 = scalar_lea.vmem [#allocation1], 3
    %8725 = vst [vmem:[%s8724] ss:$9 sm:$0xff] %v8651
    %s8726 = scalar_lea.vmem [#allocation1], 4
    %8727 = vst [vmem:[%s8726] ss:$9 sm:$0xff] %v8652
    %v8728 = vld [vmem:[#allocation1] sm:$0xff]
    %8729 = vst [vmem:[#allocation1] ss:$9 sm:$0xff] %v8653
    %8730 = vst [vmem:[%s8720] ss:$9 sm:$0xff] %v8654
    %8731 = vst [vmem:[%s8722] ss:$9 sm:$0xff] %v8655
    %8732 = vst [vmem:[%s8724] ss:$9 sm:$0xff] %v8301
    %8733 = vst [vmem:[%s8726] ss:$9 sm:$0xff] %v8656
    %v8734 = vld [vmem:[#allocation1] sm:$0xff]
    %8735 = vst [vmem:[#allocation1] ss:$9 sm:$0xff] %v8657
    %8736 = vst [vmem:[%s8720] ss:$9 sm:$0xff] %v8658
    %8737 = vst [vmem:[%s8722] ss:$9 sm:$0xff] %v8659
    %8738 = vst [vmem:[%s8724] ss:$9 sm:$0xff] %v8660
    %8739 = vst [vmem:[%s8726] ss:$9 sm:$0xff] %v8661
    %v8740 = vld [vmem:[#allocation1] sm:$0xff]
    %8741 = vst [vmem:[#allocation1] ss:$9 sm:$0xff] %v8662
    %8742 = vst [vmem:[%s8720] ss:$9 sm:$0xff] %v8304
    %8743 = vst [vmem:[%s8722] ss:$9 sm:$0xff] %v8663
    %8744 = vst [vmem:[%s8724] ss:$9 sm:$0xff] %v8664
    %8745 = vst [vmem:[%s8726] ss:$9 sm:$0xff] %v8665
    %v8746 = vld [vmem:[#allocation1] sm:$0xff]
    %8747 = vst [vmem:[#allocation1] ss:$9 sm:$0xff] %v8666
    %8748 = vst [vmem:[%s8720] ss:$9 sm:$0xff] %v8667
    %8749 = vst [vmem:[%s8722] ss:$9 sm:$0xff] %v8668
    %8750 = vst [vmem:[%s8724] ss:$9 sm:$0xff] %v8669
    %8751 = vst [vmem:[%s8726] ss:$9 sm:$0xff] %v8306
    %v8752 = vld [vmem:[#allocation1] sm:$0xff]
    %8753 = vst [vmem:[#allocation1] ss:$9 sm:$0xff] %v8670
    %8754 = vst [vmem:[%s8720] ss:$9 sm:$0xff] %v8671
    %8755 = vst [vmem:[%s8722] ss:$9 sm:$0xff] %v8672
    %8756 = vst [vmem:[%s8724] ss:$9 sm:$0xff] %v8673
    %8757 = vst [vmem:[%s8726] ss:$9 sm:$0xff] %v8674
    %v8758 = vld [vmem:[#allocation1] sm:$0xff]
    %8759 = vst [vmem:[#allocation1] ss:$9 sm:$0xff] %v8675
    %8760 = vst [vmem:[%s8720] ss:$9 sm:$0xff] %v8676
    %8761 = vst [vmem:[%s8722] ss:$9 sm:$0xff] %v8309
    %8762 = vst [vmem:[%s8724] ss:$9 sm:$0xff] %v8677
    %8763 = vst [vmem:[%s8726] ss:$9 sm:$0xff] %v8678
    %v8764 = vld [vmem:[#allocation1] sm:$0xff]
    %8765 = vst [vmem:[#allocation1] ss:$9 sm:$0xff] %v8679
    %8766 = vst [vmem:[%s8720] ss:$9 sm:$0xff] %v8680
    %8767 = vst [vmem:[%s8722] ss:$9 sm:$0xff] %v8681
    %8768 = vst [vmem:[%s8724] ss:$9 sm:$0xff] %v8682
    %8769 = vst [vmem:[%s8726] ss:$9 sm:$0xff] %v8683
    %v8770 = vld [vmem:[#allocation1] sm:$0xff]
    %8771 = vst [vmem:[#allocation1] ss:$9 sm:$0xff] %v8311
    %8772 = vst [vmem:[%s8720] ss:$9 sm:$0xff] %v8684
    %8773 = vst [vmem:[%s8722] ss:$9 sm:$0xff] %v8685
    %8774 = vst [vmem:[%s8724] ss:$9 sm:$0xff] %v8686
    %8775 = vst [vmem:[%s8726] ss:$9 sm:$0xff] %v8687
    %v8776 = vld [vmem:[#allocation1] sm:$0xff]
    %8777 = vst [vmem:[#allocation1] ss:$9 sm:$0xff] %v8688
    %8778 = vst [vmem:[%s8720] ss:$9 sm:$0xff] %v8689
    %8779 = vst [vmem:[%s8722] ss:$9 sm:$0xff] %v8690
    %8780 = vst [vmem:[%s8724] ss:$9 sm:$0xff] %v8314
    %8781 = vst [vmem:[%s8726] ss:$9 sm:$0xff] %v8691
    %v8782 = vld [vmem:[#allocation1] sm:$0xff]
    %8783 = vst [vmem:[#allocation1] ss:$9 sm:$0xff] %v8692
    %8784 = vst [vmem:[%s8720] ss:$9 sm:$0xff] %v8693
    %8785 = vst [vmem:[%s8722] ss:$9 sm:$0xff] %v8694
    %8786 = vst [vmem:[%s8724] ss:$9 sm:$0xff] %v8695
    %8787 = vst [vmem:[%s8726] ss:$9 sm:$0xff] %v8696
    %v8788 = vld [vmem:[#allocation1] sm:$0xff]
    %8789 = vst [vmem:[#allocation1] ss:$9 sm:$0xff] %v8697
    %8790 = vst [vmem:[%s8720] ss:$9 sm:$0xff] %v8316
    %8791 = vst [vmem:[%s8722] ss:$9 sm:$0xff] %v8698
    %8792 = vst [vmem:[%s8724] ss:$9 sm:$0xff] %v8699
    %8793 = vst [vmem:[%s8726] ss:$9 sm:$0xff] %v8700
    %v8794 = vld [vmem:[#allocation1] sm:$0xff]
    %8795 = vst [vmem:[#allocation1] ss:$9 sm:$0xff] %v8701
    %8796 = vst [vmem:[%s8720] ss:$9 sm:$0xff] %v8702
    %8797 = vst [vmem:[%s8722] ss:$9 sm:$0xff] %v8703
    %8798 = vst [vmem:[%s8724] ss:$9 sm:$0xff] %v8704
    %8799 = vst [vmem:[%s8726] ss:$9 sm:$0xff] %v8319
    %v8800 = vld [vmem:[#allocation1] sm:$0xff]
    %8801 = vst [vmem:[#allocation1] ss:$9 sm:$0xff] %v8705
    %8802 = vst [vmem:[%s8720] ss:$9 sm:$0xff] %v8706
    %8803 = vst [vmem:[%s8722] ss:$9 sm:$0xff] %v8707
    %8804 = vst [vmem:[%s8724] ss:$9 sm:$0xff] %v8708
    %8805 = vst [vmem:[%s8726] ss:$9 sm:$0xff] %v8709
    %v8806 = vld [vmem:[#allocation1] sm:$0xff]
    %8807 = vst [vmem:[#allocation1] ss:$9 sm:$0xff] %v8710
    %8808 = vst [vmem:[%s8720] ss:$9 sm:$0xff] %v8711
    %8809 = vst [vmem:[%s8722] ss:$9 sm:$0xff] %v8321
    %8810 = vst [vmem:[%s8724] ss:$9 sm:$0xff] %v8712
    %8811 = vst [vmem:[%s8726] ss:$9 sm:$0xff] %v8713
    %v8812 = vld [vmem:[#allocation1] sm:$0xff]
    %8813 = vst [vmem:[#allocation1] ss:$9 sm:$0xff] %v8714
    %8814 = vst [vmem:[%s8720] ss:$9 sm:$0xff] %v8715
    %8815 = vst [vmem:[%s8722] ss:$9 sm:$0xff] %v8716
    %8816 = vst [vmem:[%s8724] ss:$9 sm:$0xff] %v8717
    %8817 = vst [vmem:[%s8726] ss:$9 sm:$0xff] %v8718
    %v8818 = vld [vmem:[#allocation1] sm:$0xff]
    %v8835 = vpack.c.bf16 %v8728, %v8728
    %v8836 = vpack.c.bf16 %v8734, %v8734
    %v8837 = vpack.c.bf16 %v8740, %v8740
    %v8838 = vpack.c.bf16 %v8746, %v8746
    %v8839 = vpack.c.bf16 %v8752, %v8752
    %v8840 = vpack.c.bf16 %v8758, %v8758
    %v8841 = vpack.c.bf16 %v8764, %v8764
    %v8842 = vpack.c.bf16 %v8770, %v8770
    %v8843 = vpack.c.bf16 %v8776, %v8776
    %v8844 = vpack.c.bf16 %v8782, %v8782
    %v8845 = vpack.c.bf16 %v8788, %v8788
    %v8846 = vpack.c.bf16 %v8794, %v8794
    %v8847 = vpack.c.bf16 %v8800, %v8800
    %v8848 = vpack.c.bf16 %v8806, %v8806
    %v8849 = vpack.c.bf16 %v8812, %v8812
    %v8850 = vpack.c.bf16 %v8818, %v8818
    %v8861 = vrot.slane %v8403, 1
    %v8862 = vrot.slane %v8403, 2
    %v8863 = vrot.slane %v8403, 3
    %v8864 = vrot.slane %v8403, 4
    %v8865 = vrot.slane %v8403, 5
    %v8866 = vrot.slane %v8403, 6
    %v8867 = vrot.slane %v8403, 7
    %v8868 = vrot.slane %v8405, 1
    %v8869 = vrot.slane %v8405, 2
    %v8870 = vrot.slane %v8405, 3
    %v8871 = vrot.slane %v8405, 4
    %v8872 = vrot.slane %v8405, 5
    %v8873 = vrot.slane %v8405, 6
    %v8874 = vrot.slane %v8405, 7
    %v8875 = vrot.slane %v8408, 1
    %v8876 = vrot.slane %v8408, 2
    %v8877 = vrot.slane %v8408, 3
    %v8878 = vrot.slane %v8408, 4
    %v8879 = vrot.slane %v8408, 5
    %v8880 = vrot.slane %v8408, 6
    %v8881 = vrot.slane %v8408, 7
    %v8882 = vrot.slane %v8410, 1
    %v8883 = vrot.slane %v8410, 2
    %v8884 = vrot.slane %v8410, 3
    %v8885 = vrot.slane %v8410, 4
    %v8886 = vrot.slane %v8410, 5
    %v8887 = vrot.slane %v8410, 6
    %v8888 = vrot.slane %v8410, 7
    %v8889 = vrot.slane %v8413, 1
    %v8890 = vrot.slane %v8413, 2
    %v8891 = vrot.slane %v8413, 3
    %v8892 = vrot.slane %v8413, 4
    %v8893 = vrot.slane %v8413, 5
    %v8894 = vrot.slane %v8413, 6
    %v8895 = vrot.slane %v8413, 7
    %v8896 = vrot.slane %v8415, 1
    %v8897 = vrot.slane %v8415, 2
    %v8898 = vrot.slane %v8415, 3
    %v8899 = vrot.slane %v8415, 4
    %v8900 = vrot.slane %v8415, 5
    %v8901 = vrot.slane %v8415, 6
    %v8902 = vrot.slane %v8415, 7
    %v8903 = vrot.slane %v8418, 1
    %v8904 = vrot.slane %v8418, 2
    %v8905 = vrot.slane %v8418, 3
    %v8906 = vrot.slane %v8418, 4
    %v8907 = vrot.slane %v8418, 5
    %v8908 = vrot.slane %v8418, 6
    %v8909 = vrot.slane %v8418, 7
    %v8910 = vrot.slane %v8420, 1
    %v8911 = vrot.slane %v8420, 2
    %v8912 = vrot.slane %v8420, 3
    %v8913 = vrot.slane %v8420, 4
    %v8914 = vrot.slane %v8420, 5
    %v8915 = vrot.slane %v8420, 6
    %v8916 = vrot.slane %v8420, 7
    %v8917 = vrot.slane %v8423, 1
    %v8918 = vrot.slane %v8423, 2
    %v8919 = vrot.slane %v8423, 3
    %v8920 = vrot.slane %v8423, 4
    %v8921 = vrot.slane %v8423, 5
    %v8922 = vrot.slane %v8423, 6
    %v8923 = vrot.slane %v8423, 7
    %v8924 = vrot.slane %v8425, 1
    %v8925 = vrot.slane %v8425, 2
    %v8926 = vrot.slane %v8425, 3
    %v8927 = vrot.slane %v8425, 4
    %v8928 = vrot.slane %v8425, 5
    %v8929 = vrot.slane %v8425, 6
    %v8930 = vrot.slane %v8425, 7
    %8931 = vst [vmem:[#allocation1] ss:$9 sm:$0xff] %v8403
    %s8932 = scalar_lea.vmem [#allocation1], 1
    %8933 = vst [vmem:[%s8932] ss:$9 sm:$0xff] %v8861
    %s8934 = scalar_lea.vmem [#allocation1], 2
    %8935 = vst [vmem:[%s8934] ss:$9 sm:$0xff] %v8862
    %s8936 = scalar_lea.vmem [#allocation1], 3
    %8937 = vst [vmem:[%s8936] ss:$9 sm:$0xff] %v8863
    %s8938 = scalar_lea.vmem [#allocation1], 4
    %8939 = vst [vmem:[%s8938] ss:$9 sm:$0xff] %v8864
    %v8940 = vld [vmem:[#allocation1] sm:$0xff]
    %8941 = vst [vmem:[#allocation1] ss:$9 sm:$0xff] %v8865
    %8942 = vst [vmem:[%s8932] ss:$9 sm:$0xff] %v8866
    %8943 = vst [vmem:[%s8934] ss:$9 sm:$0xff] %v8867
    %8944 = vst [vmem:[%s8936] ss:$9 sm:$0xff] %v8405
    %8945 = vst [vmem:[%s8938] ss:$9 sm:$0xff] %v8868
    %v8946 = vld [vmem:[#allocation1] sm:$0xff]
    %8947 = vst [vmem:[#allocation1] ss:$9 sm:$0xff] %v8869
    %8948 = vst [vmem:[%s8932] ss:$9 sm:$0xff] %v8870
    %8949 = vst [vmem:[%s8934] ss:$9 sm:$0xff] %v8871
    %8950 = vst [vmem:[%s8936] ss:$9 sm:$0xff] %v8872
    %8951 = vst [vmem:[%s8938] ss:$9 sm:$0xff] %v8873
    %v8952 = vld [vmem:[#allocation1] sm:$0xff]
    %8953 = vst [vmem:[#allocation1] ss:$9 sm:$0xff] %v8874
    %8954 = vst [vmem:[%s8932] ss:$9 sm:$0xff] %v8408
    %8955 = vst [vmem:[%s8934] ss:$9 sm:$0xff] %v8875
    %8956 = vst [vmem:[%s8936] ss:$9 sm:$0xff] %v8876
    %8957 = vst [vmem:[%s8938] ss:$9 sm:$0xff] %v8877
    %v8958 = vld [vmem:[#allocation1] sm:$0xff]
    %8959 = vst [vmem:[#allocation1] ss:$9 sm:$0xff] %v8878
    %8960 = vst [vmem:[%s8932] ss:$9 sm:$0xff] %v8879
    %8961 = vst [vmem:[%s8934] ss:$9 sm:$0xff] %v8880
    %8962 = vst [vmem:[%s8936] ss:$9 sm:$0xff] %v8881
    %8963 = vst [vmem:[%s8938] ss:$9 sm:$0xff] %v8410
    %v8964 = vld [vmem:[#allocation1] sm:$0xff]
    %8965 = vst [vmem:[#allocation1] ss:$9 sm:$0xff] %v8882
    %8966 = vst [vmem:[%s8932] ss:$9 sm:$0xff] %v8883
    %8967 = vst [vmem:[%s8934] ss:$9 sm:$0xff] %v8884
    %8968 = vst [vmem:[%s8936] ss:$9 sm:$0xff] %v8885
    %8969 = vst [vmem:[%s8938] ss:$9 sm:$0xff] %v8886
    %v8970 = vld [vmem:[#allocation1] sm:$0xff]
    %8971 = vst [vmem:[#allocation1] ss:$9 sm:$0xff] %v8887
    %8972 = vst [vmem:[%s8932] ss:$9 sm:$0xff] %v8888
    %8973 = vst [vmem:[%s8934] ss:$9 sm:$0xff] %v8413
    %8974 = vst [vmem:[%s8936] ss:$9 sm:$0xff] %v8889
    %8975 = vst [vmem:[%s8938] ss:$9 sm:$0xff] %v8890
    %v8976 = vld [vmem:[#allocation1] sm:$0xff]
    %8977 = vst [vmem:[#allocation1] ss:$9 sm:$0xff] %v8891
    %8978 = vst [vmem:[%s8932] ss:$9 sm:$0xff] %v8892
    %8979 = vst [vmem:[%s8934] ss:$9 sm:$0xff] %v8893
    %8980 = vst [vmem:[%s8936] ss:$9 sm:$0xff] %v8894
    %8981 = vst [vmem:[%s8938] ss:$9 sm:$0xff] %v8895
    %v8982 = vld [vmem:[#allocation1] sm:$0xff]
    %8983 = vst [vmem:[#allocation1] ss:$9 sm:$0xff] %v8415
    %8984 = vst [vmem:[%s8932] ss:$9 sm:$0xff] %v8896
    %8985 = vst [vmem:[%s8934] ss:$9 sm:$0xff] %v8897
    %8986 = vst [vmem:[%s8936] ss:$9 sm:$0xff] %v8898
    %8987 = vst [vmem:[%s8938] ss:$9 sm:$0xff] %v8899
    %v8988 = vld [vmem:[#allocation1] sm:$0xff]
    %8989 = vst [vmem:[#allocation1] ss:$9 sm:$0xff] %v8900
    %8990 = vst [vmem:[%s8932] ss:$9 sm:$0xff] %v8901
    %8991 = vst [vmem:[%s8934] ss:$9 sm:$0xff] %v8902
    %8992 = vst [vmem:[%s8936] ss:$9 sm:$0xff] %v8418
    %8993 = vst [vmem:[%s8938] ss:$9 sm:$0xff] %v8903
    %v8994 = vld [vmem:[#allocation1] sm:$0xff]
    %8995 = vst [vmem:[#allocation1] ss:$9 sm:$0xff] %v8904
    %8996 = vst [vmem:[%s8932] ss:$9 sm:$0xff] %v8905
    %8997 = vst [vmem:[%s8934] ss:$9 sm:$0xff] %v8906
    %8998 = vst [vmem:[%s8936] ss:$9 sm:$0xff] %v8907
    %8999 = vst [vmem:[%s8938] ss:$9 sm:$0xff] %v8908
    %v9000 = vld [vmem:[#allocation1] sm:$0xff]
    %9001 = vst [vmem:[#allocation1] ss:$9 sm:$0xff] %v8909
    %9002 = vst [vmem:[%s8932] ss:$9 sm:$0xff] %v8420
    %9003 = vst [vmem:[%s8934] ss:$9 sm:$0xff] %v8910
    %9004 = vst [vmem:[%s8936] ss:$9 sm:$0xff] %v8911
    %9005 = vst [vmem:[%s8938] ss:$9 sm:$0xff] %v8912
    %v9006 = vld [vmem:[#allocation1] sm:$0xff]
    %9007 = vst [vmem:[#allocation1] ss:$9 sm:$0xff] %v8913
    %9008 = vst [vmem:[%s8932] ss:$9 sm:$0xff] %v8914
    %9009 = vst [vmem:[%s8934] ss:$9 sm:$0xff] %v8915
    %9010 = vst [vmem:[%s8936] ss:$9 sm:$0xff] %v8916
    %9011 = vst [vmem:[%s8938] ss:$9 sm:$0xff] %v8423
    %v9012 = vld [vmem:[#allocation1] sm:$0xff]
    %9013 = vst [vmem:[#allocation1] ss:$9 sm:$0xff] %v8917
    %9014 = vst [vmem:[%s8932] ss:$9 sm:$0xff] %v8918
    %9015 = vst [vmem:[%s8934] ss:$9 sm:$0xff] %v8919
    %9016 = vst [vmem:[%s8936] ss:$9 sm:$0xff] %v8920
    %9017 = vst [vmem:[%s8938] ss:$9 sm:$0xff] %v8921
    %v9018 = vld [vmem:[#allocation1] sm:$0xff]
    %9019 = vst [vmem:[#allocation1] ss:$9 sm:$0xff] %v8922
    %9020 = vst [vmem:[%s8932] ss:$9 sm:$0xff] %v8923
    %9021 = vst [vmem:[%s8934] ss:$9 sm:$0xff] %v8425
    %9022 = vst [vmem:[%s8936] ss:$9 sm:$0xff] %v8924
    %9023 = vst [vmem:[%s8938] ss:$9 sm:$0xff] %v8925
    %v9024 = vld [vmem:[#allocation1] sm:$0xff]
    %9025 = vst [vmem:[#allocation1] ss:$9 sm:$0xff] %v8926
    %9026 = vst [vmem:[%s8932] ss:$9 sm:$0xff] %v8927
    %9027 = vst [vmem:[%s8934] ss:$9 sm:$0xff] %v8928
    %9028 = vst [vmem:[%s8936] ss:$9 sm:$0xff] %v8929
    %9029 = vst [vmem:[%s8938] ss:$9 sm:$0xff] %v8930
    %v9030 = vld [vmem:[#allocation1] sm:$0xff]
    %v9047 = vpack.c.bf16 %v8940, %v8940
    %v9048 = vpack.c.bf16 %v8946, %v8946
    %v9049 = vpack.c.bf16 %v8952, %v8952
    %v9050 = vpack.c.bf16 %v8958, %v8958
    %v9051 = vpack.c.bf16 %v8964, %v8964
    %v9052 = vpack.c.bf16 %v8970, %v8970
    %v9053 = vpack.c.bf16 %v8976, %v8976
    %v9054 = vpack.c.bf16 %v8982, %v8982
    %v9055 = vpack.c.bf16 %v8988, %v8988
    %v9056 = vpack.c.bf16 %v8994, %v8994
    %v9057 = vpack.c.bf16 %v9000, %v9000
    %v9058 = vpack.c.bf16 %v9006, %v9006
    %v9059 = vpack.c.bf16 %v9012, %v9012
    %v9060 = vpack.c.bf16 %v9018, %v9018
    %v9061 = vpack.c.bf16 %v9024, %v9024
    %v9062 = vpack.c.bf16 %v9030, %v9030
    %v9064 = vsel %vm1762, %v8623, 0
    %v9067 = vsel %vm1762, %v8835, 0
    %9069 = vmatpush.bf16.xpose.msra.mxu0 0
    %9070 = vmatpush.bf16.xpose.msra.mxu0 0
    %9071 = vmatpush.bf16.xpose.msra.mxu0 0
    %9072 = vmatpush.bf16.xpose.msra.mxu0 0
    %9073 = vmatpush.bf16.xpose.msra.mxu0 0
    %9074 = vmatpush.bf16.xpose.msra.mxu0 0
    %9075 = vmatpush.bf16.xpose.msra.mxu0 0
    %9076 = vmatpush.bf16.xpose.msra.mxu0 %v9067
    %9077 = vmatmul.bf16.gmra.mxu0 %v9064
    %v9078 = vpop.f32.mrf.mxu0
    %v9079 = vadd.f32 0.0, %v9078
    %v9080 = vpop.f32.mrf.mxu0
    %9081 = vdwg.mxu0
    %v9083 = vsel %vm1762, %v8624, 0
    %v9086 = vsel %vm1762, %v8836, 0
    %9088 = vmatpush.bf16.xpose.msra.mxu0 0
    %9089 = vmatpush.bf16.xpose.msra.mxu0 0
    %9090 = vmatpush.bf16.xpose.msra.mxu0 0
    %9091 = vmatpush.bf16.xpose.msra.mxu0 0
    %9092 = vmatpush.bf16.xpose.msra.mxu0 0
    %9093 = vmatpush.bf16.xpose.msra.mxu0 0
    %9094 = vmatpush.bf16.xpose.msra.mxu0 0
    %9095 = vmatpush.bf16.xpose.msra.mxu0 %v9086
    %9096 = vmatmul.bf16.gmra.mxu0 %v9083
    %v9097 = vpop.f32.mrf.mxu0
    %v9098 = vadd.f32 0.0, %v9097
    %v9099 = vpop.f32.mrf.mxu0
    %9100 = vdwg.mxu0
    %v9102 = vsel %vm1762, %v8625, 0
    %v9105 = vsel %vm1762, %v8837, 0
    %9107 = vmatpush.bf16.xpose.msra.mxu0 0
    %9108 = vmatpush.bf16.xpose.msra.mxu0 0
    %9109 = vmatpush.bf16.xpose.msra.mxu0 0
    %9110 = vmatpush.bf16.xpose.msra.mxu0 0
    %9111 = vmatpush.bf16.xpose.msra.mxu0 0
    %9112 = vmatpush.bf16.xpose.msra.mxu0 0
    %9113 = vmatpush.bf16.xpose.msra.mxu0 0
    %9114 = vmatpush.bf16.xpose.msra.mxu0 %v9105
    %9115 = vmatmul.bf16.gmra.mxu0 %v9102
    %v9116 = vpop.f32.mrf.mxu0
    %v9117 = vadd.f32 0.0, %v9116
    %v9118 = vpop.f32.mrf.mxu0
    %9119 = vdwg.mxu0
    %v9121 = vsel %vm1762, %v8626, 0
    %v9124 = vsel %vm1762, %v8838, 0
    %9126 = vmatpush.bf16.xpose.msra.mxu0 0
    %9127 = vmatpush.bf16.xpose.msra.mxu0 0
    %9128 = vmatpush.bf16.xpose.msra.mxu0 0
    %9129 = vmatpush.bf16.xpose.msra.mxu0 0
    %9130 = vmatpush.bf16.xpose.msra.mxu0 0
    %9131 = vmatpush.bf16.xpose.msra.mxu0 0
    %9132 = vmatpush.bf16.xpose.msra.mxu0 0
    %9133 = vmatpush.bf16.xpose.msra.mxu0 %v9124
    %9134 = vmatmul.bf16.gmra.mxu0 %v9121
    %v9135 = vpop.f32.mrf.mxu0
    %v9136 = vadd.f32 0.0, %v9135
    %v9137 = vpop.f32.mrf.mxu0
    %9138 = vdwg.mxu0
    %v9140 = vsel %vm1762, %v8627, 0
    %v9143 = vsel %vm1762, %v8839, 0
    %9145 = vmatpush.bf16.xpose.msra.mxu0 0
    %9146 = vmatpush.bf16.xpose.msra.mxu0 0
    %9147 = vmatpush.bf16.xpose.msra.mxu0 0
    %9148 = vmatpush.bf16.xpose.msra.mxu0 0
    %9149 = vmatpush.bf16.xpose.msra.mxu0 0
    %9150 = vmatpush.bf16.xpose.msra.mxu0 0
    %9151 = vmatpush.bf16.xpose.msra.mxu0 0
    %9152 = vmatpush.bf16.xpose.msra.mxu0 %v9143
    %9153 = vmatmul.bf16.gmra.mxu0 %v9140
    %v9154 = vpop.f32.mrf.mxu0
    %v9155 = vadd.f32 0.0, %v9154
    %v9156 = vpop.f32.mrf.mxu0
    %9157 = vdwg.mxu0
    %v9159 = vsel %vm1762, %v8628, 0
    %v9162 = vsel %vm1762, %v8840, 0
    %9164 = vmatpush.bf16.xpose.msra.mxu0 0
    %9165 = vmatpush.bf16.xpose.msra.mxu0 0
    %9166 = vmatpush.bf16.xpose.msra.mxu0 0
    %9167 = vmatpush.bf16.xpose.msra.mxu0 0
    %9168 = vmatpush.bf16.xpose.msra.mxu0 0
    %9169 = vmatpush.bf16.xpose.msra.mxu0 0
    %9170 = vmatpush.bf16.xpose.msra.mxu0 0
    %9171 = vmatpush.bf16.xpose.msra.mxu0 %v9162
    %9172 = vmatmul.bf16.gmra.mxu0 %v9159
    %v9173 = vpop.f32.mrf.mxu0
    %v9174 = vadd.f32 0.0, %v9173
    %v9175 = vpop.f32.mrf.mxu0
    %9176 = vdwg.mxu0
    %v9178 = vsel %vm1762, %v8629, 0
    %v9181 = vsel %vm1762, %v8841, 0
    %9183 = vmatpush.bf16.xpose.msra.mxu0 0
    %9184 = vmatpush.bf16.xpose.msra.mxu0 0
    %9185 = vmatpush.bf16.xpose.msra.mxu0 0
    %9186 = vmatpush.bf16.xpose.msra.mxu0 0
    %9187 = vmatpush.bf16.xpose.msra.mxu0 0
    %9188 = vmatpush.bf16.xpose.msra.mxu0 0
    %9189 = vmatpush.bf16.xpose.msra.mxu0 0
    %9190 = vmatpush.bf16.xpose.msra.mxu0 %v9181
    %9191 = vmatmul.bf16.gmra.mxu0 %v9178
    %v9192 = vpop.f32.mrf.mxu0
    %v9193 = vadd.f32 0.0, %v9192
    %v9194 = vpop.f32.mrf.mxu0
    %9195 = vdwg.mxu0
    %v9197 = vsel %vm1762, %v8630, 0
    %v9200 = vsel %vm1762, %v8842, 0
    %9202 = vmatpush.bf16.xpose.msra.mxu0 0
    %9203 = vmatpush.bf16.xpose.msra.mxu0 0
    %9204 = vmatpush.bf16.xpose.msra.mxu0 0
    %9205 = vmatpush.bf16.xpose.msra.mxu0 0
    %9206 = vmatpush.bf16.xpose.msra.mxu0 0
    %9207 = vmatpush.bf16.xpose.msra.mxu0 0
    %9208 = vmatpush.bf16.xpose.msra.mxu0 0
    %9209 = vmatpush.bf16.xpose.msra.mxu0 %v9200
    %9210 = vmatmul.bf16.gmra.mxu0 %v9197
    %v9211 = vpop.f32.mrf.mxu0
    %v9212 = vadd.f32 0.0, %v9211
    %v9213 = vpop.f32.mrf.mxu0
    %9214 = vdwg.mxu0
    %v9216 = vsel %vm1762, %v8631, 0
    %v9219 = vsel %vm1762, %v8843, 0
    %9221 = vmatpush.bf16.xpose.msra.mxu0 0
    %9222 = vmatpush.bf16.xpose.msra.mxu0 0
    %9223 = vmatpush.bf16.xpose.msra.mxu0 0
    %9224 = vmatpush.bf16.xpose.msra.mxu0 0
    %9225 = vmatpush.bf16.xpose.msra.mxu0 0
    %9226 = vmatpush.bf16.xpose.msra.mxu0 0
    %9227 = vmatpush.bf16.xpose.msra.mxu0 0
    %9228 = vmatpush.bf16.xpose.msra.mxu0 %v9219
    %9229 = vmatmul.bf16.gmra.mxu0 %v9216
    %v9230 = vpop.f32.mrf.mxu0
    %v9231 = vadd.f32 0.0, %v9230
    %v9232 = vpop.f32.mrf.mxu0
    %9233 = vdwg.mxu0
    %v9235 = vsel %vm1762, %v8632, 0
    %v9238 = vsel %vm1762, %v8844, 0
    %9240 = vmatpush.bf16.xpose.msra.mxu0 0
    %9241 = vmatpush.bf16.xpose.msra.mxu0 0
    %9242 = vmatpush.bf16.xpose.msra.mxu0 0
    %9243 = vmatpush.bf16.xpose.msra.mxu0 0
    %9244 = vmatpush.bf16.xpose.msra.mxu0 0
    %9245 = vmatpush.bf16.xpose.msra.mxu0 0
    %9246 = vmatpush.bf16.xpose.msra.mxu0 0
    %9247 = vmatpush.bf16.xpose.msra.mxu0 %v9238
    %9248 = vmatmul.bf16.gmra.mxu0 %v9235
    %v9249 = vpop.f32.mrf.mxu0
    %v9250 = vadd.f32 0.0, %v9249
    %v9251 = vpop.f32.mrf.mxu0
    %9252 = vdwg.mxu0
    %v9254 = vsel %vm1762, %v8633, 0
    %v9257 = vsel %vm1762, %v8845, 0
    %9259 = vmatpush.bf16.xpose.msra.mxu0 0
    %9260 = vmatpush.bf16.xpose.msra.mxu0 0
    %9261 = vmatpush.bf16.xpose.msra.mxu0 0
    %9262 = vmatpush.bf16.xpose.msra.mxu0 0
    %9263 = vmatpush.bf16.xpose.msra.mxu0 0
    %9264 = vmatpush.bf16.xpose.msra.mxu0 0
    %9265 = vmatpush.bf16.xpose.msra.mxu0 0
    %9266 = vmatpush.bf16.xpose.msra.mxu0 %v9257
    %9267 = vmatmul.bf16.gmra.mxu0 %v9254
    %v9268 = vpop.f32.mrf.mxu0
    %v9269 = vadd.f32 0.0, %v9268
    %v9270 = vpop.f32.mrf.mxu0
    %9271 = vdwg.mxu0
    %v9273 = vsel %vm1762, %v8634, 0
    %v9276 = vsel %vm1762, %v8846, 0
    %9278 = vmatpush.bf16.xpose.msra.mxu0 0
    %9279 = vmatpush.bf16.xpose.msra.mxu0 0
    %9280 = vmatpush.bf16.xpose.msra.mxu0 0
    %9281 = vmatpush.bf16.xpose.msra.mxu0 0
    %9282 = vmatpush.bf16.xpose.msra.mxu0 0
    %9283 = vmatpush.bf16.xpose.msra.mxu0 0
    %9284 = vmatpush.bf16.xpose.msra.mxu0 0
    %9285 = vmatpush.bf16.xpose.msra.mxu0 %v9276
    %9286 = vmatmul.bf16.gmra.mxu0 %v9273
    %v9287 = vpop.f32.mrf.mxu0
    %v9288 = vadd.f32 0.0, %v9287
    %v9289 = vpop.f32.mrf.mxu0
    %9290 = vdwg.mxu0
    %v9292 = vsel %vm1762, %v8635, 0
    %v9295 = vsel %vm1762, %v8847, 0
    %9297 = vmatpush.bf16.xpose.msra.mxu0 0
    %9298 = vmatpush.bf16.xpose.msra.mxu0 0
    %9299 = vmatpush.bf16.xpose.msra.mxu0 0
    %9300 = vmatpush.bf16.xpose.msra.mxu0 0
    %9301 = vmatpush.bf16.xpose.msra.mxu0 0
    %9302 = vmatpush.bf16.xpose.msra.mxu0 0
    %9303 = vmatpush.bf16.xpose.msra.mxu0 0
    %9304 = vmatpush.bf16.xpose.msra.mxu0 %v9295
    %9305 = vmatmul.bf16.gmra.mxu0 %v9292
    %v9306 = vpop.f32.mrf.mxu0
    %v9307 = vadd.f32 0.0, %v9306
    %v9308 = vpop.f32.mrf.mxu0
    %9309 = vdwg.mxu0
    %v9311 = vsel %vm1762, %v8636, 0
    %v9314 = vsel %vm1762, %v8848, 0
    %9316 = vmatpush.bf16.xpose.msra.mxu0 0
    %9317 = vmatpush.bf16.xpose.msra.mxu0 0
    %9318 = vmatpush.bf16.xpose.msra.mxu0 0
    %9319 = vmatpush.bf16.xpose.msra.mxu0 0
    %9320 = vmatpush.bf16.xpose.msra.mxu0 0
    %9321 = vmatpush.bf16.xpose.msra.mxu0 0
    %9322 = vmatpush.bf16.xpose.msra.mxu0 0
    %9323 = vmatpush.bf16.xpose.msra.mxu0 %v9314
    %9324 = vmatmul.bf16.gmra.mxu0 %v9311
    %v9325 = vpop.f32.mrf.mxu0
    %v9326 = vadd.f32 0.0, %v9325
    %v9327 = vpop.f32.mrf.mxu0
    %9328 = vdwg.mxu0
    %v9330 = vsel %vm1762, %v8637, 0
    %v9333 = vsel %vm1762, %v8849, 0
    %9335 = vmatpush.bf16.xpose.msra.mxu0 0
    %9336 = vmatpush.bf16.xpose.msra.mxu0 0
    %9337 = vmatpush.bf16.xpose.msra.mxu0 0
    %9338 = vmatpush.bf16.xpose.msra.mxu0 0
    %9339 = vmatpush.bf16.xpose.msra.mxu0 0
    %9340 = vmatpush.bf16.xpose.msra.mxu0 0
    %9341 = vmatpush.bf16.xpose.msra.mxu0 0
    %9342 = vmatpush.bf16.xpose.msra.mxu0 %v9333
    %9343 = vmatmul.bf16.gmra.mxu0 %v9330
    %v9344 = vpop.f32.mrf.mxu0
    %v9345 = vadd.f32 0.0, %v9344
    %v9346 = vpop.f32.mrf.mxu0
    %9347 = vdwg.mxu0
    %v9349 = vsel %vm1762, %v8638, 0
    %v9352 = vsel %vm1762, %v8850, 0
    %9354 = vmatpush.bf16.xpose.msra.mxu0 0
    %9355 = vmatpush.bf16.xpose.msra.mxu0 0
    %9356 = vmatpush.bf16.xpose.msra.mxu0 0
    %9357 = vmatpush.bf16.xpose.msra.mxu0 0
    %9358 = vmatpush.bf16.xpose.msra.mxu0 0
    %9359 = vmatpush.bf16.xpose.msra.mxu0 0
    %9360 = vmatpush.bf16.xpose.msra.mxu0 0
    %9361 = vmatpush.bf16.xpose.msra.mxu0 %v9352
    %9362 = vmatmul.bf16.gmra.mxu0 %v9349
    %v9363 = vpop.f32.mrf.mxu0
    %v9364 = vadd.f32 0.0, %v9363
    %v9365 = vpop.f32.mrf.mxu0
    %9366 = vdwg.mxu0
    %v9367 = vsel %vm2067, %v9079, -inf
    %9368 = vmax.xlane.f32.xlu0 %v9367
    %v9369 = vpop.xlane.xlu0 %9368
    %v9370 = vsel %vm2067, %v9098, -inf
    %9371 = vmax.xlane.f32.xlu0 %v9370
    %v9372 = vpop.xlane.xlu0 %9371
    %v9373 = vsel %vm2067, %v9117, -inf
    %9374 = vmax.xlane.f32.xlu0 %v9373
    %v9375 = vpop.xlane.xlu0 %9374
    %v9376 = vsel %vm2067, %v9136, -inf
    %9377 = vmax.xlane.f32.xlu0 %v9376
    %v9378 = vpop.xlane.xlu0 %9377
    %v9379 = vsel %vm2067, %v9155, -inf
    %9380 = vmax.xlane.f32.xlu0 %v9379
    %v9381 = vpop.xlane.xlu0 %9380
    %v9382 = vsel %vm2067, %v9174, -inf
    %9383 = vmax.xlane.f32.xlu0 %v9382
    %v9384 = vpop.xlane.xlu0 %9383
    %v9385 = vsel %vm2067, %v9193, -inf
    %9386 = vmax.xlane.f32.xlu0 %v9385
    %v9387 = vpop.xlane.xlu0 %9386
    %v9388 = vsel %vm2067, %v9212, -inf
    %9389 = vmax.xlane.f32.xlu0 %v9388
    %v9390 = vpop.xlane.xlu0 %9389
    %v9391 = vsel %vm2067, %v9231, -inf
    %9392 = vmax.xlane.f32.xlu0 %v9391
    %v9393 = vpop.xlane.xlu0 %9392
    %v9394 = vsel %vm2067, %v9250, -inf
    %9395 = vmax.xlane.f32.xlu0 %v9394
    %v9396 = vpop.xlane.xlu0 %9395
    %v9397 = vsel %vm2067, %v9269, -inf
    %9398 = vmax.xlane.f32.xlu0 %v9397
    %v9399 = vpop.xlane.xlu0 %9398
    %v9400 = vsel %vm2067, %v9288, -inf
    %9401 = vmax.xlane.f32.xlu0 %v9400
    %v9402 = vpop.xlane.xlu0 %9401
    %v9403 = vsel %vm2067, %v9307, -inf
    %9404 = vmax.xlane.f32.xlu0 %v9403
    %v9405 = vpop.xlane.xlu0 %9404
    %v9406 = vsel %vm2067, %v9326, -inf
    %9407 = vmax.xlane.f32.xlu0 %v9406
    %v9408 = vpop.xlane.xlu0 %9407
    %v9409 = vsel %vm2067, %v9345, -inf
    %9410 = vmax.xlane.f32.xlu0 %v9409
    %v9411 = vpop.xlane.xlu0 %9410
    %v9412 = vsel %vm2067, %v9364, -inf
    %9413 = vmax.xlane.f32.xlu0 %v9412
    %v9414 = vpop.xlane.xlu0 %9413
    %v9415 = vsub.f32 %v9079, %v9369
    %v9416 = vsub.f32 %v9098, %v9372
    %v9417 = vsub.f32 %v9117, %v9375
    %v9418 = vsub.f32 %v9136, %v9378
    %v9419 = vsub.f32 %v9155, %v9381
    %v9420 = vsub.f32 %v9174, %v9384
    %v9421 = vsub.f32 %v9193, %v9387
    %v9422 = vsub.f32 %v9212, %v9390
    %v9423 = vsub.f32 %v9231, %v9393
    %v9424 = vsub.f32 %v9250, %v9396
    %v9425 = vsub.f32 %v9269, %v9399
    %v9426 = vsub.f32 %v9288, %v9402
    %v9427 = vsub.f32 %v9307, %v9405
    %v9428 = vsub.f32 %v9326, %v9408
    %v9429 = vsub.f32 %v9345, %v9411
    %v9430 = vsub.f32 %v9364, %v9414
    %v9431 = vmul.f32 %v9415, 1.442695
    %v9432 = vpow.pop %v9431
    %v9433 = vmul.f32 %v9416, 1.442695
    %v9434 = vpow.pop %v9433
    %v9435 = vmul.f32 %v9417, 1.442695
    %v9436 = vpow.pop %v9435
    %v9437 = vmul.f32 %v9418, 1.442695
    %v9438 = vpow.pop %v9437
    %v9439 = vmul.f32 %v9419, 1.442695
    %v9440 = vpow.pop %v9439
    %v9441 = vmul.f32 %v9420, 1.442695
    %v9442 = vpow.pop %v9441
    %v9443 = vmul.f32 %v9421, 1.442695
    %v9444 = vpow.pop %v9443
    %v9445 = vmul.f32 %v9422, 1.442695
    %v9446 = vpow.pop %v9445
    %v9447 = vmul.f32 %v9423, 1.442695
    %v9448 = vpow.pop %v9447
    %v9449 = vmul.f32 %v9424, 1.442695
    %v9450 = vpow.pop %v9449
    %v9451 = vmul.f32 %v9425, 1.442695
    %v9452 = vpow.pop %v9451
    %v9453 = vmul.f32 %v9426, 1.442695
    %v9454 = vpow.pop %v9453
    %v9455 = vmul.f32 %v9427, 1.442695
    %v9456 = vpow.pop %v9455
    %v9457 = vmul.f32 %v9428, 1.442695
    %v9458 = vpow.pop %v9457
    %v9459 = vmul.f32 %v9429, 1.442695
    %v9460 = vpow.pop %v9459
    %v9461 = vmul.f32 %v9430, 1.442695
    %v9462 = vpow.pop %v9461
    %v9463 = vsel %vm2067, %v9432, 0.0
    %9464 = vadd.xlane.f32.xlu0 %v9463
    %v9465 = vpop.xlane.xlu0 %9464
    %v9466 = vsel %vm2067, %v9434, 0.0
    %9467 = vadd.xlane.f32.xlu0 %v9466
    %v9468 = vpop.xlane.xlu0 %9467
    %v9469 = vsel %vm2067, %v9436, 0.0
    %9470 = vadd.xlane.f32.xlu0 %v9469
    %v9471 = vpop.xlane.xlu0 %9470
    %v9472 = vsel %vm2067, %v9438, 0.0
    %9473 = vadd.xlane.f32.xlu0 %v9472
    %v9474 = vpop.xlane.xlu0 %9473
    %v9475 = vsel %vm2067, %v9440, 0.0
    %9476 = vadd.xlane.f32.xlu0 %v9475
    %v9477 = vpop.xlane.xlu0 %9476
    %v9478 = vsel %vm2067, %v9442, 0.0
    %9479 = vadd.xlane.f32.xlu0 %v9478
    %v9480 = vpop.xlane.xlu0 %9479
    %v9481 = vsel %vm2067, %v9444, 0.0
    %9482 = vadd.xlane.f32.xlu0 %v9481
    %v9483 = vpop.xlane.xlu0 %9482
    %v9484 = vsel %vm2067, %v9446, 0.0
    %9485 = vadd.xlane.f32.xlu0 %v9484
    %v9486 = vpop.xlane.xlu0 %9485
    %v9487 = vsel %vm2067, %v9448, 0.0
    %9488 = vadd.xlane.f32.xlu0 %v9487
    %v9489 = vpop.xlane.xlu0 %9488
    %v9490 = vsel %vm2067, %v9450, 0.0
    %9491 = vadd.xlane.f32.xlu0 %v9490
    %v9492 = vpop.xlane.xlu0 %9491
    %v9493 = vsel %vm2067, %v9452, 0.0
    %9494 = vadd.xlane.f32.xlu0 %v9493
    %v9495 = vpop.xlane.xlu0 %9494
    %v9496 = vsel %vm2067, %v9454, 0.0
    %9497 = vadd.xlane.f32.xlu0 %v9496
    %v9498 = vpop.xlane.xlu0 %9497
    %v9499 = vsel %vm2067, %v9456, 0.0
    %9500 = vadd.xlane.f32.xlu0 %v9499
    %v9501 = vpop.xlane.xlu0 %9500
    %v9502 = vsel %vm2067, %v9458, 0.0
    %9503 = vadd.xlane.f32.xlu0 %v9502
    %v9504 = vpop.xlane.xlu0 %9503
    %v9505 = vsel %vm2067, %v9460, 0.0
    %9506 = vadd.xlane.f32.xlu0 %v9505
    %v9507 = vpop.xlane.xlu0 %9506
    %v9508 = vsel %vm2067, %v9462, 0.0
    %9509 = vadd.xlane.f32.xlu0 %v9508
    %v9510 = vpop.xlane.xlu0 %9509
    %v9511 = vrcp.pop %v9465
    %v9512 = vrcp.pop %v9468
    %v9513 = vrcp.pop %v9471
    %v9514 = vrcp.pop %v9474
    %v9515 = vrcp.pop %v9477
    %v9516 = vrcp.pop %v9480
    %v9517 = vrcp.pop %v9483
    %v9518 = vrcp.pop %v9486
    %v9519 = vrcp.pop %v9489
    %v9520 = vrcp.pop %v9492
    %v9521 = vrcp.pop %v9495
    %v9522 = vrcp.pop %v9498
    %v9523 = vrcp.pop %v9501
    %v9524 = vrcp.pop %v9504
    %v9525 = vrcp.pop %v9507
    %v9526 = vrcp.pop %v9510
    %v9527 = vmul.f32 %v9432, %v9511
    %v9528 = vmul.f32 %v9434, %v9512
    %v9529 = vmul.f32 %v9436, %v9513
    %v9530 = vmul.f32 %v9438, %v9514
    %v9531 = vmul.f32 %v9440, %v9515
    %v9532 = vmul.f32 %v9442, %v9516
    %v9533 = vmul.f32 %v9444, %v9517
    %v9534 = vmul.f32 %v9446, %v9518
    %v9535 = vmul.f32 %v9448, %v9519
    %v9536 = vmul.f32 %v9450, %v9520
    %v9537 = vmul.f32 %v9452, %v9521
    %v9538 = vmul.f32 %v9454, %v9522
    %v9539 = vmul.f32 %v9456, %v9523
    %v9540 = vmul.f32 %v9458, %v9524
    %v9541 = vmul.f32 %v9460, %v9525
    %v9542 = vmul.f32 %v9462, %v9526
    %v9543 = vpack.c.bf16 %v9527, %v9527
    %v9544 = vpack.c.bf16 %v9528, %v9528
    %v9545 = vpack.c.bf16 %v9529, %v9529
    %v9546 = vpack.c.bf16 %v9530, %v9530
    %v9547 = vpack.c.bf16 %v9531, %v9531
    %v9548 = vpack.c.bf16 %v9532, %v9532
    %v9549 = vpack.c.bf16 %v9533, %v9533
    %v9550 = vpack.c.bf16 %v9534, %v9534
    %v9551 = vpack.c.bf16 %v9535, %v9535
    %v9552 = vpack.c.bf16 %v9536, %v9536
    %v9553 = vpack.c.bf16 %v9537, %v9537
    %v9554 = vpack.c.bf16 %v9538, %v9538
    %v9555 = vpack.c.bf16 %v9539, %v9539
    %v9556 = vpack.c.bf16 %v9540, %v9540
    %v9557 = vpack.c.bf16 %v9541, %v9541
    %v9558 = vpack.c.bf16 %v9542, %v9542
    %v9560 = vsel %vm2260, %v9543, 0
    %v9563 = vand.u32 %v9047, %v2267
    %9565 = vmatpush.bf16.msra.mxu0 0
    %9566 = vmatpush.bf16.msra.mxu0 0
    %9567 = vmatpush.bf16.msra.mxu0 0
    %9568 = vmatpush.bf16.msra.mxu0 0
    %9569 = vmatpush.bf16.msra.mxu0 0
    %9570 = vmatpush.bf16.msra.mxu0 0
    %9571 = vmatpush.bf16.msra.mxu0 0
    %9572 = vmatpush.bf16.msra.mxu0 %v9563
    %9573 = vmatmul.bf16.gmra.mxu0 %v9560
    %v9574 = vpop.f32.mrf.mxu0
    %v9575 = vadd.f32 0.0, %v9574
    %v9576 = vpop.f32.mrf.mxu0
    %9577 = vdwg.mxu0
    %v9579 = vsel %vm2260, %v9544, 0
    %v9582 = vand.u32 %v9048, %v2267
    %9584 = vmatpush.bf16.msra.mxu0 0
    %9585 = vmatpush.bf16.msra.mxu0 0
    %9586 = vmatpush.bf16.msra.mxu0 0
    %9587 = vmatpush.bf16.msra.mxu0 0
    %9588 = vmatpush.bf16.msra.mxu0 0
    %9589 = vmatpush.bf16.msra.mxu0 0
    %9590 = vmatpush.bf16.msra.mxu0 0
    %9591 = vmatpush.bf16.msra.mxu0 %v9582
    %9592 = vmatmul.bf16.gmra.mxu0 %v9579
    %v9593 = vpop.f32.mrf.mxu0
    %v9594 = vadd.f32 0.0, %v9593
    %v9595 = vpop.f32.mrf.mxu0
    %9596 = vdwg.mxu0
    %v9598 = vsel %vm2260, %v9545, 0
    %v9601 = vand.u32 %v9049, %v2267
    %9603 = vmatpush.bf16.msra.mxu0 0
    %9604 = vmatpush.bf16.msra.mxu0 0
    %9605 = vmatpush.bf16.msra.mxu0 0
    %9606 = vmatpush.bf16.msra.mxu0 0
    %9607 = vmatpush.bf16.msra.mxu0 0
    %9608 = vmatpush.bf16.msra.mxu0 0
    %9609 = vmatpush.bf16.msra.mxu0 0
    %9610 = vmatpush.bf16.msra.mxu0 %v9601
    %9611 = vmatmul.bf16.gmra.mxu0 %v9598
    %v9612 = vpop.f32.mrf.mxu0
    %v9613 = vadd.f32 0.0, %v9612
    %v9614 = vpop.f32.mrf.mxu0
    %9615 = vdwg.mxu0
    %v9617 = vsel %vm2260, %v9546, 0
    %v9620 = vand.u32 %v9050, %v2267
    %9622 = vmatpush.bf16.msra.mxu0 0
    %9623 = vmatpush.bf16.msra.mxu0 0
    %9624 = vmatpush.bf16.msra.mxu0 0
    %9625 = vmatpush.bf16.msra.mxu0 0
    %9626 = vmatpush.bf16.msra.mxu0 0
    %9627 = vmatpush.bf16.msra.mxu0 0
    %9628 = vmatpush.bf16.msra.mxu0 0
    %9629 = vmatpush.bf16.msra.mxu0 %v9620
    %9630 = vmatmul.bf16.gmra.mxu0 %v9617
    %v9631 = vpop.f32.mrf.mxu0
    %v9632 = vadd.f32 0.0, %v9631
    %v9633 = vpop.f32.mrf.mxu0
    %9634 = vdwg.mxu0
    %v9636 = vsel %vm2260, %v9547, 0
    %v9639 = vand.u32 %v9051, %v2267
    %9641 = vmatpush.bf16.msra.mxu0 0
    %9642 = vmatpush.bf16.msra.mxu0 0
    %9643 = vmatpush.bf16.msra.mxu0 0
    %9644 = vmatpush.bf16.msra.mxu0 0
    %9645 = vmatpush.bf16.msra.mxu0 0
    %9646 = vmatpush.bf16.msra.mxu0 0
    %9647 = vmatpush.bf16.msra.mxu0 0
    %9648 = vmatpush.bf16.msra.mxu0 %v9639
    %9649 = vmatmul.bf16.gmra.mxu0 %v9636
    %v9650 = vpop.f32.mrf.mxu0
    %v9651 = vadd.f32 0.0, %v9650
    %v9652 = vpop.f32.mrf.mxu0
    %9653 = vdwg.mxu0
    %v9655 = vsel %vm2260, %v9548, 0
    %v9658 = vand.u32 %v9052, %v2267
    %9660 = vmatpush.bf16.msra.mxu0 0
    %9661 = vmatpush.bf16.msra.mxu0 0
    %9662 = vmatpush.bf16.msra.mxu0 0
    %9663 = vmatpush.bf16.msra.mxu0 0
    %9664 = vmatpush.bf16.msra.mxu0 0
    %9665 = vmatpush.bf16.msra.mxu0 0
    %9666 = vmatpush.bf16.msra.mxu0 0
    %9667 = vmatpush.bf16.msra.mxu0 %v9658
    %9668 = vmatmul.bf16.gmra.mxu0 %v9655
    %v9669 = vpop.f32.mrf.mxu0
    %v9670 = vadd.f32 0.0, %v9669
    %v9671 = vpop.f32.mrf.mxu0
    %9672 = vdwg.mxu0
    %v9674 = vsel %vm2260, %v9549, 0
    %v9677 = vand.u32 %v9053, %v2267
    %9679 = vmatpush.bf16.msra.mxu0 0
    %9680 = vmatpush.bf16.msra.mxu0 0
    %9681 = vmatpush.bf16.msra.mxu0 0
    %9682 = vmatpush.bf16.msra.mxu0 0
    %9683 = vmatpush.bf16.msra.mxu0 0
    %9684 = vmatpush.bf16.msra.mxu0 0
    %9685 = vmatpush.bf16.msra.mxu0 0
    %9686 = vmatpush.bf16.msra.mxu0 %v9677
    %9687 = vmatmul.bf16.gmra.mxu0 %v9674
    %v9688 = vpop.f32.mrf.mxu0
    %v9689 = vadd.f32 0.0, %v9688
    %v9690 = vpop.f32.mrf.mxu0
    %9691 = vdwg.mxu0
    %v9693 = vsel %vm2260, %v9550, 0
    %v9696 = vand.u32 %v9054, %v2267
    %9698 = vmatpush.bf16.msra.mxu0 0
    %9699 = vmatpush.bf16.msra.mxu0 0
    %9700 = vmatpush.bf16.msra.mxu0 0
    %9701 = vmatpush.bf16.msra.mxu0 0
    %9702 = vmatpush.bf16.msra.mxu0 0
    %9703 = vmatpush.bf16.msra.mxu0 0
    %9704 = vmatpush.bf16.msra.mxu0 0
    %9705 = vmatpush.bf16.msra.mxu0 %v9696
    %9706 = vmatmul.bf16.gmra.mxu0 %v9693
    %v9707 = vpop.f32.mrf.mxu0
    %v9708 = vadd.f32 0.0, %v9707
    %v9709 = vpop.f32.mrf.mxu0
    %9710 = vdwg.mxu0
    %v9712 = vsel %vm2260, %v9551, 0
    %v9715 = vand.u32 %v9055, %v2267
    %9717 = vmatpush.bf16.msra.mxu0 0
    %9718 = vmatpush.bf16.msra.mxu0 0
    %9719 = vmatpush.bf16.msra.mxu0 0
    %9720 = vmatpush.bf16.msra.mxu0 0
    %9721 = vmatpush.bf16.msra.mxu0 0
    %9722 = vmatpush.bf16.msra.mxu0 0
    %9723 = vmatpush.bf16.msra.mxu0 0
    %9724 = vmatpush.bf16.msra.mxu0 %v9715
    %9725 = vmatmul.bf16.gmra.mxu0 %v9712
    %v9726 = vpop.f32.mrf.mxu0
    %v9727 = vadd.f32 0.0, %v9726
    %v9728 = vpop.f32.mrf.mxu0
    %9729 = vdwg.mxu0
    %v9731 = vsel %vm2260, %v9552, 0
    %v9734 = vand.u32 %v9056, %v2267
    %9736 = vmatpush.bf16.msra.mxu0 0
    %9737 = vmatpush.bf16.msra.mxu0 0
    %9738 = vmatpush.bf16.msra.mxu0 0
    %9739 = vmatpush.bf16.msra.mxu0 0
    %9740 = vmatpush.bf16.msra.mxu0 0
    %9741 = vmatpush.bf16.msra.mxu0 0
    %9742 = vmatpush.bf16.msra.mxu0 0
    %9743 = vmatpush.bf16.msra.mxu0 %v9734
    %9744 = vmatmul.bf16.gmra.mxu0 %v9731
    %v9745 = vpop.f32.mrf.mxu0
    %v9746 = vadd.f32 0.0, %v9745
    %v9747 = vpop.f32.mrf.mxu0
    %9748 = vdwg.mxu0
    %v9750 = vsel %vm2260, %v9553, 0
    %v9753 = vand.u32 %v9057, %v2267
    %9755 = vmatpush.bf16.msra.mxu0 0
    %9756 = vmatpush.bf16.msra.mxu0 0
    %9757 = vmatpush.bf16.msra.mxu0 0
    %9758 = vmatpush.bf16.msra.mxu0 0
    %9759 = vmatpush.bf16.msra.mxu0 0
    %9760 = vmatpush.bf16.msra.mxu0 0
    %9761 = vmatpush.bf16.msra.mxu0 0
    %9762 = vmatpush.bf16.msra.mxu0 %v9753
    %9763 = vmatmul.bf16.gmra.mxu0 %v9750
    %v9764 = vpop.f32.mrf.mxu0
    %v9765 = vadd.f32 0.0, %v9764
    %v9766 = vpop.f32.mrf.mxu0
    %9767 = vdwg.mxu0
    %v9769 = vsel %vm2260, %v9554, 0
    %v9772 = vand.u32 %v9058, %v2267
    %9774 = vmatpush.bf16.msra.mxu0 0
    %9775 = vmatpush.bf16.msra.mxu0 0
    %9776 = vmatpush.bf16.msra.mxu0 0
    %9777 = vmatpush.bf16.msra.mxu0 0
    %9778 = vmatpush.bf16.msra.mxu0 0
    %9779 = vmatpush.bf16.msra.mxu0 0
    %9780 = vmatpush.bf16.msra.mxu0 0
    %9781 = vmatpush.bf16.msra.mxu0 %v9772
    %9782 = vmatmul.bf16.gmra.mxu0 %v9769
    %v9783 = vpop.f32.mrf.mxu0
    %v9784 = vadd.f32 0.0, %v9783
    %v9785 = vpop.f32.mrf.mxu0
    %9786 = vdwg.mxu0
    %v9788 = vsel %vm2260, %v9555, 0
    %v9791 = vand.u32 %v9059, %v2267
    %9793 = vmatpush.bf16.msra.mxu0 0
    %9794 = vmatpush.bf16.msra.mxu0 0
    %9795 = vmatpush.bf16.msra.mxu0 0
    %9796 = vmatpush.bf16.msra.mxu0 0
    %9797 = vmatpush.bf16.msra.mxu0 0
    %9798 = vmatpush.bf16.msra.mxu0 0
    %9799 = vmatpush.bf16.msra.mxu0 0
    %9800 = vmatpush.bf16.msra.mxu0 %v9791
    %9801 = vmatmul.bf16.gmra.mxu0 %v9788
    %v9802 = vpop.f32.mrf.mxu0
    %v9803 = vadd.f32 0.0, %v9802
    %v9804 = vpop.f32.mrf.mxu0
    %9805 = vdwg.mxu0
    %v9807 = vsel %vm2260, %v9556, 0
    %v9810 = vand.u32 %v9060, %v2267
    %9812 = vmatpush.bf16.msra.mxu0 0
    %9813 = vmatpush.bf16.msra.mxu0 0
    %9814 = vmatpush.bf16.msra.mxu0 0
    %9815 = vmatpush.bf16.msra.mxu0 0
    %9816 = vmatpush.bf16.msra.mxu0 0
    %9817 = vmatpush.bf16.msra.mxu0 0
    %9818 = vmatpush.bf16.msra.mxu0 0
    %9819 = vmatpush.bf16.msra.mxu0 %v9810
    %9820 = vmatmul.bf16.gmra.mxu0 %v9807
    %v9821 = vpop.f32.mrf.mxu0
    %v9822 = vadd.f32 0.0, %v9821
    %v9823 = vpop.f32.mrf.mxu0
    %9824 = vdwg.mxu0
    %v9826 = vsel %vm2260, %v9557, 0
    %v9829 = vand.u32 %v9061, %v2267
    %9831 = vmatpush.bf16.msra.mxu0 0
    %9832 = vmatpush.bf16.msra.mxu0 0
    %9833 = vmatpush.bf16.msra.mxu0 0
    %9834 = vmatpush.bf16.msra.mxu0 0
    %9835 = vmatpush.bf16.msra.mxu0 0
    %9836 = vmatpush.bf16.msra.mxu0 0
    %9837 = vmatpush.bf16.msra.mxu0 0
    %9838 = vmatpush.bf16.msra.mxu0 %v9829
    %9839 = vmatmul.bf16.gmra.mxu0 %v9826
    %v9840 = vpop.f32.mrf.mxu0
    %v9841 = vadd.f32 0.0, %v9840
    %v9842 = vpop.f32.mrf.mxu0
    %9843 = vdwg.mxu0
    %v9845 = vsel %vm2260, %v9558, 0
    %v9848 = vand.u32 %v9062, %v2267
    %9850 = vmatpush.bf16.msra.mxu0 0
    %9851 = vmatpush.bf16.msra.mxu0 0
    %9852 = vmatpush.bf16.msra.mxu0 0
    %9853 = vmatpush.bf16.msra.mxu0 0
    %9854 = vmatpush.bf16.msra.mxu0 0
    %9855 = vmatpush.bf16.msra.mxu0 0
    %9856 = vmatpush.bf16.msra.mxu0 0
    %9857 = vmatpush.bf16.msra.mxu0 %v9848
    %9858 = vmatmul.bf16.gmra.mxu0 %v9845
    %v9859 = vpop.f32.mrf.mxu0
    %v9860 = vadd.f32 0.0, %v9859
    %v9861 = vpop.f32.mrf.mxu0
    %9862 = vdwg.mxu0
    %v9879 = vrot.slane %v9575, 1
    %v9880 = vrot.slane %v9575, 2
    %v9881 = vrot.slane %v9575, 3
    %v9882 = vrot.slane %v9575, 4
    %v9883 = vrot.slane %v9594, 1
    %v9884 = vrot.slane %v9594, 2
    %v9885 = vrot.slane %v9594, 3
    %v9886 = vrot.slane %v9594, 4
    %v9887 = vrot.slane %v9613, 1
    %v9888 = vrot.slane %v9613, 2
    %v9889 = vrot.slane %v9613, 3
    %v9890 = vrot.slane %v9613, 4
    %v9891 = vrot.slane %v9632, 1
    %v9892 = vrot.slane %v9632, 2
    %v9893 = vrot.slane %v9632, 3
    %v9894 = vrot.slane %v9632, 4
    %v9895 = vrot.slane %v9651, 1
    %v9896 = vrot.slane %v9651, 2
    %v9897 = vrot.slane %v9651, 3
    %v9898 = vrot.slane %v9651, 4
    %v9899 = vrot.slane %v9670, 1
    %v9900 = vrot.slane %v9670, 2
    %v9901 = vrot.slane %v9670, 3
    %v9902 = vrot.slane %v9670, 4
    %v9903 = vrot.slane %v9689, 1
    %v9904 = vrot.slane %v9689, 2
    %v9905 = vrot.slane %v9689, 3
    %v9906 = vrot.slane %v9689, 4
    %v9907 = vrot.slane %v9708, 1
    %v9908 = vrot.slane %v9708, 2
    %v9909 = vrot.slane %v9708, 3
    %v9910 = vrot.slane %v9708, 4
    %v9911 = vrot.slane %v9727, 1
    %v9912 = vrot.slane %v9727, 2
    %v9913 = vrot.slane %v9727, 3
    %v9914 = vrot.slane %v9727, 4
    %v9915 = vrot.slane %v9746, 1
    %v9916 = vrot.slane %v9746, 2
    %v9917 = vrot.slane %v9746, 3
    %v9918 = vrot.slane %v9746, 4
    %v9919 = vrot.slane %v9765, 1
    %v9920 = vrot.slane %v9765, 2
    %v9921 = vrot.slane %v9765, 3
    %v9922 = vrot.slane %v9765, 4
    %v9923 = vrot.slane %v9784, 1
    %v9924 = vrot.slane %v9784, 2
    %v9925 = vrot.slane %v9784, 3
    %v9926 = vrot.slane %v9784, 4
    %v9927 = vrot.slane %v9803, 1
    %v9928 = vrot.slane %v9803, 2
    %v9929 = vrot.slane %v9803, 3
    %v9930 = vrot.slane %v9803, 4
    %v9931 = vrot.slane %v9822, 1
    %v9932 = vrot.slane %v9822, 2
    %v9933 = vrot.slane %v9822, 3
    %v9934 = vrot.slane %v9822, 4
    %v9935 = vrot.slane %v9841, 1
    %v9936 = vrot.slane %v9841, 2
    %v9937 = vrot.slane %v9841, 3
    %v9938 = vrot.slane %v9841, 4
    %v9939 = vrot.slane %v9860, 1
    %v9940 = vrot.slane %v9860, 2
    %v9941 = vrot.slane %v9860, 3
    %v9942 = vrot.slane %v9860, 4
    %9943 = vst [vmem:[#allocation1] ss:$9 sm:$0xff] %v9575
    %s9944 = scalar_lea.vmem [#allocation1], 1
    %9945 = vst [vmem:[%s9944] ss:$9 sm:$0xff] %v9879
    %s9946 = scalar_lea.vmem [#allocation1], 2
    %9947 = vst [vmem:[%s9946] ss:$9 sm:$0xff] %v9880
    %s9948 = scalar_lea.vmem [#allocation1], 3
    %9949 = vst [vmem:[%s9948] ss:$9 sm:$0xff] %v9881
    %s9950 = scalar_lea.vmem [#allocation1], 4
    %9951 = vst [vmem:[%s9950] ss:$9 sm:$0xff] %v9882
    %s9952 = scalar_lea.vmem [#allocation1], 5
    %9953 = vst [vmem:[%s9952] ss:$9 sm:$0xff] %v9594
    %s9954 = scalar_lea.vmem [#allocation1], 6
    %9955 = vst [vmem:[%s9954] ss:$9 sm:$0xff] %v9883
    %s9956 = scalar_lea.vmem [#allocation1], 7
    %9957 = vst [vmem:[%s9956] ss:$9 sm:$0xff] %v9884
    %v9958 = vld [vmem:[#allocation1] sm:$0xff]
    %9959 = vst [vmem:[#allocation1] ss:$9 sm:$0xff] %v9885
    %9960 = vst [vmem:[%s9944] ss:$9 sm:$0xff] %v9886
    %9961 = vst [vmem:[%s9946] ss:$9 sm:$0xff] %v9613
    %9962 = vst [vmem:[%s9948] ss:$9 sm:$0xff] %v9887
    %9963 = vst [vmem:[%s9950] ss:$9 sm:$0xff] %v9888
    %9964 = vst [vmem:[%s9952] ss:$9 sm:$0xff] %v9889
    %9965 = vst [vmem:[%s9954] ss:$9 sm:$0xff] %v9890
    %9966 = vst [vmem:[%s9956] ss:$9 sm:$0xff] %v9632
    %v9967 = vld [vmem:[#allocation1] sm:$0xff]
    %9968 = vst [vmem:[#allocation1] ss:$9 sm:$0xff] %v9891
    %9969 = vst [vmem:[%s9944] ss:$9 sm:$0xff] %v9892
    %9970 = vst [vmem:[%s9946] ss:$9 sm:$0xff] %v9893
    %9971 = vst [vmem:[%s9948] ss:$9 sm:$0xff] %v9894
    %9972 = vst [vmem:[%s9950] ss:$9 sm:$0xff] %v9651
    %9973 = vst [vmem:[%s9952] ss:$9 sm:$0xff] %v9895
    %9974 = vst [vmem:[%s9954] ss:$9 sm:$0xff] %v9896
    %9975 = vst [vmem:[%s9956] ss:$9 sm:$0xff] %v9897
    %v9976 = vld [vmem:[#allocation1] sm:$0xff]
    %9977 = vst [vmem:[#allocation1] ss:$9 sm:$0xff] %v9898
    %9978 = vst [vmem:[%s9944] ss:$9 sm:$0xff] %v9670
    %9979 = vst [vmem:[%s9946] ss:$9 sm:$0xff] %v9899
    %9980 = vst [vmem:[%s9948] ss:$9 sm:$0xff] %v9900
    %9981 = vst [vmem:[%s9950] ss:$9 sm:$0xff] %v9901
    %9982 = vst [vmem:[%s9952] ss:$9 sm:$0xff] %v9902
    %9983 = vst [vmem:[%s9954] ss:$9 sm:$0xff] %v9689
    %9984 = vst [vmem:[%s9956] ss:$9 sm:$0xff] %v9903
    %v9985 = vld [vmem:[#allocation1] sm:$0xff]
    %9986 = vst [vmem:[#allocation1] ss:$9 sm:$0xff] %v9904
    %9987 = vst [vmem:[%s9944] ss:$9 sm:$0xff] %v9905
    %9988 = vst [vmem:[%s9946] ss:$9 sm:$0xff] %v9906
    %9989 = vst [vmem:[%s9948] ss:$9 sm:$0xff] %v9708
    %9990 = vst [vmem:[%s9950] ss:$9 sm:$0xff] %v9907
    %9991 = vst [vmem:[%s9952] ss:$9 sm:$0xff] %v9908
    %9992 = vst [vmem:[%s9954] ss:$9 sm:$0xff] %v9909
    %9993 = vst [vmem:[%s9956] ss:$9 sm:$0xff] %v9910
    %v9994 = vld [vmem:[#allocation1] sm:$0xff]
    %9995 = vst [vmem:[#allocation1] ss:$9 sm:$0xff] %v9727
    %9996 = vst [vmem:[%s9944] ss:$9 sm:$0xff] %v9911
    %9997 = vst [vmem:[%s9946] ss:$9 sm:$0xff] %v9912
    %9998 = vst [vmem:[%s9948] ss:$9 sm:$0xff] %v9913
    %9999 = vst [vmem:[%s9950] ss:$9 sm:$0xff] %v9914
    %10000 = vst [vmem:[%s9952] ss:$9 sm:$0xff] %v9746
    %10001 = vst [vmem:[%s9954] ss:$9 sm:$0xff] %v9915
    %10002 = vst [vmem:[%s9956] ss:$9 sm:$0xff] %v9916
    %v10003 = vld [vmem:[#allocation1] sm:$0xff]
    %10004 = vst [vmem:[#allocation1] ss:$9 sm:$0xff] %v9917
    %10005 = vst [vmem:[%s9944] ss:$9 sm:$0xff] %v9918
    %10006 = vst [vmem:[%s9946] ss:$9 sm:$0xff] %v9765
    %10007 = vst [vmem:[%s9948] ss:$9 sm:$0xff] %v9919
    %10008 = vst [vmem:[%s9950] ss:$9 sm:$0xff] %v9920
    %10009 = vst [vmem:[%s9952] ss:$9 sm:$0xff] %v9921
    %10010 = vst [vmem:[%s9954] ss:$9 sm:$0xff] %v9922
    %10011 = vst [vmem:[%s9956] ss:$9 sm:$0xff] %v9784
    %v10012 = vld [vmem:[#allocation1] sm:$0xff]
    %10013 = vst [vmem:[#allocation1] ss:$9 sm:$0xff] %v9923
    %10014 = vst [vmem:[%s9944] ss:$9 sm:$0xff] %v9924
    %10015 = vst [vmem:[%s9946] ss:$9 sm:$0xff] %v9925
    %10016 = vst [vmem:[%s9948] ss:$9 sm:$0xff] %v9926
    %10017 = vst [vmem:[%s9950] ss:$9 sm:$0xff] %v9803
    %10018 = vst [vmem:[%s9952] ss:$9 sm:$0xff] %v9927
    %10019 = vst [vmem:[%s9954] ss:$9 sm:$0xff] %v9928
    %10020 = vst [vmem:[%s9956] ss:$9 sm:$0xff] %v9929
    %v10021 = vld [vmem:[#allocation1] sm:$0xff]
    %10022 = vst [vmem:[#allocation1] ss:$9 sm:$0xff] %v9930
    %10023 = vst [vmem:[%s9944] ss:$9 sm:$0xff] %v9822
    %10024 = vst [vmem:[%s9946] ss:$9 sm:$0xff] %v9931
    %10025 = vst [vmem:[%s9948] ss:$9 sm:$0xff] %v9932
    %10026 = vst [vmem:[%s9950] ss:$9 sm:$0xff] %v9933
    %10027 = vst [vmem:[%s9952] ss:$9 sm:$0xff] %v9934
    %10028 = vst [vmem:[%s9954] ss:$9 sm:$0xff] %v9841
    %10029 = vst [vmem:[%s9956] ss:$9 sm:$0xff] %v9935
    %v10030 = vld [vmem:[#allocation1] sm:$0xff]
    %10031 = vst [vmem:[#allocation1] ss:$9 sm:$0xff] %v9936
    %10032 = vst [vmem:[%s9944] ss:$9 sm:$0xff] %v9937
    %10033 = vst [vmem:[%s9946] ss:$9 sm:$0xff] %v9938
    %10034 = vst [vmem:[%s9948] ss:$9 sm:$0xff] %v9860
    %10035 = vst [vmem:[%s9950] ss:$9 sm:$0xff] %v9939
    %10036 = vst [vmem:[%s9952] ss:$9 sm:$0xff] %v9940
    %10037 = vst [vmem:[%s9954] ss:$9 sm:$0xff] %v9941
    %10038 = vst [vmem:[%s9956] ss:$9 sm:$0xff] %v9942
    %v10039 = vld [vmem:[#allocation1] sm:$0xff]
    %v10050 = vpack.c.bf16 %v9967, %v9958
    %v10051 = vpack.c.bf16 %v9985, %v9976
    %v10052 = vpack.c.bf16 %v10003, %v9994
    %v10053 = vpack.c.bf16 %v10021, %v10012
    %v10054 = vpack.c.bf16 %v10039, %v10030
    %s10055 = scalar_lea.vmem %s13, 96
    %v10056 = vld [vmem:[%s10055] sm:$0xf]
    %v10057 = vld [vmem:[%s10055 + $0x4] sm:$0xf]
    %v10058 = vld [vmem:[%s10055 + $0x8] sm:$0xf]
    %v10059 = vld [vmem:[%s10055 + $0xc] sm:$0xf]
    %v10060 = vld [vmem:[%s10055 + $0x10] sm:$0xf]
    %v10061 = vld [vmem:[%s10055 + $0x14] sm:$0xf]
    %v10062 = vld [vmem:[%s10055 + $0x18] sm:$0xf]
    %v10063 = vld [vmem:[%s10055 + $0x1c] sm:$0xf]
    %v10072 = vunpack.c.l.b16 %v10056
    %v10073 = vunpack.c.l.b16 %v10057
    %v10074 = vunpack.c.l.b16 %v10058
    %v10075 = vunpack.c.l.b16 %v10059
    %v10076 = vunpack.c.l.b16 %v10060
    %v10077 = vunpack.c.l.b16 %v10061
    %v10078 = vunpack.c.l.b16 %v10062
    %v10079 = vunpack.c.l.b16 %v10063
    %v10080 = vpack.c.b16 %v10073, %v10072
    %v10081 = vpack.c.b16 %v10075, %v10074
    %v10082 = vpack.c.b16 %v10077, %v10076
    %v10083 = vpack.c.b16 %v10079, %v10078
    %v10089 = vsel %vm1762, %v10050, 0
    %v10092 = vsel %vm1762, %v10051, 0
    %v10095 = vsel %vm1762, %v10052, 0
    %v10098 = vsel %vm1762, %v10053, 0
    %v10101 = vsel %vm1762, %v10054, 0
    %10103 = vmatpush.bf16.msra.mxu0 0
    %10104 = vmatpush.bf16.msra.mxu0 0
    %10105 = vmatpush.bf16.msra.mxu0 0
    %10106 = vmatpush.bf16.msra.mxu0 0
    %10107 = vmatpush.bf16.msra.mxu0 %v10083
    %10108 = vmatpush.bf16.msra.mxu0 %v10082
    %10109 = vmatpush.bf16.msra.mxu0 %v10081
    %10110 = vmatpush.bf16.msra.mxu0 %v10080
    %10111 = vmatmul.bf16.gmra.mxu0 %v10089
    %v10112 = vpop.f32.mrf.mxu0
    %v10113 = vadd.f32 0.0, %v10112
    %v10114 = vpop.f32.mrf.mxu0
    %v10115 = vadd.f32 0.0, %v10114
    %10116 = vmatmul.bf16.gmra.mxu0 %v10092
    %v10117 = vpop.f32.mrf.mxu0
    %v10118 = vadd.f32 0.0, %v10117
    %v10119 = vpop.f32.mrf.mxu0
    %v10120 = vadd.f32 0.0, %v10119
    %10121 = vmatmul.bf16.gmra.mxu0 %v10095
    %v10122 = vpop.f32.mrf.mxu0
    %v10123 = vadd.f32 0.0, %v10122
    %v10124 = vpop.f32.mrf.mxu0
    %v10125 = vadd.f32 0.0, %v10124
    %10126 = vmatmul.bf16.gmra.mxu0 %v10098
    %v10127 = vpop.f32.mrf.mxu0
    %v10128 = vadd.f32 0.0, %v10127
    %v10129 = vpop.f32.mrf.mxu0
    %v10130 = vadd.f32 0.0, %v10129
    %10131 = vmatmul.bf16.gmra.mxu0 %v10101
    %v10132 = vpop.f32.mrf.mxu0
    %v10133 = vadd.f32 0.0, %v10132
    %v10134 = vpop.f32.mrf.mxu0
    %v10135 = vadd.f32 0.0, %v10134
    %10136 = vdwg.mxu0
    %v10145 = vunpack.c.l.b16 %v8107
    %v10146 = vunpack.c.l.b16 %v8108
    %v10147 = vunpack.c.l.b16 %v8109
    %v10148 = vunpack.c.l.b16 %v8110
    %v10149 = vunpack.c.l.b16 %v8111
    %v10150 = vunpack.c.l.b16 %v8112
    %v10151 = vunpack.c.l.b16 %v8113
    %v10152 = vunpack.c.l.b16 %v8114
    %v10153 = vpack.c.b16 %v10146, %v10145
    %v10154 = vpack.c.b16 %v10148, %v10147
    %v10155 = vpack.c.b16 %v10150, %v10149
    %v10156 = vpack.c.b16 %v10152, %v10151
    %v10162 = vsel %vm1762, %v8101, 0
    %v10165 = vsel %vm1762, %v8102, 0
    %v10168 = vsel %vm1762, %v8103, 0
    %v10171 = vsel %vm1762, %v8104, 0
    %v10174 = vsel %vm1762, %v8105, 0
    %10176 = vmatpush.bf16.msra.mxu0 0
    %10177 = vmatpush.bf16.msra.mxu0 0
    %10178 = vmatpush.bf16.msra.mxu0 0
    %10179 = vmatpush.bf16.msra.mxu0 0
    %10180 = vmatpush.bf16.msra.mxu0 %v10156
    %10181 = vmatpush.bf16.msra.mxu0 %v10155
    %10182 = vmatpush.bf16.msra.mxu0 %v10154
    %10183 = vmatpush.bf16.msra.mxu0 %v10153
    %10184 = vmatmul.bf16.gmra.mxu0 %v10162
    %v10185 = vpop.f32.mrf.mxu0
    %v10186 = vadd.f32 %v10113, %v10185
    %v10187 = vpop.f32.mrf.mxu0
    %v10188 = vadd.f32 %v10115, %v10187
    %10189 = vmatmul.bf16.gmra.mxu0 %v10165
    %v10190 = vpop.f32.mrf.mxu0
    %v10191 = vadd.f32 %v10118, %v10190
    %v10192 = vpop.f32.mrf.mxu0
    %v10193 = vadd.f32 %v10120, %v10192
    %10194 = vmatmul.bf16.gmra.mxu0 %v10168
    %v10195 = vpop.f32.mrf.mxu0
    %v10196 = vadd.f32 %v10123, %v10195
    %v10197 = vpop.f32.mrf.mxu0
    %v10198 = vadd.f32 %v10125, %v10197
    %10199 = vmatmul.bf16.gmra.mxu0 %v10171
    %v10200 = vpop.f32.mrf.mxu0
    %v10201 = vadd.f32 %v10128, %v10200
    %v10202 = vpop.f32.mrf.mxu0
    %v10203 = vadd.f32 %v10130, %v10202
    %10204 = vmatmul.bf16.gmra.mxu0 %v10174
    %v10205 = vpop.f32.mrf.mxu0
    %v10206 = vadd.f32 %v10133, %v10205
    %v10207 = vpop.f32.mrf.mxu0
    %v10208 = vadd.f32 %v10135, %v10207
    %10209 = vdwg.mxu0
    %v10210 = vadd.f32 %v5921, %v10186
    %v10211 = vadd.f32 %v5922, %v10188
    %v10212 = vadd.f32 %v5923, %v10191
    %v10213 = vadd.f32 %v5924, %v10193
    %v10214 = vadd.f32 %v5925, %v10196
    %v10215 = vadd.f32 %v5926, %v10198
    %v10216 = vadd.f32 %v5927, %v10201
    %v10217 = vadd.f32 %v5928, %v10203
    %v10218 = vadd.f32 %v5929, %v10206
    %v10219 = vadd.f32 %v5930, %v10208
    %s10220 = scalar_lea.vmem %s14, 1
    %v10221 = vld [vmem:[%s10220] sm:$0x1]
    %v10223 = vperm.slane %v10221, 0
    %v10225 = vadd.f32 %v10210, %v10223
    %v10226 = vadd.f32 %v10211, %v10223
    %v10227 = vadd.f32 %v10212, %v10223
    %v10228 = vadd.f32 %v10213, %v10223
    %v10229 = vadd.f32 %v10214, %v10223
    %v10230 = vadd.f32 %v10215, %v10223
    %v10231 = vadd.f32 %v10216, %v10223
    %v10232 = vadd.f32 %v10217, %v10223
    %v10233 = vadd.f32 %v10218, %v10223
    %v10234 = vadd.f32 %v10219, %v10223
    %s10235 = scalar_lea.vmem %s15, 1
    %v10236 = vld [vmem:[%s10235] sm:$0x1]
    %s10237 = scalar_lea.vmem %s16, 1
    %v10238 = vld [vmem:[%s10237] sm:$0x1]
    %10239 = vadd.xlane.f32.xlu0 %v10225
    %v10240 = vpop.xlane.xlu0 %10239
    %10241 = vadd.xlane.f32.xlu0 %v10226
    %v10242 = vpop.xlane.xlu0 %10241
    %10243 = vadd.xlane.f32.xlu0 %v10227
    %v10244 = vpop.xlane.xlu0 %10243
    %10245 = vadd.xlane.f32.xlu0 %v10228
    %v10246 = vpop.xlane.xlu0 %10245
    %10247 = vadd.xlane.f32.xlu0 %v10229
    %v10248 = vpop.xlane.xlu0 %10247
    %10249 = vadd.xlane.f32.xlu0 %v10230
    %v10250 = vpop.xlane.xlu0 %10249
    %10251 = vadd.xlane.f32.xlu0 %v10231
    %v10252 = vpop.xlane.xlu0 %10251
    %10253 = vadd.xlane.f32.xlu0 %v10232
    %v10254 = vpop.xlane.xlu0 %10253
    %10255 = vadd.xlane.f32.xlu0 %v10233
    %v10256 = vpop.xlane.xlu0 %10255
    %10257 = vadd.xlane.f32.xlu0 %v10234
    %v10258 = vpop.xlane.xlu0 %10257
    %v10259 = vmul.f32 %v10240, %v380
    %v10260 = vmul.f32 %v10242, %v380
    %v10261 = vmul.f32 %v10244, %v380
    %v10262 = vmul.f32 %v10246, %v380
    %v10263 = vmul.f32 %v10248, %v380
    %v10264 = vmul.f32 %v10250, %v380
    %v10265 = vmul.f32 %v10252, %v380
    %v10266 = vmul.f32 %v10254, %v380
    %v10267 = vmul.f32 %v10256, %v380
    %v10268 = vmul.f32 %v10258, %v380
    %v10269 = vsub.f32 %v10225, %v10259
    %v10270 = vsub.f32 %v10226, %v10260
    %v10271 = vsub.f32 %v10227, %v10261
    %v10272 = vsub.f32 %v10228, %v10262
    %v10273 = vsub.f32 %v10229, %v10263
    %v10274 = vsub.f32 %v10230, %v10264
    %v10275 = vsub.f32 %v10231, %v10265
    %v10276 = vsub.f32 %v10232, %v10266
    %v10277 = vsub.f32 %v10233, %v10267
    %v10278 = vsub.f32 %v10234, %v10268
    %v10279 = vmul.f32 %v10269, %v10269
    %v10280 = vmul.f32 %v10270, %v10270
    %v10281 = vmul.f32 %v10271, %v10271
    %v10282 = vmul.f32 %v10272, %v10272
    %v10283 = vmul.f32 %v10273, %v10273
    %v10284 = vmul.f32 %v10274, %v10274
    %v10285 = vmul.f32 %v10275, %v10275
    %v10286 = vmul.f32 %v10276, %v10276
    %v10287 = vmul.f32 %v10277, %v10277
    %v10288 = vmul.f32 %v10278, %v10278
    %10289 = vadd.xlane.f32.xlu0 %v10279
    %v10290 = vpop.xlane.xlu0 %10289
    %10291 = vadd.xlane.f32.xlu0 %v10280
    %v10292 = vpop.xlane.xlu0 %10291
    %10293 = vadd.xlane.f32.xlu0 %v10281
    %v10294 = vpop.xlane.xlu0 %10293
    %10295 = vadd.xlane.f32.xlu0 %v10282
    %v10296 = vpop.xlane.xlu0 %10295
    %10297 = vadd.xlane.f32.xlu0 %v10283
    %v10298 = vpop.xlane.xlu0 %10297
    %10299 = vadd.xlane.f32.xlu0 %v10284
    %v10300 = vpop.xlane.xlu0 %10299
    %10301 = vadd.xlane.f32.xlu0 %v10285
    %v10302 = vpop.xlane.xlu0 %10301
    %10303 = vadd.xlane.f32.xlu0 %v10286
    %v10304 = vpop.xlane.xlu0 %10303
    %10305 = vadd.xlane.f32.xlu0 %v10287
    %v10306 = vpop.xlane.xlu0 %10305
    %10307 = vadd.xlane.f32.xlu0 %v10288
    %v10308 = vpop.xlane.xlu0 %10307
    %v10309 = vmul.f32 %v10290, %v380
    %v10310 = vmul.f32 %v10292, %v380
    %v10311 = vmul.f32 %v10294, %v380
    %v10312 = vmul.f32 %v10296, %v380
    %v10313 = vmul.f32 %v10298, %v380
    %v10314 = vmul.f32 %v10300, %v380
    %v10315 = vmul.f32 %v10302, %v380
    %v10316 = vmul.f32 %v10304, %v380
    %v10317 = vmul.f32 %v10306, %v380
    %v10318 = vmul.f32 %v10308, %v380
    %v10319 = vadd.f32 %v10309, 1e-05
    %v10320 = vadd.f32 %v10310, 1e-05
    %v10321 = vadd.f32 %v10311, 1e-05
    %v10322 = vadd.f32 %v10312, 1e-05
    %v10323 = vadd.f32 %v10313, 1e-05
    %v10324 = vadd.f32 %v10314, 1e-05
    %v10325 = vadd.f32 %v10315, 1e-05
    %v10326 = vadd.f32 %v10316, 1e-05
    %v10327 = vadd.f32 %v10317, 1e-05
    %v10328 = vadd.f32 %v10318, 1e-05
    %v10329 = vrsqrt.pop %v10319
    %v10330 = vmul.f32 %v10329, %v10319
    %v10331 = vmul.f32 %v10330, %v10329
    %v10332 = vmul.f32 0.5, %v10331
    %v10333 = vsub.f32 1.5, %v10332
    %v10334 = vmul.f32 %v10329, %v10333
    %vm10335 = vweird.f32 %v10319
    %vm10336 = vweird.f32 %v10329
    %vm10337 = vmor %vm10335, %vm10336
    %v10338 = vsel %vm10337, %v10329, %v10334
    %v10339 = vrsqrt.pop %v10320
    %v10340 = vmul.f32 %v10339, %v10320
    %v10341 = vmul.f32 %v10340, %v10339
    %v10342 = vmul.f32 0.5, %v10341
    %v10343 = vsub.f32 1.5, %v10342
    %v10344 = vmul.f32 %v10339, %v10343
    %vm10345 = vweird.f32 %v10320
    %vm10346 = vweird.f32 %v10339
    %vm10347 = vmor %vm10345, %vm10346
    %v10348 = vsel %vm10347, %v10339, %v10344
    %v10349 = vrsqrt.pop %v10321
    %v10350 = vmul.f32 %v10349, %v10321
    %v10351 = vmul.f32 %v10350, %v10349
    %v10352 = vmul.f32 0.5, %v10351
    %v10353 = vsub.f32 1.5, %v10352
    %v10354 = vmul.f32 %v10349, %v10353
    %vm10355 = vweird.f32 %v10321
    %vm10356 = vweird.f32 %v10349
    %vm10357 = vmor %vm10355, %vm10356
    %v10358 = vsel %vm10357, %v10349, %v10354
    %v10359 = vrsqrt.pop %v10322
    %v10360 = vmul.f32 %v10359, %v10322
    %v10361 = vmul.f32 %v10360, %v10359
    %v10362 = vmul.f32 0.5, %v10361
    %v10363 = vsub.f32 1.5, %v10362
    %v10364 = vmul.f32 %v10359, %v10363
    %vm10365 = vweird.f32 %v10322
    %vm10366 = vweird.f32 %v10359
    %vm10367 = vmor %vm10365, %vm10366
    %v10368 = vsel %vm10367, %v10359, %v10364
    %v10369 = vrsqrt.pop %v10323
    %v10370 = vmul.f32 %v10369, %v10323
    %v10371 = vmul.f32 %v10370, %v10369
    %v10372 = vmul.f32 0.5, %v10371
    %v10373 = vsub.f32 1.5, %v10372
    %v10374 = vmul.f32 %v10369, %v10373
    %vm10375 = vweird.f32 %v10323
    %vm10376 = vweird.f32 %v10369
    %vm10377 = vmor %vm10375, %vm10376
    %v10378 = vsel %vm10377, %v10369, %v10374
    %v10379 = vrsqrt.pop %v10324
    %v10380 = vmul.f32 %v10379, %v10324
    %v10381 = vmul.f32 %v10380, %v10379
    %v10382 = vmul.f32 0.5, %v10381
    %v10383 = vsub.f32 1.5, %v10382
    %v10384 = vmul.f32 %v10379, %v10383
    %vm10385 = vweird.f32 %v10324
    %vm10386 = vweird.f32 %v10379
    %vm10387 = vmor %vm10385, %vm10386
    %v10388 = vsel %vm10387, %v10379, %v10384
    %v10389 = vrsqrt.pop %v10325
    %v10390 = vmul.f32 %v10389, %v10325
    %v10391 = vmul.f32 %v10390, %v10389
    %v10392 = vmul.f32 0.5, %v10391
    %v10393 = vsub.f32 1.5, %v10392
    %v10394 = vmul.f32 %v10389, %v10393
    %vm10395 = vweird.f32 %v10325
    %vm10396 = vweird.f32 %v10389
    %vm10397 = vmor %vm10395, %vm10396
    %v10398 = vsel %vm10397, %v10389, %v10394
    %v10399 = vrsqrt.pop %v10326
    %v10400 = vmul.f32 %v10399, %v10326
    %v10401 = vmul.f32 %v10400, %v10399
    %v10402 = vmul.f32 0.5, %v10401
    %v10403 = vsub.f32 1.5, %v10402
    %v10404 = vmul.f32 %v10399, %v10403
    %vm10405 = vweird.f32 %v10326
    %vm10406 = vweird.f32 %v10399
    %vm10407 = vmor %vm10405, %vm10406
    %v10408 = vsel %vm10407, %v10399, %v10404
    %v10409 = vrsqrt.pop %v10327
    %v10410 = vmul.f32 %v10409, %v10327
    %v10411 = vmul.f32 %v10410, %v10409
    %v10412 = vmul.f32 0.5, %v10411
    %v10413 = vsub.f32 1.5, %v10412
    %v10414 = vmul.f32 %v10409, %v10413
    %vm10415 = vweird.f32 %v10327
    %vm10416 = vweird.f32 %v10409
    %vm10417 = vmor %vm10415, %vm10416
    %v10418 = vsel %vm10417, %v10409, %v10414
    %v10419 = vrsqrt.pop %v10328
    %v10420 = vmul.f32 %v10419, %v10328
    %v10421 = vmul.f32 %v10420, %v10419
    %v10422 = vmul.f32 0.5, %v10421
    %v10423 = vsub.f32 1.5, %v10422
    %v10424 = vmul.f32 %v10419, %v10423
    %vm10425 = vweird.f32 %v10328
    %vm10426 = vweird.f32 %v10419
    %vm10427 = vmor %vm10425, %vm10426
    %v10428 = vsel %vm10427, %v10419, %v10424
    %v10429 = vmul.f32 %v10269, %v10338
    %v10430 = vmul.f32 %v10270, %v10348
    %v10431 = vmul.f32 %v10271, %v10358
    %v10432 = vmul.f32 %v10272, %v10368
    %v10433 = vmul.f32 %v10273, %v10378
    %v10434 = vmul.f32 %v10274, %v10388
    %v10435 = vmul.f32 %v10275, %v10398
    %v10436 = vmul.f32 %v10276, %v10408
    %v10437 = vmul.f32 %v10277, %v10418
    %v10438 = vmul.f32 %v10278, %v10428
    %v10440 = vperm.slane %v10236, 0
    %v10442 = vmul.f32 %v10429, %v10440
    %v10443 = vmul.f32 %v10430, %v10440
    %v10444 = vmul.f32 %v10431, %v10440
    %v10445 = vmul.f32 %v10432, %v10440
    %v10446 = vmul.f32 %v10433, %v10440
    %v10447 = vmul.f32 %v10434, %v10440
    %v10448 = vmul.f32 %v10435, %v10440
    %v10449 = vmul.f32 %v10436, %v10440
    %v10450 = vmul.f32 %v10437, %v10440
    %v10451 = vmul.f32 %v10438, %v10440
    %v10453 = vperm.slane %v10238, 0
    %v10455 = vadd.f32 %v10442, %v10453
    %v10456 = vadd.f32 %v10443, %v10453
    %v10457 = vadd.f32 %v10444, %v10453
    %v10458 = vadd.f32 %v10445, %v10453
    %v10459 = vadd.f32 %v10446, %v10453
    %v10460 = vadd.f32 %v10447, %v10453
    %v10461 = vadd.f32 %v10448, %v10453
    %v10462 = vadd.f32 %v10449, %v10453
    %v10463 = vadd.f32 %v10450, %v10453
    %v10464 = vadd.f32 %v10451, %v10453
    %v10465 = vpack.c.bf16 %v10456, %v10455
    %v10466 = vpack.c.bf16 %v10458, %v10457
    %v10467 = vpack.c.bf16 %v10460, %v10459
    %v10468 = vpack.c.bf16 %v10462, %v10461
    %v10469 = vpack.c.bf16 %v10464, %v10463
    %s10470 = scalar_lea.vmem %s17, 128
    %v10471 = vld [vmem:[%s10470] sm:$0xff]
    %v10472 = vld [vmem:[%s10470 + $0x8] sm:$0xff]
    %v10473 = vld [vmem:[%s10470 + $0x10] sm:$0xff]
    %v10474 = vld [vmem:[%s10470 + $0x18] sm:$0xff]
    %v10475 = vld [vmem:[%s10470 + $0x20] sm:$0xff]
    %v10476 = vld [vmem:[%s10470 + $0x28] sm:$0xff]
    %v10477 = vld [vmem:[%s10470 + $0x30] sm:$0xff]
    %v10478 = vld [vmem:[%s10470 + $0x38] sm:$0xff]
    %v10479 = vld [vmem:[%s10470 + $0x40] sm:$0xff]
    %v10480 = vld [vmem:[%s10470 + $0x48] sm:$0xff]
    %v10481 = vld [vmem:[%s10470 + $0x50] sm:$0xff]
    %v10482 = vld [vmem:[%s10470 + $0x58] sm:$0xff]
    %v10483 = vld [vmem:[%s10470 + $0x60] sm:$0xff]
    %v10484 = vld [vmem:[%s10470 + $0x68] sm:$0xff]
    %v10485 = vld [vmem:[%s10470 + $0x70] sm:$0xff]
    %v10486 = vld [vmem:[%s10470 + $0x78] sm:$0xff]
    %s10487 = scalar_lea.vmem %s18, 2
    %v10488 = vld [vmem:[%s10487] sm:$0x3]
    %v10490 = vperm.slane %v10488, 0
    %v10491 = vperm.slane %v10488, 1
    %v10510 = vunpack.c.l.b16 %v10471
    %v10511 = vunpack.c.h.b16 %v10471
    %v10512 = vunpack.c.l.b16 %v10472
    %v10513 = vunpack.c.h.b16 %v10472
    %v10514 = vunpack.c.l.b16 %v10473
    %v10515 = vunpack.c.h.b16 %v10473
    %v10516 = vunpack.c.l.b16 %v10474
    %v10517 = vunpack.c.h.b16 %v10474
    %v10518 = vunpack.c.l.b16 %v10475
    %v10519 = vunpack.c.h.b16 %v10475
    %v10520 = vunpack.c.l.b16 %v10476
    %v10521 = vunpack.c.h.b16 %v10476
    %v10522 = vunpack.c.l.b16 %v10477
    %v10523 = vunpack.c.h.b16 %v10477
    %v10524 = vunpack.c.l.b16 %v10478
    %v10525 = vunpack.c.h.b16 %v10478
    %v10526 = vunpack.c.l.b16 %v10479
    %v10527 = vunpack.c.h.b16 %v10479
    %v10528 = vunpack.c.l.b16 %v10480
    %v10529 = vunpack.c.h.b16 %v10480
    %v10530 = vunpack.c.l.b16 %v10481
    %v10531 = vunpack.c.h.b16 %v10481
    %v10532 = vunpack.c.l.b16 %v10482
    %v10533 = vunpack.c.h.b16 %v10482
    %v10534 = vunpack.c.l.b16 %v10483
    %v10535 = vunpack.c.h.b16 %v10483
    %v10536 = vunpack.c.l.b16 %v10484
    %v10537 = vunpack.c.h.b16 %v10484
    %v10538 = vunpack.c.l.b16 %v10485
    %v10539 = vunpack.c.h.b16 %v10485
    %v10540 = vunpack.c.l.b16 %v10486
    %v10541 = vunpack.c.h.b16 %v10486
    %v10542 = vpack.c.b16 %v10512, %v10510
    %v10543 = vpack.c.b16 %v10513, %v10511
    %v10544 = vpack.c.b16 %v10516, %v10514
    %v10545 = vpack.c.b16 %v10517, %v10515
    %v10546 = vpack.c.b16 %v10520, %v10518
    %v10547 = vpack.c.b16 %v10521, %v10519
    %v10548 = vpack.c.b16 %v10524, %v10522
    %v10549 = vpack.c.b16 %v10525, %v10523
    %v10550 = vpack.c.b16 %v10528, %v10526
    %v10551 = vpack.c.b16 %v10529, %v10527
    %v10552 = vpack.c.b16 %v10532, %v10530
    %v10553 = vpack.c.b16 %v10533, %v10531
    %v10554 = vpack.c.b16 %v10536, %v10534
    %v10555 = vpack.c.b16 %v10537, %v10535
    %v10556 = vpack.c.b16 %v10540, %v10538
    %v10557 = vpack.c.b16 %v10541, %v10539
    %10574 = vmatpush.bf16.msra.mxu0 %v10556
    %10575 = vmatpush.bf16.msra.mxu0 %v10554
    %10576 = vmatpush.bf16.msra.mxu0 %v10552
    %10577 = vmatpush.bf16.msra.mxu0 %v10550
    %10578 = vmatpush.bf16.msra.mxu0 %v10548
    %10579 = vmatpush.bf16.msra.mxu0 %v10546
    %10580 = vmatpush.bf16.msra.mxu0 %v10544
    %10581 = vmatpush.bf16.msra.mxu0 %v10542
    %10582 = vmatmul.bf16.gmra.mxu0 %v10465
    %v10583 = vpop.f32.mrf.mxu0
    %v10584 = vadd.f32 %v10490, %v10583
    %v10585 = vpop.f32.mrf.mxu0
    %v10586 = vadd.f32 %v10490, %v10585
    %10587 = vmatmul.bf16.gmra.mxu0 %v10466
    %v10588 = vpop.f32.mrf.mxu0
    %v10589 = vadd.f32 %v10490, %v10588
    %v10590 = vpop.f32.mrf.mxu0
    %v10591 = vadd.f32 %v10490, %v10590
    %10592 = vmatmul.bf16.gmra.mxu0 %v10467
    %v10593 = vpop.f32.mrf.mxu0
    %v10594 = vadd.f32 %v10490, %v10593
    %v10595 = vpop.f32.mrf.mxu0
    %v10596 = vadd.f32 %v10490, %v10595
    %10597 = vmatmul.bf16.gmra.mxu0 %v10468
    %v10598 = vpop.f32.mrf.mxu0
    %v10599 = vadd.f32 %v10490, %v10598
    %v10600 = vpop.f32.mrf.mxu0
    %v10601 = vadd.f32 %v10490, %v10600
    %10602 = vmatmul.bf16.gmra.mxu0 %v10469
    %v10603 = vpop.f32.mrf.mxu0
    %v10604 = vadd.f32 %v10490, %v10603
    %v10605 = vpop.f32.mrf.mxu0
    %v10606 = vadd.f32 %v10490, %v10605
    %10607 = vdwg.mxu0
    %10608 = vmatpush.bf16.msra.mxu0 %v10557
    %10609 = vmatpush.bf16.msra.mxu0 %v10555
    %10610 = vmatpush.bf16.msra.mxu0 %v10553
    %10611 = vmatpush.bf16.msra.mxu0 %v10551
    %10612 = vmatpush.bf16.msra.mxu0 %v10549
    %10613 = vmatpush.bf16.msra.mxu0 %v10547
    %10614 = vmatpush.bf16.msra.mxu0 %v10545
    %10615 = vmatpush.bf16.msra.mxu0 %v10543
    %10616 = vmatmul.bf16.gmra.mxu0 %v10465
    %v10617 = vpop.f32.mrf.mxu0
    %v10618 = vadd.f32 %v10491, %v10617
    %v10619 = vpop.f32.mrf.mxu0
    %v10620 = vadd.f32 %v10491, %v10619
    %10621 = vmatmul.bf16.gmra.mxu0 %v10466
    %v10622 = vpop.f32.mrf.mxu0
    %v10623 = vadd.f32 %v10491, %v10622
    %v10624 = vpop.f32.mrf.mxu0
    %v10625 = vadd.f32 %v10491, %v10624
    %10626 = vmatmul.bf16.gmra.mxu0 %v10467
    %v10627 = vpop.f32.mrf.mxu0
    %v10628 = vadd.f32 %v10491, %v10627
    %v10629 = vpop.f32.mrf.mxu0
    %v10630 = vadd.f32 %v10491, %v10629
    %10631 = vmatmul.bf16.gmra.mxu0 %v10468
    %v10632 = vpop.f32.mrf.mxu0
    %v10633 = vadd.f32 %v10491, %v10632
    %v10634 = vpop.f32.mrf.mxu0
    %v10635 = vadd.f32 %v10491, %v10634
    %10636 = vmatmul.bf16.gmra.mxu0 %v10469
    %v10637 = vpop.f32.mrf.mxu0
    %v10638 = vadd.f32 %v10491, %v10637
    %v10639 = vpop.f32.mrf.mxu0
    %v10640 = vadd.f32 %v10491, %v10639
    %10641 = vdwg.mxu0
    %v10642 = vmul.f32 %v10584, 1.702
    %v10643 = vmul.f32 %v10618, 1.702
    %v10644 = vmul.f32 %v10586, 1.702
    %v10645 = vmul.f32 %v10620, 1.702
    %v10646 = vmul.f32 %v10589, 1.702
    %v10647 = vmul.f32 %v10623, 1.702
    %v10648 = vmul.f32 %v10591, 1.702
    %v10649 = vmul.f32 %v10625, 1.702
    %v10650 = vmul.f32 %v10594, 1.702
    %v10651 = vmul.f32 %v10628, 1.702
    %v10652 = vmul.f32 %v10596, 1.702
    %v10653 = vmul.f32 %v10630, 1.702
    %v10654 = vmul.f32 %v10599, 1.702
    %v10655 = vmul.f32 %v10633, 1.702
    %v10656 = vmul.f32 %v10601, 1.702
    %v10657 = vmul.f32 %v10635, 1.702
    %v10658 = vmul.f32 %v10604, 1.702
    %v10659 = vmul.f32 %v10638, 1.702
    %v10660 = vmul.f32 %v10606, 1.702
    %v10661 = vmul.f32 %v10640, 1.702
    %v10662 = vxor.u32 %v10642, 2147483648
    %v10663 = vxor.u32 %v10643, 2147483648
    %v10664 = vxor.u32 %v10644, 2147483648
    %v10665 = vxor.u32 %v10645, 2147483648
    %v10666 = vxor.u32 %v10646, 2147483648
    %v10667 = vxor.u32 %v10647, 2147483648
    %v10668 = vxor.u32 %v10648, 2147483648
    %v10669 = vxor.u32 %v10649, 2147483648
    %v10670 = vxor.u32 %v10650, 2147483648
    %v10671 = vxor.u32 %v10651, 2147483648
    %v10672 = vxor.u32 %v10652, 2147483648
    %v10673 = vxor.u32 %v10653, 2147483648
    %v10674 = vxor.u32 %v10654, 2147483648
    %v10675 = vxor.u32 %v10655, 2147483648
    %v10676 = vxor.u32 %v10656, 2147483648
    %v10677 = vxor.u32 %v10657, 2147483648
    %v10678 = vxor.u32 %v10658, 2147483648
    %v10679 = vxor.u32 %v10659, 2147483648
    %v10680 = vxor.u32 %v10660, 2147483648
    %v10681 = vxor.u32 %v10661, 2147483648
    %v10682 = vmul.f32 %v10662, 1.442695
    %v10683 = vpow.pop %v10682
    %v10684 = vmul.f32 %v10663, 1.442695
    %v10685 = vpow.pop %v10684
    %v10686 = vmul.f32 %v10664, 1.442695
    %v10687 = vpow.pop %v10686
    %v10688 = vmul.f32 %v10665, 1.442695
    %v10689 = vpow.pop %v10688
    %v10690 = vmul.f32 %v10666, 1.442695
    %v10691 = vpow.pop %v10690
    %v10692 = vmul.f32 %v10667, 1.442695
    %v10693 = vpow.pop %v10692
    %v10694 = vmul.f32 %v10668, 1.442695
    %v10695 = vpow.pop %v10694
    %v10696 = vmul.f32 %v10669, 1.442695
    %v10697 = vpow.pop %v10696
    %v10698 = vmul.f32 %v10670, 1.442695
    %v10699 = vpow.pop %v10698
    %v10700 = vmul.f32 %v10671, 1.442695
    %v10701 = vpow.pop %v10700
    %v10702 = vmul.f32 %v10672, 1.442695
    %v10703 = vpow.pop %v10702
    %v10704 = vmul.f32 %v10673, 1.442695
    %v10705 = vpow.pop %v10704
    %v10706 = vmul.f32 %v10674, 1.442695
    %v10707 = vpow.pop %v10706
    %v10708 = vmul.f32 %v10675, 1.442695
    %v10709 = vpow.pop %v10708
    %v10710 = vmul.f32 %v10676, 1.442695
    %v10711 = vpow.pop %v10710
    %v10712 = vmul.f32 %v10677, 1.442695
    %v10713 = vpow.pop %v10712
    %v10714 = vmul.f32 %v10678, 1.442695
    %v10715 = vpow.pop %v10714
    %v10716 = vmul.f32 %v10679, 1.442695
    %v10717 = vpow.pop %v10716
    %v10718 = vmul.f32 %v10680, 1.442695
    %v10719 = vpow.pop %v10718
    %v10720 = vmul.f32 %v10681, 1.442695
    %v10721 = vpow.pop %v10720
    %v10722 = vadd.f32 %v10683, 1.0
    %v10723 = vadd.f32 %v10685, 1.0
    %v10724 = vadd.f32 %v10687, 1.0
    %v10725 = vadd.f32 %v10689, 1.0
    %v10726 = vadd.f32 %v10691, 1.0
    %v10727 = vadd.f32 %v10693, 1.0
    %v10728 = vadd.f32 %v10695, 1.0
    %v10729 = vadd.f32 %v10697, 1.0
    %v10730 = vadd.f32 %v10699, 1.0
    %v10731 = vadd.f32 %v10701, 1.0
    %v10732 = vadd.f32 %v10703, 1.0
    %v10733 = vadd.f32 %v10705, 1.0
    %v10734 = vadd.f32 %v10707, 1.0
    %v10735 = vadd.f32 %v10709, 1.0
    %v10736 = vadd.f32 %v10711, 1.0
    %v10737 = vadd.f32 %v10713, 1.0
    %v10738 = vadd.f32 %v10715, 1.0
    %v10739 = vadd.f32 %v10717, 1.0
    %v10740 = vadd.f32 %v10719, 1.0
    %v10741 = vadd.f32 %v10721, 1.0
    %v10742 = vrcp.pop %v10722
    %v10743 = vmul.f32 %v10722, %v10742
    %v10744 = vsub.f32 1.0, %v10743
    %v10745 = vmul.f32 %v10742, %v10744
    %v10746 = vadd.f32 %v10742, %v10745
    %vm10747 = vweird.f32 %v10722
    %vm10748 = vweird.f32 %v10742
    %vm10749 = vmor %vm10747, %vm10748
    %v10750 = vsel %vm10749, %v10742, %v10746
    %v10751 = vand.u32 2147483647, %v10722
    %vm10752 = vcmp.eq.f32.partialorder %v10751, 8.507059e+37
    %v10753 = vand.u32 %v10722, 2147483648
    %v10754 = vor.u32 1.1754944e-38, %v10753
    %v10755 = vsel %vm10752, %v10754, %v10750
    %v10756 = vmul.f32 1.0, %v10755
    %v10757 = vrcp.pop %v10723
    %v10758 = vmul.f32 %v10723, %v10757
    %v10759 = vsub.f32 1.0, %v10758
    %v10760 = vmul.f32 %v10757, %v10759
    %v10761 = vadd.f32 %v10757, %v10760
    %vm10762 = vweird.f32 %v10723
    %vm10763 = vweird.f32 %v10757
    %vm10764 = vmor %vm10762, %vm10763
    %v10765 = vsel %vm10764, %v10757, %v10761
    %v10766 = vand.u32 2147483647, %v10723
    %vm10767 = vcmp.eq.f32.partialorder %v10766, 8.507059e+37
    %v10768 = vand.u32 %v10723, 2147483648
    %v10769 = vor.u32 1.1754944e-38, %v10768
    %v10770 = vsel %vm10767, %v10769, %v10765
    %v10771 = vmul.f32 1.0, %v10770
    %v10772 = vrcp.pop %v10724
    %v10773 = vmul.f32 %v10724, %v10772
    %v10774 = vsub.f32 1.0, %v10773
    %v10775 = vmul.f32 %v10772, %v10774
    %v10776 = vadd.f32 %v10772, %v10775
    %vm10777 = vweird.f32 %v10724
    %vm10778 = vweird.f32 %v10772
    %vm10779 = vmor %vm10777, %vm10778
    %v10780 = vsel %vm10779, %v10772, %v10776
    %v10781 = vand.u32 2147483647, %v10724
    %vm10782 = vcmp.eq.f32.partialorder %v10781, 8.507059e+37
    %v10783 = vand.u32 %v10724, 2147483648
    %v10784 = vor.u32 1.1754944e-38, %v10783
    %v10785 = vsel %vm10782, %v10784, %v10780
    %v10786 = vmul.f32 1.0, %v10785
    %v10787 = vrcp.pop %v10725
    %v10788 = vmul.f32 %v10725, %v10787
    %v10789 = vsub.f32 1.0, %v10788
    %v10790 = vmul.f32 %v10787, %v10789
    %v10791 = vadd.f32 %v10787, %v10790
    %vm10792 = vweird.f32 %v10725
    %vm10793 = vweird.f32 %v10787
    %vm10794 = vmor %vm10792, %vm10793
    %v10795 = vsel %vm10794, %v10787, %v10791
    %v10796 = vand.u32 2147483647, %v10725
    %vm10797 = vcmp.eq.f32.partialorder %v10796, 8.507059e+37
    %v10798 = vand.u32 %v10725, 2147483648
    %v10799 = vor.u32 1.1754944e-38, %v10798
    %v10800 = vsel %vm10797, %v10799, %v10795
    %v10801 = vmul.f32 1.0, %v10800
    %v10802 = vrcp.pop %v10726
    %v10803 = vmul.f32 %v10726, %v10802
    %v10804 = vsub.f32 1.0, %v10803
    %v10805 = vmul.f32 %v10802, %v10804
    %v10806 = vadd.f32 %v10802, %v10805
    %vm10807 = vweird.f32 %v10726
    %vm10808 = vweird.f32 %v10802
    %vm10809 = vmor %vm10807, %vm10808
    %v10810 = vsel %vm10809, %v10802, %v10806
    %v10811 = vand.u32 2147483647, %v10726
    %vm10812 = vcmp.eq.f32.partialorder %v10811, 8.507059e+37
    %v10813 = vand.u32 %v10726, 2147483648
    %v10814 = vor.u32 1.1754944e-38, %v10813
    %v10815 = vsel %vm10812, %v10814, %v10810
    %v10816 = vmul.f32 1.0, %v10815
    %v10817 = vrcp.pop %v10727
    %v10818 = vmul.f32 %v10727, %v10817
    %v10819 = vsub.f32 1.0, %v10818
    %v10820 = vmul.f32 %v10817, %v10819
    %v10821 = vadd.f32 %v10817, %v10820
    %vm10822 = vweird.f32 %v10727
    %vm10823 = vweird.f32 %v10817
    %vm10824 = vmor %vm10822, %vm10823
    %v10825 = vsel %vm10824, %v10817, %v10821
    %v10826 = vand.u32 2147483647, %v10727
    %vm10827 = vcmp.eq.f32.partialorder %v10826, 8.507059e+37
    %v10828 = vand.u32 %v10727, 2147483648
    %v10829 = vor.u32 1.1754944e-38, %v10828
    %v10830 = vsel %vm10827, %v10829, %v10825
    %v10831 = vmul.f32 1.0, %v10830
    %v10832 = vrcp.pop %v10728
    %v10833 = vmul.f32 %v10728, %v10832
    %v10834 = vsub.f32 1.0, %v10833
    %v10835 = vmul.f32 %v10832, %v10834
    %v10836 = vadd.f32 %v10832, %v10835
    %vm10837 = vweird.f32 %v10728
    %vm10838 = vweird.f32 %v10832
    %vm10839 = vmor %vm10837, %vm10838
    %v10840 = vsel %vm10839, %v10832, %v10836
    %v10841 = vand.u32 2147483647, %v10728
    %vm10842 = vcmp.eq.f32.partialorder %v10841, 8.507059e+37
    %v10843 = vand.u32 %v10728, 2147483648
    %v10844 = vor.u32 1.1754944e-38, %v10843
    %v10845 = vsel %vm10842, %v10844, %v10840
    %v10846 = vmul.f32 1.0, %v10845
    %v10847 = vrcp.pop %v10729
    %v10848 = vmul.f32 %v10729, %v10847
    %v10849 = vsub.f32 1.0, %v10848
    %v10850 = vmul.f32 %v10847, %v10849
    %v10851 = vadd.f32 %v10847, %v10850
    %vm10852 = vweird.f32 %v10729
    %vm10853 = vweird.f32 %v10847
    %vm10854 = vmor %vm10852, %vm10853
    %v10855 = vsel %vm10854, %v10847, %v10851
    %v10856 = vand.u32 2147483647, %v10729
    %vm10857 = vcmp.eq.f32.partialorder %v10856, 8.507059e+37
    %v10858 = vand.u32 %v10729, 2147483648
    %v10859 = vor.u32 1.1754944e-38, %v10858
    %v10860 = vsel %vm10857, %v10859, %v10855
    %v10861 = vmul.f32 1.0, %v10860
    %v10862 = vrcp.pop %v10730
    %v10863 = vmul.f32 %v10730, %v10862
    %v10864 = vsub.f32 1.0, %v10863
    %v10865 = vmul.f32 %v10862, %v10864
    %v10866 = vadd.f32 %v10862, %v10865
    %vm10867 = vweird.f32 %v10730
    %vm10868 = vweird.f32 %v10862
    %vm10869 = vmor %vm10867, %vm10868
    %v10870 = vsel %vm10869, %v10862, %v10866
    %v10871 = vand.u32 2147483647, %v10730
    %vm10872 = vcmp.eq.f32.partialorder %v10871, 8.507059e+37
    %v10873 = vand.u32 %v10730, 2147483648
    %v10874 = vor.u32 1.1754944e-38, %v10873
    %v10875 = vsel %vm10872, %v10874, %v10870
    %v10876 = vmul.f32 1.0, %v10875
    %v10877 = vrcp.pop %v10731
    %v10878 = vmul.f32 %v10731, %v10877
    %v10879 = vsub.f32 1.0, %v10878
    %v10880 = vmul.f32 %v10877, %v10879
    %v10881 = vadd.f32 %v10877, %v10880
    %vm10882 = vweird.f32 %v10731
    %vm10883 = vweird.f32 %v10877
    %vm10884 = vmor %vm10882, %vm10883
    %v10885 = vsel %vm10884, %v10877, %v10881
    %v10886 = vand.u32 2147483647, %v10731
    %vm10887 = vcmp.eq.f32.partialorder %v10886, 8.507059e+37
    %v10888 = vand.u32 %v10731, 2147483648
    %v10889 = vor.u32 1.1754944e-38, %v10888
    %v10890 = vsel %vm10887, %v10889, %v10885
    %v10891 = vmul.f32 1.0, %v10890
    %v10892 = vrcp.pop %v10732
    %v10893 = vmul.f32 %v10732, %v10892
    %v10894 = vsub.f32 1.0, %v10893
    %v10895 = vmul.f32 %v10892, %v10894
    %v10896 = vadd.f32 %v10892, %v10895
    %vm10897 = vweird.f32 %v10732
    %vm10898 = vweird.f32 %v10892
    %vm10899 = vmor %vm10897, %vm10898
    %v10900 = vsel %vm10899, %v10892, %v10896
    %v10901 = vand.u32 2147483647, %v10732
    %vm10902 = vcmp.eq.f32.partialorder %v10901, 8.507059e+37
    %v10903 = vand.u32 %v10732, 2147483648
    %v10904 = vor.u32 1.1754944e-38, %v10903
    %v10905 = vsel %vm10902, %v10904, %v10900
    %v10906 = vmul.f32 1.0, %v10905
    %v10907 = vrcp.pop %v10733
    %v10908 = vmul.f32 %v10733, %v10907
    %v10909 = vsub.f32 1.0, %v10908
    %v10910 = vmul.f32 %v10907, %v10909
    %v10911 = vadd.f32 %v10907, %v10910
    %vm10912 = vweird.f32 %v10733
    %vm10913 = vweird.f32 %v10907
    %vm10914 = vmor %vm10912, %vm10913
    %v10915 = vsel %vm10914, %v10907, %v10911
    %v10916 = vand.u32 2147483647, %v10733
    %vm10917 = vcmp.eq.f32.partialorder %v10916, 8.507059e+37
    %v10918 = vand.u32 %v10733, 2147483648
    %v10919 = vor.u32 1.1754944e-38, %v10918
    %v10920 = vsel %vm10917, %v10919, %v10915
    %v10921 = vmul.f32 1.0, %v10920
    %v10922 = vrcp.pop %v10734
    %v10923 = vmul.f32 %v10734, %v10922
    %v10924 = vsub.f32 1.0, %v10923
    %v10925 = vmul.f32 %v10922, %v10924
    %v10926 = vadd.f32 %v10922, %v10925
    %vm10927 = vweird.f32 %v10734
    %vm10928 = vweird.f32 %v10922
    %vm10929 = vmor %vm10927, %vm10928
    %v10930 = vsel %vm10929, %v10922, %v10926
    %v10931 = vand.u32 2147483647, %v10734
    %vm10932 = vcmp.eq.f32.partialorder %v10931, 8.507059e+37
    %v10933 = vand.u32 %v10734, 2147483648
    %v10934 = vor.u32 1.1754944e-38, %v10933
    %v10935 = vsel %vm10932, %v10934, %v10930
    %v10936 = vmul.f32 1.0, %v10935
    %v10937 = vrcp.pop %v10735
    %v10938 = vmul.f32 %v10735, %v10937
    %v10939 = vsub.f32 1.0, %v10938
    %v10940 = vmul.f32 %v10937, %v10939
    %v10941 = vadd.f32 %v10937, %v10940
    %vm10942 = vweird.f32 %v10735
    %vm10943 = vweird.f32 %v10937
    %vm10944 = vmor %vm10942, %vm10943
    %v10945 = vsel %vm10944, %v10937, %v10941
    %v10946 = vand.u32 2147483647, %v10735
    %vm10947 = vcmp.eq.f32.partialorder %v10946, 8.507059e+37
    %v10948 = vand.u32 %v10735, 2147483648
    %v10949 = vor.u32 1.1754944e-38, %v10948
    %v10950 = vsel %vm10947, %v10949, %v10945
    %v10951 = vmul.f32 1.0, %v10950
    %v10952 = vrcp.pop %v10736
    %v10953 = vmul.f32 %v10736, %v10952
    %v10954 = vsub.f32 1.0, %v10953
    %v10955 = vmul.f32 %v10952, %v10954
    %v10956 = vadd.f32 %v10952, %v10955
    %vm10957 = vweird.f32 %v10736
    %vm10958 = vweird.f32 %v10952
    %vm10959 = vmor %vm10957, %vm10958
    %v10960 = vsel %vm10959, %v10952, %v10956
    %v10961 = vand.u32 2147483647, %v10736
    %vm10962 = vcmp.eq.f32.partialorder %v10961, 8.507059e+37
    %v10963 = vand.u32 %v10736, 2147483648
    %v10964 = vor.u32 1.1754944e-38, %v10963
    %v10965 = vsel %vm10962, %v10964, %v10960
    %v10966 = vmul.f32 1.0, %v10965
    %v10967 = vrcp.pop %v10737
    %v10968 = vmul.f32 %v10737, %v10967
    %v10969 = vsub.f32 1.0, %v10968
    %v10970 = vmul.f32 %v10967, %v10969
    %v10971 = vadd.f32 %v10967, %v10970
    %vm10972 = vweird.f32 %v10737
    %vm10973 = vweird.f32 %v10967
    %vm10974 = vmor %vm10972, %vm10973
    %v10975 = vsel %vm10974, %v10967, %v10971
    %v10976 = vand.u32 2147483647, %v10737
    %vm10977 = vcmp.eq.f32.partialorder %v10976, 8.507059e+37
    %v10978 = vand.u32 %v10737, 2147483648
    %v10979 = vor.u32 1.1754944e-38, %v10978
    %v10980 = vsel %vm10977, %v10979, %v10975
    %v10981 = vmul.f32 1.0, %v10980
    %v10982 = vrcp.pop %v10738
    %v10983 = vmul.f32 %v10738, %v10982
    %v10984 = vsub.f32 1.0, %v10983
    %v10985 = vmul.f32 %v10982, %v10984
    %v10986 = vadd.f32 %v10982, %v10985
    %vm10987 = vweird.f32 %v10738
    %vm10988 = vweird.f32 %v10982
    %vm10989 = vmor %vm10987, %vm10988
    %v10990 = vsel %vm10989, %v10982, %v10986
    %v10991 = vand.u32 2147483647, %v10738
    %vm10992 = vcmp.eq.f32.partialorder %v10991, 8.507059e+37
    %v10993 = vand.u32 %v10738, 2147483648
    %v10994 = vor.u32 1.1754944e-38, %v10993
    %v10995 = vsel %vm10992, %v10994, %v10990
    %v10996 = vmul.f32 1.0, %v10995
    %v10997 = vrcp.pop %v10739
    %v10998 = vmul.f32 %v10739, %v10997
    %v10999 = vsub.f32 1.0, %v10998
    %v11000 = vmul.f32 %v10997, %v10999
    %v11001 = vadd.f32 %v10997, %v11000
    %vm11002 = vweird.f32 %v10739
    %vm11003 = vweird.f32 %v10997
    %vm11004 = vmor %vm11002, %vm11003
    %v11005 = vsel %vm11004, %v10997, %v11001
    %v11006 = vand.u32 2147483647, %v10739
    %vm11007 = vcmp.eq.f32.partialorder %v11006, 8.507059e+37
    %v11008 = vand.u32 %v10739, 2147483648
    %v11009 = vor.u32 1.1754944e-38, %v11008
    %v11010 = vsel %vm11007, %v11009, %v11005
    %v11011 = vmul.f32 1.0, %v11010
    %v11012 = vrcp.pop %v10740
    %v11013 = vmul.f32 %v10740, %v11012
    %v11014 = vsub.f32 1.0, %v11013
    %v11015 = vmul.f32 %v11012, %v11014
    %v11016 = vadd.f32 %v11012, %v11015
    %vm11017 = vweird.f32 %v10740
    %vm11018 = vweird.f32 %v11012
    %vm11019 = vmor %vm11017, %vm11018
    %v11020 = vsel %vm11019, %v11012, %v11016
    %v11021 = vand.u32 2147483647, %v10740
    %vm11022 = vcmp.eq.f32.partialorder %v11021, 8.507059e+37
    %v11023 = vand.u32 %v10740, 2147483648
    %v11024 = vor.u32 1.1754944e-38, %v11023
    %v11025 = vsel %vm11022, %v11024, %v11020
    %v11026 = vmul.f32 1.0, %v11025
    %v11027 = vrcp.pop %v10741
    %v11028 = vmul.f32 %v10741, %v11027
    %v11029 = vsub.f32 1.0, %v11028
    %v11030 = vmul.f32 %v11027, %v11029
    %v11031 = vadd.f32 %v11027, %v11030
    %vm11032 = vweird.f32 %v10741
    %vm11033 = vweird.f32 %v11027
    %vm11034 = vmor %vm11032, %vm11033
    %v11035 = vsel %vm11034, %v11027, %v11031
    %v11036 = vand.u32 2147483647, %v10741
    %vm11037 = vcmp.eq.f32.partialorder %v11036, 8.507059e+37
    %v11038 = vand.u32 %v10741, 2147483648
    %v11039 = vor.u32 1.1754944e-38, %v11038
    %v11040 = vsel %vm11037, %v11039, %v11035
    %v11041 = vmul.f32 1.0, %v11040
    %v11042 = vmul.f32 %v10584, %v10756
    %v11043 = vmul.f32 %v10618, %v10771
    %v11044 = vmul.f32 %v10586, %v10786
    %v11045 = vmul.f32 %v10620, %v10801
    %v11046 = vmul.f32 %v10589, %v10816
    %v11047 = vmul.f32 %v10623, %v10831
    %v11048 = vmul.f32 %v10591, %v10846
    %v11049 = vmul.f32 %v10625, %v10861
    %v11050 = vmul.f32 %v10594, %v10876
    %v11051 = vmul.f32 %v10628, %v10891
    %v11052 = vmul.f32 %v10596, %v10906
    %v11053 = vmul.f32 %v10630, %v10921
    %v11054 = vmul.f32 %v10599, %v10936
    %v11055 = vmul.f32 %v10633, %v10951
    %v11056 = vmul.f32 %v10601, %v10966
    %v11057 = vmul.f32 %v10635, %v10981
    %v11058 = vmul.f32 %v10604, %v10996
    %v11059 = vmul.f32 %v10638, %v11011
    %v11060 = vmul.f32 %v10606, %v11026
    %v11061 = vmul.f32 %v10640, %v11041
    %v11062 = vpack.c.bf16 %v11044, %v11042
    %v11063 = vpack.c.bf16 %v11045, %v11043
    %v11064 = vpack.c.bf16 %v11048, %v11046
    %v11065 = vpack.c.bf16 %v11049, %v11047
    %v11066 = vpack.c.bf16 %v11052, %v11050
    %v11067 = vpack.c.bf16 %v11053, %v11051
    %v11068 = vpack.c.bf16 %v11056, %v11054
    %v11069 = vpack.c.bf16 %v11057, %v11055
    %v11070 = vpack.c.bf16 %v11060, %v11058
    %v11071 = vpack.c.bf16 %v11061, %v11059
    %s11072 = scalar_lea.vmem %s19, 128
    %v11073 = vld [vmem:[%s11072] sm:$0xf]
    %v11074 = vld [vmem:[%s11072 + $0x4] sm:$0xf]
    %v11075 = vld [vmem:[%s11072 + $0x8] sm:$0xf]
    %v11076 = vld [vmem:[%s11072 + $0xc] sm:$0xf]
    %v11077 = vld [vmem:[%s11072 + $0x10] sm:$0xf]
    %v11078 = vld [vmem:[%s11072 + $0x14] sm:$0xf]
    %v11079 = vld [vmem:[%s11072 + $0x18] sm:$0xf]
    %v11080 = vld [vmem:[%s11072 + $0x1c] sm:$0xf]
    %v11081 = vld [vmem:[%s11072 + $0x20] sm:$0xf]
    %v11082 = vld [vmem:[%s11072 + $0x24] sm:$0xf]
    %v11083 = vld [vmem:[%s11072 + $0x28] sm:$0xf]
    %v11084 = vld [vmem:[%s11072 + $0x2c] sm:$0xf]
    %v11085 = vld [vmem:[%s11072 + $0x30] sm:$0xf]
    %v11086 = vld [vmem:[%s11072 + $0x34] sm:$0xf]
    %v11087 = vld [vmem:[%s11072 + $0x38] sm:$0xf]
    %v11088 = vld [vmem:[%s11072 + $0x3c] sm:$0xf]
    %v11089 = vld [vmem:[%s11072 + $0x40] sm:$0xf]
    %v11090 = vld [vmem:[%s11072 + $0x44] sm:$0xf]
    %v11091 = vld [vmem:[%s11072 + $0x48] sm:$0xf]
    %v11092 = vld [vmem:[%s11072 + $0x4c] sm:$0xf]
    %v11093 = vld [vmem:[%s11072 + $0x50] sm:$0xf]
    %v11094 = vld [vmem:[%s11072 + $0x54] sm:$0xf]
    %v11095 = vld [vmem:[%s11072 + $0x58] sm:$0xf]
    %v11096 = vld [vmem:[%s11072 + $0x5c] sm:$0xf]
    %v11097 = vld [vmem:[%s11072 + $0x60] sm:$0xf]
    %v11098 = vld [vmem:[%s11072 + $0x64] sm:$0xf]
    %v11099 = vld [vmem:[%s11072 + $0x68] sm:$0xf]
    %v11100 = vld [vmem:[%s11072 + $0x6c] sm:$0xf]
    %v11101 = vld [vmem:[%s11072 + $0x70] sm:$0xf]
    %v11102 = vld [vmem:[%s11072 + $0x74] sm:$0xf]
    %v11103 = vld [vmem:[%s11072 + $0x78] sm:$0xf]
    %v11104 = vld [vmem:[%s11072 + $0x7c] sm:$0xf]
    %s11105 = scalar_lea.vmem %s20, 1
    %v11106 = vld [vmem:[%s11105] sm:$0x1]
    %v11108 = vperm.slane %v11106, 0
    %v11142 = vunpack.c.l.b16 %v11073
    %v11143 = vunpack.c.l.b16 %v11074
    %v11144 = vunpack.c.l.b16 %v11075
    %v11145 = vunpack.c.l.b16 %v11076
    %v11146 = vunpack.c.l.b16 %v11077
    %v11147 = vunpack.c.l.b16 %v11078
    %v11148 = vunpack.c.l.b16 %v11079
    %v11149 = vunpack.c.l.b16 %v11080
    %v11150 = vunpack.c.l.b16 %v11081
    %v11151 = vunpack.c.l.b16 %v11082
    %v11152 = vunpack.c.l.b16 %v11083
    %v11153 = vunpack.c.l.b16 %v11084
    %v11154 = vunpack.c.l.b16 %v11085
    %v11155 = vunpack.c.l.b16 %v11086
    %v11156 = vunpack.c.l.b16 %v11087
    %v11157 = vunpack.c.l.b16 %v11088
    %v11158 = vunpack.c.l.b16 %v11089
    %v11159 = vunpack.c.l.b16 %v11090
    %v11160 = vunpack.c.l.b16 %v11091
    %v11161 = vunpack.c.l.b16 %v11092
    %v11162 = vunpack.c.l.b16 %v11093
    %v11163 = vunpack.c.l.b16 %v11094
    %v11164 = vunpack.c.l.b16 %v11095
    %v11165 = vunpack.c.l.b16 %v11096
    %v11166 = vunpack.c.l.b16 %v11097
    %v11167 = vunpack.c.l.b16 %v11098
    %v11168 = vunpack.c.l.b16 %v11099
    %v11169 = vunpack.c.l.b16 %v11100
    %v11170 = vunpack.c.l.b16 %v11101
    %v11171 = vunpack.c.l.b16 %v11102
    %v11172 = vunpack.c.l.b16 %v11103
    %v11173 = vunpack.c.l.b16 %v11104
    %v11174 = vpack.c.b16 %v11143, %v11142
    %v11175 = vpack.c.b16 %v11145, %v11144
    %v11176 = vpack.c.b16 %v11147, %v11146
    %v11177 = vpack.c.b16 %v11149, %v11148
    %v11178 = vpack.c.b16 %v11151, %v11150
    %v11179 = vpack.c.b16 %v11153, %v11152
    %v11180 = vpack.c.b16 %v11155, %v11154
    %v11181 = vpack.c.b16 %v11157, %v11156
    %v11182 = vpack.c.b16 %v11159, %v11158
    %v11183 = vpack.c.b16 %v11161, %v11160
    %v11184 = vpack.c.b16 %v11163, %v11162
    %v11185 = vpack.c.b16 %v11165, %v11164
    %v11186 = vpack.c.b16 %v11167, %v11166
    %v11187 = vpack.c.b16 %v11169, %v11168
    %v11188 = vpack.c.b16 %v11171, %v11170
    %v11189 = vpack.c.b16 %v11173, %v11172
    %11206 = vmatpush.bf16.msra.mxu0 %v11181
    %11207 = vmatpush.bf16.msra.mxu0 %v11180
    %11208 = vmatpush.bf16.msra.mxu0 %v11179
    %11209 = vmatpush.bf16.msra.mxu0 %v11178
    %11210 = vmatpush.bf16.msra.mxu0 %v11177
    %11211 = vmatpush.bf16.msra.mxu0 %v11176
    %11212 = vmatpush.bf16.msra.mxu0 %v11175
    %11213 = vmatpush.bf16.msra.mxu0 %v11174
    %11214 = vmatmul.bf16.gmra.mxu0 %v11062
    %v11215 = vpop.f32.mrf.mxu0
    %v11216 = vadd.f32 %v11108, %v11215
    %v11217 = vpop.f32.mrf.mxu0
    %v11218 = vadd.f32 %v11108, %v11217
    %11219 = vmatmul.bf16.gmra.mxu0 %v11064
    %v11220 = vpop.f32.mrf.mxu0
    %v11221 = vadd.f32 %v11108, %v11220
    %v11222 = vpop.f32.mrf.mxu0
    %v11223 = vadd.f32 %v11108, %v11222
    %11224 = vmatmul.bf16.gmra.mxu0 %v11066
    %v11225 = vpop.f32.mrf.mxu0
    %v11226 = vadd.f32 %v11108, %v11225
    %v11227 = vpop.f32.mrf.mxu0
    %v11228 = vadd.f32 %v11108, %v11227
    %11229 = vmatmul.bf16.gmra.mxu0 %v11068
    %v11230 = vpop.f32.mrf.mxu0
    %v11231 = vadd.f32 %v11108, %v11230
    %v11232 = vpop.f32.mrf.mxu0
    %v11233 = vadd.f32 %v11108, %v11232
    %11234 = vmatmul.bf16.gmra.mxu0 %v11070
    %v11235 = vpop.f32.mrf.mxu0
    %v11236 = vadd.f32 %v11108, %v11235
    %v11237 = vpop.f32.mrf.mxu0
    %v11238 = vadd.f32 %v11108, %v11237
    %11239 = vdwg.mxu0
    %11240 = vmatpush.bf16.msra.mxu0 %v11189
    %11241 = vmatpush.bf16.msra.mxu0 %v11188
    %11242 = vmatpush.bf16.msra.mxu0 %v11187
    %11243 = vmatpush.bf16.msra.mxu0 %v11186
    %11244 = vmatpush.bf16.msra.mxu0 %v11185
    %11245 = vmatpush.bf16.msra.mxu0 %v11184
    %11246 = vmatpush.bf16.msra.mxu0 %v11183
    %11247 = vmatpush.bf16.msra.mxu0 %v11182
    %11248 = vmatmul.bf16.gmra.mxu0 %v11063
    %v11249 = vpop.f32.mrf.mxu0
    %v11250 = vadd.f32 %v11216, %v11249
    %v11251 = vpop.f32.mrf.mxu0
    %v11252 = vadd.f32 %v11218, %v11251
    %11253 = vmatmul.bf16.gmra.mxu0 %v11065
    %v11254 = vpop.f32.mrf.mxu0
    %v11255 = vadd.f32 %v11221, %v11254
    %v11256 = vpop.f32.mrf.mxu0
    %v11257 = vadd.f32 %v11223, %v11256
    %11258 = vmatmul.bf16.gmra.mxu0 %v11067
    %v11259 = vpop.f32.mrf.mxu0
    %v11260 = vadd.f32 %v11226, %v11259
    %v11261 = vpop.f32.mrf.mxu0
    %v11262 = vadd.f32 %v11228, %v11261
    %11263 = vmatmul.bf16.gmra.mxu0 %v11069
    %v11264 = vpop.f32.mrf.mxu0
    %v11265 = vadd.f32 %v11231, %v11264
    %v11266 = vpop.f32.mrf.mxu0
    %v11267 = vadd.f32 %v11233, %v11266
    %11268 = vmatmul.bf16.gmra.mxu0 %v11071
    %v11269 = vpop.f32.mrf.mxu0
    %v11270 = vadd.f32 %v11236, %v11269
    %v11271 = vpop.f32.mrf.mxu0
    %v11272 = vadd.f32 %v11238, %v11271
    %11273 = vdwg.mxu0
    %v11274 = vadd.f32 %v10225, %v11250
    %v11275 = vadd.f32 %v10226, %v11252
    %v11276 = vadd.f32 %v10227, %v11255
    %v11277 = vadd.f32 %v10228, %v11257
    %v11278 = vadd.f32 %v10229, %v11260
    %v11279 = vadd.f32 %v10230, %v11262
    %v11280 = vadd.f32 %v10231, %v11265
    %v11281 = vadd.f32 %v10232, %v11267
    %v11282 = vadd.f32 %v10233, %v11270
    %v11283 = vadd.f32 %v10234, %v11272
    %11284 = vst [vmem:[#allocation5] sm:$0xff] %v11274
    %11285 = vst [vmem:[#allocation5 + $0x8] sm:$0xff] %v11275
    %11286 = vst [vmem:[#allocation5 + $0x10] sm:$0xff] %v11276
    %11287 = vst [vmem:[#allocation5 + $0x18] sm:$0xff] %v11277
    %11288 = vst [vmem:[#allocation5 + $0x20] sm:$0xff] %v11278
    %11289 = vst [vmem:[#allocation5 + $0x28] sm:$0xff] %v11279
    %11290 = vst [vmem:[#allocation5 + $0x30] sm:$0xff] %v11280
    %11291 = vst [vmem:[#allocation5 + $0x38] sm:$0xff] %v11281
    %11292 = vst [vmem:[#allocation5 + $0x40] sm:$0xff] %v11282
    %11293 = vst [vmem:[#allocation5 + $0x48] sm:$0xff] %v11283
    // Predicated region
    $region90: #{tpu_custom_call.1} parent=1 // pred_check
      _
    $region91: #{tpu_custom_call.1} parent=1 // pred_check_branch
      %11295 = sbr.rel (0) target = $region93
    $region92: #{tpu_custom_call.1} parent=1 // pred_region
      %11297 = vsyncadd [#allocation4], 0
      %s11298 = sshll.u32 [#allocation5], 4
      %s11299 = int_to_ptr.vmem [resolvable:$true] %s11298
      %s11300 = sshll.u32 %s21, 4
      %s11301 = int_to_ptr.hbm [resolvable:$true] %s11300
      %11306 = dma.vmem_to_hbm [thread:$0]  %s11299, 1280, %s11301, [#allocation4], 128, 128, 8
    $region93: #{tpu_custom_call.1} parent=1 // pred_fallthru
      _
    // Predicated region
    $region94: #{tpu_custom_call.1} parent=1 // pred_check
      _
    $region95: #{tpu_custom_call.1} parent=1 // pred_check_branch
      %11308 = sbr.rel (0) target = $region97
    $region96: #{tpu_custom_call.1} parent=1 // pred_region
      %11310 = dma.done [#allocation4], 1280
    $region97: #{tpu_custom_call.1} parent=1 // pred_fallthru
      _
    %11311 = vsyncpa [#allocation3], 1
    %11312 = vsyncpa [#allocation4], 1

</llo_original>
